<compile_context>
chip_gen: v7x
topology: tpu7x:2x2x1
jax: 0.10.0
libtpu: 0.0.40
codegen_flags: <defaults>
</compile_context>

<pallas_src>
import functools
import math

import jax
import jax.numpy as jnp
from jax.experimental import pallas as pl
from jax.experimental.pallas import tpu as pltpu

LN_EPS = 1e-12            # ConvNextStem(..., ln_eps=1e-12) module default
USE_BF16_MATMUL = True    # bf16 MXU operands, f32 accumulation
MLP_TILE_ROWS = 512       # row tile for the fused ConvNext MLP kernel
PROJ_TILE_ROWS = 256      # row tile for the fused projection + LN kernel


def _mxu_dtype():
    return jnp.bfloat16 if USE_BF16_MATMUL else jnp.float32


# ----------------------------- small helpers ---------------------------------

def _rep_spec(shape):
    """BlockSpec for an array that is identical (fully resident) for every grid step."""
    nd = len(shape)
    return pl.BlockSpec(tuple(int(s) for s in shape), lambda *_: (0,) * nd)


def _cp():
    # NOTE: for large production shapes also set vmem_limit_bytes here.
    return pltpu.CompilerParams(dimension_semantics=("parallel",))


def _pad_rows(x, tile):
    """Zero-pad the leading dim up to a multiple of `tile` (no-op if it divides)."""
    m = x.shape[0]
    mp = -(-m // tile) * tile
    if mp != m:
        x = jnp.pad(x, ((0, mp - m),) + ((0, 0),) * (x.ndim - 1))
    return x


def _erf(x):
    # Abramowitz & Stegun 7.1.26 rational approximation (|err| < 1.5e-7); only
    # exp/mul/add needed inside Mosaic.  torch.nn.GELU() is erf-based.
    a1, a2, a3, a4, a5 = (0.254829592, -0.284496736, 1.421413741,
                          -1.453152027, 1.061405429)
    p = 0.3275911
    s = jnp.where(x >= 0.0, 1.0, -1.0)
    ax = jnp.abs(x)
    t = 1.0 / (1.0 + p * ax)
    poly = ((((a5 * t + a4) * t + a3) * t + a2) * t + a1) * t
    return s * (1.0 - poly * jnp.exp(-ax * ax))


def _gelu(x):
    return 0.5 * x * (1.0 + _erf(x * (1.0 / math.sqrt(2.0))))


# ----------------------------- 3x3 conv (+bias+GELU) ---------------------------

def _conv3x3_kernel(x_ref, w_ref, b_ref, o_ref, *, stride, cdt):
    # x_ref: [1, sh*sw, Hq, Wq, Cin]  phase-split, zero-padded input (one batch)
    # w_ref: [3, 3, Cin, Cout];  b_ref: [1, Cout];  o_ref: [1, Ho*Wo, Cout]
    sh, sw = stride
    _, hw, cout = o_ref.shape
    cin = x_ref.shape[-1]
    ho = hw // _CONV_WO[id(o_ref)] if False else None  # (unused; shapes passed below)
    del ho
    ho, wo = _conv_out_dims(x_ref.shape, stride)
    acc = jnp.zeros((ho * wo, cout), jnp.float32)
    for dh in range(3):
        for dw in range(3):
            phase = (dh % sh) * sw + (dw % sw)
            tap = x_ref[0, phase, pl.ds(dh // sh, ho), pl.ds(dw // sw, wo), :]
            tap = tap.reshape(ho * wo, cin)
            w_k = w_ref[dh, dw]                               # [Cin, Cout]
            if cin == 1:
                # K=1: keep the tiny conv1 off the MXU (VPU broadcast-FMA).
                acc = acc + tap.astype(jnp.float32) * w_k.astype(jnp.float32)
            else:
                acc = acc + jnp.dot(tap.astype(cdt), w_k.astype(cdt),
                                    preferred_element_type=jnp.float32)
    acc = _gelu(acc + b_ref[...])
    o_ref[0] = acc.astype(o_ref.dtype)


_CONV_WO = {}  # (kept trivial; output dims are derived from the padded input below)


def _conv_out_dims(x_block_shape, stride):
    # padded/phase-split block: [1, sh*sw, Hq, Wq, Cin]; Ho = Hq - 2//sh, Wo = Wq - 2//sw
    sh, sw = stride
    hq, wq = x_block_shape[2], x_block_shape[3]
    return hq - (2 // sh), wq - (2 // sw)


def conv3x3_gelu(x, w, b, stride):
    """3x3 conv, padding=1, fused bias + exact GELU.
    x: [B, H, W, Cin]; w: [3, 3, Cin, Cout]; b: [Cout] -> [B, Ho, Wo, Cout]."""
    B, H, W, Cin = x.shape
    Cout = w.shape[-1]
    sh, sw = stride
    Ho = (H - 1) // sh + 1
    Wo = (W - 1) // sw + 1
    Hq = -(-(H + 2) // sh)
    Wq = -(-(W + 2) // sw)
    # torch padding=1, plus right-pad so the strided phase split is exact.
    # pad + space-to-depth fuse into a single XLA pass; no 9x im2col in HBM.
    xp = jnp.pad(x, ((0, 0), (1, Hq * sh - H - 1), (1, Wq * sw - W - 1), (0, 0)))
    xs = (xp.reshape(B, Hq, sh, Wq, sw, Cin)
            .transpose(0, 2, 4, 1, 3, 5)
            .reshape(B, sh * sw, Hq, Wq, Cin))
    # sanity: derived output dims must match
    assert _conv_out_dims((1, sh * sw, Hq, Wq, Cin), stride) == (Ho + (Hq - (2 // sh) - Ho), Wo + (Wq - (2 // sw) - Wo)) or True
    ho_k, wo_k = _conv_out_dims((1, sh * sw, Hq, Wq, Cin), stride)

    kern = functools.partial(_conv3x3_kernel, stride=stride, cdt=_mxu_dtype())
    out = pl.pallas_call(
        kern,
        grid=(B,),
        in_specs=[
            pl.BlockSpec((1, sh * sw, Hq, Wq, Cin), lambda bi: (bi, 0, 0, 0, 0)),
            _rep_spec((3, 3, Cin, Cout)),
            _rep_spec((1, Cout)),
        ],
        out_specs=pl.BlockSpec((1, ho_k * wo_k, Cout), lambda bi: (bi, 0, 0)),
        out_shape=jax.ShapeDtypeStruct((B, ho_k * wo_k, Cout), jnp.float32),
        compiler_params=_cp(),
    )(xs, w, b.reshape(1, Cout))
    # ho_k/wo_k may exceed Ho/Wo only via the stride-alignment pad; keep valid rows.
    out = out.reshape(B, ho_k, wo_k, Cout)[:, :Ho, :Wo, :]
    return out


# ----------------------------- depthwise 7x7 -----------------------------------

def _dwconv7_kernel(x_ref, w_ref, b_ref, o_ref):
    # x_ref: [1, Ho+6, Wo+6, C] zero-padded; w_ref: [7, 7, 1, C]; b_ref: [1, C]
    _, ho, wo, c = o_ref.shape
    w_all = w_ref[...].astype(jnp.float32)           # resident (7,7,1,C)
    bias = b_ref[...].astype(jnp.float32)             # (1, C)

    @pl.loop(0, ho)
    def _row(h):
        acc = jnp.zeros((wo, c), jnp.float32)
        for dh in range(7):                            # unrolled 49-tap depthwise conv
            for dw in range(7):
                tap = x_ref[0, h + dh, pl.ds(dw, wo), :].astype(jnp.float32)
                acc = acc + tap * w_all[dh, dw]
        o_ref[0, h] = (acc + bias).astype(o_ref.dtype)


def depthwise_conv7(x, w, b):
    """Depthwise 7x7, padding=3 (same). x: [B,H,W,C]; w: [7,7,C]; b: [C]."""
    B, H, W, C = x.shape
    # TODO(synk): handle the halo in-kernel (VMEM scratch) to drop this HBM pad pass.
    xp = jnp.pad(x, ((0, 0), (3, 3), (3, 3), (0, 0)))
    return pl.pallas_call(
        _dwconv7_kernel,
        grid=(B,),
        in_specs=[
            pl.BlockSpec((1, H + 6, W + 6, C), lambda bi: (bi, 0, 0, 0)),
            _rep_spec((7, 7, 1, C)),
            _rep_spec((1, C)),
        ],
        out_specs=pl.BlockSpec((1, H, W, C), lambda bi: (bi, 0, 0, 0)),
        out_shape=jax.ShapeDtypeStruct((B, H, W, C), jnp.float32),
        compiler_params=_cp(),
    )(xp, w.reshape(7, 7, 1, C), b.reshape(1, C))


# ------------------- fused channel-LN -> pw1+GELU -> pw2 -> +residual ----------

def _convnext_mlp_kernel(x_ref, res_ref, g_ref, b_ref, w1_ref, b1_ref,
                         w2_ref, b2_ref, o_ref, *, eps, cdt):
    x = x_ref[...].astype(jnp.float32)
    mean = jnp.mean(x, axis=-1, keepdims=True)
    cen = x - mean
    var = jnp.mean(cen * cen, axis=-1, keepdims=True)
    y = cen * jax.lax.rsqrt(var + eps)
    y = y * g_ref[...] + b_ref[...]
    h = jnp.dot(y.astype(cdt), w1_ref[...], preferred_element_type=jnp.float32)
    h = _gelu(h + b1_ref[...])                          # [tm, 4C] stays in VMEM only
    o = jnp.dot(h.astype(cdt), w2_ref[...], preferred_element_type=jnp.float32)
    o = o + b2_ref[...] + res_ref[...].astype(jnp.float32)
    o_ref[...] = o.astype(o_ref.dtype)


def convnext_mlp(x, res, ln_g, ln_b, w1, b1, w2, b2, eps):
    M, C = x.shape
    E = w1.shape[1]
    tm = M if M <= MLP_TILE_ROWS else MLP_TILE_ROWS
    xp = _pad_rows(x, tm)
    rp = _pad_rows(res, tm)
    Mp = xp.shape[0]
    cdt = _mxu_dtype()
    row = pl.BlockSpec((tm, C), lambda i: (i, 0))
    out = pl.pallas_call(
        functools.partial(_convnext_mlp_kernel, eps=eps, cdt=cdt),
        grid=(Mp // tm,),
        in_specs=[row, row,
                  _rep_spec((1, C)), _rep_spec((1, C)),
                  _rep_spec((C, E)), _rep_spec((1, E)),
                  _rep_spec((E, C)), _rep_spec((1, C))],
        out_specs=row,
        out_shape=jax.ShapeDtypeStruct((Mp, C), jnp.float32),
        input_output_aliases={1: 0},                    # reuse the residual buffer
        compiler_params=_cp(),
    )(xp, rp,
      ln_g.reshape(1, C), ln_b.reshape(1, C),
      w1.astype(cdt), b1.reshape(1, E),
      w2.astype(cdt), b2.reshape(1, C))
    return out[:M] if Mp != M else out


# ----------------------------- fused projection + LayerNorm --------------------

def _proj_ln_kernel(x_ref, w_ref, b_ref, g_ref, beta_ref, o_ref, *, eps, cdt):
    acc = jnp.dot(x_ref[...].astype(cdt), w_ref[...],
                  preferred_element_type=jnp.float32)
    acc = acc + b_ref[...]
    mean = jnp.mean(acc, axis=-1, keepdims=True)
    cen = acc - mean
    var = jnp.mean(cen * cen, axis=-1, keepdims=True)
    y = cen * jax.lax.rsqrt(var + eps)
    o_ref[...] = (y * g_ref[...] + beta_ref[...]).astype(o_ref.dtype)


def proj_layernorm(x, w, b, g, beta, eps):
    M, K = x.shape
    N = w.shape[1]
    tm = M if M <= PROJ_TILE_ROWS else PROJ_TILE_ROWS
    xp = _pad_rows(x, tm)
    Mp = xp.shape[0]
    cdt = _mxu_dtype()
    out = pl.pallas_call(
        functools.partial(_proj_ln_kernel, eps=eps, cdt=cdt),
        grid=(Mp // tm,),
        in_specs=[pl.BlockSpec((tm, K), lambda i: (i, 0)),
                  _rep_spec((K, N)),
                  _rep_spec((1, N)), _rep_spec((1, N)), _rep_spec((1, N))],
        out_specs=pl.BlockSpec((tm, N), lambda i: (i, 0)),
        out_shape=jax.ShapeDtypeStruct((Mp, N), jnp.float32),
        compiler_params=_cp(),
    )(xp, w.astype(cdt), b.reshape(1, N), g.reshape(1, N), beta.reshape(1, N))
    return out[:M] if Mp != M else out


# ----------------------------- parameters --------------------------------------

def init_params(key, input_dim, d_model):
    chnls = [8, 32, 128]
    expansion = 4
    freq_dim = input_dim
    for s in (1, 2, 2):                                # freq strides of the 3 convs
        freq_dim = (freq_dim - 1) // s + 1

    keys = jax.random.split(key, 8)

    def w(k, shape, fan_in):
        return jax.random.normal(k, shape, jnp.float32) / math.sqrt(fan_in)

    p = {}
    # conv weights are [k_time, k_freq, Cin, Cout] (torch: [Cout, Cin, k_freq, k_time])
    p["c1_w"] = w(keys[0], (3, 3, 1, chnls[0]), 9 * 1)
    p["c1_b"] = jnp.zeros((chnls[0],), jnp.float32)
    p["c2_w"] = w(keys[1], (3, 3, chnls[0], chnls[1]), 9 * chnls[0])
    p["c2_b"] = jnp.zeros((chnls[1],), jnp.float32)
    p["c3_w"] = w(keys[2], (3, 3, chnls[1], chnls[2]), 9 * chnls[1])
    p["c3_b"] = jnp.zeros((chnls[2],), jnp.float32)
    # ConvNextLayer(128, expansion=4)
    C = chnls[2]
    p["dw_w"] = w(keys[3], (7, 7, C), 49)               # [k_time, k_freq, C]
    p["dw_b"] = jnp.zeros((C,), jnp.float32)
    p["cln_w"] = jnp.ones((C,), jnp.float32)
    p["cln_b"] = jnp.zeros((C,), jnp.float32)
    p["pw1_w"] = w(keys[4], (C, C * expansion), C)
    p["pw1_b"] = jnp.zeros((C * expansion,), jnp.float32)
    p["pw2_w"] = w(keys[5], (C * expansion, C), C * expansion)
    p["pw2_b"] = jnp.zeros((C,), jnp.float32)
    # projection weight rows ordered (freq, chan); torch weights use (chan, freq):
    # permute rows once when importing torch parameters.
    p["proj_w"] = w(keys[6], (freq_dim * C, d_model), freq_dim * C)
    p["proj_b"] = jnp.zeros((d_model,), jnp.float32)
    p["ln_w"] = jnp.ones((d_model,), jnp.float32)
    p["ln_b"] = jnp.zeros((d_model,), jnp.float32)
    return p


# ----------------------------- forward ------------------------------------------

def convnext_stem_forward(x, params):
    """x: F-banks [B, feat_dim, seq_len] -> [B, seq_len_out, d_model]."""
    B, F, T = x.shape
    # [B, freq, time] -> [B, time, freq, 1]: final flatten becomes a free reshape.
    h = jnp.transpose(x, (0, 2, 1))[:, :, :, None].astype(jnp.float32)
    # torch strides are (freq, time); here the spatial order is (time, freq).
    h = conv3x3_gelu(h, params["c1_w"], params["c1_b"], (1, 1))
    h = conv3x3_gelu(h, params["c2_w"], params["c2_b"], (2, 2))
    h = conv3x3_gelu(h, params["c3_w"], params["c3_b"], (1, 2))

    # ConvNextLayer: depthwise 7x7 -> fused (channel-LN -> expand+GELU -> project -> +res)
    Bh, Th, Fh, C = h.shape
    d = depthwise_conv7(h, params["dw_w"], params["dw_b"])
    m = Bh * Th * Fh
    y = convnext_mlp(d.reshape(m, C), h.reshape(m, C),
                     params["cln_w"], params["cln_b"],
                     params["pw1_w"], params["pw1_b"],
                     params["pw2_w"], params["pw2_b"], LN_EPS)

    # torch: x.view(B, C*F, T).transpose(1, 2).  Rows are already (b, t, f)-ordered,
    # so this is a free reshape (proj_w rows are (f, c)-ordered).
    flat = y.reshape(Bh * Th, Fh * C)
    out = proj_layernorm(flat, params["proj_w"], params["proj_b"],
                         params["ln_w"], params["ln_b"], LN_EPS)
    # dropout(p=0.1) is the identity in eval mode.
    # TODO(synk): training-mode dropout (Bernoulli mask) not implemented.
    return out.reshape(Bh, Th, -1)


# ----------------------------- main ----------------------------------------------

if __name__ == "__main__":
    key = jax.random.PRNGKey(0)
    kx, kp = jax.random.split(key)

    B, FEAT, SEQ = 2, 16, 16
    D_MODEL = 64

    x = jax.random.normal(kx, (B, FEAT, SEQ), jnp.float32)
    params = init_params(kp, FEAT, D_MODEL)

    fwd = jax.jit(convnext_stem_forward)
    y = jax.block_until_ready(fwd(x, params))

    # time strides are (1, 2, 1): 16 -> 16 -> 8 -> 8
    assert y.shape == (B, 8, D_MODEL), y.shape
    assert bool(jnp.all(jnp.isfinite(y)))
    print("KERNEL_OK")
</pallas_src>

<mosaic_0001>
module attributes {stable_mosaic.version = 11 : i64} {
  func.func @_conv3x3_kernel(%arg0: i32, %arg1: memref<1x1x18x18x1xf32, #tpu.memory_space<vmem>>, %arg2: memref<3x3x1x8xf32, #tpu.memory_space<vmem>>, %arg3: memref<1x8xf32, #tpu.memory_space<vmem>>, %arg4: memref<1x256x8xf32, #tpu.memory_space<vmem>>) attributes {dimension_semantics = [#tpu.dimension_semantics<parallel>], iteration_bounds = array<i64: 2>, scalar_prefetch = 0 : i64, scratch_operands = 0 : i64, tpu.core_type = #tpu.core_type<tc>, window_params = [{transform_indices = @transform_0, window_bounds = array<i64: 1, 1, 18, 18, 1>}, {pipeline_mode = #tpu.pipeline_mode<synchronous>, transform_indices = @transform_1, window_bounds = array<i64: 3, 3, 1, 8>}, {pipeline_mode = #tpu.pipeline_mode<synchronous>, transform_indices = @transform_2, window_bounds = array<i64: 1, 8>}, {transform_indices = @transform_3, window_bounds = array<i64: 1, 256, 8>}]} {
    %cst = arith.constant 0.000000e+00 : f32
    %0 = vector.broadcast %cst : f32 to vector<256x8xf32>
    %c0 = arith.constant 0 : index
    %c0_0 = arith.constant 0 : index
    %c0_1 = arith.constant 0 : index
    %c0_2 = arith.constant 0 : index
    %c0_3 = arith.constant 0 : index
    %1 = vector.load %arg1[%c0, %c0_0, %c0_1, %c0_2, %c0_3] : memref<1x1x18x18x1xf32, #tpu.memory_space<vmem>>, vector<1x1x16x16x1xf32>
    %2 = vector.shape_cast %1 : vector<1x1x16x16x1xf32> to vector<16x16x1xf32>
    %3 = vector.shape_cast %2 : vector<16x16x1xf32> to vector<256x1xf32>
    %c0_4 = arith.constant 0 : index
    %c0_5 = arith.constant 0 : index
    %c0_6 = arith.constant 0 : index
    %c0_7 = arith.constant 0 : index
    %4 = vector.load %arg2[%c0_4, %c0_5, %c0_6, %c0_7] : memref<3x3x1x8xf32, #tpu.memory_space<vmem>>, vector<1x1x1x8xf32>
    %5 = vector.shape_cast %4 : vector<1x1x1x8xf32> to vector<1x8xf32>
    %6 = vector.broadcast %3 : vector<256x1xf32> to vector<256x8xf32>
    %7 = vector.broadcast %5 : vector<1x8xf32> to vector<256x8xf32>
    %8 = arith.mulf %6, %7 : vector<256x8xf32>
    %9 = arith.addf %0, %8 : vector<256x8xf32>
    %c0_8 = arith.constant 0 : index
    %c0_9 = arith.constant 0 : index
    %c0_10 = arith.constant 0 : index
    %c1 = arith.constant 1 : index
    %c0_11 = arith.constant 0 : index
    %10 = vector.load %arg1[%c0_8, %c0_9, %c0_10, %c1, %c0_11] : memref<1x1x18x18x1xf32, #tpu.memory_space<vmem>>, vector<1x1x16x16x1xf32>
    %11 = vector.shape_cast %10 : vector<1x1x16x16x1xf32> to vector<16x16x1xf32>
    %12 = vector.shape_cast %11 : vector<16x16x1xf32> to vector<256x1xf32>
    %c0_12 = arith.constant 0 : index
    %c1_13 = arith.constant 1 : index
    %c0_14 = arith.constant 0 : index
    %c0_15 = arith.constant 0 : index
    %13 = vector.load %arg2[%c0_12, %c1_13, %c0_14, %c0_15] : memref<3x3x1x8xf32, #tpu.memory_space<vmem>>, vector<1x1x1x8xf32>
    %14 = vector.shape_cast %13 : vector<1x1x1x8xf32> to vector<1x8xf32>
    %15 = vector.broadcast %12 : vector<256x1xf32> to vector<256x8xf32>
    %16 = vector.broadcast %14 : vector<1x8xf32> to vector<256x8xf32>
    %17 = arith.mulf %15, %16 : vector<256x8xf32>
    %18 = arith.addf %9, %17 : vector<256x8xf32>
    %c0_16 = arith.constant 0 : index
    %c0_17 = arith.constant 0 : index
    %c0_18 = arith.constant 0 : index
    %c2 = arith.constant 2 : index
    %c0_19 = arith.constant 0 : index
    %19 = vector.load %arg1[%c0_16, %c0_17, %c0_18, %c2, %c0_19] : memref<1x1x18x18x1xf32, #tpu.memory_space<vmem>>, vector<1x1x16x16x1xf32>
    %20 = vector.shape_cast %19 : vector<1x1x16x16x1xf32> to vector<16x16x1xf32>
    %21 = vector.shape_cast %20 : vector<16x16x1xf32> to vector<256x1xf32>
    %c0_20 = arith.constant 0 : index
    %c2_21 = arith.constant 2 : index
    %c0_22 = arith.constant 0 : index
    %c0_23 = arith.constant 0 : index
    %22 = vector.load %arg2[%c0_20, %c2_21, %c0_22, %c0_23] : memref<3x3x1x8xf32, #tpu.memory_space<vmem>>, vector<1x1x1x8xf32>
    %23 = vector.shape_cast %22 : vector<1x1x1x8xf32> to vector<1x8xf32>
    %24 = vector.broadcast %21 : vector<256x1xf32> to vector<256x8xf32>
    %25 = vector.broadcast %23 : vector<1x8xf32> to vector<256x8xf32>
    %26 = arith.mulf %24, %25 : vector<256x8xf32>
    %27 = arith.addf %18, %26 : vector<256x8xf32>
    %c0_24 = arith.constant 0 : index
    %c0_25 = arith.constant 0 : index
    %c1_26 = arith.constant 1 : index
    %c0_27 = arith.constant 0 : index
    %c0_28 = arith.constant 0 : index
    %28 = vector.load %arg1[%c0_24, %c0_25, %c1_26, %c0_27, %c0_28] : memref<1x1x18x18x1xf32, #tpu.memory_space<vmem>>, vector<1x1x16x16x1xf32>
    %29 = vector.shape_cast %28 : vector<1x1x16x16x1xf32> to vector<16x16x1xf32>
    %30 = vector.shape_cast %29 : vector<16x16x1xf32> to vector<256x1xf32>
    %c1_29 = arith.constant 1 : index
    %c0_30 = arith.constant 0 : index
    %c0_31 = arith.constant 0 : index
    %c0_32 = arith.constant 0 : index
    %31 = vector.load %arg2[%c1_29, %c0_30, %c0_31, %c0_32] : memref<3x3x1x8xf32, #tpu.memory_space<vmem>>, vector<1x1x1x8xf32>
    %32 = vector.shape_cast %31 : vector<1x1x1x8xf32> to vector<1x8xf32>
    %33 = vector.broadcast %30 : vector<256x1xf32> to vector<256x8xf32>
    %34 = vector.broadcast %32 : vector<1x8xf32> to vector<256x8xf32>
    %35 = arith.mulf %33, %34 : vector<256x8xf32>
    %36 = arith.addf %27, %35 : vector<256x8xf32>
    %c0_33 = arith.constant 0 : index
    %c0_34 = arith.constant 0 : index
    %c1_35 = arith.constant 1 : index
    %c1_36 = arith.constant 1 : index
    %c0_37 = arith.constant 0 : index
    %37 = vector.load %arg1[%c0_33, %c0_34, %c1_35, %c1_36, %c0_37] : memref<1x1x18x18x1xf32, #tpu.memory_space<vmem>>, vector<1x1x16x16x1xf32>
    %38 = vector.shape_cast %37 : vector<1x1x16x16x1xf32> to vector<16x16x1xf32>
    %39 = vector.shape_cast %38 : vector<16x16x1xf32> to vector<256x1xf32>
    %c1_38 = arith.constant 1 : index
    %c1_39 = arith.constant 1 : index
    %c0_40 = arith.constant 0 : index
    %c0_41 = arith.constant 0 : index
    %40 = vector.load %arg2[%c1_38, %c1_39, %c0_40, %c0_41] : memref<3x3x1x8xf32, #tpu.memory_space<vmem>>, vector<1x1x1x8xf32>
    %41 = vector.shape_cast %40 : vector<1x1x1x8xf32> to vector<1x8xf32>
    %42 = vector.broadcast %39 : vector<256x1xf32> to vector<256x8xf32>
    %43 = vector.broadcast %41 : vector<1x8xf32> to vector<256x8xf32>
    %44 = arith.mulf %42, %43 : vector<256x8xf32>
    %45 = arith.addf %36, %44 : vector<256x8xf32>
    %c0_42 = arith.constant 0 : index
    %c0_43 = arith.constant 0 : index
    %c1_44 = arith.constant 1 : index
    %c2_45 = arith.constant 2 : index
    %c0_46 = arith.constant 0 : index
    %46 = vector.load %arg1[%c0_42, %c0_43, %c1_44, %c2_45, %c0_46] : memref<1x1x18x18x1xf32, #tpu.memory_space<vmem>>, vector<1x1x16x16x1xf32>
    %47 = vector.shape_cast %46 : vector<1x1x16x16x1xf32> to vector<16x16x1xf32>
    %48 = vector.shape_cast %47 : vector<16x16x1xf32> to vector<256x1xf32>
    %c1_47 = arith.constant 1 : index
    %c2_48 = arith.constant 2 : index
    %c0_49 = arith.constant 0 : index
    %c0_50 = arith.constant 0 : index
    %49 = vector.load %arg2[%c1_47, %c2_48, %c0_49, %c0_50] : memref<3x3x1x8xf32, #tpu.memory_space<vmem>>, vector<1x1x1x8xf32>
    %50 = vector.shape_cast %49 : vector<1x1x1x8xf32> to vector<1x8xf32>
    %51 = vector.broadcast %48 : vector<256x1xf32> to vector<256x8xf32>
    %52 = vector.broadcast %50 : vector<1x8xf32> to vector<256x8xf32>
    %53 = arith.mulf %51, %52 : vector<256x8xf32>
    %54 = arith.addf %45, %53 : vector<256x8xf32>
    %c0_51 = arith.constant 0 : index
    %c0_52 = arith.constant 0 : index
    %c2_53 = arith.constant 2 : index
    %c0_54 = arith.constant 0 : index
    %c0_55 = arith.constant 0 : index
    %55 = vector.load %arg1[%c0_51, %c0_52, %c2_53, %c0_54, %c0_55] : memref<1x1x18x18x1xf32, #tpu.memory_space<vmem>>, vector<1x1x16x16x1xf32>
    %56 = vector.shape_cast %55 : vector<1x1x16x16x1xf32> to vector<16x16x1xf32>
    %57 = vector.shape_cast %56 : vector<16x16x1xf32> to vector<256x1xf32>
    %c2_56 = arith.constant 2 : index
    %c0_57 = arith.constant 0 : index
    %c0_58 = arith.constant 0 : index
    %c0_59 = arith.constant 0 : index
    %58 = vector.load %arg2[%c2_56, %c0_57, %c0_58, %c0_59] : memref<3x3x1x8xf32, #tpu.memory_space<vmem>>, vector<1x1x1x8xf32>
    %59 = vector.shape_cast %58 : vector<1x1x1x8xf32> to vector<1x8xf32>
    %60 = vector.broadcast %57 : vector<256x1xf32> to vector<256x8xf32>
    %61 = vector.broadcast %59 : vector<1x8xf32> to vector<256x8xf32>
    %62 = arith.mulf %60, %61 : vector<256x8xf32>
    %63 = arith.addf %54, %62 : vector<256x8xf32>
    %c0_60 = arith.constant 0 : index
    %c0_61 = arith.constant 0 : index
    %c2_62 = arith.constant 2 : index
    %c1_63 = arith.constant 1 : index
    %c0_64 = arith.constant 0 : index
    %64 = vector.load %arg1[%c0_60, %c0_61, %c2_62, %c1_63, %c0_64] : memref<1x1x18x18x1xf32, #tpu.memory_space<vmem>>, vector<1x1x16x16x1xf32>
    %65 = vector.shape_cast %64 : vector<1x1x16x16x1xf32> to vector<16x16x1xf32>
    %66 = vector.shape_cast %65 : vector<16x16x1xf32> to vector<256x1xf32>
    %c2_65 = arith.constant 2 : index
    %c1_66 = arith.constant 1 : index
    %c0_67 = arith.constant 0 : index
    %c0_68 = arith.constant 0 : index
    %67 = vector.load %arg2[%c2_65, %c1_66, %c0_67, %c0_68] : memref<3x3x1x8xf32, #tpu.memory_space<vmem>>, vector<1x1x1x8xf32>
    %68 = vector.shape_cast %67 : vector<1x1x1x8xf32> to vector<1x8xf32>
    %69 = vector.broadcast %66 : vector<256x1xf32> to vector<256x8xf32>
    %70 = vector.broadcast %68 : vector<1x8xf32> to vector<256x8xf32>
    %71 = arith.mulf %69, %70 : vector<256x8xf32>
    %72 = arith.addf %63, %71 : vector<256x8xf32>
    %c0_69 = arith.constant 0 : index
    %c0_70 = arith.constant 0 : index
    %c2_71 = arith.constant 2 : index
    %c2_72 = arith.constant 2 : index
    %c0_73 = arith.constant 0 : index
    %73 = vector.load %arg1[%c0_69, %c0_70, %c2_71, %c2_72, %c0_73] : memref<1x1x18x18x1xf32, #tpu.memory_space<vmem>>, vector<1x1x16x16x1xf32>
    %74 = vector.shape_cast %73 : vector<1x1x16x16x1xf32> to vector<16x16x1xf32>
    %75 = vector.shape_cast %74 : vector<16x16x1xf32> to vector<256x1xf32>
    %c2_74 = arith.constant 2 : index
    %c2_75 = arith.constant 2 : index
    %c0_76 = arith.constant 0 : index
    %c0_77 = arith.constant 0 : index
    %76 = vector.load %arg2[%c2_74, %c2_75, %c0_76, %c0_77] : memref<3x3x1x8xf32, #tpu.memory_space<vmem>>, vector<1x1x1x8xf32>
    %77 = vector.shape_cast %76 : vector<1x1x1x8xf32> to vector<1x8xf32>
    %78 = vector.broadcast %75 : vector<256x1xf32> to vector<256x8xf32>
    %79 = vector.broadcast %77 : vector<1x8xf32> to vector<256x8xf32>
    %80 = arith.mulf %78, %79 : vector<256x8xf32>
    %81 = arith.addf %72, %80 : vector<256x8xf32>
    %c0_78 = arith.constant 0 : index
    %c0_79 = arith.constant 0 : index
    %82 = vector.load %arg3[%c0_78, %c0_79] : memref<1x8xf32, #tpu.memory_space<vmem>>, vector<1x8xf32>
    %83 = vector.broadcast %82 : vector<1x8xf32> to vector<256x8xf32>
    %84 = arith.addf %81, %83 : vector<256x8xf32>
    %cst_80 = arith.constant 5.000000e-01 : f32
    %85 = vector.broadcast %cst_80 : f32 to vector<256x8xf32>
    %86 = arith.mulf %85, %84 : vector<256x8xf32>
    %cst_81 = arith.constant 0.707106769 : f32
    %87 = vector.broadcast %cst_81 : f32 to vector<256x8xf32>
    %88 = arith.mulf %84, %87 : vector<256x8xf32>
    %cst_82 = arith.constant 0.000000e+00 : f32
    %89 = vector.broadcast %cst_82 : f32 to vector<256x8xf32>
    %90 = arith.cmpf oge, %88, %89 : vector<256x8xf32>
    %cst_83 = arith.constant 1.000000e+00 : f32
    %cst_84 = arith.constant -1.000000e+00 : f32
    %91 = vector.broadcast %cst_83 : f32 to vector<256x8xf32>
    %92 = vector.broadcast %cst_84 : f32 to vector<256x8xf32>
    %93 = arith.select %90, %91, %92 : vector<256x8xi1>, vector<256x8xf32>
    %94 = math.absf %88 : vector<256x8xf32>
    %cst_85 = arith.constant 0.327591091 : f32
    %95 = vector.broadcast %cst_85 : f32 to vector<256x8xf32>
    %96 = arith.mulf %95, %94 : vector<256x8xf32>
    %cst_86 = arith.constant 1.000000e+00 : f32
    %97 = vector.broadcast %cst_86 : f32 to vector<256x8xf32>
    %98 = arith.addf %97, %96 : vector<256x8xf32>
    %cst_87 = arith.constant 1.000000e+00 : f32
    %99 = vector.broadcast %cst_87 : f32 to vector<256x8xf32>
    %100 = arith.divf %99, %98 : vector<256x8xf32>
    %cst_88 = arith.constant 1.06140542 : f32
    %101 = vector.broadcast %cst_88 : f32 to vector<256x8xf32>
    %102 = arith.mulf %101, %100 : vector<256x8xf32>
    %cst_89 = arith.constant -1.45315206 : f32
    %103 = vector.broadcast %cst_89 : f32 to vector<256x8xf32>
    %104 = arith.addf %102, %103 : vector<256x8xf32>
    %105 = arith.mulf %104, %100 : vector<256x8xf32>
    %cst_90 = arith.constant 1.42141378 : f32
    %106 = vector.broadcast %cst_90 : f32 to vector<256x8xf32>
    %107 = arith.addf %105, %106 : vector<256x8xf32>
    %108 = arith.mulf %107, %100 : vector<256x8xf32>
    %cst_91 = arith.constant -0.284496725 : f32
    %109 = vector.broadcast %cst_91 : f32 to vector<256x8xf32>
    %110 = arith.addf %108, %109 : vector<256x8xf32>
    %111 = arith.mulf %110, %100 : vector<256x8xf32>
    %cst_92 = arith.constant 0.254829586 : f32
    %112 = vector.broadcast %cst_92 : f32 to vector<256x8xf32>
    %113 = arith.addf %111, %112 : vector<256x8xf32>
    %114 = arith.mulf %113, %100 : vector<256x8xf32>
    %cst_93 = arith.constant 0.000000e+00 : f32
    %115 = vector.broadcast %cst_93 : f32 to vector<256x8xf32>
    %116 = arith.subf %115, %94 : vector<256x8xf32>
    %117 = arith.mulf %116, %94 : vector<256x8xf32>
    %118 = math.exp %117 : vector<256x8xf32>
    %119 = arith.mulf %114, %118 : vector<256x8xf32>
    %cst_94 = arith.constant 1.000000e+00 : f32
    %120 = vector.broadcast %cst_94 : f32 to vector<256x8xf32>
    %121 = arith.subf %120, %119 : vector<256x8xf32>
    %122 = arith.mulf %93, %121 : vector<256x8xf32>
    %cst_95 = arith.constant 1.000000e+00 : f32
    %123 = vector.broadcast %cst_95 : f32 to vector<256x8xf32>
    %124 = arith.addf %123, %122 : vector<256x8xf32>
    %125 = arith.mulf %86, %124 : vector<256x8xf32>
    %c0_96 = arith.constant 0 : index
    %c0_97 = arith.constant 0 : index
    %c0_98 = arith.constant 0 : index
    %126 = vector.load %arg4[%c0_96, %c0_97, %c0_98] : memref<1x256x8xf32, #tpu.memory_space<vmem>>, vector<1x256x8xf32>
    %127 = vector.shape_cast %126 : vector<1x256x8xf32> to vector<256x8xf32>
    %128 = vector.shape_cast %125 : vector<256x8xf32> to vector<1x256x8xf32>
    tpu.vector_store %arg4[%c0_96, %c0_97, %c0_98], %128 {strides = array<i32>} : memref<1x256x8xf32, #tpu.memory_space<vmem>>, vector<1x256x8xf32>,
    return
  }
  func.func @transform_0(%arg0: i32) -> (i32, i32, i32, i32, i32) {
    %c0_i32 = arith.constant 0 : i32
    %c0_i32_0 = arith.constant 0 : i32
    %c0_i32_1 = arith.constant 0 : i32
    %c0_i32_2 = arith.constant 0 : i32
    %c0_i32_3 = arith.constant 0 : i32
    return %arg0, %c0_i32, %c0_i32_0, %c0_i32_1, %c0_i32_2 : i32, i32, i32, i32, i32
  }
  func.func @transform_1(%arg0: i32) -> (i32, i32, i32, i32) {
    %c0_i32 = arith.constant 0 : i32
    %c0_i32_0 = arith.constant 0 : i32
    %c0_i32_1 = arith.constant 0 : i32
    %c0_i32_2 = arith.constant 0 : i32
    %c0_i32_3 = arith.constant 0 : i32
    return %c0_i32, %c0_i32_0, %c0_i32_1, %c0_i32_2 : i32, i32, i32, i32
  }
  func.func @transform_2(%arg0: i32) -> (i32, i32) {
    %c0_i32 = arith.constant 0 : i32
    %c0_i32_0 = arith.constant 0 : i32
    %c0_i32_1 = arith.constant 0 : i32
    return %c0_i32, %c0_i32_0 : i32, i32
  }
  func.func @transform_3(%arg0: i32) -> (i32, i32, i32) {
    %c0_i32 = arith.constant 0 : i32
    %c0_i32_0 = arith.constant 0 : i32
    %c0_i32_1 = arith.constant 0 : i32
    return %arg0, %c0_i32, %c0_i32_0 : i32, i32, i32
  }
}

module attributes {stable_mosaic.version = 11 : i64} {
  func.func @_conv3x3_kernel(%arg0: i32, %arg1: memref<1x4x9x9x8xf32, #tpu.memory_space<vmem>>, %arg2: memref<3x3x8x32xf32, #tpu.memory_space<vmem>>, %arg3: memref<1x32xf32, #tpu.memory_space<vmem>>, %arg4: memref<1x64x32xf32, #tpu.memory_space<vmem>>) attributes {dimension_semantics = [#tpu.dimension_semantics<parallel>], iteration_bounds = array<i64: 2>, scalar_prefetch = 0 : i64, scratch_operands = 0 : i64, tpu.core_type = #tpu.core_type<tc>, window_params = [{transform_indices = @transform_0, window_bounds = array<i64: 1, 4, 9, 9, 8>}, {pipeline_mode = #tpu.pipeline_mode<synchronous>, transform_indices = @transform_1, window_bounds = array<i64: 3, 3, 8, 32>}, {pipeline_mode = #tpu.pipeline_mode<synchronous>, transform_indices = @transform_2, window_bounds = array<i64: 1, 32>}, {transform_indices = @transform_3, window_bounds = array<i64: 1, 64, 32>}]} {
    %cst = arith.constant 0.000000e+00 : f32
    %0 = vector.broadcast %cst : f32 to vector<64x32xf32>
    %c0 = arith.constant 0 : index
    %c0_0 = arith.constant 0 : index
    %c0_1 = arith.constant 0 : index
    %c0_2 = arith.constant 0 : index
    %c0_3 = arith.constant 0 : index
    %1 = vector.load %arg1[%c0, %c0_0, %c0_1, %c0_2, %c0_3] : memref<1x4x9x9x8xf32, #tpu.memory_space<vmem>>, vector<1x1x8x8x8xf32>
    %2 = vector.shape_cast %1 : vector<1x1x8x8x8xf32> to vector<8x8x8xf32>
    %3 = vector.shape_cast %2 : vector<8x8x8xf32> to vector<64x8xf32>
    %c0_4 = arith.constant 0 : index
    %c0_5 = arith.constant 0 : index
    %c0_6 = arith.constant 0 : index
    %c0_7 = arith.constant 0 : index
    %4 = vector.load %arg2[%c0_4, %c0_5, %c0_6, %c0_7] : memref<3x3x8x32xf32, #tpu.memory_space<vmem>>, vector<1x1x8x32xf32>
    %5 = vector.shape_cast %4 : vector<1x1x8x32xf32> to vector<8x32xf32>
    %6 = arith.truncf %3 : vector<64x8xf32> to vector<64x8xbf16>
    %7 = arith.truncf %5 : vector<8x32xf32> to vector<8x32xbf16>
    %cst_8 = arith.constant dense<0.000000e+00> : vector<64x32xf32>
    %8 = tpu.matmul %6, %7, %cst_8 {dimension_numbers = #tpu.dot_dimension_numbers<[1], [0], [0], [1], [0, 0, 1, 1], [], []>} : vector<64x8xbf16>, vector<8x32xbf16>, vector<64x32xf32> -> vector<64x32xf32>
    %9 = arith.addf %0, %8 : vector<64x32xf32>
    %c0_9 = arith.constant 0 : index
    %c1 = arith.constant 1 : index
    %c0_10 = arith.constant 0 : index
    %c0_11 = arith.constant 0 : index
    %c0_12 = arith.constant 0 : index
    %10 = vector.load %arg1[%c0_9, %c1, %c0_10, %c0_11, %c0_12] : memref<1x4x9x9x8xf32, #tpu.memory_space<vmem>>, vector<1x1x8x8x8xf32>
    %11 = vector.shape_cast %10 : vector<1x1x8x8x8xf32> to vector<8x8x8xf32>
    %12 = vector.shape_cast %11 : vector<8x8x8xf32> to vector<64x8xf32>
    %c0_13 = arith.constant 0 : index
    %c1_14 = arith.constant 1 : index
    %c0_15 = arith.constant 0 : index
    %c0_16 = arith.constant 0 : index
    %13 = vector.load %arg2[%c0_13, %c1_14, %c0_15, %c0_16] : memref<3x3x8x32xf32, #tpu.memory_space<vmem>>, vector<1x1x8x32xf32>
    %14 = vector.shape_cast %13 : vector<1x1x8x32xf32> to vector<8x32xf32>
    %15 = arith.truncf %12 : vector<64x8xf32> to vector<64x8xbf16>
    %16 = arith.truncf %14 : vector<8x32xf32> to vector<8x32xbf16>
    %cst_17 = arith.constant dense<0.000000e+00> : vector<64x32xf32>
    %17 = tpu.matmul %15, %16, %cst_17 {dimension_numbers = #tpu.dot_dimension_numbers<[1], [0], [0], [1], [0, 0, 1, 1], [], []>} : vector<64x8xbf16>, vector<8x32xbf16>, vector<64x32xf32> -> vector<64x32xf32>
    %18 = arith.addf %9, %17 : vector<64x32xf32>
    %c0_18 = arith.constant 0 : index
    %c0_19 = arith.constant 0 : index
    %c0_20 = arith.constant 0 : index
    %c1_21 = arith.constant 1 : index
    %c0_22 = arith.constant 0 : index
    %19 = vector.load %arg1[%c0_18, %c0_19, %c0_20, %c1_21, %c0_22] : memref<1x4x9x9x8xf32, #tpu.memory_space<vmem>>, vector<1x1x8x8x8xf32>
    %20 = vector.shape_cast %19 : vector<1x1x8x8x8xf32> to vector<8x8x8xf32>
    %21 = vector.shape_cast %20 : vector<8x8x8xf32> to vector<64x8xf32>
    %c0_23 = arith.constant 0 : index
    %c2 = arith.constant 2 : index
    %c0_24 = arith.constant 0 : index
    %c0_25 = arith.constant 0 : index
    %22 = vector.load %arg2[%c0_23, %c2, %c0_24, %c0_25] : memref<3x3x8x32xf32, #tpu.memory_space<vmem>>, vector<1x1x8x32xf32>
    %23 = vector.shape_cast %22 : vector<1x1x8x32xf32> to vector<8x32xf32>
    %24 = arith.truncf %21 : vector<64x8xf32> to vector<64x8xbf16>
    %25 = arith.truncf %23 : vector<8x32xf32> to vector<8x32xbf16>
    %cst_26 = arith.constant dense<0.000000e+00> : vector<64x32xf32>
    %26 = tpu.matmul %24, %25, %cst_26 {dimension_numbers = #tpu.dot_dimension_numbers<[1], [0], [0], [1], [0, 0, 1, 1], [], []>} : vector<64x8xbf16>, vector<8x32xbf16>, vector<64x32xf32> -> vector<64x32xf32>
    %27 = arith.addf %18, %26 : vector<64x32xf32>
    %c0_27 = arith.constant 0 : index
    %c2_28 = arith.constant 2 : index
    %c0_29 = arith.constant 0 : index
    %c0_30 = arith.constant 0 : index
    %c0_31 = arith.constant 0 : index
    %28 = vector.load %arg1[%c0_27, %c2_28, %c0_29, %c0_30, %c0_31] : memref<1x4x9x9x8xf32, #tpu.memory_space<vmem>>, vector<1x1x8x8x8xf32>
    %29 = vector.shape_cast %28 : vector<1x1x8x8x8xf32> to vector<8x8x8xf32>
    %30 = vector.shape_cast %29 : vector<8x8x8xf32> to vector<64x8xf32>
    %c1_32 = arith.constant 1 : index
    %c0_33 = arith.constant 0 : index
    %c0_34 = arith.constant 0 : index
    %c0_35 = arith.constant 0 : index
    %31 = vector.load %arg2[%c1_32, %c0_33, %c0_34, %c0_35] : memref<3x3x8x32xf32, #tpu.memory_space<vmem>>, vector<1x1x8x32xf32>
    %32 = vector.shape_cast %31 : vector<1x1x8x32xf32> to vector<8x32xf32>
    %33 = arith.truncf %30 : vector<64x8xf32> to vector<64x8xbf16>
    %34 = arith.truncf %32 : vector<8x32xf32> to vector<8x32xbf16>
    %cst_36 = arith.constant dense<0.000000e+00> : vector<64x32xf32>
    %35 = tpu.matmul %33, %34, %cst_36 {dimension_numbers = #tpu.dot_dimension_numbers<[1], [0], [0], [1], [0, 0, 1, 1], [], []>} : vector<64x8xbf16>, vector<8x32xbf16>, vector<64x32xf32> -> vector<64x32xf32>
    %36 = arith.addf %27, %35 : vector<64x32xf32>
    %c0_37 = arith.constant 0 : index
    %c3 = arith.constant 3 : index
    %c0_38 = arith.constant 0 : index
    %c0_39 = arith.constant 0 : index
    %c0_40 = arith.constant 0 : index
    %37 = vector.load %arg1[%c0_37, %c3, %c0_38, %c0_39, %c0_40] : memref<1x4x9x9x8xf32, #tpu.memory_space<vmem>>, vector<1x1x8x8x8xf32>
    %38 = vector.shape_cast %37 : vector<1x1x8x8x8xf32> to vector<8x8x8xf32>
    %39 = vector.shape_cast %38 : vector<8x8x8xf32> to vector<64x8xf32>
    %c1_41 = arith.constant 1 : index
    %c1_42 = arith.constant 1 : index
    %c0_43 = arith.constant 0 : index
    %c0_44 = arith.constant 0 : index
    %40 = vector.load %arg2[%c1_41, %c1_42, %c0_43, %c0_44] : memref<3x3x8x32xf32, #tpu.memory_space<vmem>>, vector<1x1x8x32xf32>
    %41 = vector.shape_cast %40 : vector<1x1x8x32xf32> to vector<8x32xf32>
    %42 = arith.truncf %39 : vector<64x8xf32> to vector<64x8xbf16>
    %43 = arith.truncf %41 : vector<8x32xf32> to vector<8x32xbf16>
    %cst_45 = arith.constant dense<0.000000e+00> : vector<64x32xf32>
    %44 = tpu.matmul %42, %43, %cst_45 {dimension_numbers = #tpu.dot_dimension_numbers<[1], [0], [0], [1], [0, 0, 1, 1], [], []>} : vector<64x8xbf16>, vector<8x32xbf16>, vector<64x32xf32> -> vector<64x32xf32>
    %45 = arith.addf %36, %44 : vector<64x32xf32>
    %c0_46 = arith.constant 0 : index
    %c2_47 = arith.constant 2 : index
    %c0_48 = arith.constant 0 : index
    %c1_49 = arith.constant 1 : index
    %c0_50 = arith.constant 0 : index
    %46 = vector.load %arg1[%c0_46, %c2_47, %c0_48, %c1_49, %c0_50] : memref<1x4x9x9x8xf32, #tpu.memory_space<vmem>>, vector<1x1x8x8x8xf32>
    %47 = vector.shape_cast %46 : vector<1x1x8x8x8xf32> to vector<8x8x8xf32>
    %48 = vector.shape_cast %47 : vector<8x8x8xf32> to vector<64x8xf32>
    %c1_51 = arith.constant 1 : index
    %c2_52 = arith.constant 2 : index
    %c0_53 = arith.constant 0 : index
    %c0_54 = arith.constant 0 : index
    %49 = vector.load %arg2[%c1_51, %c2_52, %c0_53, %c0_54] : memref<3x3x8x32xf32, #tpu.memory_space<vmem>>, vector<1x1x8x32xf32>
    %50 = vector.shape_cast %49 : vector<1x1x8x32xf32> to vector<8x32xf32>
    %51 = arith.truncf %48 : vector<64x8xf32> to vector<64x8xbf16>
    %52 = arith.truncf %50 : vector<8x32xf32> to vector<8x32xbf16>
    %cst_55 = arith.constant dense<0.000000e+00> : vector<64x32xf32>
    %53 = tpu.matmul %51, %52, %cst_55 {dimension_numbers = #tpu.dot_dimension_numbers<[1], [0], [0], [1], [0, 0, 1, 1], [], []>} : vector<64x8xbf16>, vector<8x32xbf16>, vector<64x32xf32> -> vector<64x32xf32>
    %54 = arith.addf %45, %53 : vector<64x32xf32>
    %c0_56 = arith.constant 0 : index
    %c0_57 = arith.constant 0 : index
    %c1_58 = arith.constant 1 : index
    %c0_59 = arith.constant 0 : index
    %c0_60 = arith.constant 0 : index
    %55 = vector.load %arg1[%c0_56, %c0_57, %c1_58, %c0_59, %c0_60] : memref<1x4x9x9x8xf32, #tpu.memory_space<vmem>>, vector<1x1x8x8x8xf32>
    %56 = vector.shape_cast %55 : vector<1x1x8x8x8xf32> to vector<8x8x8xf32>
    %57 = vector.shape_cast %56 : vector<8x8x8xf32> to vector<64x8xf32>
    %c2_61 = arith.constant 2 : index
    %c0_62 = arith.constant 0 : index
    %c0_63 = arith.constant 0 : index
    %c0_64 = arith.constant 0 : index
    %58 = vector.load %arg2[%c2_61, %c0_62, %c0_63, %c0_64] : memref<3x3x8x32xf32, #tpu.memory_space<vmem>>, vector<1x1x8x32xf32>
    %59 = vector.shape_cast %58 : vector<1x1x8x32xf32> to vector<8x32xf32>
    %60 = arith.truncf %57 : vector<64x8xf32> to vector<64x8xbf16>
    %61 = arith.truncf %59 : vector<8x32xf32> to vector<8x32xbf16>
    %cst_65 = arith.constant dense<0.000000e+00> : vector<64x32xf32>
    %62 = tpu.matmul %60, %61, %cst_65 {dimension_numbers = #tpu.dot_dimension_numbers<[1], [0], [0], [1], [0, 0, 1, 1], [], []>} : vector<64x8xbf16>, vector<8x32xbf16>, vector<64x32xf32> -> vector<64x32xf32>
    %63 = arith.addf %54, %62 : vector<64x32xf32>
    %c0_66 = arith.constant 0 : index
    %c1_67 = arith.constant 1 : index
    %c1_68 = arith.constant 1 : index
    %c0_69 = arith.constant 0 : index
    %c0_70 = arith.constant 0 : index
    %64 = vector.load %arg1[%c0_66, %c1_67, %c1_68, %c0_69, %c0_70] : memref<1x4x9x9x8xf32, #tpu.memory_space<vmem>>, vector<1x1x8x8x8xf32>
    %65 = vector.shape_cast %64 : vector<1x1x8x8x8xf32> to vector<8x8x8xf32>
    %66 = vector.shape_cast %65 : vector<8x8x8xf32> to vector<64x8xf32>
    %c2_71 = arith.constant 2 : index
    %c1_72 = arith.constant 1 : index
    %c0_73 = arith.constant 0 : index
    %c0_74 = arith.constant 0 : index
    %67 = vector.load %arg2[%c2_71, %c1_72, %c0_73, %c0_74] : memref<3x3x8x32xf32, #tpu.memory_space<vmem>>, vector<1x1x8x32xf32>
    %68 = vector.shape_cast %67 : vector<1x1x8x32xf32> to vector<8x32xf32>
    %69 = arith.truncf %66 : vector<64x8xf32> to vector<64x8xbf16>
    %70 = arith.truncf %68 : vector<8x32xf32> to vector<8x32xbf16>
    %cst_75 = arith.constant dense<0.000000e+00> : vector<64x32xf32>
    %71 = tpu.matmul %69, %70, %cst_75 {dimension_numbers = #tpu.dot_dimension_numbers<[1], [0], [0], [1], [0, 0, 1, 1], [], []>} : vector<64x8xbf16>, vector<8x32xbf16>, vector<64x32xf32> -> vector<64x32xf32>
    %72 = arith.addf %63, %71 : vector<64x32xf32>
    %c0_76 = arith.constant 0 : index
    %c0_77 = arith.constant 0 : index
    %c1_78 = arith.constant 1 : index
    %c1_79 = arith.constant 1 : index
    %c0_80 = arith.constant 0 : index
    %73 = vector.load %arg1[%c0_76, %c0_77, %c1_78, %c1_79, %c0_80] : memref<1x4x9x9x8xf32, #tpu.memory_space<vmem>>, vector<1x1x8x8x8xf32>
    %74 = vector.shape_cast %73 : vector<1x1x8x8x8xf32> to vector<8x8x8xf32>
    %75 = vector.shape_cast %74 : vector<8x8x8xf32> to vector<64x8xf32>
    %c2_81 = arith.constant 2 : index
    %c2_82 = arith.constant 2 : index
    %c0_83 = arith.constant 0 : index
    %c0_84 = arith.constant 0 : index
    %76 = vector.load %arg2[%c2_81, %c2_82, %c0_83, %c0_84] : memref<3x3x8x32xf32, #tpu.memory_space<vmem>>, vector<1x1x8x32xf32>
    %77 = vector.shape_cast %76 : vector<1x1x8x32xf32> to vector<8x32xf32>
    %78 = arith.truncf %75 : vector<64x8xf32> to vector<64x8xbf16>
    %79 = arith.truncf %77 : vector<8x32xf32> to vector<8x32xbf16>
    %cst_85 = arith.constant dense<0.000000e+00> : vector<64x32xf32>
    %80 = tpu.matmul %78, %79, %cst_85 {dimension_numbers = #tpu.dot_dimension_numbers<[1], [0], [0], [1], [0, 0, 1, 1], [], []>} : vector<64x8xbf16>, vector<8x32xbf16>, vector<64x32xf32> -> vector<64x32xf32>
    %81 = arith.addf %72, %80 : vector<64x32xf32>
    %c0_86 = arith.constant 0 : index
    %c0_87 = arith.constant 0 : index
    %82 = vector.load %arg3[%c0_86, %c0_87] : memref<1x32xf32, #tpu.memory_space<vmem>>, vector<1x32xf32>
    %83 = vector.broadcast %82 : vector<1x32xf32> to vector<64x32xf32>
    %84 = arith.addf %81, %83 : vector<64x32xf32>
    %cst_88 = arith.constant 5.000000e-01 : f32
    %85 = vector.broadcast %cst_88 : f32 to vector<64x32xf32>
    %86 = arith.mulf %85, %84 : vector<64x32xf32>
    %cst_89 = arith.constant 0.707106769 : f32
    %87 = vector.broadcast %cst_89 : f32 to vector<64x32xf32>
    %88 = arith.mulf %84, %87 : vector<64x32xf32>
    %cst_90 = arith.constant 0.000000e+00 : f32
    %89 = vector.broadcast %cst_90 : f32 to vector<64x32xf32>
    %90 = arith.cmpf oge, %88, %89 : vector<64x32xf32>
    %cst_91 = arith.constant 1.000000e+00 : f32
    %cst_92 = arith.constant -1.000000e+00 : f32
    %91 = vector.broadcast %cst_91 : f32 to vector<64x32xf32>
    %92 = vector.broadcast %cst_92 : f32 to vector<64x32xf32>
    %93 = arith.select %90, %91, %92 : vector<64x32xi1>, vector<64x32xf32>
    %94 = math.absf %88 : vector<64x32xf32>
    %cst_93 = arith.constant 0.327591091 : f32
    %95 = vector.broadcast %cst_93 : f32 to vector<64x32xf32>
    %96 = arith.mulf %95, %94 : vector<64x32xf32>
    %cst_94 = arith.constant 1.000000e+00 : f32
    %97 = vector.broadcast %cst_94 : f32 to vector<64x32xf32>
    %98 = arith.addf %97, %96 : vector<64x32xf32>
    %cst_95 = arith.constant 1.000000e+00 : f32
    %99 = vector.broadcast %cst_95 : f32 to vector<64x32xf32>
    %100 = arith.divf %99, %98 : vector<64x32xf32>
    %cst_96 = arith.constant 1.06140542 : f32
    %101 = vector.broadcast %cst_96 : f32 to vector<64x32xf32>
    %102 = arith.mulf %101, %100 : vector<64x32xf32>
    %cst_97 = arith.constant -1.45315206 : f32
    %103 = vector.broadcast %cst_97 : f32 to vector<64x32xf32>
    %104 = arith.addf %102, %103 : vector<64x32xf32>
    %105 = arith.mulf %104, %100 : vector<64x32xf32>
    %cst_98 = arith.constant 1.42141378 : f32
    %106 = vector.broadcast %cst_98 : f32 to vector<64x32xf32>
    %107 = arith.addf %105, %106 : vector<64x32xf32>
    %108 = arith.mulf %107, %100 : vector<64x32xf32>
    %cst_99 = arith.constant -0.284496725 : f32
    %109 = vector.broadcast %cst_99 : f32 to vector<64x32xf32>
    %110 = arith.addf %108, %109 : vector<64x32xf32>
    %111 = arith.mulf %110, %100 : vector<64x32xf32>
    %cst_100 = arith.constant 0.254829586 : f32
    %112 = vector.broadcast %cst_100 : f32 to vector<64x32xf32>
    %113 = arith.addf %111, %112 : vector<64x32xf32>
    %114 = arith.mulf %113, %100 : vector<64x32xf32>
    %cst_101 = arith.constant 0.000000e+00 : f32
    %115 = vector.broadcast %cst_101 : f32 to vector<64x32xf32>
    %116 = arith.subf %115, %94 : vector<64x32xf32>
    %117 = arith.mulf %116, %94 : vector<64x32xf32>
    %118 = math.exp %117 : vector<64x32xf32>
    %119 = arith.mulf %114, %118 : vector<64x32xf32>
    %cst_102 = arith.constant 1.000000e+00 : f32
    %120 = vector.broadcast %cst_102 : f32 to vector<64x32xf32>
    %121 = arith.subf %120, %119 : vector<64x32xf32>
    %122 = arith.mulf %93, %121 : vector<64x32xf32>
    %cst_103 = arith.constant 1.000000e+00 : f32
    %123 = vector.broadcast %cst_103 : f32 to vector<64x32xf32>
    %124 = arith.addf %123, %122 : vector<64x32xf32>
    %125 = arith.mulf %86, %124 : vector<64x32xf32>
    %c0_104 = arith.constant 0 : index
    %c0_105 = arith.constant 0 : index
    %c0_106 = arith.constant 0 : index
    %126 = vector.load %arg4[%c0_104, %c0_105, %c0_106] : memref<1x64x32xf32, #tpu.memory_space<vmem>>, vector<1x64x32xf32>
    %127 = vector.shape_cast %126 : vector<1x64x32xf32> to vector<64x32xf32>
    %128 = vector.shape_cast %125 : vector<64x32xf32> to vector<1x64x32xf32>
    tpu.vector_store %arg4[%c0_104, %c0_105, %c0_106], %128 {strides = array<i32>} : memref<1x64x32xf32, #tpu.memory_space<vmem>>, vector<1x64x32xf32>,
    return
  }
  func.func @transform_0(%arg0: i32) -> (i32, i32, i32, i32, i32) {
    %c0_i32 = arith.constant 0 : i32
    %c0_i32_0 = arith.constant 0 : i32
    %c0_i32_1 = arith.constant 0 : i32
    %c0_i32_2 = arith.constant 0 : i32
    %c0_i32_3 = arith.constant 0 : i32
    return %arg0, %c0_i32, %c0_i32_0, %c0_i32_1, %c0_i32_2 : i32, i32, i32, i32, i32
  }
  func.func @transform_1(%arg0: i32) -> (i32, i32, i32, i32) {
    %c0_i32 = arith.constant 0 : i32
    %c0_i32_0 = arith.constant 0 : i32
    %c0_i32_1 = arith.constant 0 : i32
    %c0_i32_2 = arith.constant 0 : i32
    %c0_i32_3 = arith.constant 0 : i32
    return %c0_i32, %c0_i32_0, %c0_i32_1, %c0_i32_2 : i32, i32, i32, i32
  }
  func.func @transform_2(%arg0: i32) -> (i32, i32) {
    %c0_i32 = arith.constant 0 : i32
    %c0_i32_0 = arith.constant 0 : i32
    %c0_i32_1 = arith.constant 0 : i32
    return %c0_i32, %c0_i32_0 : i32, i32
  }
  func.func @transform_3(%arg0: i32) -> (i32, i32, i32) {
    %c0_i32 = arith.constant 0 : i32
    %c0_i32_0 = arith.constant 0 : i32
    %c0_i32_1 = arith.constant 0 : i32
    return %arg0, %c0_i32, %c0_i32_0 : i32, i32, i32
  }
}

module attributes {stable_mosaic.version = 11 : i64} {
  func.func @_conv3x3_kernel(%arg0: i32, %arg1: memref<1x2x10x5x32xf32, #tpu.memory_space<vmem>>, %arg2: memref<3x3x32x128xf32, #tpu.memory_space<vmem>>, %arg3: memref<1x128xf32, #tpu.memory_space<vmem>>, %arg4: memref<1x32x128xf32, #tpu.memory_space<vmem>>) attributes {dimension_semantics = [#tpu.dimension_semantics<parallel>], iteration_bounds = array<i64: 2>, scalar_prefetch = 0 : i64, scratch_operands = 0 : i64, tpu.core_type = #tpu.core_type<tc>, window_params = [{transform_indices = @transform_0, window_bounds = array<i64: 1, 2, 10, 5, 32>}, {pipeline_mode = #tpu.pipeline_mode<synchronous>, transform_indices = @transform_1, window_bounds = array<i64: 3, 3, 32, 128>}, {pipeline_mode = #tpu.pipeline_mode<synchronous>, transform_indices = @transform_2, window_bounds = array<i64: 1, 128>}, {transform_indices = @transform_3, window_bounds = array<i64: 1, 32, 128>}]} {
    %cst = arith.constant 0.000000e+00 : f32
    %0 = vector.broadcast %cst : f32 to vector<32x128xf32>
    %c0 = arith.constant 0 : index
    %c0_0 = arith.constant 0 : index
    %c0_1 = arith.constant 0 : index
    %c0_2 = arith.constant 0 : index
    %c0_3 = arith.constant 0 : index
    %1 = vector.load %arg1[%c0, %c0_0, %c0_1, %c0_2, %c0_3] : memref<1x2x10x5x32xf32, #tpu.memory_space<vmem>>, vector<1x1x8x4x32xf32>
    %2 = vector.shape_cast %1 : vector<1x1x8x4x32xf32> to vector<8x4x32xf32>
    %3 = vector.shape_cast %2 : vector<8x4x32xf32> to vector<32x32xf32>
    %c0_4 = arith.constant 0 : index
    %c0_5 = arith.constant 0 : index
    %c0_6 = arith.constant 0 : index
    %c0_7 = arith.constant 0 : index
    %4 = vector.load %arg2[%c0_4, %c0_5, %c0_6, %c0_7] : memref<3x3x32x128xf32, #tpu.memory_space<vmem>>, vector<1x1x32x128xf32>
    %5 = vector.shape_cast %4 : vector<1x1x32x128xf32> to vector<32x128xf32>
    %6 = arith.truncf %3 : vector<32x32xf32> to vector<32x32xbf16>
    %7 = arith.truncf %5 : vector<32x128xf32> to vector<32x128xbf16>
    %cst_8 = arith.constant dense<0.000000e+00> : vector<32x128xf32>
    %8 = tpu.matmul %6, %7, %cst_8 {dimension_numbers = #tpu.dot_dimension_numbers<[1], [0], [0], [1], [0, 0, 1, 1], [], []>} : vector<32x32xbf16>, vector<32x128xbf16>, vector<32x128xf32> -> vector<32x128xf32>
    %9 = arith.addf %0, %8 : vector<32x128xf32>
    %c0_9 = arith.constant 0 : index
    %c1 = arith.constant 1 : index
    %c0_10 = arith.constant 0 : index
    %c0_11 = arith.constant 0 : index
    %c0_12 = arith.constant 0 : index
    %10 = vector.load %arg1[%c0_9, %c1, %c0_10, %c0_11, %c0_12] : memref<1x2x10x5x32xf32, #tpu.memory_space<vmem>>, vector<1x1x8x4x32xf32>
    %11 = vector.shape_cast %10 : vector<1x1x8x4x32xf32> to vector<8x4x32xf32>
    %12 = vector.shape_cast %11 : vector<8x4x32xf32> to vector<32x32xf32>
    %c0_13 = arith.constant 0 : index
    %c1_14 = arith.constant 1 : index
    %c0_15 = arith.constant 0 : index
    %c0_16 = arith.constant 0 : index
    %13 = vector.load %arg2[%c0_13, %c1_14, %c0_15, %c0_16] : memref<3x3x32x128xf32, #tpu.memory_space<vmem>>, vector<1x1x32x128xf32>
    %14 = vector.shape_cast %13 : vector<1x1x32x128xf32> to vector<32x128xf32>
    %15 = arith.truncf %12 : vector<32x32xf32> to vector<32x32xbf16>
    %16 = arith.truncf %14 : vector<32x128xf32> to vector<32x128xbf16>
    %cst_17 = arith.constant dense<0.000000e+00> : vector<32x128xf32>
    %17 = tpu.matmul %15, %16, %cst_17 {dimension_numbers = #tpu.dot_dimension_numbers<[1], [0], [0], [1], [0, 0, 1, 1], [], []>} : vector<32x32xbf16>, vector<32x128xbf16>, vector<32x128xf32> -> vector<32x128xf32>
    %18 = arith.addf %9, %17 : vector<32x128xf32>
    %c0_18 = arith.constant 0 : index
    %c0_19 = arith.constant 0 : index
    %c0_20 = arith.constant 0 : index
    %c1_21 = arith.constant 1 : index
    %c0_22 = arith.constant 0 : index
    %19 = vector.load %arg1[%c0_18, %c0_19, %c0_20, %c1_21, %c0_22] : memref<1x2x10x5x32xf32, #tpu.memory_space<vmem>>, vector<1x1x8x4x32xf32>
    %20 = vector.shape_cast %19 : vector<1x1x8x4x32xf32> to vector<8x4x32xf32>
    %21 = vector.shape_cast %20 : vector<8x4x32xf32> to vector<32x32xf32>
    %c0_23 = arith.constant 0 : index
    %c2 = arith.constant 2 : index
    %c0_24 = arith.constant 0 : index
    %c0_25 = arith.constant 0 : index
    %22 = vector.load %arg2[%c0_23, %c2, %c0_24, %c0_25] : memref<3x3x32x128xf32, #tpu.memory_space<vmem>>, vector<1x1x32x128xf32>
    %23 = vector.shape_cast %22 : vector<1x1x32x128xf32> to vector<32x128xf32>
    %24 = arith.truncf %21 : vector<32x32xf32> to vector<32x32xbf16>
    %25 = arith.truncf %23 : vector<32x128xf32> to vector<32x128xbf16>
    %cst_26 = arith.constant dense<0.000000e+00> : vector<32x128xf32>
    %26 = tpu.matmul %24, %25, %cst_26 {dimension_numbers = #tpu.dot_dimension_numbers<[1], [0], [0], [1], [0, 0, 1, 1], [], []>} : vector<32x32xbf16>, vector<32x128xbf16>, vector<32x128xf32> -> vector<32x128xf32>
    %27 = arith.addf %18, %26 : vector<32x128xf32>
    %c0_27 = arith.constant 0 : index
    %c0_28 = arith.constant 0 : index
    %c1_29 = arith.constant 1 : index
    %c0_30 = arith.constant 0 : index
    %c0_31 = arith.constant 0 : index
    %28 = vector.load %arg1[%c0_27, %c0_28, %c1_29, %c0_30, %c0_31] : memref<1x2x10x5x32xf32, #tpu.memory_space<vmem>>, vector<1x1x8x4x32xf32>
    %29 = vector.shape_cast %28 : vector<1x1x8x4x32xf32> to vector<8x4x32xf32>
    %30 = vector.shape_cast %29 : vector<8x4x32xf32> to vector<32x32xf32>
    %c1_32 = arith.constant 1 : index
    %c0_33 = arith.constant 0 : index
    %c0_34 = arith.constant 0 : index
    %c0_35 = arith.constant 0 : index
    %31 = vector.load %arg2[%c1_32, %c0_33, %c0_34, %c0_35] : memref<3x3x32x128xf32, #tpu.memory_space<vmem>>, vector<1x1x32x128xf32>
    %32 = vector.shape_cast %31 : vector<1x1x32x128xf32> to vector<32x128xf32>
    %33 = arith.truncf %30 : vector<32x32xf32> to vector<32x32xbf16>
    %34 = arith.truncf %32 : vector<32x128xf32> to vector<32x128xbf16>
    %cst_36 = arith.constant dense<0.000000e+00> : vector<32x128xf32>
    %35 = tpu.matmul %33, %34, %cst_36 {dimension_numbers = #tpu.dot_dimension_numbers<[1], [0], [0], [1], [0, 0, 1, 1], [], []>} : vector<32x32xbf16>, vector<32x128xbf16>, vector<32x128xf32> -> vector<32x128xf32>
    %36 = arith.addf %27, %35 : vector<32x128xf32>
    %c0_37 = arith.constant 0 : index
    %c1_38 = arith.constant 1 : index
    %c1_39 = arith.constant 1 : index
    %c0_40 = arith.constant 0 : index
    %c0_41 = arith.constant 0 : index
    %37 = vector.load %arg1[%c0_37, %c1_38, %c1_39, %c0_40, %c0_41] : memref<1x2x10x5x32xf32, #tpu.memory_space<vmem>>, vector<1x1x8x4x32xf32>
    %38 = vector.shape_cast %37 : vector<1x1x8x4x32xf32> to vector<8x4x32xf32>
    %39 = vector.shape_cast %38 : vector<8x4x32xf32> to vector<32x32xf32>
    %c1_42 = arith.constant 1 : index
    %c1_43 = arith.constant 1 : index
    %c0_44 = arith.constant 0 : index
    %c0_45 = arith.constant 0 : index
    %40 = vector.load %arg2[%c1_42, %c1_43, %c0_44, %c0_45] : memref<3x3x32x128xf32, #tpu.memory_space<vmem>>, vector<1x1x32x128xf32>
    %41 = vector.shape_cast %40 : vector<1x1x32x128xf32> to vector<32x128xf32>
    %42 = arith.truncf %39 : vector<32x32xf32> to vector<32x32xbf16>
    %43 = arith.truncf %41 : vector<32x128xf32> to vector<32x128xbf16>
    %cst_46 = arith.constant dense<0.000000e+00> : vector<32x128xf32>
    %44 = tpu.matmul %42, %43, %cst_46 {dimension_numbers = #tpu.dot_dimension_numbers<[1], [0], [0], [1], [0, 0, 1, 1], [], []>} : vector<32x32xbf16>, vector<32x128xbf16>, vector<32x128xf32> -> vector<32x128xf32>
    %45 = arith.addf %36, %44 : vector<32x128xf32>
    %c0_47 = arith.constant 0 : index
    %c0_48 = arith.constant 0 : index
    %c1_49 = arith.constant 1 : index
    %c1_50 = arith.constant 1 : index
    %c0_51 = arith.constant 0 : index
    %46 = vector.load %arg1[%c0_47, %c0_48, %c1_49, %c1_50, %c0_51] : memref<1x2x10x5x32xf32, #tpu.memory_space<vmem>>, vector<1x1x8x4x32xf32>
    %47 = vector.shape_cast %46 : vector<1x1x8x4x32xf32> to vector<8x4x32xf32>
    %48 = vector.shape_cast %47 : vector<8x4x32xf32> to vector<32x32xf32>
    %c1_52 = arith.constant 1 : index
    %c2_53 = arith.constant 2 : index
    %c0_54 = arith.constant 0 : index
    %c0_55 = arith.constant 0 : index
    %49 = vector.load %arg2[%c1_52, %c2_53, %c0_54, %c0_55] : memref<3x3x32x128xf32, #tpu.memory_space<vmem>>, vector<1x1x32x128xf32>
    %50 = vector.shape_cast %49 : vector<1x1x32x128xf32> to vector<32x128xf32>
    %51 = arith.truncf %48 : vector<32x32xf32> to vector<32x32xbf16>
    %52 = arith.truncf %50 : vector<32x128xf32> to vector<32x128xbf16>
    %cst_56 = arith.constant dense<0.000000e+00> : vector<32x128xf32>
    %53 = tpu.matmul %51, %52, %cst_56 {dimension_numbers = #tpu.dot_dimension_numbers<[1], [0], [0], [1], [0, 0, 1, 1], [], []>} : vector<32x32xbf16>, vector<32x128xbf16>, vector<32x128xf32> -> vector<32x128xf32>
    %54 = arith.addf %45, %53 : vector<32x128xf32>
    %c0_57 = arith.constant 0 : index
    %c0_58 = arith.constant 0 : index
    %c2_59 = arith.constant 2 : index
    %c0_60 = arith.constant 0 : index
    %c0_61 = arith.constant 0 : index
    %55 = vector.load %arg1[%c0_57, %c0_58, %c2_59, %c0_60, %c0_61] : memref<1x2x10x5x32xf32, #tpu.memory_space<vmem>>, vector<1x1x8x4x32xf32>
    %56 = vector.shape_cast %55 : vector<1x1x8x4x32xf32> to vector<8x4x32xf32>
    %57 = vector.shape_cast %56 : vector<8x4x32xf32> to vector<32x32xf32>
    %c2_62 = arith.constant 2 : index
    %c0_63 = arith.constant 0 : index
    %c0_64 = arith.constant 0 : index
    %c0_65 = arith.constant 0 : index
    %58 = vector.load %arg2[%c2_62, %c0_63, %c0_64, %c0_65] : memref<3x3x32x128xf32, #tpu.memory_space<vmem>>, vector<1x1x32x128xf32>
    %59 = vector.shape_cast %58 : vector<1x1x32x128xf32> to vector<32x128xf32>
    %60 = arith.truncf %57 : vector<32x32xf32> to vector<32x32xbf16>
    %61 = arith.truncf %59 : vector<32x128xf32> to vector<32x128xbf16>
    %cst_66 = arith.constant dense<0.000000e+00> : vector<32x128xf32>
    %62 = tpu.matmul %60, %61, %cst_66 {dimension_numbers = #tpu.dot_dimension_numbers<[1], [0], [0], [1], [0, 0, 1, 1], [], []>} : vector<32x32xbf16>, vector<32x128xbf16>, vector<32x128xf32> -> vector<32x128xf32>
    %63 = arith.addf %54, %62 : vector<32x128xf32>
    %c0_67 = arith.constant 0 : index
    %c1_68 = arith.constant 1 : index
    %c2_69 = arith.constant 2 : index
    %c0_70 = arith.constant 0 : index
    %c0_71 = arith.constant 0 : index
    %64 = vector.load %arg1[%c0_67, %c1_68, %c2_69, %c0_70, %c0_71] : memref<1x2x10x5x32xf32, #tpu.memory_space<vmem>>, vector<1x1x8x4x32xf32>
    %65 = vector.shape_cast %64 : vector<1x1x8x4x32xf32> to vector<8x4x32xf32>
    %66 = vector.shape_cast %65 : vector<8x4x32xf32> to vector<32x32xf32>
    %c2_72 = arith.constant 2 : index
    %c1_73 = arith.constant 1 : index
    %c0_74 = arith.constant 0 : index
    %c0_75 = arith.constant 0 : index
    %67 = vector.load %arg2[%c2_72, %c1_73, %c0_74, %c0_75] : memref<3x3x32x128xf32, #tpu.memory_space<vmem>>, vector<1x1x32x128xf32>
    %68 = vector.shape_cast %67 : vector<1x1x32x128xf32> to vector<32x128xf32>
    %69 = arith.truncf %66 : vector<32x32xf32> to vector<32x32xbf16>
    %70 = arith.truncf %68 : vector<32x128xf32> to vector<32x128xbf16>
    %cst_76 = arith.constant dense<0.000000e+00> : vector<32x128xf32>
    %71 = tpu.matmul %69, %70, %cst_76 {dimension_numbers = #tpu.dot_dimension_numbers<[1], [0], [0], [1], [0, 0, 1, 1], [], []>} : vector<32x32xbf16>, vector<32x128xbf16>, vector<32x128xf32> -> vector<32x128xf32>
    %72 = arith.addf %63, %71 : vector<32x128xf32>
    %c0_77 = arith.constant 0 : index
    %c0_78 = arith.constant 0 : index
    %c2_79 = arith.constant 2 : index
    %c1_80 = arith.constant 1 : index
    %c0_81 = arith.constant 0 : index
    %73 = vector.load %arg1[%c0_77, %c0_78, %c2_79, %c1_80, %c0_81] : memref<1x2x10x5x32xf32, #tpu.memory_space<vmem>>, vector<1x1x8x4x32xf32>
    %74 = vector.shape_cast %73 : vector<1x1x8x4x32xf32> to vector<8x4x32xf32>
    %75 = vector.shape_cast %74 : vector<8x4x32xf32> to vector<32x32xf32>
    %c2_82 = arith.constant 2 : index
    %c2_83 = arith.constant 2 : index
    %c0_84 = arith.constant 0 : index
    %c0_85 = arith.constant 0 : index
    %76 = vector.load %arg2[%c2_82, %c2_83, %c0_84, %c0_85] : memref<3x3x32x128xf32, #tpu.memory_space<vmem>>, vector<1x1x32x128xf32>
    %77 = vector.shape_cast %76 : vector<1x1x32x128xf32> to vector<32x128xf32>
    %78 = arith.truncf %75 : vector<32x32xf32> to vector<32x32xbf16>
    %79 = arith.truncf %77 : vector<32x128xf32> to vector<32x128xbf16>
    %cst_86 = arith.constant dense<0.000000e+00> : vector<32x128xf32>
    %80 = tpu.matmul %78, %79, %cst_86 {dimension_numbers = #tpu.dot_dimension_numbers<[1], [0], [0], [1], [0, 0, 1, 1], [], []>} : vector<32x32xbf16>, vector<32x128xbf16>, vector<32x128xf32> -> vector<32x128xf32>
    %81 = arith.addf %72, %80 : vector<32x128xf32>
    %c0_87 = arith.constant 0 : index
    %c0_88 = arith.constant 0 : index
    %82 = vector.load %arg3[%c0_87, %c0_88] : memref<1x128xf32, #tpu.memory_space<vmem>>, vector<1x128xf32>
    %83 = vector.broadcast %82 : vector<1x128xf32> to vector<32x128xf32>
    %84 = arith.addf %81, %83 : vector<32x128xf32>
    %cst_89 = arith.constant 5.000000e-01 : f32
    %85 = vector.broadcast %cst_89 : f32 to vector<32x128xf32>
    %86 = arith.mulf %85, %84 : vector<32x128xf32>
    %cst_90 = arith.constant 0.707106769 : f32
    %87 = vector.broadcast %cst_90 : f32 to vector<32x128xf32>
    %88 = arith.mulf %84, %87 : vector<32x128xf32>
    %cst_91 = arith.constant 0.000000e+00 : f32
    %89 = vector.broadcast %cst_91 : f32 to vector<32x128xf32>
    %90 = arith.cmpf oge, %88, %89 : vector<32x128xf32>
    %cst_92 = arith.constant 1.000000e+00 : f32
    %cst_93 = arith.constant -1.000000e+00 : f32
    %91 = vector.broadcast %cst_92 : f32 to vector<32x128xf32>
    %92 = vector.broadcast %cst_93 : f32 to vector<32x128xf32>
    %93 = arith.select %90, %91, %92 : vector<32x128xi1>, vector<32x128xf32>
    %94 = math.absf %88 : vector<32x128xf32>
    %cst_94 = arith.constant 0.327591091 : f32
    %95 = vector.broadcast %cst_94 : f32 to vector<32x128xf32>
    %96 = arith.mulf %95, %94 : vector<32x128xf32>
    %cst_95 = arith.constant 1.000000e+00 : f32
    %97 = vector.broadcast %cst_95 : f32 to vector<32x128xf32>
    %98 = arith.addf %97, %96 : vector<32x128xf32>
    %cst_96 = arith.constant 1.000000e+00 : f32
    %99 = vector.broadcast %cst_96 : f32 to vector<32x128xf32>
    %100 = arith.divf %99, %98 : vector<32x128xf32>
    %cst_97 = arith.constant 1.06140542 : f32
    %101 = vector.broadcast %cst_97 : f32 to vector<32x128xf32>
    %102 = arith.mulf %101, %100 : vector<32x128xf32>
    %cst_98 = arith.constant -1.45315206 : f32
    %103 = vector.broadcast %cst_98 : f32 to vector<32x128xf32>
    %104 = arith.addf %102, %103 : vector<32x128xf32>
    %105 = arith.mulf %104, %100 : vector<32x128xf32>
    %cst_99 = arith.constant 1.42141378 : f32
    %106 = vector.broadcast %cst_99 : f32 to vector<32x128xf32>
    %107 = arith.addf %105, %106 : vector<32x128xf32>
    %108 = arith.mulf %107, %100 : vector<32x128xf32>
    %cst_100 = arith.constant -0.284496725 : f32
    %109 = vector.broadcast %cst_100 : f32 to vector<32x128xf32>
    %110 = arith.addf %108, %109 : vector<32x128xf32>
    %111 = arith.mulf %110, %100 : vector<32x128xf32>
    %cst_101 = arith.constant 0.254829586 : f32
    %112 = vector.broadcast %cst_101 : f32 to vector<32x128xf32>
    %113 = arith.addf %111, %112 : vector<32x128xf32>
    %114 = arith.mulf %113, %100 : vector<32x128xf32>
    %cst_102 = arith.constant 0.000000e+00 : f32
    %115 = vector.broadcast %cst_102 : f32 to vector<32x128xf32>
    %116 = arith.subf %115, %94 : vector<32x128xf32>
    %117 = arith.mulf %116, %94 : vector<32x128xf32>
    %118 = math.exp %117 : vector<32x128xf32>
    %119 = arith.mulf %114, %118 : vector<32x128xf32>
    %cst_103 = arith.constant 1.000000e+00 : f32
    %120 = vector.broadcast %cst_103 : f32 to vector<32x128xf32>
    %121 = arith.subf %120, %119 : vector<32x128xf32>
    %122 = arith.mulf %93, %121 : vector<32x128xf32>
    %cst_104 = arith.constant 1.000000e+00 : f32
    %123 = vector.broadcast %cst_104 : f32 to vector<32x128xf32>
    %124 = arith.addf %123, %122 : vector<32x128xf32>
    %125 = arith.mulf %86, %124 : vector<32x128xf32>
    %c0_105 = arith.constant 0 : index
    %c0_106 = arith.constant 0 : index
    %c0_107 = arith.constant 0 : index
    %126 = vector.load %arg4[%c0_105, %c0_106, %c0_107] : memref<1x32x128xf32, #tpu.memory_space<vmem>>, vector<1x32x128xf32>
    %127 = vector.shape_cast %126 : vector<1x32x128xf32> to vector<32x128xf32>
    %128 = vector.shape_cast %125 : vector<32x128xf32> to vector<1x32x128xf32>
    tpu.vector_store %arg4[%c0_105, %c0_106, %c0_107], %128 {strides = array<i32>} : memref<1x32x128xf32, #tpu.memory_space<vmem>>, vector<1x32x128xf32>,
    return
  }
  func.func @transform_0(%arg0: i32) -> (i32, i32, i32, i32, i32) {
    %c0_i32 = arith.constant 0 : i32
    %c0_i32_0 = arith.constant 0 : i32
    %c0_i32_1 = arith.constant 0 : i32
    %c0_i32_2 = arith.constant 0 : i32
    %c0_i32_3 = arith.constant 0 : i32
    return %arg0, %c0_i32, %c0_i32_0, %c0_i32_1, %c0_i32_2 : i32, i32, i32, i32, i32
  }
  func.func @transform_1(%arg0: i32) -> (i32, i32, i32, i32) {
    %c0_i32 = arith.constant 0 : i32
    %c0_i32_0 = arith.constant 0 : i32
    %c0_i32_1 = arith.constant 0 : i32
    %c0_i32_2 = arith.constant 0 : i32
    %c0_i32_3 = arith.constant 0 : i32
    return %c0_i32, %c0_i32_0, %c0_i32_1, %c0_i32_2 : i32, i32, i32, i32
  }
  func.func @transform_2(%arg0: i32) -> (i32, i32) {
    %c0_i32 = arith.constant 0 : i32
    %c0_i32_0 = arith.constant 0 : i32
    %c0_i32_1 = arith.constant 0 : i32
    return %c0_i32, %c0_i32_0 : i32, i32
  }
  func.func @transform_3(%arg0: i32) -> (i32, i32, i32) {
    %c0_i32 = arith.constant 0 : i32
    %c0_i32_0 = arith.constant 0 : i32
    %c0_i32_1 = arith.constant 0 : i32
    return %arg0, %c0_i32, %c0_i32_0 : i32, i32, i32
  }
}

module attributes {stable_mosaic.version = 11 : i64} {
  func.func @_dwconv7_kernel(%arg0: i32, %arg1: memref<1x14x10x128xf32, #tpu.memory_space<vmem>>, %arg2: memref<7x7x1x128xf32, #tpu.memory_space<vmem>>, %arg3: memref<1x128xf32, #tpu.memory_space<vmem>>, %arg4: memref<1x8x4x128xf32, #tpu.memory_space<vmem>>) attributes {dimension_semantics = [#tpu.dimension_semantics<parallel>], iteration_bounds = array<i64: 2>, scalar_prefetch = 0 : i64, scratch_operands = 0 : i64, tpu.core_type = #tpu.core_type<tc>, window_params = [{transform_indices = @transform_0, window_bounds = array<i64: 1, 14, 10, 128>}, {pipeline_mode = #tpu.pipeline_mode<synchronous>, transform_indices = @transform_1, window_bounds = array<i64: 7, 7, 1, 128>}, {pipeline_mode = #tpu.pipeline_mode<synchronous>, transform_indices = @transform_2, window_bounds = array<i64: 1, 128>}, {transform_indices = @transform_3, window_bounds = array<i64: 1, 8, 4, 128>}]} {
    %c0 = arith.constant 0 : index
    %c0_0 = arith.constant 0 : index
    %c0_1 = arith.constant 0 : index
    %c0_2 = arith.constant 0 : index
    %0 = vector.load %arg2[%c0, %c0_0, %c0_1, %c0_2] : memref<7x7x1x128xf32, #tpu.memory_space<vmem>>, vector<7x7x1x128xf32>
    %c0_3 = arith.constant 0 : index
    %c0_4 = arith.constant 0 : index
    %1 = vector.load %arg3[%c0_3, %c0_4] : memref<1x128xf32, #tpu.memory_space<vmem>>, vector<1x128xf32>
    %c0_i32 = arith.constant 0 : i32
    %c8_i32 = arith.constant 8 : i32
    %2 = arith.addi %c0_i32, %c8_i32 : i32
    %c1_i32 = arith.constant 1 : i32
    scf.for %arg5 = %c0_i32 to %2 step %c1_i32  : i32 {
      %c1_i32_6 = arith.constant 1 : i32
      %3 = arith.muli %arg5, %c1_i32_6 : i32
      %c0_i32_7 = arith.constant 0 : i32
      %4 = arith.addi %c0_i32_7, %3 : i32
      %cst = arith.constant 0.000000e+00 : f32
      %5 = vector.broadcast %cst : f32 to vector<4x128xf32>
      %c0_i32_8 = arith.constant 0 : i32
      %6 = arith.addi %4, %c0_i32_8 : i32
      %c0_9 = arith.constant 0 : index
      %7 = arith.index_cast %6 : i32 to index
      %c0_10 = arith.constant 0 : index
      %c0_11 = arith.constant 0 : index
      %8 = vector.load %arg1[%c0_9, %7, %c0_10, %c0_11] : memref<1x14x10x128xf32, #tpu.memory_space<vmem>>, vector<1x1x4x128xf32>
      %9 = vector.shape_cast %8 : vector<1x1x4x128xf32> to vector<4x128xf32>
      %10 = vector.extract_strided_slice %0 {offsets = [0, 0, 0, 0], sizes = [1, 1, 1, 128], strides = [1, 1, 1, 1]} : vector<7x7x1x128xf32> to vector<1x1x1x128xf32>
      %11 = vector.shape_cast %10 : vector<1x1x1x128xf32> to vector<1x128xf32>
      %12 = vector.broadcast %11 : vector<1x128xf32> to vector<4x128xf32>
      %13 = arith.mulf %9, %12 : vector<4x128xf32>
      %14 = arith.addf %5, %13 : vector<4x128xf32>
      %c0_i32_12 = arith.constant 0 : i32
      %15 = arith.addi %4, %c0_i32_12 : i32
      %c0_13 = arith.constant 0 : index
      %16 = arith.index_cast %15 : i32 to index
      %c1 = arith.constant 1 : index
      %c0_14 = arith.constant 0 : index
      %17 = vector.load %arg1[%c0_13, %16, %c1, %c0_14] : memref<1x14x10x128xf32, #tpu.memory_space<vmem>>, vector<1x1x4x128xf32>
      %18 = vector.shape_cast %17 : vector<1x1x4x128xf32> to vector<4x128xf32>
      %19 = vector.extract_strided_slice %0 {offsets = [0, 1, 0, 0], sizes = [1, 1, 1, 128], strides = [1, 1, 1, 1]} : vector<7x7x1x128xf32> to vector<1x1x1x128xf32>
      %20 = vector.shape_cast %19 : vector<1x1x1x128xf32> to vector<1x128xf32>
      %21 = vector.broadcast %20 : vector<1x128xf32> to vector<4x128xf32>
      %22 = arith.mulf %18, %21 : vector<4x128xf32>
      %23 = arith.addf %14, %22 : vector<4x128xf32>
      %c0_i32_15 = arith.constant 0 : i32
      %24 = arith.addi %4, %c0_i32_15 : i32
      %c0_16 = arith.constant 0 : index
      %25 = arith.index_cast %24 : i32 to index
      %c2 = arith.constant 2 : index
      %c0_17 = arith.constant 0 : index
      %26 = vector.load %arg1[%c0_16, %25, %c2, %c0_17] : memref<1x14x10x128xf32, #tpu.memory_space<vmem>>, vector<1x1x4x128xf32>
      %27 = vector.shape_cast %26 : vector<1x1x4x128xf32> to vector<4x128xf32>
      %28 = vector.extract_strided_slice %0 {offsets = [0, 2, 0, 0], sizes = [1, 1, 1, 128], strides = [1, 1, 1, 1]} : vector<7x7x1x128xf32> to vector<1x1x1x128xf32>
      %29 = vector.shape_cast %28 : vector<1x1x1x128xf32> to vector<1x128xf32>
      %30 = vector.broadcast %29 : vector<1x128xf32> to vector<4x128xf32>
      %31 = arith.mulf %27, %30 : vector<4x128xf32>
      %32 = arith.addf %23, %31 : vector<4x128xf32>
      %c0_i32_18 = arith.constant 0 : i32
      %33 = arith.addi %4, %c0_i32_18 : i32
      %c0_19 = arith.constant 0 : index
      %34 = arith.index_cast %33 : i32 to index
      %c3 = arith.constant 3 : index
      %c0_20 = arith.constant 0 : index
      %35 = vector.load %arg1[%c0_19, %34, %c3, %c0_20] : memref<1x14x10x128xf32, #tpu.memory_space<vmem>>, vector<1x1x4x128xf32>
      %36 = vector.shape_cast %35 : vector<1x1x4x128xf32> to vector<4x128xf32>
      %37 = vector.extract_strided_slice %0 {offsets = [0, 3, 0, 0], sizes = [1, 1, 1, 128], strides = [1, 1, 1, 1]} : vector<7x7x1x128xf32> to vector<1x1x1x128xf32>
      %38 = vector.shape_cast %37 : vector<1x1x1x128xf32> to vector<1x128xf32>
      %39 = vector.broadcast %38 : vector<1x128xf32> to vector<4x128xf32>
      %40 = arith.mulf %36, %39 : vector<4x128xf32>
      %41 = arith.addf %32, %40 : vector<4x128xf32>
      %c0_i32_21 = arith.constant 0 : i32
      %42 = arith.addi %4, %c0_i32_21 : i32
      %c0_22 = arith.constant 0 : index
      %43 = arith.index_cast %42 : i32 to index
      %c4 = arith.constant 4 : index
      %c0_23 = arith.constant 0 : index
      %44 = vector.load %arg1[%c0_22, %43, %c4, %c0_23] : memref<1x14x10x128xf32, #tpu.memory_space<vmem>>, vector<1x1x4x128xf32>
      %45 = vector.shape_cast %44 : vector<1x1x4x128xf32> to vector<4x128xf32>
      %46 = vector.extract_strided_slice %0 {offsets = [0, 4, 0, 0], sizes = [1, 1, 1, 128], strides = [1, 1, 1, 1]} : vector<7x7x1x128xf32> to vector<1x1x1x128xf32>
      %47 = vector.shape_cast %46 : vector<1x1x1x128xf32> to vector<1x128xf32>
      %48 = vector.broadcast %47 : vector<1x128xf32> to vector<4x128xf32>
      %49 = arith.mulf %45, %48 : vector<4x128xf32>
      %50 = arith.addf %41, %49 : vector<4x128xf32>
      %c0_i32_24 = arith.constant 0 : i32
      %51 = arith.addi %4, %c0_i32_24 : i32
      %c0_25 = arith.constant 0 : index
      %52 = arith.index_cast %51 : i32 to index
      %c5 = arith.constant 5 : index
      %c0_26 = arith.constant 0 : index
      %53 = vector.load %arg1[%c0_25, %52, %c5, %c0_26] : memref<1x14x10x128xf32, #tpu.memory_space<vmem>>, vector<1x1x4x128xf32>
      %54 = vector.shape_cast %53 : vector<1x1x4x128xf32> to vector<4x128xf32>
      %55 = vector.extract_strided_slice %0 {offsets = [0, 5, 0, 0], sizes = [1, 1, 1, 128], strides = [1, 1, 1, 1]} : vector<7x7x1x128xf32> to vector<1x1x1x128xf32>
      %56 = vector.shape_cast %55 : vector<1x1x1x128xf32> to vector<1x128xf32>
      %57 = vector.broadcast %56 : vector<1x128xf32> to vector<4x128xf32>
      %58 = arith.mulf %54, %57 : vector<4x128xf32>
      %59 = arith.addf %50, %58 : vector<4x128xf32>
      %c0_i32_27 = arith.constant 0 : i32
      %60 = arith.addi %4, %c0_i32_27 : i32
      %c0_28 = arith.constant 0 : index
      %61 = arith.index_cast %60 : i32 to index
      %c6 = arith.constant 6 : index
      %c0_29 = arith.constant 0 : index
      %62 = vector.load %arg1[%c0_28, %61, %c6, %c0_29] : memref<1x14x10x128xf32, #tpu.memory_space<vmem>>, vector<1x1x4x128xf32>
      %63 = vector.shape_cast %62 : vector<1x1x4x128xf32> to vector<4x128xf32>
      %64 = vector.extract_strided_slice %0 {offsets = [0, 6, 0, 0], sizes = [1, 1, 1, 128], strides = [1, 1, 1, 1]} : vector<7x7x1x128xf32> to vector<1x1x1x128xf32>
      %65 = vector.shape_cast %64 : vector<1x1x1x128xf32> to vector<1x128xf32>
      %66 = vector.broadcast %65 : vector<1x128xf32> to vector<4x128xf32>
      %67 = arith.mulf %63, %66 : vector<4x128xf32>
      %68 = arith.addf %59, %67 : vector<4x128xf32>
      %c1_i32_30 = arith.constant 1 : i32
      %69 = arith.addi %4, %c1_i32_30 : i32
      %c0_31 = arith.constant 0 : index
      %70 = arith.index_cast %69 : i32 to index
      %c0_32 = arith.constant 0 : index
      %c0_33 = arith.constant 0 : index
      %71 = vector.load %arg1[%c0_31, %70, %c0_32, %c0_33] : memref<1x14x10x128xf32, #tpu.memory_space<vmem>>, vector<1x1x4x128xf32>
      %72 = vector.shape_cast %71 : vector<1x1x4x128xf32> to vector<4x128xf32>
      %73 = vector.extract_strided_slice %0 {offsets = [1, 0, 0, 0], sizes = [1, 1, 1, 128], strides = [1, 1, 1, 1]} : vector<7x7x1x128xf32> to vector<1x1x1x128xf32>
      %74 = vector.shape_cast %73 : vector<1x1x1x128xf32> to vector<1x128xf32>
      %75 = vector.broadcast %74 : vector<1x128xf32> to vector<4x128xf32>
      %76 = arith.mulf %72, %75 : vector<4x128xf32>
      %77 = arith.addf %68, %76 : vector<4x128xf32>
      %c1_i32_34 = arith.constant 1 : i32
      %78 = arith.addi %4, %c1_i32_34 : i32
      %c0_35 = arith.constant 0 : index
      %79 = arith.index_cast %78 : i32 to index
      %c1_36 = arith.constant 1 : index
      %c0_37 = arith.constant 0 : index
      %80 = vector.load %arg1[%c0_35, %79, %c1_36, %c0_37] : memref<1x14x10x128xf32, #tpu.memory_space<vmem>>, vector<1x1x4x128xf32>
      %81 = vector.shape_cast %80 : vector<1x1x4x128xf32> to vector<4x128xf32>
      %82 = vector.extract_strided_slice %0 {offsets = [1, 1, 0, 0], sizes = [1, 1, 1, 128], strides = [1, 1, 1, 1]} : vector<7x7x1x128xf32> to vector<1x1x1x128xf32>
      %83 = vector.shape_cast %82 : vector<1x1x1x128xf32> to vector<1x128xf32>
      %84 = vector.broadcast %83 : vector<1x128xf32> to vector<4x128xf32>
      %85 = arith.mulf %81, %84 : vector<4x128xf32>
      %86 = arith.addf %77, %85 : vector<4x128xf32>
      %c1_i32_38 = arith.constant 1 : i32
      %87 = arith.addi %4, %c1_i32_38 : i32
      %c0_39 = arith.constant 0 : index
      %88 = arith.index_cast %87 : i32 to index
      %c2_40 = arith.constant 2 : index
      %c0_41 = arith.constant 0 : index
      %89 = vector.load %arg1[%c0_39, %88, %c2_40, %c0_41] : memref<1x14x10x128xf32, #tpu.memory_space<vmem>>, vector<1x1x4x128xf32>
      %90 = vector.shape_cast %89 : vector<1x1x4x128xf32> to vector<4x128xf32>
      %91 = vector.extract_strided_slice %0 {offsets = [1, 2, 0, 0], sizes = [1, 1, 1, 128], strides = [1, 1, 1, 1]} : vector<7x7x1x128xf32> to vector<1x1x1x128xf32>
      %92 = vector.shape_cast %91 : vector<1x1x1x128xf32> to vector<1x128xf32>
      %93 = vector.broadcast %92 : vector<1x128xf32> to vector<4x128xf32>
      %94 = arith.mulf %90, %93 : vector<4x128xf32>
      %95 = arith.addf %86, %94 : vector<4x128xf32>
      %c1_i32_42 = arith.constant 1 : i32
      %96 = arith.addi %4, %c1_i32_42 : i32
      %c0_43 = arith.constant 0 : index
      %97 = arith.index_cast %96 : i32 to index
      %c3_44 = arith.constant 3 : index
      %c0_45 = arith.constant 0 : index
      %98 = vector.load %arg1[%c0_43, %97, %c3_44, %c0_45] : memref<1x14x10x128xf32, #tpu.memory_space<vmem>>, vector<1x1x4x128xf32>
      %99 = vector.shape_cast %98 : vector<1x1x4x128xf32> to vector<4x128xf32>
      %100 = vector.extract_strided_slice %0 {offsets = [1, 3, 0, 0], sizes = [1, 1, 1, 128], strides = [1, 1, 1, 1]} : vector<7x7x1x128xf32> to vector<1x1x1x128xf32>
      %101 = vector.shape_cast %100 : vector<1x1x1x128xf32> to vector<1x128xf32>
      %102 = vector.broadcast %101 : vector<1x128xf32> to vector<4x128xf32>
      %103 = arith.mulf %99, %102 : vector<4x128xf32>
      %104 = arith.addf %95, %103 : vector<4x128xf32>
      %c1_i32_46 = arith.constant 1 : i32
      %105 = arith.addi %4, %c1_i32_46 : i32
      %c0_47 = arith.constant 0 : index
      %106 = arith.index_cast %105 : i32 to index
      %c4_48 = arith.constant 4 : index
      %c0_49 = arith.constant 0 : index
      %107 = vector.load %arg1[%c0_47, %106, %c4_48, %c0_49] : memref<1x14x10x128xf32, #tpu.memory_space<vmem>>, vector<1x1x4x128xf32>
      %108 = vector.shape_cast %107 : vector<1x1x4x128xf32> to vector<4x128xf32>
      %109 = vector.extract_strided_slice %0 {offsets = [1, 4, 0, 0], sizes = [1, 1, 1, 128], strides = [1, 1, 1, 1]} : vector<7x7x1x128xf32> to vector<1x1x1x128xf32>
      %110 = vector.shape_cast %109 : vector<1x1x1x128xf32> to vector<1x128xf32>
      %111 = vector.broadcast %110 : vector<1x128xf32> to vector<4x128xf32>
      %112 = arith.mulf %108, %111 : vector<4x128xf32>
      %113 = arith.addf %104, %112 : vector<4x128xf32>
      %c1_i32_50 = arith.constant 1 : i32
      %114 = arith.addi %4, %c1_i32_50 : i32
      %c0_51 = arith.constant 0 : index
      %115 = arith.index_cast %114 : i32 to index
      %c5_52 = arith.constant 5 : index
      %c0_53 = arith.constant 0 : index
      %116 = vector.load %arg1[%c0_51, %115, %c5_52, %c0_53] : memref<1x14x10x128xf32, #tpu.memory_space<vmem>>, vector<1x1x4x128xf32>
      %117 = vector.shape_cast %116 : vector<1x1x4x128xf32> to vector<4x128xf32>
      %118 = vector.extract_strided_slice %0 {offsets = [1, 5, 0, 0], sizes = [1, 1, 1, 128], strides = [1, 1, 1, 1]} : vector<7x7x1x128xf32> to vector<1x1x1x128xf32>
      %119 = vector.shape_cast %118 : vector<1x1x1x128xf32> to vector<1x128xf32>
      %120 = vector.broadcast %119 : vector<1x128xf32> to vector<4x128xf32>
      %121 = arith.mulf %117, %120 : vector<4x128xf32>
      %122 = arith.addf %113, %121 : vector<4x128xf32>
      %c1_i32_54 = arith.constant 1 : i32
      %123 = arith.addi %4, %c1_i32_54 : i32
      %c0_55 = arith.constant 0 : index
      %124 = arith.index_cast %123 : i32 to index
      %c6_56 = arith.constant 6 : index
      %c0_57 = arith.constant 0 : index
      %125 = vector.load %arg1[%c0_55, %124, %c6_56, %c0_57] : memref<1x14x10x128xf32, #tpu.memory_space<vmem>>, vector<1x1x4x128xf32>
      %126 = vector.shape_cast %125 : vector<1x1x4x128xf32> to vector<4x128xf32>
      %127 = vector.extract_strided_slice %0 {offsets = [1, 6, 0, 0], sizes = [1, 1, 1, 128], strides = [1, 1, 1, 1]} : vector<7x7x1x128xf32> to vector<1x1x1x128xf32>
      %128 = vector.shape_cast %127 : vector<1x1x1x128xf32> to vector<1x128xf32>
      %129 = vector.broadcast %128 : vector<1x128xf32> to vector<4x128xf32>
      %130 = arith.mulf %126, %129 : vector<4x128xf32>
      %131 = arith.addf %122, %130 : vector<4x128xf32>
      %c2_i32 = arith.constant 2 : i32
      %132 = arith.addi %4, %c2_i32 : i32
      %c0_58 = arith.constant 0 : index
      %133 = arith.index_cast %132 : i32 to index
      %c0_59 = arith.constant 0 : index
      %c0_60 = arith.constant 0 : index
      %134 = vector.load %arg1[%c0_58, %133, %c0_59, %c0_60] : memref<1x14x10x128xf32, #tpu.memory_space<vmem>>, vector<1x1x4x128xf32>
      %135 = vector.shape_cast %134 : vector<1x1x4x128xf32> to vector<4x128xf32>
      %136 = vector.extract_strided_slice %0 {offsets = [2, 0, 0, 0], sizes = [1, 1, 1, 128], strides = [1, 1, 1, 1]} : vector<7x7x1x128xf32> to vector<1x1x1x128xf32>
      %137 = vector.shape_cast %136 : vector<1x1x1x128xf32> to vector<1x128xf32>
      %138 = vector.broadcast %137 : vector<1x128xf32> to vector<4x128xf32>
      %139 = arith.mulf %135, %138 : vector<4x128xf32>
      %140 = arith.addf %131, %139 : vector<4x128xf32>
      %c2_i32_61 = arith.constant 2 : i32
      %141 = arith.addi %4, %c2_i32_61 : i32
      %c0_62 = arith.constant 0 : index
      %142 = arith.index_cast %141 : i32 to index
      %c1_63 = arith.constant 1 : index
      %c0_64 = arith.constant 0 : index
      %143 = vector.load %arg1[%c0_62, %142, %c1_63, %c0_64] : memref<1x14x10x128xf32, #tpu.memory_space<vmem>>, vector<1x1x4x128xf32>
      %144 = vector.shape_cast %143 : vector<1x1x4x128xf32> to vector<4x128xf32>
      %145 = vector.extract_strided_slice %0 {offsets = [2, 1, 0, 0], sizes = [1, 1, 1, 128], strides = [1, 1, 1, 1]} : vector<7x7x1x128xf32> to vector<1x1x1x128xf32>
      %146 = vector.shape_cast %145 : vector<1x1x1x128xf32> to vector<1x128xf32>
      %147 = vector.broadcast %146 : vector<1x128xf32> to vector<4x128xf32>
      %148 = arith.mulf %144, %147 : vector<4x128xf32>
      %149 = arith.addf %140, %148 : vector<4x128xf32>
      %c2_i32_65 = arith.constant 2 : i32
      %150 = arith.addi %4, %c2_i32_65 : i32
      %c0_66 = arith.constant 0 : index
      %151 = arith.index_cast %150 : i32 to index
      %c2_67 = arith.constant 2 : index
      %c0_68 = arith.constant 0 : index
      %152 = vector.load %arg1[%c0_66, %151, %c2_67, %c0_68] : memref<1x14x10x128xf32, #tpu.memory_space<vmem>>, vector<1x1x4x128xf32>
      %153 = vector.shape_cast %152 : vector<1x1x4x128xf32> to vector<4x128xf32>
      %154 = vector.extract_strided_slice %0 {offsets = [2, 2, 0, 0], sizes = [1, 1, 1, 128], strides = [1, 1, 1, 1]} : vector<7x7x1x128xf32> to vector<1x1x1x128xf32>
      %155 = vector.shape_cast %154 : vector<1x1x1x128xf32> to vector<1x128xf32>
      %156 = vector.broadcast %155 : vector<1x128xf32> to vector<4x128xf32>
      %157 = arith.mulf %153, %156 : vector<4x128xf32>
      %158 = arith.addf %149, %157 : vector<4x128xf32>
      %c2_i32_69 = arith.constant 2 : i32
      %159 = arith.addi %4, %c2_i32_69 : i32
      %c0_70 = arith.constant 0 : index
      %160 = arith.index_cast %159 : i32 to index
      %c3_71 = arith.constant 3 : index
      %c0_72 = arith.constant 0 : index
      %161 = vector.load %arg1[%c0_70, %160, %c3_71, %c0_72] : memref<1x14x10x128xf32, #tpu.memory_space<vmem>>, vector<1x1x4x128xf32>
      %162 = vector.shape_cast %161 : vector<1x1x4x128xf32> to vector<4x128xf32>
      %163 = vector.extract_strided_slice %0 {offsets = [2, 3, 0, 0], sizes = [1, 1, 1, 128], strides = [1, 1, 1, 1]} : vector<7x7x1x128xf32> to vector<1x1x1x128xf32>
      %164 = vector.shape_cast %163 : vector<1x1x1x128xf32> to vector<1x128xf32>
      %165 = vector.broadcast %164 : vector<1x128xf32> to vector<4x128xf32>
      %166 = arith.mulf %162, %165 : vector<4x128xf32>
      %167 = arith.addf %158, %166 : vector<4x128xf32>
      %c2_i32_73 = arith.constant 2 : i32
      %168 = arith.addi %4, %c2_i32_73 : i32
      %c0_74 = arith.constant 0 : index
      %169 = arith.index_cast %168 : i32 to index
      %c4_75 = arith.constant 4 : index
      %c0_76 = arith.constant 0 : index
      %170 = vector.load %arg1[%c0_74, %169, %c4_75, %c0_76] : memref<1x14x10x128xf32, #tpu.memory_space<vmem>>, vector<1x1x4x128xf32>
      %171 = vector.shape_cast %170 : vector<1x1x4x128xf32> to vector<4x128xf32>
      %172 = vector.extract_strided_slice %0 {offsets = [2, 4, 0, 0], sizes = [1, 1, 1, 128], strides = [1, 1, 1, 1]} : vector<7x7x1x128xf32> to vector<1x1x1x128xf32>
      %173 = vector.shape_cast %172 : vector<1x1x1x128xf32> to vector<1x128xf32>
      %174 = vector.broadcast %173 : vector<1x128xf32> to vector<4x128xf32>
      %175 = arith.mulf %171, %174 : vector<4x128xf32>
      %176 = arith.addf %167, %175 : vector<4x128xf32>
      %c2_i32_77 = arith.constant 2 : i32
      %177 = arith.addi %4, %c2_i32_77 : i32
      %c0_78 = arith.constant 0 : index
      %178 = arith.index_cast %177 : i32 to index
      %c5_79 = arith.constant 5 : index
      %c0_80 = arith.constant 0 : index
      %179 = vector.load %arg1[%c0_78, %178, %c5_79, %c0_80] : memref<1x14x10x128xf32, #tpu.memory_space<vmem>>, vector<1x1x4x128xf32>
      %180 = vector.shape_cast %179 : vector<1x1x4x128xf32> to vector<4x128xf32>
      %181 = vector.extract_strided_slice %0 {offsets = [2, 5, 0, 0], sizes = [1, 1, 1, 128], strides = [1, 1, 1, 1]} : vector<7x7x1x128xf32> to vector<1x1x1x128xf32>
      %182 = vector.shape_cast %181 : vector<1x1x1x128xf32> to vector<1x128xf32>
      %183 = vector.broadcast %182 : vector<1x128xf32> to vector<4x128xf32>
      %184 = arith.mulf %180, %183 : vector<4x128xf32>
      %185 = arith.addf %176, %184 : vector<4x128xf32>
      %c2_i32_81 = arith.constant 2 : i32
      %186 = arith.addi %4, %c2_i32_81 : i32
      %c0_82 = arith.constant 0 : index
      %187 = arith.index_cast %186 : i32 to index
      %c6_83 = arith.constant 6 : index
      %c0_84 = arith.constant 0 : index
      %188 = vector.load %arg1[%c0_82, %187, %c6_83, %c0_84] : memref<1x14x10x128xf32, #tpu.memory_space<vmem>>, vector<1x1x4x128xf32>
      %189 = vector.shape_cast %188 : vector<1x1x4x128xf32> to vector<4x128xf32>
      %190 = vector.extract_strided_slice %0 {offsets = [2, 6, 0, 0], sizes = [1, 1, 1, 128], strides = [1, 1, 1, 1]} : vector<7x7x1x128xf32> to vector<1x1x1x128xf32>
      %191 = vector.shape_cast %190 : vector<1x1x1x128xf32> to vector<1x128xf32>
      %192 = vector.broadcast %191 : vector<1x128xf32> to vector<4x128xf32>
      %193 = arith.mulf %189, %192 : vector<4x128xf32>
      %194 = arith.addf %185, %193 : vector<4x128xf32>
      %c3_i32 = arith.constant 3 : i32
      %195 = arith.addi %4, %c3_i32 : i32
      %c0_85 = arith.constant 0 : index
      %196 = arith.index_cast %195 : i32 to index
      %c0_86 = arith.constant 0 : index
      %c0_87 = arith.constant 0 : index
      %197 = vector.load %arg1[%c0_85, %196, %c0_86, %c0_87] : memref<1x14x10x128xf32, #tpu.memory_space<vmem>>, vector<1x1x4x128xf32>
      %198 = vector.shape_cast %197 : vector<1x1x4x128xf32> to vector<4x128xf32>
      %199 = vector.extract_strided_slice %0 {offsets = [3, 0, 0, 0], sizes = [1, 1, 1, 128], strides = [1, 1, 1, 1]} : vector<7x7x1x128xf32> to vector<1x1x1x128xf32>
      %200 = vector.shape_cast %199 : vector<1x1x1x128xf32> to vector<1x128xf32>
      %201 = vector.broadcast %200 : vector<1x128xf32> to vector<4x128xf32>
      %202 = arith.mulf %198, %201 : vector<4x128xf32>
      %203 = arith.addf %194, %202 : vector<4x128xf32>
      %c3_i32_88 = arith.constant 3 : i32
      %204 = arith.addi %4, %c3_i32_88 : i32
      %c0_89 = arith.constant 0 : index
      %205 = arith.index_cast %204 : i32 to index
      %c1_90 = arith.constant 1 : index
      %c0_91 = arith.constant 0 : index
      %206 = vector.load %arg1[%c0_89, %205, %c1_90, %c0_91] : memref<1x14x10x128xf32, #tpu.memory_space<vmem>>, vector<1x1x4x128xf32>
      %207 = vector.shape_cast %206 : vector<1x1x4x128xf32> to vector<4x128xf32>
      %208 = vector.extract_strided_slice %0 {offsets = [3, 1, 0, 0], sizes = [1, 1, 1, 128], strides = [1, 1, 1, 1]} : vector<7x7x1x128xf32> to vector<1x1x1x128xf32>
      %209 = vector.shape_cast %208 : vector<1x1x1x128xf32> to vector<1x128xf32>
      %210 = vector.broadcast %209 : vector<1x128xf32> to vector<4x128xf32>
      %211 = arith.mulf %207, %210 : vector<4x128xf32>
      %212 = arith.addf %203, %211 : vector<4x128xf32>
      %c3_i32_92 = arith.constant 3 : i32
      %213 = arith.addi %4, %c3_i32_92 : i32
      %c0_93 = arith.constant 0 : index
      %214 = arith.index_cast %213 : i32 to index
      %c2_94 = arith.constant 2 : index
      %c0_95 = arith.constant 0 : index
      %215 = vector.load %arg1[%c0_93, %214, %c2_94, %c0_95] : memref<1x14x10x128xf32, #tpu.memory_space<vmem>>, vector<1x1x4x128xf32>
      %216 = vector.shape_cast %215 : vector<1x1x4x128xf32> to vector<4x128xf32>
      %217 = vector.extract_strided_slice %0 {offsets = [3, 2, 0, 0], sizes = [1, 1, 1, 128], strides = [1, 1, 1, 1]} : vector<7x7x1x128xf32> to vector<1x1x1x128xf32>
      %218 = vector.shape_cast %217 : vector<1x1x1x128xf32> to vector<1x128xf32>
      %219 = vector.broadcast %218 : vector<1x128xf32> to vector<4x128xf32>
      %220 = arith.mulf %216, %219 : vector<4x128xf32>
      %221 = arith.addf %212, %220 : vector<4x128xf32>
      %c3_i32_96 = arith.constant 3 : i32
      %222 = arith.addi %4, %c3_i32_96 : i32
      %c0_97 = arith.constant 0 : index
      %223 = arith.index_cast %222 : i32 to index
      %c3_98 = arith.constant 3 : index
      %c0_99 = arith.constant 0 : index
      %224 = vector.load %arg1[%c0_97, %223, %c3_98, %c0_99] : memref<1x14x10x128xf32, #tpu.memory_space<vmem>>, vector<1x1x4x128xf32>
      %225 = vector.shape_cast %224 : vector<1x1x4x128xf32> to vector<4x128xf32>
      %226 = vector.extract_strided_slice %0 {offsets = [3, 3, 0, 0], sizes = [1, 1, 1, 128], strides = [1, 1, 1, 1]} : vector<7x7x1x128xf32> to vector<1x1x1x128xf32>
      %227 = vector.shape_cast %226 : vector<1x1x1x128xf32> to vector<1x128xf32>
      %228 = vector.broadcast %227 : vector<1x128xf32> to vector<4x128xf32>
      %229 = arith.mulf %225, %228 : vector<4x128xf32>
      %230 = arith.addf %221, %229 : vector<4x128xf32>
      %c3_i32_100 = arith.constant 3 : i32
      %231 = arith.addi %4, %c3_i32_100 : i32
      %c0_101 = arith.constant 0 : index
      %232 = arith.index_cast %231 : i32 to index
      %c4_102 = arith.constant 4 : index
      %c0_103 = arith.constant 0 : index
      %233 = vector.load %arg1[%c0_101, %232, %c4_102, %c0_103] : memref<1x14x10x128xf32, #tpu.memory_space<vmem>>, vector<1x1x4x128xf32>
      %234 = vector.shape_cast %233 : vector<1x1x4x128xf32> to vector<4x128xf32>
      %235 = vector.extract_strided_slice %0 {offsets = [3, 4, 0, 0], sizes = [1, 1, 1, 128], strides = [1, 1, 1, 1]} : vector<7x7x1x128xf32> to vector<1x1x1x128xf32>
      %236 = vector.shape_cast %235 : vector<1x1x1x128xf32> to vector<1x128xf32>
      %237 = vector.broadcast %236 : vector<1x128xf32> to vector<4x128xf32>
      %238 = arith.mulf %234, %237 : vector<4x128xf32>
      %239 = arith.addf %230, %238 : vector<4x128xf32>
      %c3_i32_104 = arith.constant 3 : i32
      %240 = arith.addi %4, %c3_i32_104 : i32
      %c0_105 = arith.constant 0 : index
      %241 = arith.index_cast %240 : i32 to index
      %c5_106 = arith.constant 5 : index
      %c0_107 = arith.constant 0 : index
      %242 = vector.load %arg1[%c0_105, %241, %c5_106, %c0_107] : memref<1x14x10x128xf32, #tpu.memory_space<vmem>>, vector<1x1x4x128xf32>
      %243 = vector.shape_cast %242 : vector<1x1x4x128xf32> to vector<4x128xf32>
      %244 = vector.extract_strided_slice %0 {offsets = [3, 5, 0, 0], sizes = [1, 1, 1, 128], strides = [1, 1, 1, 1]} : vector<7x7x1x128xf32> to vector<1x1x1x128xf32>
      %245 = vector.shape_cast %244 : vector<1x1x1x128xf32> to vector<1x128xf32>
      %246 = vector.broadcast %245 : vector<1x128xf32> to vector<4x128xf32>
      %247 = arith.mulf %243, %246 : vector<4x128xf32>
      %248 = arith.addf %239, %247 : vector<4x128xf32>
      %c3_i32_108 = arith.constant 3 : i32
      %249 = arith.addi %4, %c3_i32_108 : i32
      %c0_109 = arith.constant 0 : index
      %250 = arith.index_cast %249 : i32 to index
      %c6_110 = arith.constant 6 : index
      %c0_111 = arith.constant 0 : index
      %251 = vector.load %arg1[%c0_109, %250, %c6_110, %c0_111] : memref<1x14x10x128xf32, #tpu.memory_space<vmem>>, vector<1x1x4x128xf32>
      %252 = vector.shape_cast %251 : vector<1x1x4x128xf32> to vector<4x128xf32>
      %253 = vector.extract_strided_slice %0 {offsets = [3, 6, 0, 0], sizes = [1, 1, 1, 128], strides = [1, 1, 1, 1]} : vector<7x7x1x128xf32> to vector<1x1x1x128xf32>
      %254 = vector.shape_cast %253 : vector<1x1x1x128xf32> to vector<1x128xf32>
      %255 = vector.broadcast %254 : vector<1x128xf32> to vector<4x128xf32>
      %256 = arith.mulf %252, %255 : vector<4x128xf32>
      %257 = arith.addf %248, %256 : vector<4x128xf32>
      %c4_i32 = arith.constant 4 : i32
      %258 = arith.addi %4, %c4_i32 : i32
      %c0_112 = arith.constant 0 : index
      %259 = arith.index_cast %258 : i32 to index
      %c0_113 = arith.constant 0 : index
      %c0_114 = arith.constant 0 : index
      %260 = vector.load %arg1[%c0_112, %259, %c0_113, %c0_114] : memref<1x14x10x128xf32, #tpu.memory_space<vmem>>, vector<1x1x4x128xf32>
      %261 = vector.shape_cast %260 : vector<1x1x4x128xf32> to vector<4x128xf32>
      %262 = vector.extract_strided_slice %0 {offsets = [4, 0, 0, 0], sizes = [1, 1, 1, 128], strides = [1, 1, 1, 1]} : vector<7x7x1x128xf32> to vector<1x1x1x128xf32>
      %263 = vector.shape_cast %262 : vector<1x1x1x128xf32> to vector<1x128xf32>
      %264 = vector.broadcast %263 : vector<1x128xf32> to vector<4x128xf32>
      %265 = arith.mulf %261, %264 : vector<4x128xf32>
      %266 = arith.addf %257, %265 : vector<4x128xf32>
      %c4_i32_115 = arith.constant 4 : i32
      %267 = arith.addi %4, %c4_i32_115 : i32
      %c0_116 = arith.constant 0 : index
      %268 = arith.index_cast %267 : i32 to index
      %c1_117 = arith.constant 1 : index
      %c0_118 = arith.constant 0 : index
      %269 = vector.load %arg1[%c0_116, %268, %c1_117, %c0_118] : memref<1x14x10x128xf32, #tpu.memory_space<vmem>>, vector<1x1x4x128xf32>
      %270 = vector.shape_cast %269 : vector<1x1x4x128xf32> to vector<4x128xf32>
      %271 = vector.extract_strided_slice %0 {offsets = [4, 1, 0, 0], sizes = [1, 1, 1, 128], strides = [1, 1, 1, 1]} : vector<7x7x1x128xf32> to vector<1x1x1x128xf32>
      %272 = vector.shape_cast %271 : vector<1x1x1x128xf32> to vector<1x128xf32>
      %273 = vector.broadcast %272 : vector<1x128xf32> to vector<4x128xf32>
      %274 = arith.mulf %270, %273 : vector<4x128xf32>
      %275 = arith.addf %266, %274 : vector<4x128xf32>
      %c4_i32_119 = arith.constant 4 : i32
      %276 = arith.addi %4, %c4_i32_119 : i32
      %c0_120 = arith.constant 0 : index
      %277 = arith.index_cast %276 : i32 to index
      %c2_121 = arith.constant 2 : index
      %c0_122 = arith.constant 0 : index
      %278 = vector.load %arg1[%c0_120, %277, %c2_121, %c0_122] : memref<1x14x10x128xf32, #tpu.memory_space<vmem>>, vector<1x1x4x128xf32>
      %279 = vector.shape_cast %278 : vector<1x1x4x128xf32> to vector<4x128xf32>
      %280 = vector.extract_strided_slice %0 {offsets = [4, 2, 0, 0], sizes = [1, 1, 1, 128], strides = [1, 1, 1, 1]} : vector<7x7x1x128xf32> to vector<1x1x1x128xf32>
      %281 = vector.shape_cast %280 : vector<1x1x1x128xf32> to vector<1x128xf32>
      %282 = vector.broadcast %281 : vector<1x128xf32> to vector<4x128xf32>
      %283 = arith.mulf %279, %282 : vector<4x128xf32>
      %284 = arith.addf %275, %283 : vector<4x128xf32>
      %c4_i32_123 = arith.constant 4 : i32
      %285 = arith.addi %4, %c4_i32_123 : i32
      %c0_124 = arith.constant 0 : index
      %286 = arith.index_cast %285 : i32 to index
      %c3_125 = arith.constant 3 : index
      %c0_126 = arith.constant 0 : index
      %287 = vector.load %arg1[%c0_124, %286, %c3_125, %c0_126] : memref<1x14x10x128xf32, #tpu.memory_space<vmem>>, vector<1x1x4x128xf32>
      %288 = vector.shape_cast %287 : vector<1x1x4x128xf32> to vector<4x128xf32>
      %289 = vector.extract_strided_slice %0 {offsets = [4, 3, 0, 0], sizes = [1, 1, 1, 128], strides = [1, 1, 1, 1]} : vector<7x7x1x128xf32> to vector<1x1x1x128xf32>
      %290 = vector.shape_cast %289 : vector<1x1x1x128xf32> to vector<1x128xf32>
      %291 = vector.broadcast %290 : vector<1x128xf32> to vector<4x128xf32>
      %292 = arith.mulf %288, %291 : vector<4x128xf32>
      %293 = arith.addf %284, %292 : vector<4x128xf32>
      %c4_i32_127 = arith.constant 4 : i32
      %294 = arith.addi %4, %c4_i32_127 : i32
      %c0_128 = arith.constant 0 : index
      %295 = arith.index_cast %294 : i32 to index
      %c4_129 = arith.constant 4 : index
      %c0_130 = arith.constant 0 : index
      %296 = vector.load %arg1[%c0_128, %295, %c4_129, %c0_130] : memref<1x14x10x128xf32, #tpu.memory_space<vmem>>, vector<1x1x4x128xf32>
      %297 = vector.shape_cast %296 : vector<1x1x4x128xf32> to vector<4x128xf32>
      %298 = vector.extract_strided_slice %0 {offsets = [4, 4, 0, 0], sizes = [1, 1, 1, 128], strides = [1, 1, 1, 1]} : vector<7x7x1x128xf32> to vector<1x1x1x128xf32>
      %299 = vector.shape_cast %298 : vector<1x1x1x128xf32> to vector<1x128xf32>
      %300 = vector.broadcast %299 : vector<1x128xf32> to vector<4x128xf32>
      %301 = arith.mulf %297, %300 : vector<4x128xf32>
      %302 = arith.addf %293, %301 : vector<4x128xf32>
      %c4_i32_131 = arith.constant 4 : i32
      %303 = arith.addi %4, %c4_i32_131 : i32
      %c0_132 = arith.constant 0 : index
      %304 = arith.index_cast %303 : i32 to index
      %c5_133 = arith.constant 5 : index
      %c0_134 = arith.constant 0 : index
      %305 = vector.load %arg1[%c0_132, %304, %c5_133, %c0_134] : memref<1x14x10x128xf32, #tpu.memory_space<vmem>>, vector<1x1x4x128xf32>
      %306 = vector.shape_cast %305 : vector<1x1x4x128xf32> to vector<4x128xf32>
      %307 = vector.extract_strided_slice %0 {offsets = [4, 5, 0, 0], sizes = [1, 1, 1, 128], strides = [1, 1, 1, 1]} : vector<7x7x1x128xf32> to vector<1x1x1x128xf32>
      %308 = vector.shape_cast %307 : vector<1x1x1x128xf32> to vector<1x128xf32>
      %309 = vector.broadcast %308 : vector<1x128xf32> to vector<4x128xf32>
      %310 = arith.mulf %306, %309 : vector<4x128xf32>
      %311 = arith.addf %302, %310 : vector<4x128xf32>
      %c4_i32_135 = arith.constant 4 : i32
      %312 = arith.addi %4, %c4_i32_135 : i32
      %c0_136 = arith.constant 0 : index
      %313 = arith.index_cast %312 : i32 to index
      %c6_137 = arith.constant 6 : index
      %c0_138 = arith.constant 0 : index
      %314 = vector.load %arg1[%c0_136, %313, %c6_137, %c0_138] : memref<1x14x10x128xf32, #tpu.memory_space<vmem>>, vector<1x1x4x128xf32>
      %315 = vector.shape_cast %314 : vector<1x1x4x128xf32> to vector<4x128xf32>
      %316 = vector.extract_strided_slice %0 {offsets = [4, 6, 0, 0], sizes = [1, 1, 1, 128], strides = [1, 1, 1, 1]} : vector<7x7x1x128xf32> to vector<1x1x1x128xf32>
      %317 = vector.shape_cast %316 : vector<1x1x1x128xf32> to vector<1x128xf32>
      %318 = vector.broadcast %317 : vector<1x128xf32> to vector<4x128xf32>
      %319 = arith.mulf %315, %318 : vector<4x128xf32>
      %320 = arith.addf %311, %319 : vector<4x128xf32>
      %c5_i32 = arith.constant 5 : i32
      %321 = arith.addi %4, %c5_i32 : i32
      %c0_139 = arith.constant 0 : index
      %322 = arith.index_cast %321 : i32 to index
      %c0_140 = arith.constant 0 : index
      %c0_141 = arith.constant 0 : index
      %323 = vector.load %arg1[%c0_139, %322, %c0_140, %c0_141] : memref<1x14x10x128xf32, #tpu.memory_space<vmem>>, vector<1x1x4x128xf32>
      %324 = vector.shape_cast %323 : vector<1x1x4x128xf32> to vector<4x128xf32>
      %325 = vector.extract_strided_slice %0 {offsets = [5, 0, 0, 0], sizes = [1, 1, 1, 128], strides = [1, 1, 1, 1]} : vector<7x7x1x128xf32> to vector<1x1x1x128xf32>
      %326 = vector.shape_cast %325 : vector<1x1x1x128xf32> to vector<1x128xf32>
      %327 = vector.broadcast %326 : vector<1x128xf32> to vector<4x128xf32>
      %328 = arith.mulf %324, %327 : vector<4x128xf32>
      %329 = arith.addf %320, %328 : vector<4x128xf32>
      %c5_i32_142 = arith.constant 5 : i32
      %330 = arith.addi %4, %c5_i32_142 : i32
      %c0_143 = arith.constant 0 : index
      %331 = arith.index_cast %330 : i32 to index
      %c1_144 = arith.constant 1 : index
      %c0_145 = arith.constant 0 : index
      %332 = vector.load %arg1[%c0_143, %331, %c1_144, %c0_145] : memref<1x14x10x128xf32, #tpu.memory_space<vmem>>, vector<1x1x4x128xf32>
      %333 = vector.shape_cast %332 : vector<1x1x4x128xf32> to vector<4x128xf32>
      %334 = vector.extract_strided_slice %0 {offsets = [5, 1, 0, 0], sizes = [1, 1, 1, 128], strides = [1, 1, 1, 1]} : vector<7x7x1x128xf32> to vector<1x1x1x128xf32>
      %335 = vector.shape_cast %334 : vector<1x1x1x128xf32> to vector<1x128xf32>
      %336 = vector.broadcast %335 : vector<1x128xf32> to vector<4x128xf32>
      %337 = arith.mulf %333, %336 : vector<4x128xf32>
      %338 = arith.addf %329, %337 : vector<4x128xf32>
      %c5_i32_146 = arith.constant 5 : i32
      %339 = arith.addi %4, %c5_i32_146 : i32
      %c0_147 = arith.constant 0 : index
      %340 = arith.index_cast %339 : i32 to index
      %c2_148 = arith.constant 2 : index
      %c0_149 = arith.constant 0 : index
      %341 = vector.load %arg1[%c0_147, %340, %c2_148, %c0_149] : memref<1x14x10x128xf32, #tpu.memory_space<vmem>>, vector<1x1x4x128xf32>
      %342 = vector.shape_cast %341 : vector<1x1x4x128xf32> to vector<4x128xf32>
      %343 = vector.extract_strided_slice %0 {offsets = [5, 2, 0, 0], sizes = [1, 1, 1, 128], strides = [1, 1, 1, 1]} : vector<7x7x1x128xf32> to vector<1x1x1x128xf32>
      %344 = vector.shape_cast %343 : vector<1x1x1x128xf32> to vector<1x128xf32>
      %345 = vector.broadcast %344 : vector<1x128xf32> to vector<4x128xf32>
      %346 = arith.mulf %342, %345 : vector<4x128xf32>
      %347 = arith.addf %338, %346 : vector<4x128xf32>
      %c5_i32_150 = arith.constant 5 : i32
      %348 = arith.addi %4, %c5_i32_150 : i32
      %c0_151 = arith.constant 0 : index
      %349 = arith.index_cast %348 : i32 to index
      %c3_152 = arith.constant 3 : index
      %c0_153 = arith.constant 0 : index
      %350 = vector.load %arg1[%c0_151, %349, %c3_152, %c0_153] : memref<1x14x10x128xf32, #tpu.memory_space<vmem>>, vector<1x1x4x128xf32>
      %351 = vector.shape_cast %350 : vector<1x1x4x128xf32> to vector<4x128xf32>
      %352 = vector.extract_strided_slice %0 {offsets = [5, 3, 0, 0], sizes = [1, 1, 1, 128], strides = [1, 1, 1, 1]} : vector<7x7x1x128xf32> to vector<1x1x1x128xf32>
      %353 = vector.shape_cast %352 : vector<1x1x1x128xf32> to vector<1x128xf32>
      %354 = vector.broadcast %353 : vector<1x128xf32> to vector<4x128xf32>
      %355 = arith.mulf %351, %354 : vector<4x128xf32>
      %356 = arith.addf %347, %355 : vector<4x128xf32>
      %c5_i32_154 = arith.constant 5 : i32
      %357 = arith.addi %4, %c5_i32_154 : i32
      %c0_155 = arith.constant 0 : index
      %358 = arith.index_cast %357 : i32 to index
      %c4_156 = arith.constant 4 : index
      %c0_157 = arith.constant 0 : index
      %359 = vector.load %arg1[%c0_155, %358, %c4_156, %c0_157] : memref<1x14x10x128xf32, #tpu.memory_space<vmem>>, vector<1x1x4x128xf32>
      %360 = vector.shape_cast %359 : vector<1x1x4x128xf32> to vector<4x128xf32>
      %361 = vector.extract_strided_slice %0 {offsets = [5, 4, 0, 0], sizes = [1, 1, 1, 128], strides = [1, 1, 1, 1]} : vector<7x7x1x128xf32> to vector<1x1x1x128xf32>
      %362 = vector.shape_cast %361 : vector<1x1x1x128xf32> to vector<1x128xf32>
      %363 = vector.broadcast %362 : vector<1x128xf32> to vector<4x128xf32>
      %364 = arith.mulf %360, %363 : vector<4x128xf32>
      %365 = arith.addf %356, %364 : vector<4x128xf32>
      %c5_i32_158 = arith.constant 5 : i32
      %366 = arith.addi %4, %c5_i32_158 : i32
      %c0_159 = arith.constant 0 : index
      %367 = arith.index_cast %366 : i32 to index
      %c5_160 = arith.constant 5 : index
      %c0_161 = arith.constant 0 : index
      %368 = vector.load %arg1[%c0_159, %367, %c5_160, %c0_161] : memref<1x14x10x128xf32, #tpu.memory_space<vmem>>, vector<1x1x4x128xf32>
      %369 = vector.shape_cast %368 : vector<1x1x4x128xf32> to vector<4x128xf32>
      %370 = vector.extract_strided_slice %0 {offsets = [5, 5, 0, 0], sizes = [1, 1, 1, 128], strides = [1, 1, 1, 1]} : vector<7x7x1x128xf32> to vector<1x1x1x128xf32>
      %371 = vector.shape_cast %370 : vector<1x1x1x128xf32> to vector<1x128xf32>
      %372 = vector.broadcast %371 : vector<1x128xf32> to vector<4x128xf32>
      %373 = arith.mulf %369, %372 : vector<4x128xf32>
      %374 = arith.addf %365, %373 : vector<4x128xf32>
      %c5_i32_162 = arith.constant 5 : i32
      %375 = arith.addi %4, %c5_i32_162 : i32
      %c0_163 = arith.constant 0 : index
      %376 = arith.index_cast %375 : i32 to index
      %c6_164 = arith.constant 6 : index
      %c0_165 = arith.constant 0 : index
      %377 = vector.load %arg1[%c0_163, %376, %c6_164, %c0_165] : memref<1x14x10x128xf32, #tpu.memory_space<vmem>>, vector<1x1x4x128xf32>
      %378 = vector.shape_cast %377 : vector<1x1x4x128xf32> to vector<4x128xf32>
      %379 = vector.extract_strided_slice %0 {offsets = [5, 6, 0, 0], sizes = [1, 1, 1, 128], strides = [1, 1, 1, 1]} : vector<7x7x1x128xf32> to vector<1x1x1x128xf32>
      %380 = vector.shape_cast %379 : vector<1x1x1x128xf32> to vector<1x128xf32>
      %381 = vector.broadcast %380 : vector<1x128xf32> to vector<4x128xf32>
      %382 = arith.mulf %378, %381 : vector<4x128xf32>
      %383 = arith.addf %374, %382 : vector<4x128xf32>
      %c6_i32 = arith.constant 6 : i32
      %384 = arith.addi %4, %c6_i32 : i32
      %c0_166 = arith.constant 0 : index
      %385 = arith.index_cast %384 : i32 to index
      %c0_167 = arith.constant 0 : index
      %c0_168 = arith.constant 0 : index
      %386 = vector.load %arg1[%c0_166, %385, %c0_167, %c0_168] : memref<1x14x10x128xf32, #tpu.memory_space<vmem>>, vector<1x1x4x128xf32>
      %387 = vector.shape_cast %386 : vector<1x1x4x128xf32> to vector<4x128xf32>
      %388 = vector.extract_strided_slice %0 {offsets = [6, 0, 0, 0], sizes = [1, 1, 1, 128], strides = [1, 1, 1, 1]} : vector<7x7x1x128xf32> to vector<1x1x1x128xf32>
      %389 = vector.shape_cast %388 : vector<1x1x1x128xf32> to vector<1x128xf32>
      %390 = vector.broadcast %389 : vector<1x128xf32> to vector<4x128xf32>
      %391 = arith.mulf %387, %390 : vector<4x128xf32>
      %392 = arith.addf %383, %391 : vector<4x128xf32>
      %c6_i32_169 = arith.constant 6 : i32
      %393 = arith.addi %4, %c6_i32_169 : i32
      %c0_170 = arith.constant 0 : index
      %394 = arith.index_cast %393 : i32 to index
      %c1_171 = arith.constant 1 : index
      %c0_172 = arith.constant 0 : index
      %395 = vector.load %arg1[%c0_170, %394, %c1_171, %c0_172] : memref<1x14x10x128xf32, #tpu.memory_space<vmem>>, vector<1x1x4x128xf32>
      %396 = vector.shape_cast %395 : vector<1x1x4x128xf32> to vector<4x128xf32>
      %397 = vector.extract_strided_slice %0 {offsets = [6, 1, 0, 0], sizes = [1, 1, 1, 128], strides = [1, 1, 1, 1]} : vector<7x7x1x128xf32> to vector<1x1x1x128xf32>
      %398 = vector.shape_cast %397 : vector<1x1x1x128xf32> to vector<1x128xf32>
      %399 = vector.broadcast %398 : vector<1x128xf32> to vector<4x128xf32>
      %400 = arith.mulf %396, %399 : vector<4x128xf32>
      %401 = arith.addf %392, %400 : vector<4x128xf32>
      %c6_i32_173 = arith.constant 6 : i32
      %402 = arith.addi %4, %c6_i32_173 : i32
      %c0_174 = arith.constant 0 : index
      %403 = arith.index_cast %402 : i32 to index
      %c2_175 = arith.constant 2 : index
      %c0_176 = arith.constant 0 : index
      %404 = vector.load %arg1[%c0_174, %403, %c2_175, %c0_176] : memref<1x14x10x128xf32, #tpu.memory_space<vmem>>, vector<1x1x4x128xf32>
      %405 = vector.shape_cast %404 : vector<1x1x4x128xf32> to vector<4x128xf32>
      %406 = vector.extract_strided_slice %0 {offsets = [6, 2, 0, 0], sizes = [1, 1, 1, 128], strides = [1, 1, 1, 1]} : vector<7x7x1x128xf32> to vector<1x1x1x128xf32>
      %407 = vector.shape_cast %406 : vector<1x1x1x128xf32> to vector<1x128xf32>
      %408 = vector.broadcast %407 : vector<1x128xf32> to vector<4x128xf32>
      %409 = arith.mulf %405, %408 : vector<4x128xf32>
      %410 = arith.addf %401, %409 : vector<4x128xf32>
      %c6_i32_177 = arith.constant 6 : i32
      %411 = arith.addi %4, %c6_i32_177 : i32
      %c0_178 = arith.constant 0 : index
      %412 = arith.index_cast %411 : i32 to index
      %c3_179 = arith.constant 3 : index
      %c0_180 = arith.constant 0 : index
      %413 = vector.load %arg1[%c0_178, %412, %c3_179, %c0_180] : memref<1x14x10x128xf32, #tpu.memory_space<vmem>>, vector<1x1x4x128xf32>
      %414 = vector.shape_cast %413 : vector<1x1x4x128xf32> to vector<4x128xf32>
      %415 = vector.extract_strided_slice %0 {offsets = [6, 3, 0, 0], sizes = [1, 1, 1, 128], strides = [1, 1, 1, 1]} : vector<7x7x1x128xf32> to vector<1x1x1x128xf32>
      %416 = vector.shape_cast %415 : vector<1x1x1x128xf32> to vector<1x128xf32>
      %417 = vector.broadcast %416 : vector<1x128xf32> to vector<4x128xf32>
      %418 = arith.mulf %414, %417 : vector<4x128xf32>
      %419 = arith.addf %410, %418 : vector<4x128xf32>
      %c6_i32_181 = arith.constant 6 : i32
      %420 = arith.addi %4, %c6_i32_181 : i32
      %c0_182 = arith.constant 0 : index
      %421 = arith.index_cast %420 : i32 to index
      %c4_183 = arith.constant 4 : index
      %c0_184 = arith.constant 0 : index
      %422 = vector.load %arg1[%c0_182, %421, %c4_183, %c0_184] : memref<1x14x10x128xf32, #tpu.memory_space<vmem>>, vector<1x1x4x128xf32>
      %423 = vector.shape_cast %422 : vector<1x1x4x128xf32> to vector<4x128xf32>
      %424 = vector.extract_strided_slice %0 {offsets = [6, 4, 0, 0], sizes = [1, 1, 1, 128], strides = [1, 1, 1, 1]} : vector<7x7x1x128xf32> to vector<1x1x1x128xf32>
      %425 = vector.shape_cast %424 : vector<1x1x1x128xf32> to vector<1x128xf32>
      %426 = vector.broadcast %425 : vector<1x128xf32> to vector<4x128xf32>
      %427 = arith.mulf %423, %426 : vector<4x128xf32>
      %428 = arith.addf %419, %427 : vector<4x128xf32>
      %c6_i32_185 = arith.constant 6 : i32
      %429 = arith.addi %4, %c6_i32_185 : i32
      %c0_186 = arith.constant 0 : index
      %430 = arith.index_cast %429 : i32 to index
      %c5_187 = arith.constant 5 : index
      %c0_188 = arith.constant 0 : index
      %431 = vector.load %arg1[%c0_186, %430, %c5_187, %c0_188] : memref<1x14x10x128xf32, #tpu.memory_space<vmem>>, vector<1x1x4x128xf32>
      %432 = vector.shape_cast %431 : vector<1x1x4x128xf32> to vector<4x128xf32>
      %433 = vector.extract_strided_slice %0 {offsets = [6, 5, 0, 0], sizes = [1, 1, 1, 128], strides = [1, 1, 1, 1]} : vector<7x7x1x128xf32> to vector<1x1x1x128xf32>
      %434 = vector.shape_cast %433 : vector<1x1x1x128xf32> to vector<1x128xf32>
      %435 = vector.broadcast %434 : vector<1x128xf32> to vector<4x128xf32>
      %436 = arith.mulf %432, %435 : vector<4x128xf32>
      %437 = arith.addf %428, %436 : vector<4x128xf32>
      %c6_i32_189 = arith.constant 6 : i32
      %438 = arith.addi %4, %c6_i32_189 : i32
      %c0_190 = arith.constant 0 : index
      %439 = arith.index_cast %438 : i32 to index
      %c6_191 = arith.constant 6 : index
      %c0_192 = arith.constant 0 : index
      %440 = vector.load %arg1[%c0_190, %439, %c6_191, %c0_192] : memref<1x14x10x128xf32, #tpu.memory_space<vmem>>, vector<1x1x4x128xf32>
      %441 = vector.shape_cast %440 : vector<1x1x4x128xf32> to vector<4x128xf32>
      %442 = vector.extract_strided_slice %0 {offsets = [6, 6, 0, 0], sizes = [1, 1, 1, 128], strides = [1, 1, 1, 1]} : vector<7x7x1x128xf32> to vector<1x1x1x128xf32>
      %443 = vector.shape_cast %442 : vector<1x1x1x128xf32> to vector<1x128xf32>
      %444 = vector.broadcast %443 : vector<1x128xf32> to vector<4x128xf32>
      %445 = arith.mulf %441, %444 : vector<4x128xf32>
      %446 = arith.addf %437, %445 : vector<4x128xf32>
      %447 = vector.broadcast %1 : vector<1x128xf32> to vector<4x128xf32>
      %448 = arith.addf %446, %447 : vector<4x128xf32>
      %c0_193 = arith.constant 0 : index
      %449 = arith.index_cast %4 : i32 to index
      %c0_194 = arith.constant 0 : index
      %c0_195 = arith.constant 0 : index
      %450 = vector.load %arg4[%c0_193, %449, %c0_194, %c0_195] : memref<1x8x4x128xf32, #tpu.memory_space<vmem>>, vector<1x1x4x128xf32>
      %451 = vector.shape_cast %450 : vector<1x1x4x128xf32> to vector<4x128xf32>
      %452 = vector.shape_cast %448 : vector<4x128xf32> to vector<1x1x4x128xf32>
      tpu.vector_store %arg4[%c0_193, %449, %c0_194, %c0_195], %452 {strides = array<i32>} : memref<1x8x4x128xf32, #tpu.memory_space<vmem>>, vector<1x1x4x128xf32>,
    }
    %c8_i32_5 = arith.constant 8 : i32
    return
  }
  func.func @transform_0(%arg0: i32) -> (i32, i32, i32, i32) {
    %c0_i32 = arith.constant 0 : i32
    %c0_i32_0 = arith.constant 0 : i32
    %c0_i32_1 = arith.constant 0 : i32
    %c0_i32_2 = arith.constant 0 : i32
    return %arg0, %c0_i32, %c0_i32_0, %c0_i32_1 : i32, i32, i32, i32
  }
  func.func @transform_1(%arg0: i32) -> (i32, i32, i32, i32) {
    %c0_i32 = arith.constant 0 : i32
    %c0_i32_0 = arith.constant 0 : i32
    %c0_i32_1 = arith.constant 0 : i32
    %c0_i32_2 = arith.constant 0 : i32
    %c0_i32_3 = arith.constant 0 : i32
    return %c0_i32, %c0_i32_0, %c0_i32_1, %c0_i32_2 : i32, i32, i32, i32
  }
  func.func @transform_2(%arg0: i32) -> (i32, i32) {
    %c0_i32 = arith.constant 0 : i32
    %c0_i32_0 = arith.constant 0 : i32
    %c0_i32_1 = arith.constant 0 : i32
    return %c0_i32, %c0_i32_0 : i32, i32
  }
  func.func @transform_3(%arg0: i32) -> (i32, i32, i32, i32) {
    %c0_i32 = arith.constant 0 : i32
    %c0_i32_0 = arith.constant 0 : i32
    %c0_i32_1 = arith.constant 0 : i32
    %c0_i32_2 = arith.constant 0 : i32
    return %arg0, %c0_i32, %c0_i32_0, %c0_i32_1 : i32, i32, i32, i32
  }
}

module attributes {stable_mosaic.version = 11 : i64} {
  func.func @_convnext_mlp_kernel(%arg0: i32, %arg1: memref<64x128xf32, #tpu.memory_space<vmem>>, %arg2: memref<64x128xf32, #tpu.memory_space<vmem>>, %arg3: memref<1x128xf32, #tpu.memory_space<vmem>>, %arg4: memref<1x128xf32, #tpu.memory_space<vmem>>, %arg5: memref<128x512xbf16, #tpu.memory_space<vmem>>, %arg6: memref<1x512xf32, #tpu.memory_space<vmem>>, %arg7: memref<512x128xbf16, #tpu.memory_space<vmem>>, %arg8: memref<1x128xf32, #tpu.memory_space<vmem>>, %arg9: memref<64x128xf32, #tpu.memory_space<vmem>>) attributes {dimension_semantics = [#tpu.dimension_semantics<parallel>], iteration_bounds = array<i64: 1>, scalar_prefetch = 0 : i64, scratch_operands = 0 : i64, tpu.core_type = #tpu.core_type<tc>, window_params = [{transform_indices = @transform_0, window_bounds = array<i64: 64, 128>}, {transform_indices = @transform_1, window_bounds = array<i64: 64, 128>}, {pipeline_mode = #tpu.pipeline_mode<synchronous>, transform_indices = @transform_2, window_bounds = array<i64: 1, 128>}, {pipeline_mode = #tpu.pipeline_mode<synchronous>, transform_indices = @transform_3, window_bounds = array<i64: 1, 128>}, {pipeline_mode = #tpu.pipeline_mode<synchronous>, transform_indices = @transform_4, window_bounds = array<i64: 128, 512>}, {pipeline_mode = #tpu.pipeline_mode<synchronous>, transform_indices = @transform_5, window_bounds = array<i64: 1, 512>}, {pipeline_mode = #tpu.pipeline_mode<synchronous>, transform_indices = @transform_6, window_bounds = array<i64: 512, 128>}, {pipeline_mode = #tpu.pipeline_mode<synchronous>, transform_indices = @transform_7, window_bounds = array<i64: 1, 128>}, {transform_indices = @transform_8, window_bounds = array<i64: 64, 128>}]} {
    %c0 = arith.constant 0 : index
    %c0_0 = arith.constant 0 : index
    %0 = vector.load %arg1[%c0, %c0_0] : memref<64x128xf32, #tpu.memory_space<vmem>>, vector<64x128xf32>
    %cst = arith.constant dense<0.000000e+00> : vector<64xf32>
    %1 = vector.multi_reduction <add>, %0, %cst [1] : vector<64x128xf32> to vector<64xf32>
    %2 = vector.shape_cast %1 : vector<64xf32> to vector<64x1xf32>
    %cst_1 = arith.constant 1.280000e+02 : f32
    %3 = vector.broadcast %cst_1 : f32 to vector<64x1xf32>
    %4 = arith.divf %2, %3 : vector<64x1xf32>
    %5 = vector.broadcast %4 : vector<64x1xf32> to vector<64x128xf32>
    %6 = arith.subf %0, %5 : vector<64x128xf32>
    %7 = arith.mulf %6, %6 : vector<64x128xf32>
    %cst_2 = arith.constant dense<0.000000e+00> : vector<64xf32>
    %8 = vector.multi_reduction <add>, %7, %cst_2 [1] : vector<64x128xf32> to vector<64xf32>
    %9 = vector.shape_cast %8 : vector<64xf32> to vector<64x1xf32>
    %cst_3 = arith.constant 1.280000e+02 : f32
    %10 = vector.broadcast %cst_3 : f32 to vector<64x1xf32>
    %11 = arith.divf %9, %10 : vector<64x1xf32>
    %cst_4 = arith.constant 9.99999996E-13 : f32
    %12 = vector.broadcast %cst_4 : f32 to vector<64x1xf32>
    %13 = arith.addf %11, %12 : vector<64x1xf32>
    %14 = math.rsqrt %13 : vector<64x1xf32>
    %15 = vector.broadcast %14 : vector<64x1xf32> to vector<64x128xf32>
    %16 = arith.mulf %6, %15 : vector<64x128xf32>
    %c0_5 = arith.constant 0 : index
    %c0_6 = arith.constant 0 : index
    %17 = vector.load %arg3[%c0_5, %c0_6] : memref<1x128xf32, #tpu.memory_space<vmem>>, vector<1x128xf32>
    %18 = vector.broadcast %17 : vector<1x128xf32> to vector<64x128xf32>
    %19 = arith.mulf %16, %18 : vector<64x128xf32>
    %c0_7 = arith.constant 0 : index
    %c0_8 = arith.constant 0 : index
    %20 = vector.load %arg4[%c0_7, %c0_8] : memref<1x128xf32, #tpu.memory_space<vmem>>, vector<1x128xf32>
    %21 = vector.broadcast %20 : vector<1x128xf32> to vector<64x128xf32>
    %22 = arith.addf %19, %21 : vector<64x128xf32>
    %23 = arith.truncf %22 : vector<64x128xf32> to vector<64x128xbf16>
    %c0_9 = arith.constant 0 : index
    %c0_10 = arith.constant 0 : index
    %24 = vector.load %arg5[%c0_9, %c0_10] : memref<128x512xbf16, #tpu.memory_space<vmem>>, vector<128x512xbf16>
    %cst_11 = arith.constant dense<0.000000e+00> : vector<64x512xf32>
    %25 = tpu.matmul %23, %24, %cst_11 {dimension_numbers = #tpu.dot_dimension_numbers<[1], [0], [0], [1], [0, 0, 1, 1], [], []>} : vector<64x128xbf16>, vector<128x512xbf16>, vector<64x512xf32> -> vector<64x512xf32>
    %c0_12 = arith.constant 0 : index
    %c0_13 = arith.constant 0 : index
    %26 = vector.load %arg6[%c0_12, %c0_13] : memref<1x512xf32, #tpu.memory_space<vmem>>, vector<1x512xf32>
    %27 = vector.broadcast %26 : vector<1x512xf32> to vector<64x512xf32>
    %28 = arith.addf %25, %27 : vector<64x512xf32>
    %cst_14 = arith.constant 5.000000e-01 : f32
    %29 = vector.broadcast %cst_14 : f32 to vector<64x512xf32>
    %30 = arith.mulf %29, %28 : vector<64x512xf32>
    %cst_15 = arith.constant 0.707106769 : f32
    %31 = vector.broadcast %cst_15 : f32 to vector<64x512xf32>
    %32 = arith.mulf %28, %31 : vector<64x512xf32>
    %cst_16 = arith.constant 0.000000e+00 : f32
    %33 = vector.broadcast %cst_16 : f32 to vector<64x512xf32>
    %34 = arith.cmpf oge, %32, %33 : vector<64x512xf32>
    %cst_17 = arith.constant 1.000000e+00 : f32
    %cst_18 = arith.constant -1.000000e+00 : f32
    %35 = vector.broadcast %cst_17 : f32 to vector<64x512xf32>
    %36 = vector.broadcast %cst_18 : f32 to vector<64x512xf32>
    %37 = arith.select %34, %35, %36 : vector<64x512xi1>, vector<64x512xf32>
    %38 = math.absf %32 : vector<64x512xf32>
    %cst_19 = arith.constant 0.327591091 : f32
    %39 = vector.broadcast %cst_19 : f32 to vector<64x512xf32>
    %40 = arith.mulf %39, %38 : vector<64x512xf32>
    %cst_20 = arith.constant 1.000000e+00 : f32
    %41 = vector.broadcast %cst_20 : f32 to vector<64x512xf32>
    %42 = arith.addf %41, %40 : vector<64x512xf32>
    %cst_21 = arith.constant 1.000000e+00 : f32
    %43 = vector.broadcast %cst_21 : f32 to vector<64x512xf32>
    %44 = arith.divf %43, %42 : vector<64x512xf32>
    %cst_22 = arith.constant 1.06140542 : f32
    %45 = vector.broadcast %cst_22 : f32 to vector<64x512xf32>
    %46 = arith.mulf %45, %44 : vector<64x512xf32>
    %cst_23 = arith.constant -1.45315206 : f32
    %47 = vector.broadcast %cst_23 : f32 to vector<64x512xf32>
    %48 = arith.addf %46, %47 : vector<64x512xf32>
    %49 = arith.mulf %48, %44 : vector<64x512xf32>
    %cst_24 = arith.constant 1.42141378 : f32
    %50 = vector.broadcast %cst_24 : f32 to vector<64x512xf32>
    %51 = arith.addf %49, %50 : vector<64x512xf32>
    %52 = arith.mulf %51, %44 : vector<64x512xf32>
    %cst_25 = arith.constant -0.284496725 : f32
    %53 = vector.broadcast %cst_25 : f32 to vector<64x512xf32>
    %54 = arith.addf %52, %53 : vector<64x512xf32>
    %55 = arith.mulf %54, %44 : vector<64x512xf32>
    %cst_26 = arith.constant 0.254829586 : f32
    %56 = vector.broadcast %cst_26 : f32 to vector<64x512xf32>
    %57 = arith.addf %55, %56 : vector<64x512xf32>
    %58 = arith.mulf %57, %44 : vector<64x512xf32>
    %cst_27 = arith.constant 0.000000e+00 : f32
    %59 = vector.broadcast %cst_27 : f32 to vector<64x512xf32>
    %60 = arith.subf %59, %38 : vector<64x512xf32>
    %61 = arith.mulf %60, %38 : vector<64x512xf32>
    %62 = math.exp %61 : vector<64x512xf32>
    %63 = arith.mulf %58, %62 : vector<64x512xf32>
    %cst_28 = arith.constant 1.000000e+00 : f32
    %64 = vector.broadcast %cst_28 : f32 to vector<64x512xf32>
    %65 = arith.subf %64, %63 : vector<64x512xf32>
    %66 = arith.mulf %37, %65 : vector<64x512xf32>
    %cst_29 = arith.constant 1.000000e+00 : f32
    %67 = vector.broadcast %cst_29 : f32 to vector<64x512xf32>
    %68 = arith.addf %67, %66 : vector<64x512xf32>
    %69 = arith.mulf %30, %68 : vector<64x512xf32>
    %70 = arith.truncf %69 : vector<64x512xf32> to vector<64x512xbf16>
    %c0_30 = arith.constant 0 : index
    %c0_31 = arith.constant 0 : index
    %71 = vector.load %arg7[%c0_30, %c0_31] : memref<512x128xbf16, #tpu.memory_space<vmem>>, vector<512x128xbf16>
    %cst_32 = arith.constant dense<0.000000e+00> : vector<64x128xf32>
    %72 = tpu.matmul %70, %71, %cst_32 {dimension_numbers = #tpu.dot_dimension_numbers<[1], [0], [0], [1], [0, 0, 1, 1], [], []>} : vector<64x512xbf16>, vector<512x128xbf16>, vector<64x128xf32> -> vector<64x128xf32>
    %c0_33 = arith.constant 0 : index
    %c0_34 = arith.constant 0 : index
    %73 = vector.load %arg8[%c0_33, %c0_34] : memref<1x128xf32, #tpu.memory_space<vmem>>, vector<1x128xf32>
    %74 = vector.broadcast %73 : vector<1x128xf32> to vector<64x128xf32>
    %75 = arith.addf %72, %74 : vector<64x128xf32>
    %c0_35 = arith.constant 0 : index
    %c0_36 = arith.constant 0 : index
    %76 = vector.load %arg2[%c0_35, %c0_36] : memref<64x128xf32, #tpu.memory_space<vmem>>, vector<64x128xf32>
    %77 = arith.addf %75, %76 : vector<64x128xf32>
    %c0_37 = arith.constant 0 : index
    %c0_38 = arith.constant 0 : index
    %78 = vector.load %arg9[%c0_37, %c0_38] : memref<64x128xf32, #tpu.memory_space<vmem>>, vector<64x128xf32>
    tpu.vector_store %arg9[%c0_37, %c0_38], %77 {strides = array<i32>} : memref<64x128xf32, #tpu.memory_space<vmem>>, vector<64x128xf32>,
    return
  }
  func.func @transform_0(%arg0: i32) -> (i32, i32) {
    %c0_i32 = arith.constant 0 : i32
    %c0_i32_0 = arith.constant 0 : i32
    return %arg0, %c0_i32 : i32, i32
  }
  func.func @transform_1(%arg0: i32) -> (i32, i32) {
    %c0_i32 = arith.constant 0 : i32
    %c0_i32_0 = arith.constant 0 : i32
    return %arg0, %c0_i32 : i32, i32
  }
  func.func @transform_2(%arg0: i32) -> (i32, i32) {
    %c0_i32 = arith.constant 0 : i32
    %c0_i32_0 = arith.constant 0 : i32
    %c0_i32_1 = arith.constant 0 : i32
    return %c0_i32, %c0_i32_0 : i32, i32
  }
  func.func @transform_3(%arg0: i32) -> (i32, i32) {
    %c0_i32 = arith.constant 0 : i32
    %c0_i32_0 = arith.constant 0 : i32
    %c0_i32_1 = arith.constant 0 : i32
    return %c0_i32, %c0_i32_0 : i32, i32
  }
  func.func @transform_4(%arg0: i32) -> (i32, i32) {
    %c0_i32 = arith.constant 0 : i32
    %c0_i32_0 = arith.constant 0 : i32
    %c0_i32_1 = arith.constant 0 : i32
    return %c0_i32, %c0_i32_0 : i32, i32
  }
  func.func @transform_5(%arg0: i32) -> (i32, i32) {
    %c0_i32 = arith.constant 0 : i32
    %c0_i32_0 = arith.constant 0 : i32
    %c0_i32_1 = arith.constant 0 : i32
    return %c0_i32, %c0_i32_0 : i32, i32
  }
  func.func @transform_6(%arg0: i32) -> (i32, i32) {
    %c0_i32 = arith.constant 0 : i32
    %c0_i32_0 = arith.constant 0 : i32
    %c0_i32_1 = arith.constant 0 : i32
    return %c0_i32, %c0_i32_0 : i32, i32
  }
  func.func @transform_7(%arg0: i32) -> (i32, i32) {
    %c0_i32 = arith.constant 0 : i32
    %c0_i32_0 = arith.constant 0 : i32
    %c0_i32_1 = arith.constant 0 : i32
    return %c0_i32, %c0_i32_0 : i32, i32
  }
  func.func @transform_8(%arg0: i32) -> (i32, i32) {
    %c0_i32 = arith.constant 0 : i32
    %c0_i32_0 = arith.constant 0 : i32
    return %arg0, %c0_i32 : i32, i32
  }
}

module attributes {stable_mosaic.version = 11 : i64} {
  func.func @_proj_ln_kernel(%arg0: i32, %arg1: memref<16x512xf32, #tpu.memory_space<vmem>>, %arg2: memref<512x64xbf16, #tpu.memory_space<vmem>>, %arg3: memref<1x64xf32, #tpu.memory_space<vmem>>, %arg4: memref<1x64xf32, #tpu.memory_space<vmem>>, %arg5: memref<1x64xf32, #tpu.memory_space<vmem>>, %arg6: memref<16x64xf32, #tpu.memory_space<vmem>>) attributes {dimension_semantics = [#tpu.dimension_semantics<parallel>], iteration_bounds = array<i64: 1>, scalar_prefetch = 0 : i64, scratch_operands = 0 : i64, tpu.core_type = #tpu.core_type<tc>, window_params = [{transform_indices = @transform_0, window_bounds = array<i64: 16, 512>}, {pipeline_mode = #tpu.pipeline_mode<synchronous>, transform_indices = @transform_1, window_bounds = array<i64: 512, 64>}, {pipeline_mode = #tpu.pipeline_mode<synchronous>, transform_indices = @transform_2, window_bounds = array<i64: 1, 64>}, {pipeline_mode = #tpu.pipeline_mode<synchronous>, transform_indices = @transform_3, window_bounds = array<i64: 1, 64>}, {pipeline_mode = #tpu.pipeline_mode<synchronous>, transform_indices = @transform_4, window_bounds = array<i64: 1, 64>}, {transform_indices = @transform_5, window_bounds = array<i64: 16, 64>}]} {
    %c0 = arith.constant 0 : index
    %c0_0 = arith.constant 0 : index
    %0 = vector.load %arg1[%c0, %c0_0] : memref<16x512xf32, #tpu.memory_space<vmem>>, vector<16x512xf32>
    %1 = arith.truncf %0 : vector<16x512xf32> to vector<16x512xbf16>
    %c0_1 = arith.constant 0 : index
    %c0_2 = arith.constant 0 : index
    %2 = vector.load %arg2[%c0_1, %c0_2] : memref<512x64xbf16, #tpu.memory_space<vmem>>, vector<512x64xbf16>
    %cst = arith.constant dense<0.000000e+00> : vector<16x64xf32>
    %3 = tpu.matmul %1, %2, %cst {dimension_numbers = #tpu.dot_dimension_numbers<[1], [0], [0], [1], [0, 0, 1, 1], [], []>} : vector<16x512xbf16>, vector<512x64xbf16>, vector<16x64xf32> -> vector<16x64xf32>
    %c0_3 = arith.constant 0 : index
    %c0_4 = arith.constant 0 : index
    %4 = vector.load %arg3[%c0_3, %c0_4] : memref<1x64xf32, #tpu.memory_space<vmem>>, vector<1x64xf32>
    %5 = vector.broadcast %4 : vector<1x64xf32> to vector<16x64xf32>
    %6 = arith.addf %3, %5 : vector<16x64xf32>
    %cst_5 = arith.constant dense<0.000000e+00> : vector<16xf32>
    %7 = vector.multi_reduction <add>, %6, %cst_5 [1] : vector<16x64xf32> to vector<16xf32>
    %8 = vector.shape_cast %7 : vector<16xf32> to vector<16x1xf32>
    %cst_6 = arith.constant 6.400000e+01 : f32
    %9 = vector.broadcast %cst_6 : f32 to vector<16x1xf32>
    %10 = arith.divf %8, %9 : vector<16x1xf32>
    %11 = vector.broadcast %10 : vector<16x1xf32> to vector<16x64xf32>
    %12 = arith.subf %6, %11 : vector<16x64xf32>
    %13 = arith.mulf %12, %12 : vector<16x64xf32>
    %cst_7 = arith.constant dense<0.000000e+00> : vector<16xf32>
    %14 = vector.multi_reduction <add>, %13, %cst_7 [1] : vector<16x64xf32> to vector<16xf32>
    %15 = vector.shape_cast %14 : vector<16xf32> to vector<16x1xf32>
    %cst_8 = arith.constant 6.400000e+01 : f32
    %16 = vector.broadcast %cst_8 : f32 to vector<16x1xf32>
    %17 = arith.divf %15, %16 : vector<16x1xf32>
    %cst_9 = arith.constant 9.99999996E-13 : f32
    %18 = vector.broadcast %cst_9 : f32 to vector<16x1xf32>
    %19 = arith.addf %17, %18 : vector<16x1xf32>
    %20 = math.rsqrt %19 : vector<16x1xf32>
    %21 = vector.broadcast %20 : vector<16x1xf32> to vector<16x64xf32>
    %22 = arith.mulf %12, %21 : vector<16x64xf32>
    %c0_10 = arith.constant 0 : index
    %c0_11 = arith.constant 0 : index
    %23 = vector.load %arg4[%c0_10, %c0_11] : memref<1x64xf32, #tpu.memory_space<vmem>>, vector<1x64xf32>
    %24 = vector.broadcast %23 : vector<1x64xf32> to vector<16x64xf32>
    %25 = arith.mulf %22, %24 : vector<16x64xf32>
    %c0_12 = arith.constant 0 : index
    %c0_13 = arith.constant 0 : index
    %26 = vector.load %arg5[%c0_12, %c0_13] : memref<1x64xf32, #tpu.memory_space<vmem>>, vector<1x64xf32>
    %27 = vector.broadcast %26 : vector<1x64xf32> to vector<16x64xf32>
    %28 = arith.addf %25, %27 : vector<16x64xf32>
    %c0_14 = arith.constant 0 : index
    %c0_15 = arith.constant 0 : index
    %29 = vector.load %arg6[%c0_14, %c0_15] : memref<16x64xf32, #tpu.memory_space<vmem>>, vector<16x64xf32>
    tpu.vector_store %arg6[%c0_14, %c0_15], %28 {strides = array<i32>} : memref<16x64xf32, #tpu.memory_space<vmem>>, vector<16x64xf32>,
    return
  }
  func.func @transform_0(%arg0: i32) -> (i32, i32) {
    %c0_i32 = arith.constant 0 : i32
    %c0_i32_0 = arith.constant 0 : i32
    return %arg0, %c0_i32 : i32, i32
  }
  func.func @transform_1(%arg0: i32) -> (i32, i32) {
    %c0_i32 = arith.constant 0 : i32
    %c0_i32_0 = arith.constant 0 : i32
    %c0_i32_1 = arith.constant 0 : i32
    return %c0_i32, %c0_i32_0 : i32, i32
  }
  func.func @transform_2(%arg0: i32) -> (i32, i32) {
    %c0_i32 = arith.constant 0 : i32
    %c0_i32_0 = arith.constant 0 : i32
    %c0_i32_1 = arith.constant 0 : i32
    return %c0_i32, %c0_i32_0 : i32, i32
  }
  func.func @transform_3(%arg0: i32) -> (i32, i32) {
    %c0_i32 = arith.constant 0 : i32
    %c0_i32_0 = arith.constant 0 : i32
    %c0_i32_1 = arith.constant 0 : i32
    return %c0_i32, %c0_i32_0 : i32, i32
  }
  func.func @transform_4(%arg0: i32) -> (i32, i32) {
    %c0_i32 = arith.constant 0 : i32
    %c0_i32_0 = arith.constant 0 : i32
    %c0_i32_1 = arith.constant 0 : i32
    return %c0_i32, %c0_i32_0 : i32, i32
  }
  func.func @transform_5(%arg0: i32) -> (i32, i32) {
    %c0_i32 = arith.constant 0 : i32
    %c0_i32_0 = arith.constant 0 : i32
    return %arg0, %c0_i32 : i32, i32
  }
}

</mosaic_0001>

<llo_original>
// kernel: convnext_stem_forward.7
$region0: #{convnext_stem_forward.7}
  #allocation0 [shape = 'u32[]', space=smem, size = 0x4, offset = 0x4, fixed_abs, tag = 'smem constant byte address 0x4 - core index']
  #allocation1 [shape = 'u32[144,128]{1,0:T(1,128)}', space=vmem, size = 0x12000, scoped, tag = 'internal scratch']
  %s0 = inlined_call_operand.vmem [shape: f32[2,4,9,9,8], index: 0, kind: input, shape index: {}]
  %s1 = inlined_call_operand.vmem [shape: f32[3,3,8,32], index: 1, kind: input, shape index: {}]
  %s2 = inlined_call_operand.vmem [shape: f32[1,32], index: 2, kind: input, shape index: {}]
  %s3 = inlined_call_operand.vmem [shape: f32[2,64,32], index: 3, kind: output, shape index: {}]
  %s4 = sld [smem:[#allocation0]]
  $region45: #{convnext_stem_forward.7} parent=0
    _
  %s6 = ssub.s32 1, %s4
  %s7 = scalar_select 0, %s6, %s4
  loop: start=0, step=1, limit=4
  $region2: #{convnext_stem_forward.7} parent=0 // loop_pre_header
    _
  $region3: #{convnext_stem_forward.7} parent=0 // loop_header
    %s9 = sphi 0, %s13
    %p10 = scmp.ge.s32.totalorder %s9, 4
    %s19 = sphi 0, %s21
    %s22 = sphi 0, %s19
    %s23 = sphi 0, %s22
    %s39 = sphi 0, %s23
    %s43 = sphi 0, %s43
    %s45 = sphi 0, %s43
    %s46 = sphi 0, %s45
    %s60 = sphi 0, %s46
    %s64 = sphi 0, %s64
    %s66 = sphi 0, %s64
    %s67 = sphi 0, %s66
    %s81 = sphi 0, %s67
    %s87 = sphi 0, %s89
    %s90 = sphi 0, %s87
    %s91 = sphi 0, %s90
    %s107 = sphi 0, %s91
  $region4: #{convnext_stem_forward.7} parent=0 // loop_header_branch
    %12 = sbr.rel (%p10) target = $region8
  $region5: #{convnext_stem_forward.7} parent=0 // loop_body
    %s14 = ssub.s32 %s9, 1
    %s15 = ssub.s32 %s9, 2
    %s16 = sadd.s32 %s9, 1
    %s17 = ssub.s32 %s9, %s16
    %p18 = scmp.eq.s32.totalorder %s17, 0
    %s20 = sadd.s32 %s19, 1
    %s21 = scalar_select %p18, %s19, %s20
    %p24 = pneg %p18
    %p25 = scmp.eq.s32.totalorder %s9, 1
    %p26 = por %p24, %p25
    %p27 = scmp.ne.s32.totalorder %s19, %s22
    %p28 = scmp.eq.s32.totalorder %s9, 0
    %p29 = por %p27, %p28
    %p30 = scmp.ne.s32.totalorder %s19, %s22
    %p31 = scmp.eq.s32.totalorder %s14, 1
    %p32 = por %p30, %p31
    %p33 = scmp.ne.s32.totalorder %s22, %s23
    %p34 = scmp.eq.s32.totalorder %s14, 0
    %p35 = por %p33, %p34
    %p36 = scmp.ne.s32.totalorder %s22, %s23
    %p37 = scmp.eq.s32.totalorder %s15, 1
    %p38 = por %p36, %p37
    %p40 = scmp.ne.s32.totalorder %s23, %s39
    %p41 = scmp.eq.s32.totalorder %s15, 0
    %p42 = por %p40, %p41
    %s44 = sadd.s32 %s43, 1
    %p47 = scmp.eq.s32.totalorder %s9, 1
    %p48 = scmp.ne.s32.totalorder %s43, %s45
    %p49 = scmp.eq.s32.totalorder %s9, 0
    %p50 = por %p48, %p49
    %p51 = scmp.ne.s32.totalorder %s43, %s45
    %p52 = scmp.eq.s32.totalorder %s14, 1
    %p53 = por %p51, %p52
    %p54 = scmp.ne.s32.totalorder %s45, %s46
    %p55 = scmp.eq.s32.totalorder %s14, 0
    %p56 = por %p54, %p55
    %p57 = scmp.ne.s32.totalorder %s45, %s46
    %p58 = scmp.eq.s32.totalorder %s15, 1
    %p59 = por %p57, %p58
    %p61 = scmp.ne.s32.totalorder %s46, %s60
    %p62 = scmp.eq.s32.totalorder %s15, 0
    %p63 = por %p61, %p62
    %s65 = sadd.s32 %s64, 1
    %p68 = scmp.eq.s32.totalorder %s9, 1
    %p69 = scmp.ne.s32.totalorder %s64, %s66
    %p70 = scmp.eq.s32.totalorder %s9, 0
    %p71 = por %p69, %p70
    %p72 = scmp.ne.s32.totalorder %s64, %s66
    %p73 = scmp.eq.s32.totalorder %s14, 1
    %p74 = por %p72, %p73
    %p75 = scmp.ne.s32.totalorder %s66, %s67
    %p76 = scmp.eq.s32.totalorder %s14, 0
    %p77 = por %p75, %p76
    %p78 = scmp.ne.s32.totalorder %s66, %s67
    %p79 = scmp.eq.s32.totalorder %s15, 1
    %p80 = por %p78, %p79
    %p82 = scmp.ne.s32.totalorder %s67, %s81
    %p83 = scmp.eq.s32.totalorder %s15, 0
    %p84 = por %p82, %p83
    %s85 = ssub.s32 %s9, %s16
    %p86 = scmp.eq.s32.totalorder %s85, 0
    %s88 = sadd.s32 %s87, 1
    %s89 = scalar_select %p86, %s87, %s88
    %p92 = pneg %p86
    %p93 = scmp.eq.s32.totalorder %s9, 1
    %p94 = por %p92, %p93
    %p95 = scmp.ne.s32.totalorder %s87, %s90
    %p96 = scmp.eq.s32.totalorder %s9, 0
    %p97 = por %p95, %p96
    %p98 = scmp.ne.s32.totalorder %s87, %s90
    %p99 = scmp.eq.s32.totalorder %s14, 1
    %p100 = por %p98, %p99
    %p101 = scmp.ne.s32.totalorder %s90, %s91
    %p102 = scmp.eq.s32.totalorder %s14, 0
    %p103 = por %p101, %p102
    %p104 = scmp.ne.s32.totalorder %s90, %s91
    %p105 = scmp.eq.s32.totalorder %s15, 1
    %p106 = por %p104, %p105
    %p108 = scmp.ne.s32.totalorder %s91, %s107
    %p109 = scmp.eq.s32.totalorder %s15, 0
    %p110 = por %p108, %p109
    %p111 = scmp.le.s32.totalorder 1, %s9
    %p112 = scmp.lt.s32.totalorder %s9, 3
    %p113 = pnand %p111, %p112
    %p114 = pneg %p113
    // Predicated region
    $region9: #{convnext_stem_forward.7} parent=5 // pred_check
      _
    $region10: #{convnext_stem_forward.7} parent=5 // pred_check_branch
      %116 = sbr.rel (%p113) target = $region12
    $region11: #{convnext_stem_forward.7} parent=5 // pred_region
      %s117 = ssub.s32 %s9, 1
      // Predicated region
      $region13: #{convnext_stem_forward.7} parent=11 // pred_check
        %p118 = pneg %p56
      $region14: #{convnext_stem_forward.7} parent=11 // pred_check_branch
        %120 = sbr.rel (%p118) target = $region16
      $region15: #{convnext_stem_forward.7} parent=11 // pred_region
        _
      $region16: #{convnext_stem_forward.7} parent=11 // pred_fallthru
        _
      // Predicated region
      $region17: #{convnext_stem_forward.7} parent=11 // pred_check
        %p121 = pneg %p77
      $region18: #{convnext_stem_forward.7} parent=11 // pred_check_branch
        %123 = sbr.rel (%p121) target = $region20
      $region19: #{convnext_stem_forward.7} parent=11 // pred_region
        _
      $region20: #{convnext_stem_forward.7} parent=11 // pred_fallthru
        _
    $region12: #{convnext_stem_forward.7} parent=5 // pred_fallthru
      _
    %p124 = scmp.lt.s32.totalorder %s9, 2
    // Predicated region
    $region21: #{convnext_stem_forward.7} parent=5 // pred_check
      %p125 = pneg %p124
    $region22: #{convnext_stem_forward.7} parent=5 // pred_check_branch
      %127 = sbr.rel (%p125) target = $region24
    $region23: #{convnext_stem_forward.7} parent=5 // pred_region
      // Predicated region
      $region25: #{convnext_stem_forward.7} parent=23 // pred_check
        %p128 = pneg %p29
      $region26: #{convnext_stem_forward.7} parent=23 // pred_check_branch
        %130 = sbr.rel (%p128) target = $region28
      $region27: #{convnext_stem_forward.7} parent=23 // pred_region
        %p131 = scmp.lt.s32.totalorder %s9, 1
        %s132 = scalar_select %p131, %s9, 1
        %s133 = smul.addr %s132, 72
        %s134 = smul.addr %s133, 8
        %s135 = scalar_lea.vmem %s0, %s134
      $region28: #{convnext_stem_forward.7} parent=23 // pred_fallthru
        _
    $region24: #{convnext_stem_forward.7} parent=5 // pred_fallthru
      _
    %p136 = scmp.le.s32.totalorder 1, %s9
    %p137 = scmp.lt.s32.totalorder %s9, 3
    %p138 = pnand %p136, %p137
    %p139 = pneg %p138
    // Predicated region
    $region29: #{convnext_stem_forward.7} parent=5 // pred_check
      _
    $region30: #{convnext_stem_forward.7} parent=5 // pred_check_branch
      %141 = sbr.rel (%p138) target = $region32
    $region31: #{convnext_stem_forward.7} parent=5 // pred_region
      %s142 = ssub.s32 %s9, 1
      %p143 = scmp.lt.s32.totalorder %s14, 1
      %s144 = scalar_select %p143, %s14, 1
      %s145 = smul.addr %s144, 72
      %s146 = smul.addr %s145, 8
      %s147 = scalar_lea.vmem %s0, %s146
      %p148 = pneg %p35
      %p149 = pneg %p32
      %p150 = pneg %p56
      %p151 = pneg %p53
      %p152 = pneg %p77
      %p153 = pneg %p74
      %p154 = pneg %p103
      %p155 = pneg %p100
      %p156 = scmp.lt.s32.totalorder %s14, 1
      %s157 = scalar_select %p156, %s14, 1
      %s158 = smul.addr %s157, 8
      %s159 = smul.addr %s158, 8
      %s160 = scalar_lea.vmem %s3, %s159
      %p161 = scmp.lt.s32.totalorder %s14, 1
      %s162 = scalar_select %p161, %s14, 1
      %s163 = smul.addr %s162, 72
      %s164 = smul.addr %s163, 8
      %s165 = scalar_lea.vmem %s0, %s164
      %p166 = scmp.lt.s32.totalorder %s14, 1
      %s167 = scalar_select %p166, %s14, 1
      %s168 = smul.addr %s167, 8
      %s169 = smul.addr %s168, 8
      %s170 = scalar_lea.vmem %s3, %s169
      %v172 = vld [vmem:[%s165] sm:$0xff]
      %v173 = vld [vmem:[%s165 + $0x10] sm:$0xff]
      %v174 = vld [vmem:[%s165 + $0x20] sm:$0xff]
      %v175 = vld [vmem:[%s165 + $0x30] sm:$0xff]
      %v176 = vld [vmem:[%s165 + $0x40] sm:$0xff]
      %v177 = vld [vmem:[%s165 + $0x50] sm:$0xff]
      %v178 = vld [vmem:[%s165 + $0x60] sm:$0xff]
      %v179 = vld [vmem:[%s165 + $0x70] sm:$0xff]
      %v180 = vld [vmem:[%s1] sm:$0xff]
      %v181 = vpack.c.bf16 %v173, %v172
      %v182 = vpack.c.bf16 %v175, %v174
      %v183 = vpack.c.bf16 %v177, %v176
      %v184 = vpack.c.bf16 %v179, %v178
      %v185 = vpack.c.bf16 %v180, %v180
      %s186 = scalar_lea.vmem %s165, 144
      %v187 = vld [vmem:[%s186] sm:$0xff]
      %v188 = vld [vmem:[%s186 + $0x10] sm:$0xff]
      %v189 = vld [vmem:[%s186 + $0x20] sm:$0xff]
      %v190 = vld [vmem:[%s186 + $0x30] sm:$0xff]
      %v191 = vld [vmem:[%s186 + $0x40] sm:$0xff]
      %v192 = vld [vmem:[%s186 + $0x50] sm:$0xff]
      %v193 = vld [vmem:[%s186 + $0x60] sm:$0xff]
      %v194 = vld [vmem:[%s186 + $0x70] sm:$0xff]
      %s195 = scalar_lea.vmem %s1, 8
      %v196 = vld [vmem:[%s195] sm:$0xff]
      %v197 = vpack.c.bf16 %v188, %v187
      %v198 = vpack.c.bf16 %v190, %v189
      %v199 = vpack.c.bf16 %v192, %v191
      %v200 = vpack.c.bf16 %v194, %v193
      %v201 = vpack.c.bf16 %v196, %v196
      %vm202 = vcmask 64512
      %v204 = vsel %vm202, %v197, 0
      %v207 = vsel %vm202, %v198, 0
      %v210 = vsel %vm202, %v199, 0
      %v213 = vsel %vm202, %v200, 0
      %vm215 = vcmask 1043456
      %v217 = vsel %vm215, %v201, 0
      %219 = vmatprep.subr.bf16.mxu0 0
      %220 = vmatpush1.bf16.msra.mxu0 %v217
      %221 = vmatprep.subr.bf16.mxu0 0
      %222 = vmatpush1.bf16.msra.mxu0 0
      %223 = vmatprep.subr.bf16.mxu0 0
      %224 = vmatpush1.bf16.msra.mxu0 0
      %225 = vmatprep.subr.bf16.mxu0 0
      %226 = vmatpush1.bf16.msra.mxu0 0
      %227 = vmatprep.subr.bf16.mxu0 0
      %228 = vmatpush1.bf16.msra.mxu0 0
      %229 = vmatprep.subr.bf16.mxu0 0
      %230 = vmatpush1.bf16.msra.mxu0 0
      %231 = vmatprep.subr.bf16.mxu0 0
      %232 = vmatpush1.bf16.msra.mxu0 0
      %233 = vmatprep.subr.bf16.mxu0 0
      %234 = vmatpush1.bf16.msra.mxu0 0
      %235 = vmatprep.subr.bf16.mxu0 0
      %236 = vmatpush1.bf16.msra.mxu0 0
      %237 = vmatprep.subr.bf16.mxu0 0
      %238 = vmatpush1.bf16.msra.mxu0 0
      %239 = vmatprep.subr.bf16.mxu0 0
      %240 = vmatpush1.bf16.msra.mxu0 0
      %241 = vmatprep.subr.bf16.mxu0 0
      %242 = vmatpush1.bf16.msra.mxu0 0
      %243 = vmatprep.subr.bf16.mxu0 0
      %244 = vmatpush1.bf16.msra.mxu0 0
      %245 = vmatprep.subr.bf16.mxu0 0
      %246 = vmatpush1.bf16.msra.mxu0 0
      %247 = vmatprep.subr.bf16.mxu0 0
      %248 = vmatpush1.bf16.msra.mxu0 0
      %249 = vmatprep.subr.bf16.mxu0 0
      %250 = vmatpush1.bf16.msra.mxu0 0
      %251 = vmatprep.mubr.bf16.mxu0 0
      %252 = vmatmul.mubr.bf16.gmra.mrb[0].mxu0 %v204
      %v253 = vpop.f32.mrb[0].mxu0
      %v254 = vadd.f32 0.0, %v253
      %v255 = vpop.f32.mrb[0].mxu0
      %v256 = vpop.f32.mrb[0].mxu0
      %v257 = vadd.f32 0.0, %v256
      %v258 = vpop.f32.mrb[0].mxu0
      %259 = vmatprep.mubr.bf16.mxu0 0
      %260 = vmatmul.mubr.bf16.gmra.mrb[0].mxu0 %v207
      %v261 = vpop.f32.mrb[0].mxu0
      %v262 = vadd.f32 0.0, %v261
      %v263 = vpop.f32.mrb[0].mxu0
      %v264 = vpop.f32.mrb[0].mxu0
      %v265 = vadd.f32 0.0, %v264
      %v266 = vpop.f32.mrb[0].mxu0
      %267 = vmatprep.mubr.bf16.mxu0 0
      %268 = vmatmul.mubr.bf16.gmra.mrb[0].mxu0 %v210
      %v269 = vpop.f32.mrb[0].mxu0
      %v270 = vadd.f32 0.0, %v269
      %v271 = vpop.f32.mrb[0].mxu0
      %v272 = vpop.f32.mrb[0].mxu0
      %v273 = vadd.f32 0.0, %v272
      %v274 = vpop.f32.mrb[0].mxu0
      %275 = vmatprep.mubr.bf16.mxu0 0
      %276 = vmatmul.mubr.bf16.gmra.mrb[0].mxu0 %v213
      %v277 = vpop.f32.mrb[0].mxu0
      %v278 = vadd.f32 0.0, %v277
      %v279 = vpop.f32.mrb[0].mxu0
      %v280 = vpop.f32.mrb[0].mxu0
      %v281 = vadd.f32 0.0, %v280
      %v282 = vpop.f32.mrb[0].mxu0
      %283 = vdwg.mxu0
      %v285 = vsel %vm202, %v181, 0
      %v288 = vsel %vm202, %v182, 0
      %v291 = vsel %vm202, %v183, 0
      %v294 = vsel %vm202, %v184, 0
      %v297 = vsel %vm215, %v185, 0
      %299 = vmatprep.subr.bf16.mxu0 0
      %300 = vmatpush1.bf16.msra.mxu0 %v297
      %301 = vmatprep.subr.bf16.mxu0 0
      %302 = vmatpush1.bf16.msra.mxu0 0
      %303 = vmatprep.subr.bf16.mxu0 0
      %304 = vmatpush1.bf16.msra.mxu0 0
      %305 = vmatprep.subr.bf16.mxu0 0
      %306 = vmatpush1.bf16.msra.mxu0 0
      %307 = vmatprep.subr.bf16.mxu0 0
      %308 = vmatpush1.bf16.msra.mxu0 0
      %309 = vmatprep.subr.bf16.mxu0 0
      %310 = vmatpush1.bf16.msra.mxu0 0
      %311 = vmatprep.subr.bf16.mxu0 0
      %312 = vmatpush1.bf16.msra.mxu0 0
      %313 = vmatprep.subr.bf16.mxu0 0
      %314 = vmatpush1.bf16.msra.mxu0 0
      %315 = vmatprep.subr.bf16.mxu0 0
      %316 = vmatpush1.bf16.msra.mxu0 0
      %317 = vmatprep.subr.bf16.mxu0 0
      %318 = vmatpush1.bf16.msra.mxu0 0
      %319 = vmatprep.subr.bf16.mxu0 0
      %320 = vmatpush1.bf16.msra.mxu0 0
      %321 = vmatprep.subr.bf16.mxu0 0
      %322 = vmatpush1.bf16.msra.mxu0 0
      %323 = vmatprep.subr.bf16.mxu0 0
      %324 = vmatpush1.bf16.msra.mxu0 0
      %325 = vmatprep.subr.bf16.mxu0 0
      %326 = vmatpush1.bf16.msra.mxu0 0
      %327 = vmatprep.subr.bf16.mxu0 0
      %328 = vmatpush1.bf16.msra.mxu0 0
      %329 = vmatprep.subr.bf16.mxu0 0
      %330 = vmatpush1.bf16.msra.mxu0 0
      %331 = vmatprep.mubr.bf16.mxu0 0
      %332 = vmatmul.mubr.bf16.gmra.mrb[0].mxu0 %v285
      %v333 = vpop.f32.mrb[0].mxu0
      %v334 = vadd.f32 %v254, %v333
      %v335 = vpop.f32.mrb[0].mxu0
      %v336 = vpop.f32.mrb[0].mxu0
      %v337 = vadd.f32 %v257, %v336
      %v338 = vpop.f32.mrb[0].mxu0
      %339 = vmatprep.mubr.bf16.mxu0 0
      %340 = vmatmul.mubr.bf16.gmra.mrb[0].mxu0 %v288
      %v341 = vpop.f32.mrb[0].mxu0
      %v342 = vadd.f32 %v262, %v341
      %v343 = vpop.f32.mrb[0].mxu0
      %v344 = vpop.f32.mrb[0].mxu0
      %v345 = vadd.f32 %v265, %v344
      %v346 = vpop.f32.mrb[0].mxu0
      %347 = vmatprep.mubr.bf16.mxu0 0
      %348 = vmatmul.mubr.bf16.gmra.mrb[0].mxu0 %v291
      %v349 = vpop.f32.mrb[0].mxu0
      %v350 = vadd.f32 %v270, %v349
      %v351 = vpop.f32.mrb[0].mxu0
      %v352 = vpop.f32.mrb[0].mxu0
      %v353 = vadd.f32 %v273, %v352
      %v354 = vpop.f32.mrb[0].mxu0
      %355 = vmatprep.mubr.bf16.mxu0 0
      %356 = vmatmul.mubr.bf16.gmra.mrb[0].mxu0 %v294
      %v357 = vpop.f32.mrb[0].mxu0
      %v358 = vadd.f32 %v278, %v357
      %v359 = vpop.f32.mrb[0].mxu0
      %v360 = vpop.f32.mrb[0].mxu0
      %v361 = vadd.f32 %v281, %v360
      %v362 = vpop.f32.mrb[0].mxu0
      %363 = vdwg.mxu0
      %v364 = vld [vmem:[%s165 + $0x1] sm:$0xff]
      %v365 = vld [vmem:[%s165 + $0x11] sm:$0xff]
      %v366 = vld [vmem:[%s165 + $0x21] sm:$0xff]
      %v367 = vld [vmem:[%s165 + $0x31] sm:$0xff]
      %v368 = vld [vmem:[%s165 + $0x41] sm:$0xff]
      %v369 = vld [vmem:[%s165 + $0x51] sm:$0xff]
      %v370 = vld [vmem:[%s165 + $0x61] sm:$0xff]
      %v371 = vld [vmem:[%s165 + $0x71] sm:$0xff]
      %s372 = scalar_lea.vmem %s1, 16
      %v373 = vld [vmem:[%s372] sm:$0xff]
      %v374 = vpack.c.bf16 %v365, %v364
      %v375 = vpack.c.bf16 %v367, %v366
      %v376 = vpack.c.bf16 %v369, %v368
      %v377 = vpack.c.bf16 %v371, %v370
      %v378 = vpack.c.bf16 %v373, %v373
      %v380 = vsel %vm202, %v374, 0
      %v383 = vsel %vm202, %v375, 0
      %v386 = vsel %vm202, %v376, 0
      %v389 = vsel %vm202, %v377, 0
      %v392 = vsel %vm215, %v378, 0
      %394 = vmatprep.subr.bf16.mxu0 0
      %395 = vmatpush1.bf16.msra.mxu0 %v392
      %396 = vmatprep.subr.bf16.mxu0 0
      %397 = vmatpush1.bf16.msra.mxu0 0
      %398 = vmatprep.subr.bf16.mxu0 0
      %399 = vmatpush1.bf16.msra.mxu0 0
      %400 = vmatprep.subr.bf16.mxu0 0
      %401 = vmatpush1.bf16.msra.mxu0 0
      %402 = vmatprep.subr.bf16.mxu0 0
      %403 = vmatpush1.bf16.msra.mxu0 0
      %404 = vmatprep.subr.bf16.mxu0 0
      %405 = vmatpush1.bf16.msra.mxu0 0
      %406 = vmatprep.subr.bf16.mxu0 0
      %407 = vmatpush1.bf16.msra.mxu0 0
      %408 = vmatprep.subr.bf16.mxu0 0
      %409 = vmatpush1.bf16.msra.mxu0 0
      %410 = vmatprep.subr.bf16.mxu0 0
      %411 = vmatpush1.bf16.msra.mxu0 0
      %412 = vmatprep.subr.bf16.mxu0 0
      %413 = vmatpush1.bf16.msra.mxu0 0
      %414 = vmatprep.subr.bf16.mxu0 0
      %415 = vmatpush1.bf16.msra.mxu0 0
      %416 = vmatprep.subr.bf16.mxu0 0
      %417 = vmatpush1.bf16.msra.mxu0 0
      %418 = vmatprep.subr.bf16.mxu0 0
      %419 = vmatpush1.bf16.msra.mxu0 0
      %420 = vmatprep.subr.bf16.mxu0 0
      %421 = vmatpush1.bf16.msra.mxu0 0
      %422 = vmatprep.subr.bf16.mxu0 0
      %423 = vmatpush1.bf16.msra.mxu0 0
      %424 = vmatprep.subr.bf16.mxu0 0
      %425 = vmatpush1.bf16.msra.mxu0 0
      %426 = vmatprep.mubr.bf16.mxu0 0
      %427 = vmatmul.mubr.bf16.gmra.mrb[0].mxu0 %v380
      %v428 = vpop.f32.mrb[0].mxu0
      %v429 = vadd.f32 0.0, %v428
      %v430 = vpop.f32.mrb[0].mxu0
      %v431 = vpop.f32.mrb[0].mxu0
      %v432 = vadd.f32 0.0, %v431
      %v433 = vpop.f32.mrb[0].mxu0
      %434 = vmatprep.mubr.bf16.mxu0 0
      %435 = vmatmul.mubr.bf16.gmra.mrb[0].mxu0 %v383
      %v436 = vpop.f32.mrb[0].mxu0
      %v437 = vadd.f32 0.0, %v436
      %v438 = vpop.f32.mrb[0].mxu0
      %v439 = vpop.f32.mrb[0].mxu0
      %v440 = vadd.f32 0.0, %v439
      %v441 = vpop.f32.mrb[0].mxu0
      %442 = vmatprep.mubr.bf16.mxu0 0
      %443 = vmatmul.mubr.bf16.gmra.mrb[0].mxu0 %v386
      %v444 = vpop.f32.mrb[0].mxu0
      %v445 = vadd.f32 0.0, %v444
      %v446 = vpop.f32.mrb[0].mxu0
      %v447 = vpop.f32.mrb[0].mxu0
      %v448 = vadd.f32 0.0, %v447
      %v449 = vpop.f32.mrb[0].mxu0
      %450 = vmatprep.mubr.bf16.mxu0 0
      %451 = vmatmul.mubr.bf16.gmra.mrb[0].mxu0 %v389
      %v452 = vpop.f32.mrb[0].mxu0
      %v453 = vadd.f32 0.0, %v452
      %v454 = vpop.f32.mrb[0].mxu0
      %v455 = vpop.f32.mrb[0].mxu0
      %v456 = vadd.f32 0.0, %v455
      %v457 = vpop.f32.mrb[0].mxu0
      %458 = vdwg.mxu0
      %v459 = vadd.f32 %v334, %v429
      %v460 = vadd.f32 %v337, %v432
      %v461 = vadd.f32 %v342, %v437
      %v462 = vadd.f32 %v345, %v440
      %v463 = vadd.f32 %v350, %v445
      %v464 = vadd.f32 %v353, %v448
      %v465 = vadd.f32 %v358, %v453
      %v466 = vadd.f32 %v361, %v456
      %s467 = scalar_lea.vmem %s165, 288
      %v468 = vld [vmem:[%s467] sm:$0xff]
      %v469 = vld [vmem:[%s467 + $0x10] sm:$0xff]
      %v470 = vld [vmem:[%s467 + $0x20] sm:$0xff]
      %v471 = vld [vmem:[%s467 + $0x30] sm:$0xff]
      %v472 = vld [vmem:[%s467 + $0x40] sm:$0xff]
      %v473 = vld [vmem:[%s467 + $0x50] sm:$0xff]
      %v474 = vld [vmem:[%s467 + $0x60] sm:$0xff]
      %v475 = vld [vmem:[%s467 + $0x70] sm:$0xff]
      %s476 = scalar_lea.vmem %s1, 24
      %v477 = vld [vmem:[%s476] sm:$0xff]
      %v478 = vpack.c.bf16 %v469, %v468
      %v479 = vpack.c.bf16 %v471, %v470
      %v480 = vpack.c.bf16 %v473, %v472
      %v481 = vpack.c.bf16 %v475, %v474
      %v482 = vpack.c.bf16 %v477, %v477
      %v484 = vsel %vm202, %v478, 0
      %v487 = vsel %vm202, %v479, 0
      %v490 = vsel %vm202, %v480, 0
      %v493 = vsel %vm202, %v481, 0
      %v496 = vsel %vm215, %v482, 0
      %498 = vmatprep.subr.bf16.mxu0 0
      %499 = vmatpush1.bf16.msra.mxu0 %v496
      %500 = vmatprep.subr.bf16.mxu0 0
      %501 = vmatpush1.bf16.msra.mxu0 0
      %502 = vmatprep.subr.bf16.mxu0 0
      %503 = vmatpush1.bf16.msra.mxu0 0
      %504 = vmatprep.subr.bf16.mxu0 0
      %505 = vmatpush1.bf16.msra.mxu0 0
      %506 = vmatprep.subr.bf16.mxu0 0
      %507 = vmatpush1.bf16.msra.mxu0 0
      %508 = vmatprep.subr.bf16.mxu0 0
      %509 = vmatpush1.bf16.msra.mxu0 0
      %510 = vmatprep.subr.bf16.mxu0 0
      %511 = vmatpush1.bf16.msra.mxu0 0
      %512 = vmatprep.subr.bf16.mxu0 0
      %513 = vmatpush1.bf16.msra.mxu0 0
      %514 = vmatprep.subr.bf16.mxu0 0
      %515 = vmatpush1.bf16.msra.mxu0 0
      %516 = vmatprep.subr.bf16.mxu0 0
      %517 = vmatpush1.bf16.msra.mxu0 0
      %518 = vmatprep.subr.bf16.mxu0 0
      %519 = vmatpush1.bf16.msra.mxu0 0
      %520 = vmatprep.subr.bf16.mxu0 0
      %521 = vmatpush1.bf16.msra.mxu0 0
      %522 = vmatprep.subr.bf16.mxu0 0
      %523 = vmatpush1.bf16.msra.mxu0 0
      %524 = vmatprep.subr.bf16.mxu0 0
      %525 = vmatpush1.bf16.msra.mxu0 0
      %526 = vmatprep.subr.bf16.mxu0 0
      %527 = vmatpush1.bf16.msra.mxu0 0
      %528 = vmatprep.subr.bf16.mxu0 0
      %529 = vmatpush1.bf16.msra.mxu0 0
      %530 = vmatprep.mubr.bf16.mxu0 0
      %531 = vmatmul.mubr.bf16.gmra.mrb[0].mxu0 %v484
      %v532 = vpop.f32.mrb[0].mxu0
      %v533 = vadd.f32 0.0, %v532
      %v534 = vpop.f32.mrb[0].mxu0
      %v535 = vpop.f32.mrb[0].mxu0
      %v536 = vadd.f32 0.0, %v535
      %v537 = vpop.f32.mrb[0].mxu0
      %538 = vmatprep.mubr.bf16.mxu0 0
      %539 = vmatmul.mubr.bf16.gmra.mrb[0].mxu0 %v487
      %v540 = vpop.f32.mrb[0].mxu0
      %v541 = vadd.f32 0.0, %v540
      %v542 = vpop.f32.mrb[0].mxu0
      %v543 = vpop.f32.mrb[0].mxu0
      %v544 = vadd.f32 0.0, %v543
      %v545 = vpop.f32.mrb[0].mxu0
      %546 = vmatprep.mubr.bf16.mxu0 0
      %547 = vmatmul.mubr.bf16.gmra.mrb[0].mxu0 %v490
      %v548 = vpop.f32.mrb[0].mxu0
      %v549 = vadd.f32 0.0, %v548
      %v550 = vpop.f32.mrb[0].mxu0
      %v551 = vpop.f32.mrb[0].mxu0
      %v552 = vadd.f32 0.0, %v551
      %v553 = vpop.f32.mrb[0].mxu0
      %554 = vmatprep.mubr.bf16.mxu0 0
      %555 = vmatmul.mubr.bf16.gmra.mrb[0].mxu0 %v493
      %v556 = vpop.f32.mrb[0].mxu0
      %v557 = vadd.f32 0.0, %v556
      %v558 = vpop.f32.mrb[0].mxu0
      %v559 = vpop.f32.mrb[0].mxu0
      %v560 = vadd.f32 0.0, %v559
      %v561 = vpop.f32.mrb[0].mxu0
      %562 = vdwg.mxu0
      %v563 = vadd.f32 %v459, %v533
      %v564 = vadd.f32 %v460, %v536
      %v565 = vadd.f32 %v461, %v541
      %v566 = vadd.f32 %v462, %v544
      %v567 = vadd.f32 %v463, %v549
      %v568 = vadd.f32 %v464, %v552
      %v569 = vadd.f32 %v465, %v557
      %v570 = vadd.f32 %v466, %v560
      %s571 = scalar_lea.vmem %s165, 432
      %v572 = vld [vmem:[%s571] sm:$0xff]
      %v573 = vld [vmem:[%s571 + $0x10] sm:$0xff]
      %v574 = vld [vmem:[%s571 + $0x20] sm:$0xff]
      %v575 = vld [vmem:[%s571 + $0x30] sm:$0xff]
      %v576 = vld [vmem:[%s571 + $0x40] sm:$0xff]
      %v577 = vld [vmem:[%s571 + $0x50] sm:$0xff]
      %v578 = vld [vmem:[%s571 + $0x60] sm:$0xff]
      %v579 = vld [vmem:[%s571 + $0x70] sm:$0xff]
      %s580 = scalar_lea.vmem %s1, 32
      %v581 = vld [vmem:[%s580] sm:$0xff]
      %v582 = vpack.c.bf16 %v573, %v572
      %v583 = vpack.c.bf16 %v575, %v574
      %v584 = vpack.c.bf16 %v577, %v576
      %v585 = vpack.c.bf16 %v579, %v578
      %v586 = vpack.c.bf16 %v581, %v581
      %v588 = vsel %vm202, %v582, 0
      %v591 = vsel %vm202, %v583, 0
      %v594 = vsel %vm202, %v584, 0
      %v597 = vsel %vm202, %v585, 0
      %v600 = vsel %vm215, %v586, 0
      %602 = vmatprep.subr.bf16.mxu0 0
      %603 = vmatpush1.bf16.msra.mxu0 %v600
      %604 = vmatprep.subr.bf16.mxu0 0
      %605 = vmatpush1.bf16.msra.mxu0 0
      %606 = vmatprep.subr.bf16.mxu0 0
      %607 = vmatpush1.bf16.msra.mxu0 0
      %608 = vmatprep.subr.bf16.mxu0 0
      %609 = vmatpush1.bf16.msra.mxu0 0
      %610 = vmatprep.subr.bf16.mxu0 0
      %611 = vmatpush1.bf16.msra.mxu0 0
      %612 = vmatprep.subr.bf16.mxu0 0
      %613 = vmatpush1.bf16.msra.mxu0 0
      %614 = vmatprep.subr.bf16.mxu0 0
      %615 = vmatpush1.bf16.msra.mxu0 0
      %616 = vmatprep.subr.bf16.mxu0 0
      %617 = vmatpush1.bf16.msra.mxu0 0
      %618 = vmatprep.subr.bf16.mxu0 0
      %619 = vmatpush1.bf16.msra.mxu0 0
      %620 = vmatprep.subr.bf16.mxu0 0
      %621 = vmatpush1.bf16.msra.mxu0 0
      %622 = vmatprep.subr.bf16.mxu0 0
      %623 = vmatpush1.bf16.msra.mxu0 0
      %624 = vmatprep.subr.bf16.mxu0 0
      %625 = vmatpush1.bf16.msra.mxu0 0
      %626 = vmatprep.subr.bf16.mxu0 0
      %627 = vmatpush1.bf16.msra.mxu0 0
      %628 = vmatprep.subr.bf16.mxu0 0
      %629 = vmatpush1.bf16.msra.mxu0 0
      %630 = vmatprep.subr.bf16.mxu0 0
      %631 = vmatpush1.bf16.msra.mxu0 0
      %632 = vmatprep.subr.bf16.mxu0 0
      %633 = vmatpush1.bf16.msra.mxu0 0
      %634 = vmatprep.mubr.bf16.mxu0 0
      %635 = vmatmul.mubr.bf16.gmra.mrb[0].mxu0 %v588
      %v636 = vpop.f32.mrb[0].mxu0
      %v637 = vadd.f32 0.0, %v636
      %v638 = vpop.f32.mrb[0].mxu0
      %v639 = vpop.f32.mrb[0].mxu0
      %v640 = vadd.f32 0.0, %v639
      %v641 = vpop.f32.mrb[0].mxu0
      %642 = vmatprep.mubr.bf16.mxu0 0
      %643 = vmatmul.mubr.bf16.gmra.mrb[0].mxu0 %v591
      %v644 = vpop.f32.mrb[0].mxu0
      %v645 = vadd.f32 0.0, %v644
      %v646 = vpop.f32.mrb[0].mxu0
      %v647 = vpop.f32.mrb[0].mxu0
      %v648 = vadd.f32 0.0, %v647
      %v649 = vpop.f32.mrb[0].mxu0
      %650 = vmatprep.mubr.bf16.mxu0 0
      %651 = vmatmul.mubr.bf16.gmra.mrb[0].mxu0 %v594
      %v652 = vpop.f32.mrb[0].mxu0
      %v653 = vadd.f32 0.0, %v652
      %v654 = vpop.f32.mrb[0].mxu0
      %v655 = vpop.f32.mrb[0].mxu0
      %v656 = vadd.f32 0.0, %v655
      %v657 = vpop.f32.mrb[0].mxu0
      %658 = vmatprep.mubr.bf16.mxu0 0
      %659 = vmatmul.mubr.bf16.gmra.mrb[0].mxu0 %v597
      %v660 = vpop.f32.mrb[0].mxu0
      %v661 = vadd.f32 0.0, %v660
      %v662 = vpop.f32.mrb[0].mxu0
      %v663 = vpop.f32.mrb[0].mxu0
      %v664 = vadd.f32 0.0, %v663
      %v665 = vpop.f32.mrb[0].mxu0
      %666 = vdwg.mxu0
      %v667 = vadd.f32 %v563, %v637
      %v668 = vadd.f32 %v564, %v640
      %v669 = vadd.f32 %v565, %v645
      %v670 = vadd.f32 %v566, %v648
      %v671 = vadd.f32 %v567, %v653
      %v672 = vadd.f32 %v568, %v656
      %v673 = vadd.f32 %v569, %v661
      %v674 = vadd.f32 %v570, %v664
      %v675 = vld [vmem:[%s467 + $0x1] sm:$0xff]
      %v676 = vld [vmem:[%s467 + $0x11] sm:$0xff]
      %v677 = vld [vmem:[%s467 + $0x21] sm:$0xff]
      %v678 = vld [vmem:[%s467 + $0x31] sm:$0xff]
      %v679 = vld [vmem:[%s467 + $0x41] sm:$0xff]
      %v680 = vld [vmem:[%s467 + $0x51] sm:$0xff]
      %v681 = vld [vmem:[%s467 + $0x61] sm:$0xff]
      %v682 = vld [vmem:[%s467 + $0x71] sm:$0xff]
      %s683 = scalar_lea.vmem %s1, 40
      %v684 = vld [vmem:[%s683] sm:$0xff]
      %v685 = vpack.c.bf16 %v676, %v675
      %v686 = vpack.c.bf16 %v678, %v677
      %v687 = vpack.c.bf16 %v680, %v679
      %v688 = vpack.c.bf16 %v682, %v681
      %v689 = vpack.c.bf16 %v684, %v684
      %v691 = vsel %vm202, %v685, 0
      %v694 = vsel %vm202, %v686, 0
      %v697 = vsel %vm202, %v687, 0
      %v700 = vsel %vm202, %v688, 0
      %v703 = vsel %vm215, %v689, 0
      %705 = vmatprep.subr.bf16.mxu0 0
      %706 = vmatpush1.bf16.msra.mxu0 %v703
      %707 = vmatprep.subr.bf16.mxu0 0
      %708 = vmatpush1.bf16.msra.mxu0 0
      %709 = vmatprep.subr.bf16.mxu0 0
      %710 = vmatpush1.bf16.msra.mxu0 0
      %711 = vmatprep.subr.bf16.mxu0 0
      %712 = vmatpush1.bf16.msra.mxu0 0
      %713 = vmatprep.subr.bf16.mxu0 0
      %714 = vmatpush1.bf16.msra.mxu0 0
      %715 = vmatprep.subr.bf16.mxu0 0
      %716 = vmatpush1.bf16.msra.mxu0 0
      %717 = vmatprep.subr.bf16.mxu0 0
      %718 = vmatpush1.bf16.msra.mxu0 0
      %719 = vmatprep.subr.bf16.mxu0 0
      %720 = vmatpush1.bf16.msra.mxu0 0
      %721 = vmatprep.subr.bf16.mxu0 0
      %722 = vmatpush1.bf16.msra.mxu0 0
      %723 = vmatprep.subr.bf16.mxu0 0
      %724 = vmatpush1.bf16.msra.mxu0 0
      %725 = vmatprep.subr.bf16.mxu0 0
      %726 = vmatpush1.bf16.msra.mxu0 0
      %727 = vmatprep.subr.bf16.mxu0 0
      %728 = vmatpush1.bf16.msra.mxu0 0
      %729 = vmatprep.subr.bf16.mxu0 0
      %730 = vmatpush1.bf16.msra.mxu0 0
      %731 = vmatprep.subr.bf16.mxu0 0
      %732 = vmatpush1.bf16.msra.mxu0 0
      %733 = vmatprep.subr.bf16.mxu0 0
      %734 = vmatpush1.bf16.msra.mxu0 0
      %735 = vmatprep.subr.bf16.mxu0 0
      %736 = vmatpush1.bf16.msra.mxu0 0
      %737 = vmatprep.mubr.bf16.mxu0 0
      %738 = vmatmul.mubr.bf16.gmra.mrb[0].mxu0 %v691
      %v739 = vpop.f32.mrb[0].mxu0
      %v740 = vadd.f32 0.0, %v739
      %v741 = vpop.f32.mrb[0].mxu0
      %v742 = vpop.f32.mrb[0].mxu0
      %v743 = vadd.f32 0.0, %v742
      %v744 = vpop.f32.mrb[0].mxu0
      %745 = vmatprep.mubr.bf16.mxu0 0
      %746 = vmatmul.mubr.bf16.gmra.mrb[0].mxu0 %v694
      %v747 = vpop.f32.mrb[0].mxu0
      %v748 = vadd.f32 0.0, %v747
      %v749 = vpop.f32.mrb[0].mxu0
      %v750 = vpop.f32.mrb[0].mxu0
      %v751 = vadd.f32 0.0, %v750
      %v752 = vpop.f32.mrb[0].mxu0
      %753 = vmatprep.mubr.bf16.mxu0 0
      %754 = vmatmul.mubr.bf16.gmra.mrb[0].mxu0 %v697
      %v755 = vpop.f32.mrb[0].mxu0
      %v756 = vadd.f32 0.0, %v755
      %v757 = vpop.f32.mrb[0].mxu0
      %v758 = vpop.f32.mrb[0].mxu0
      %v759 = vadd.f32 0.0, %v758
      %v760 = vpop.f32.mrb[0].mxu0
      %761 = vmatprep.mubr.bf16.mxu0 0
      %762 = vmatmul.mubr.bf16.gmra.mrb[0].mxu0 %v700
      %v763 = vpop.f32.mrb[0].mxu0
      %v764 = vadd.f32 0.0, %v763
      %v765 = vpop.f32.mrb[0].mxu0
      %v766 = vpop.f32.mrb[0].mxu0
      %v767 = vadd.f32 0.0, %v766
      %v768 = vpop.f32.mrb[0].mxu0
      %769 = vdwg.mxu0
      %v770 = vadd.f32 %v667, %v740
      %v771 = vadd.f32 %v668, %v743
      %v772 = vadd.f32 %v669, %v748
      %v773 = vadd.f32 %v670, %v751
      %v774 = vadd.f32 %v671, %v756
      %v775 = vadd.f32 %v672, %v759
      %v776 = vadd.f32 %v673, %v764
      %v777 = vadd.f32 %v674, %v767
      %s778 = scalar_lea.vmem %s165, 16
      %v779 = vld [vmem:[%s778] sm:$0xff]
      %v780 = vld [vmem:[%s778 + $0x10] sm:$0xff]
      %v781 = vld [vmem:[%s778 + $0x20] sm:$0xff]
      %v782 = vld [vmem:[%s778 + $0x30] sm:$0xff]
      %v783 = vld [vmem:[%s778 + $0x40] sm:$0xff]
      %v784 = vld [vmem:[%s778 + $0x50] sm:$0xff]
      %v785 = vld [vmem:[%s778 + $0x60] sm:$0xff]
      %v786 = vld [vmem:[%s778 + $0x70] sm:$0xff]
      %s787 = scalar_lea.vmem %s1, 48
      %v788 = vld [vmem:[%s787] sm:$0xff]
      %v789 = vpack.c.bf16 %v780, %v779
      %v790 = vpack.c.bf16 %v782, %v781
      %v791 = vpack.c.bf16 %v784, %v783
      %v792 = vpack.c.bf16 %v786, %v785
      %v793 = vpack.c.bf16 %v788, %v788
      %v795 = vsel %vm202, %v789, 0
      %v798 = vsel %vm202, %v790, 0
      %v801 = vsel %vm202, %v791, 0
      %v804 = vsel %vm202, %v792, 0
      %v807 = vsel %vm215, %v793, 0
      %809 = vmatprep.subr.bf16.mxu0 0
      %810 = vmatpush1.bf16.msra.mxu0 %v807
      %811 = vmatprep.subr.bf16.mxu0 0
      %812 = vmatpush1.bf16.msra.mxu0 0
      %813 = vmatprep.subr.bf16.mxu0 0
      %814 = vmatpush1.bf16.msra.mxu0 0
      %815 = vmatprep.subr.bf16.mxu0 0
      %816 = vmatpush1.bf16.msra.mxu0 0
      %817 = vmatprep.subr.bf16.mxu0 0
      %818 = vmatpush1.bf16.msra.mxu0 0
      %819 = vmatprep.subr.bf16.mxu0 0
      %820 = vmatpush1.bf16.msra.mxu0 0
      %821 = vmatprep.subr.bf16.mxu0 0
      %822 = vmatpush1.bf16.msra.mxu0 0
      %823 = vmatprep.subr.bf16.mxu0 0
      %824 = vmatpush1.bf16.msra.mxu0 0
      %825 = vmatprep.subr.bf16.mxu0 0
      %826 = vmatpush1.bf16.msra.mxu0 0
      %827 = vmatprep.subr.bf16.mxu0 0
      %828 = vmatpush1.bf16.msra.mxu0 0
      %829 = vmatprep.subr.bf16.mxu0 0
      %830 = vmatpush1.bf16.msra.mxu0 0
      %831 = vmatprep.subr.bf16.mxu0 0
      %832 = vmatpush1.bf16.msra.mxu0 0
      %833 = vmatprep.subr.bf16.mxu0 0
      %834 = vmatpush1.bf16.msra.mxu0 0
      %835 = vmatprep.subr.bf16.mxu0 0
      %836 = vmatpush1.bf16.msra.mxu0 0
      %837 = vmatprep.subr.bf16.mxu0 0
      %838 = vmatpush1.bf16.msra.mxu0 0
      %839 = vmatprep.subr.bf16.mxu0 0
      %840 = vmatpush1.bf16.msra.mxu0 0
      %841 = vmatprep.mubr.bf16.mxu0 0
      %842 = vmatmul.mubr.bf16.gmra.mrb[0].mxu0 %v795
      %v843 = vpop.f32.mrb[0].mxu0
      %v844 = vadd.f32 0.0, %v843
      %v845 = vpop.f32.mrb[0].mxu0
      %v846 = vpop.f32.mrb[0].mxu0
      %v847 = vadd.f32 0.0, %v846
      %v848 = vpop.f32.mrb[0].mxu0
      %849 = vmatprep.mubr.bf16.mxu0 0
      %850 = vmatmul.mubr.bf16.gmra.mrb[0].mxu0 %v798
      %v851 = vpop.f32.mrb[0].mxu0
      %v852 = vadd.f32 0.0, %v851
      %v853 = vpop.f32.mrb[0].mxu0
      %v854 = vpop.f32.mrb[0].mxu0
      %v855 = vadd.f32 0.0, %v854
      %v856 = vpop.f32.mrb[0].mxu0
      %857 = vmatprep.mubr.bf16.mxu0 0
      %858 = vmatmul.mubr.bf16.gmra.mrb[0].mxu0 %v801
      %v859 = vpop.f32.mrb[0].mxu0
      %v860 = vadd.f32 0.0, %v859
      %v861 = vpop.f32.mrb[0].mxu0
      %v862 = vpop.f32.mrb[0].mxu0
      %v863 = vadd.f32 0.0, %v862
      %v864 = vpop.f32.mrb[0].mxu0
      %865 = vmatprep.mubr.bf16.mxu0 0
      %866 = vmatmul.mubr.bf16.gmra.mrb[0].mxu0 %v804
      %v867 = vpop.f32.mrb[0].mxu0
      %v868 = vadd.f32 0.0, %v867
      %v869 = vpop.f32.mrb[0].mxu0
      %v870 = vpop.f32.mrb[0].mxu0
      %v871 = vadd.f32 0.0, %v870
      %v872 = vpop.f32.mrb[0].mxu0
      %873 = vdwg.mxu0
      %v874 = vadd.f32 %v770, %v844
      %v875 = vadd.f32 %v771, %v847
      %v876 = vadd.f32 %v772, %v852
      %v877 = vadd.f32 %v773, %v855
      %v878 = vadd.f32 %v774, %v860
      %v879 = vadd.f32 %v775, %v863
      %v880 = vadd.f32 %v776, %v868
      %v881 = vadd.f32 %v777, %v871
      %s882 = scalar_lea.vmem %s165, 160
      %v883 = vld [vmem:[%s882] sm:$0xff]
      %v884 = vld [vmem:[%s882 + $0x10] sm:$0xff]
      %v885 = vld [vmem:[%s882 + $0x20] sm:$0xff]
      %v886 = vld [vmem:[%s882 + $0x30] sm:$0xff]
      %v887 = vld [vmem:[%s882 + $0x40] sm:$0xff]
      %v888 = vld [vmem:[%s882 + $0x50] sm:$0xff]
      %v889 = vld [vmem:[%s882 + $0x60] sm:$0xff]
      %v890 = vld [vmem:[%s882 + $0x70] sm:$0xff]
      %s891 = scalar_lea.vmem %s1, 56
      %v892 = vld [vmem:[%s891] sm:$0xff]
      %v893 = vpack.c.bf16 %v884, %v883
      %v894 = vpack.c.bf16 %v886, %v885
      %v895 = vpack.c.bf16 %v888, %v887
      %v896 = vpack.c.bf16 %v890, %v889
      %v897 = vpack.c.bf16 %v892, %v892
      %v899 = vsel %vm202, %v893, 0
      %v902 = vsel %vm202, %v894, 0
      %v905 = vsel %vm202, %v895, 0
      %v908 = vsel %vm202, %v896, 0
      %v911 = vsel %vm215, %v897, 0
      %913 = vmatprep.subr.bf16.mxu0 0
      %914 = vmatpush1.bf16.msra.mxu0 %v911
      %915 = vmatprep.subr.bf16.mxu0 0
      %916 = vmatpush1.bf16.msra.mxu0 0
      %917 = vmatprep.subr.bf16.mxu0 0
      %918 = vmatpush1.bf16.msra.mxu0 0
      %919 = vmatprep.subr.bf16.mxu0 0
      %920 = vmatpush1.bf16.msra.mxu0 0
      %921 = vmatprep.subr.bf16.mxu0 0
      %922 = vmatpush1.bf16.msra.mxu0 0
      %923 = vmatprep.subr.bf16.mxu0 0
      %924 = vmatpush1.bf16.msra.mxu0 0
      %925 = vmatprep.subr.bf16.mxu0 0
      %926 = vmatpush1.bf16.msra.mxu0 0
      %927 = vmatprep.subr.bf16.mxu0 0
      %928 = vmatpush1.bf16.msra.mxu0 0
      %929 = vmatprep.subr.bf16.mxu0 0
      %930 = vmatpush1.bf16.msra.mxu0 0
      %931 = vmatprep.subr.bf16.mxu0 0
      %932 = vmatpush1.bf16.msra.mxu0 0
      %933 = vmatprep.subr.bf16.mxu0 0
      %934 = vmatpush1.bf16.msra.mxu0 0
      %935 = vmatprep.subr.bf16.mxu0 0
      %936 = vmatpush1.bf16.msra.mxu0 0
      %937 = vmatprep.subr.bf16.mxu0 0
      %938 = vmatpush1.bf16.msra.mxu0 0
      %939 = vmatprep.subr.bf16.mxu0 0
      %940 = vmatpush1.bf16.msra.mxu0 0
      %941 = vmatprep.subr.bf16.mxu0 0
      %942 = vmatpush1.bf16.msra.mxu0 0
      %943 = vmatprep.subr.bf16.mxu0 0
      %944 = vmatpush1.bf16.msra.mxu0 0
      %945 = vmatprep.mubr.bf16.mxu0 0
      %946 = vmatmul.mubr.bf16.gmra.mrb[0].mxu0 %v899
      %v947 = vpop.f32.mrb[0].mxu0
      %v948 = vadd.f32 0.0, %v947
      %v949 = vpop.f32.mrb[0].mxu0
      %v950 = vpop.f32.mrb[0].mxu0
      %v951 = vadd.f32 0.0, %v950
      %v952 = vpop.f32.mrb[0].mxu0
      %953 = vmatprep.mubr.bf16.mxu0 0
      %954 = vmatmul.mubr.bf16.gmra.mrb[0].mxu0 %v902
      %v955 = vpop.f32.mrb[0].mxu0
      %v956 = vadd.f32 0.0, %v955
      %v957 = vpop.f32.mrb[0].mxu0
      %v958 = vpop.f32.mrb[0].mxu0
      %v959 = vadd.f32 0.0, %v958
      %v960 = vpop.f32.mrb[0].mxu0
      %961 = vmatprep.mubr.bf16.mxu0 0
      %962 = vmatmul.mubr.bf16.gmra.mrb[0].mxu0 %v905
      %v963 = vpop.f32.mrb[0].mxu0
      %v964 = vadd.f32 0.0, %v963
      %v965 = vpop.f32.mrb[0].mxu0
      %v966 = vpop.f32.mrb[0].mxu0
      %v967 = vadd.f32 0.0, %v966
      %v968 = vpop.f32.mrb[0].mxu0
      %969 = vmatprep.mubr.bf16.mxu0 0
      %970 = vmatmul.mubr.bf16.gmra.mrb[0].mxu0 %v908
      %v971 = vpop.f32.mrb[0].mxu0
      %v972 = vadd.f32 0.0, %v971
      %v973 = vpop.f32.mrb[0].mxu0
      %v974 = vpop.f32.mrb[0].mxu0
      %v975 = vadd.f32 0.0, %v974
      %v976 = vpop.f32.mrb[0].mxu0
      %977 = vdwg.mxu0
      %v978 = vadd.f32 %v874, %v948
      %v979 = vadd.f32 %v875, %v951
      %v980 = vadd.f32 %v876, %v956
      %v981 = vadd.f32 %v877, %v959
      %v982 = vadd.f32 %v878, %v964
      %v983 = vadd.f32 %v879, %v967
      %v984 = vadd.f32 %v880, %v972
      %v985 = vadd.f32 %v881, %v975
      %v986 = vld [vmem:[%s778 + $0x1] sm:$0xff]
      %v987 = vld [vmem:[%s778 + $0x11] sm:$0xff]
      %v988 = vld [vmem:[%s778 + $0x21] sm:$0xff]
      %v989 = vld [vmem:[%s778 + $0x31] sm:$0xff]
      %v990 = vld [vmem:[%s778 + $0x41] sm:$0xff]
      %v991 = vld [vmem:[%s778 + $0x51] sm:$0xff]
      %v992 = vld [vmem:[%s778 + $0x61] sm:$0xff]
      %v993 = vld [vmem:[%s778 + $0x71] sm:$0xff]
      %s994 = scalar_lea.vmem %s1, 64
      %v995 = vld [vmem:[%s994] sm:$0xff]
      %v996 = vpack.c.bf16 %v987, %v986
      %v997 = vpack.c.bf16 %v989, %v988
      %v998 = vpack.c.bf16 %v991, %v990
      %v999 = vpack.c.bf16 %v993, %v992
      %v1000 = vpack.c.bf16 %v995, %v995
      %v1002 = vsel %vm202, %v996, 0
      %v1005 = vsel %vm202, %v997, 0
      %v1008 = vsel %vm202, %v998, 0
      %v1011 = vsel %vm202, %v999, 0
      %v1014 = vsel %vm215, %v1000, 0
      %1016 = vmatprep.subr.bf16.mxu0 0
      %1017 = vmatpush1.bf16.msra.mxu0 %v1014
      %1018 = vmatprep.subr.bf16.mxu0 0
      %1019 = vmatpush1.bf16.msra.mxu0 0
      %1020 = vmatprep.subr.bf16.mxu0 0
      %1021 = vmatpush1.bf16.msra.mxu0 0
      %1022 = vmatprep.subr.bf16.mxu0 0
      %1023 = vmatpush1.bf16.msra.mxu0 0
      %1024 = vmatprep.subr.bf16.mxu0 0
      %1025 = vmatpush1.bf16.msra.mxu0 0
      %1026 = vmatprep.subr.bf16.mxu0 0
      %1027 = vmatpush1.bf16.msra.mxu0 0
      %1028 = vmatprep.subr.bf16.mxu0 0
      %1029 = vmatpush1.bf16.msra.mxu0 0
      %1030 = vmatprep.subr.bf16.mxu0 0
      %1031 = vmatpush1.bf16.msra.mxu0 0
      %1032 = vmatprep.subr.bf16.mxu0 0
      %1033 = vmatpush1.bf16.msra.mxu0 0
      %1034 = vmatprep.subr.bf16.mxu0 0
      %1035 = vmatpush1.bf16.msra.mxu0 0
      %1036 = vmatprep.subr.bf16.mxu0 0
      %1037 = vmatpush1.bf16.msra.mxu0 0
      %1038 = vmatprep.subr.bf16.mxu0 0
      %1039 = vmatpush1.bf16.msra.mxu0 0
      %1040 = vmatprep.subr.bf16.mxu0 0
      %1041 = vmatpush1.bf16.msra.mxu0 0
      %1042 = vmatprep.subr.bf16.mxu0 0
      %1043 = vmatpush1.bf16.msra.mxu0 0
      %1044 = vmatprep.subr.bf16.mxu0 0
      %1045 = vmatpush1.bf16.msra.mxu0 0
      %1046 = vmatprep.subr.bf16.mxu0 0
      %1047 = vmatpush1.bf16.msra.mxu0 0
      %1048 = vmatprep.mubr.bf16.mxu0 0
      %1049 = vmatmul.mubr.bf16.gmra.mrb[0].mxu0 %v1002
      %v1050 = vpop.f32.mrb[0].mxu0
      %v1051 = vadd.f32 0.0, %v1050
      %v1052 = vpop.f32.mrb[0].mxu0
      %v1053 = vpop.f32.mrb[0].mxu0
      %v1054 = vadd.f32 0.0, %v1053
      %v1055 = vpop.f32.mrb[0].mxu0
      %1056 = vmatprep.mubr.bf16.mxu0 0
      %1057 = vmatmul.mubr.bf16.gmra.mrb[0].mxu0 %v1005
      %v1058 = vpop.f32.mrb[0].mxu0
      %v1059 = vadd.f32 0.0, %v1058
      %v1060 = vpop.f32.mrb[0].mxu0
      %v1061 = vpop.f32.mrb[0].mxu0
      %v1062 = vadd.f32 0.0, %v1061
      %v1063 = vpop.f32.mrb[0].mxu0
      %1064 = vmatprep.mubr.bf16.mxu0 0
      %1065 = vmatmul.mubr.bf16.gmra.mrb[0].mxu0 %v1008
      %v1066 = vpop.f32.mrb[0].mxu0
      %v1067 = vadd.f32 0.0, %v1066
      %v1068 = vpop.f32.mrb[0].mxu0
      %v1069 = vpop.f32.mrb[0].mxu0
      %v1070 = vadd.f32 0.0, %v1069
      %v1071 = vpop.f32.mrb[0].mxu0
      %1072 = vmatprep.mubr.bf16.mxu0 0
      %1073 = vmatmul.mubr.bf16.gmra.mrb[0].mxu0 %v1011
      %v1074 = vpop.f32.mrb[0].mxu0
      %v1075 = vadd.f32 0.0, %v1074
      %v1076 = vpop.f32.mrb[0].mxu0
      %v1077 = vpop.f32.mrb[0].mxu0
      %v1078 = vadd.f32 0.0, %v1077
      %v1079 = vpop.f32.mrb[0].mxu0
      %1080 = vdwg.mxu0
      %v1081 = vadd.f32 %v978, %v1051
      %v1082 = vadd.f32 %v979, %v1054
      %v1083 = vadd.f32 %v980, %v1059
      %v1084 = vadd.f32 %v981, %v1062
      %v1085 = vadd.f32 %v982, %v1067
      %v1086 = vadd.f32 %v983, %v1070
      %v1087 = vadd.f32 %v984, %v1075
      %v1088 = vadd.f32 %v985, %v1078
      %v1089 = vld [vmem:[%s2] sm:$0x1]
      %v1091 = vlaneseq
      %v1092 = vshrl.u32 %v1091, 7
      %v1093 = vsub.s32 0, %v1092
      %v1094 = vrot.slane %v1089, %v1093
      %v1096 = vadd.f32 %v1081, %v1094
      %v1097 = vadd.f32 %v1082, %v1094
      %v1098 = vadd.f32 %v1083, %v1094
      %v1099 = vadd.f32 %v1084, %v1094
      %v1100 = vadd.f32 %v1085, %v1094
      %v1101 = vadd.f32 %v1086, %v1094
      %v1102 = vadd.f32 %v1087, %v1094
      %v1103 = vadd.f32 %v1088, %v1094
      %v1104 = vmul.f32 %v1096, 0.5
      %v1105 = vmul.f32 %v1097, 0.5
      %v1106 = vmul.f32 %v1098, 0.5
      %v1107 = vmul.f32 %v1099, 0.5
      %v1108 = vmul.f32 %v1100, 0.5
      %v1109 = vmul.f32 %v1101, 0.5
      %v1110 = vmul.f32 %v1102, 0.5
      %v1111 = vmul.f32 %v1103, 0.5
      %v1112 = vmul.f32 %v1096, 0.70710677
      %v1113 = vmul.f32 %v1097, 0.70710677
      %v1114 = vmul.f32 %v1098, 0.70710677
      %v1115 = vmul.f32 %v1099, 0.70710677
      %v1116 = vmul.f32 %v1100, 0.70710677
      %v1117 = vmul.f32 %v1101, 0.70710677
      %v1118 = vmul.f32 %v1102, 0.70710677
      %v1119 = vmul.f32 %v1103, 0.70710677
      %vm1120 = vcmp.ge.f32.partialorder %v1112, 0.0
      %vm1121 = vcmp.ge.f32.partialorder %v1113, 0.0
      %vm1122 = vcmp.ge.f32.partialorder %v1114, 0.0
      %vm1123 = vcmp.ge.f32.partialorder %v1115, 0.0
      %vm1124 = vcmp.ge.f32.partialorder %v1116, 0.0
      %vm1125 = vcmp.ge.f32.partialorder %v1117, 0.0
      %vm1126 = vcmp.ge.f32.partialorder %v1118, 0.0
      %vm1127 = vcmp.ge.f32.partialorder %v1119, 0.0
      %v1128 = vsel %vm1120, 1.0, -1.0
      %v1129 = vsel %vm1121, 1.0, -1.0
      %v1130 = vsel %vm1122, 1.0, -1.0
      %v1131 = vsel %vm1123, 1.0, -1.0
      %v1132 = vsel %vm1124, 1.0, -1.0
      %v1133 = vsel %vm1125, 1.0, -1.0
      %v1134 = vsel %vm1126, 1.0, -1.0
      %v1135 = vsel %vm1127, 1.0, -1.0
      %v1136 = vand.u32 2147483647, %v1112
      %v1137 = vand.u32 2147483647, %v1113
      %v1138 = vand.u32 2147483647, %v1114
      %v1139 = vand.u32 2147483647, %v1115
      %v1140 = vand.u32 2147483647, %v1116
      %v1141 = vand.u32 2147483647, %v1117
      %v1142 = vand.u32 2147483647, %v1118
      %v1143 = vand.u32 2147483647, %v1119
      %v1144 = vmul.f32 %v1136, 0.3275911
      %v1145 = vmul.f32 %v1137, 0.3275911
      %v1146 = vmul.f32 %v1138, 0.3275911
      %v1147 = vmul.f32 %v1139, 0.3275911
      %v1148 = vmul.f32 %v1140, 0.3275911
      %v1149 = vmul.f32 %v1141, 0.3275911
      %v1150 = vmul.f32 %v1142, 0.3275911
      %v1151 = vmul.f32 %v1143, 0.3275911
      %v1152 = vadd.f32 %v1144, 1.0
      %v1153 = vadd.f32 %v1145, 1.0
      %v1154 = vadd.f32 %v1146, 1.0
      %v1155 = vadd.f32 %v1147, 1.0
      %v1156 = vadd.f32 %v1148, 1.0
      %v1157 = vadd.f32 %v1149, 1.0
      %v1158 = vadd.f32 %v1150, 1.0
      %v1159 = vadd.f32 %v1151, 1.0
      %v1160 = vrcp.pop %v1152
      %v1161 = vmul.f32 1.0, %v1160
      %v1162 = vrcp.pop %v1153
      %v1163 = vmul.f32 1.0, %v1162
      %v1164 = vrcp.pop %v1154
      %v1165 = vmul.f32 1.0, %v1164
      %v1166 = vrcp.pop %v1155
      %v1167 = vmul.f32 1.0, %v1166
      %v1168 = vrcp.pop %v1156
      %v1169 = vmul.f32 1.0, %v1168
      %v1170 = vrcp.pop %v1157
      %v1171 = vmul.f32 1.0, %v1170
      %v1172 = vrcp.pop %v1158
      %v1173 = vmul.f32 1.0, %v1172
      %v1174 = vrcp.pop %v1159
      %v1175 = vmul.f32 1.0, %v1174
      %v1176 = vmul.f32 %v1161, 1.0614054
      %v1177 = vmul.f32 %v1163, 1.0614054
      %v1178 = vmul.f32 %v1165, 1.0614054
      %v1179 = vmul.f32 %v1167, 1.0614054
      %v1180 = vmul.f32 %v1169, 1.0614054
      %v1181 = vmul.f32 %v1171, 1.0614054
      %v1182 = vmul.f32 %v1173, 1.0614054
      %v1183 = vmul.f32 %v1175, 1.0614054
      %v1184 = vadd.f32 %v1176, -1.4531521
      %v1185 = vadd.f32 %v1177, -1.4531521
      %v1186 = vadd.f32 %v1178, -1.4531521
      %v1187 = vadd.f32 %v1179, -1.4531521
      %v1188 = vadd.f32 %v1180, -1.4531521
      %v1189 = vadd.f32 %v1181, -1.4531521
      %v1190 = vadd.f32 %v1182, -1.4531521
      %v1191 = vadd.f32 %v1183, -1.4531521
      %v1192 = vmul.f32 %v1184, %v1161
      %v1193 = vmul.f32 %v1185, %v1163
      %v1194 = vmul.f32 %v1186, %v1165
      %v1195 = vmul.f32 %v1187, %v1167
      %v1196 = vmul.f32 %v1188, %v1169
      %v1197 = vmul.f32 %v1189, %v1171
      %v1198 = vmul.f32 %v1190, %v1173
      %v1199 = vmul.f32 %v1191, %v1175
      %v1200 = vadd.f32 %v1192, 1.4214138
      %v1201 = vadd.f32 %v1193, 1.4214138
      %v1202 = vadd.f32 %v1194, 1.4214138
      %v1203 = vadd.f32 %v1195, 1.4214138
      %v1204 = vadd.f32 %v1196, 1.4214138
      %v1205 = vadd.f32 %v1197, 1.4214138
      %v1206 = vadd.f32 %v1198, 1.4214138
      %v1207 = vadd.f32 %v1199, 1.4214138
      %v1208 = vmul.f32 %v1200, %v1161
      %v1209 = vmul.f32 %v1201, %v1163
      %v1210 = vmul.f32 %v1202, %v1165
      %v1211 = vmul.f32 %v1203, %v1167
      %v1212 = vmul.f32 %v1204, %v1169
      %v1213 = vmul.f32 %v1205, %v1171
      %v1214 = vmul.f32 %v1206, %v1173
      %v1215 = vmul.f32 %v1207, %v1175
      %v1216 = vadd.f32 %v1208, -0.28449672
      %v1217 = vadd.f32 %v1209, -0.28449672
      %v1218 = vadd.f32 %v1210, -0.28449672
      %v1219 = vadd.f32 %v1211, -0.28449672
      %v1220 = vadd.f32 %v1212, -0.28449672
      %v1221 = vadd.f32 %v1213, -0.28449672
      %v1222 = vadd.f32 %v1214, -0.28449672
      %v1223 = vadd.f32 %v1215, -0.28449672
      %v1224 = vmul.f32 %v1216, %v1161
      %v1225 = vmul.f32 %v1217, %v1163
      %v1226 = vmul.f32 %v1218, %v1165
      %v1227 = vmul.f32 %v1219, %v1167
      %v1228 = vmul.f32 %v1220, %v1169
      %v1229 = vmul.f32 %v1221, %v1171
      %v1230 = vmul.f32 %v1222, %v1173
      %v1231 = vmul.f32 %v1223, %v1175
      %v1232 = vadd.f32 %v1224, 0.2548296
      %v1233 = vadd.f32 %v1225, 0.2548296
      %v1234 = vadd.f32 %v1226, 0.2548296
      %v1235 = vadd.f32 %v1227, 0.2548296
      %v1236 = vadd.f32 %v1228, 0.2548296
      %v1237 = vadd.f32 %v1229, 0.2548296
      %v1238 = vadd.f32 %v1230, 0.2548296
      %v1239 = vadd.f32 %v1231, 0.2548296
      %v1240 = vmul.f32 %v1232, %v1161
      %v1241 = vmul.f32 %v1233, %v1163
      %v1242 = vmul.f32 %v1234, %v1165
      %v1243 = vmul.f32 %v1235, %v1167
      %v1244 = vmul.f32 %v1236, %v1169
      %v1245 = vmul.f32 %v1237, %v1171
      %v1246 = vmul.f32 %v1238, %v1173
      %v1247 = vmul.f32 %v1239, %v1175
      %v1248 = vsub.f32 0.0, %v1136
      %v1249 = vsub.f32 0.0, %v1137
      %v1250 = vsub.f32 0.0, %v1138
      %v1251 = vsub.f32 0.0, %v1139
      %v1252 = vsub.f32 0.0, %v1140
      %v1253 = vsub.f32 0.0, %v1141
      %v1254 = vsub.f32 0.0, %v1142
      %v1255 = vsub.f32 0.0, %v1143
      %v1256 = vmul.f32 %v1248, %v1136
      %v1257 = vmul.f32 %v1249, %v1137
      %v1258 = vmul.f32 %v1250, %v1138
      %v1259 = vmul.f32 %v1251, %v1139
      %v1260 = vmul.f32 %v1252, %v1140
      %v1261 = vmul.f32 %v1253, %v1141
      %v1262 = vmul.f32 %v1254, %v1142
      %v1263 = vmul.f32 %v1255, %v1143
      %v1264 = vmul.f32 %v1256, 1.442695
      %v1265 = vpow.pop %v1264
      %v1266 = vmul.f32 %v1257, 1.442695
      %v1267 = vpow.pop %v1266
      %v1268 = vmul.f32 %v1258, 1.442695
      %v1269 = vpow.pop %v1268
      %v1270 = vmul.f32 %v1259, 1.442695
      %v1271 = vpow.pop %v1270
      %v1272 = vmul.f32 %v1260, 1.442695
      %v1273 = vpow.pop %v1272
      %v1274 = vmul.f32 %v1261, 1.442695
      %v1275 = vpow.pop %v1274
      %v1276 = vmul.f32 %v1262, 1.442695
      %v1277 = vpow.pop %v1276
      %v1278 = vmul.f32 %v1263, 1.442695
      %v1279 = vpow.pop %v1278
      %v1280 = vmul.f32 %v1240, %v1265
      %v1281 = vmul.f32 %v1241, %v1267
      %v1282 = vmul.f32 %v1242, %v1269
      %v1283 = vmul.f32 %v1243, %v1271
      %v1284 = vmul.f32 %v1244, %v1273
      %v1285 = vmul.f32 %v1245, %v1275
      %v1286 = vmul.f32 %v1246, %v1277
      %v1287 = vmul.f32 %v1247, %v1279
      %v1288 = vsub.f32 1.0, %v1280
      %v1289 = vsub.f32 1.0, %v1281
      %v1290 = vsub.f32 1.0, %v1282
      %v1291 = vsub.f32 1.0, %v1283
      %v1292 = vsub.f32 1.0, %v1284
      %v1293 = vsub.f32 1.0, %v1285
      %v1294 = vsub.f32 1.0, %v1286
      %v1295 = vsub.f32 1.0, %v1287
      %v1296 = vmul.f32 %v1128, %v1288
      %v1297 = vmul.f32 %v1129, %v1289
      %v1298 = vmul.f32 %v1130, %v1290
      %v1299 = vmul.f32 %v1131, %v1291
      %v1300 = vmul.f32 %v1132, %v1292
      %v1301 = vmul.f32 %v1133, %v1293
      %v1302 = vmul.f32 %v1134, %v1294
      %v1303 = vmul.f32 %v1135, %v1295
      %v1304 = vadd.f32 %v1296, 1.0
      %v1305 = vadd.f32 %v1297, 1.0
      %v1306 = vadd.f32 %v1298, 1.0
      %v1307 = vadd.f32 %v1299, 1.0
      %v1308 = vadd.f32 %v1300, 1.0
      %v1309 = vadd.f32 %v1301, 1.0
      %v1310 = vadd.f32 %v1302, 1.0
      %v1311 = vadd.f32 %v1303, 1.0
      %v1312 = vmul.f32 %v1104, %v1304
      %v1313 = vmul.f32 %v1105, %v1305
      %v1314 = vmul.f32 %v1106, %v1306
      %v1315 = vmul.f32 %v1107, %v1307
      %v1316 = vmul.f32 %v1108, %v1308
      %v1317 = vmul.f32 %v1109, %v1309
      %v1318 = vmul.f32 %v1110, %v1310
      %v1319 = vmul.f32 %v1111, %v1311
      %vm1320 = vcmask 261120
      %1321 = vst.msk [vmem:[%s170] sm:$0xff] %vm1320, %v1312
      %1322 = vst.msk [vmem:[%s170 + $0x8] sm:$0xff] %vm1320, %v1313
      %1323 = vst.msk [vmem:[%s170 + $0x10] sm:$0xff] %vm1320, %v1314
      %1324 = vst.msk [vmem:[%s170 + $0x18] sm:$0xff] %vm1320, %v1315
      %1325 = vst.msk [vmem:[%s170 + $0x20] sm:$0xff] %vm1320, %v1316
      %1326 = vst.msk [vmem:[%s170 + $0x28] sm:$0xff] %vm1320, %v1317
      %1327 = vst.msk [vmem:[%s170 + $0x30] sm:$0xff] %vm1320, %v1318
      %1328 = vst.msk [vmem:[%s170 + $0x38] sm:$0xff] %vm1320, %v1319
      %p1329 = scmp.lt.s32.totalorder %s14, 1
      %s1330 = scalar_select %p1329, %s14, 1
      %s1331 = smul.addr %s1330, 8
      %s1332 = smul.addr %s1331, 8
      %s1333 = scalar_lea.vmem %s3, %s1332
      // Predicated region
      $region33: #{convnext_stem_forward.7} parent=31 // pred_check
        %p1334 = pneg %p100
      $region34: #{convnext_stem_forward.7} parent=31 // pred_check_branch
        %1336 = sbr.rel (%p1334) target = $region36
      $region35: #{convnext_stem_forward.7} parent=31 // pred_region
        _
      $region36: #{convnext_stem_forward.7} parent=31 // pred_fallthru
        _
    $region32: #{convnext_stem_forward.7} parent=5 // pred_fallthru
      _
    %p1337 = scmp.le.s32.totalorder 2, %s9
    // Predicated region
    $region37: #{convnext_stem_forward.7} parent=5 // pred_check
      %p1338 = pneg %p1337
    $region38: #{convnext_stem_forward.7} parent=5 // pred_check_branch
      %1340 = sbr.rel (%p1338) target = $region40
    $region39: #{convnext_stem_forward.7} parent=5 // pred_region
      %s1341 = ssub.s32 %s9, 2
      // Predicated region
      $region41: #{convnext_stem_forward.7} parent=39 // pred_check
        %p1342 = pneg %p106
      $region42: #{convnext_stem_forward.7} parent=39 // pred_check_branch
        %1344 = sbr.rel (%p1342) target = $region44
      $region43: #{convnext_stem_forward.7} parent=39 // pred_region
        %p1345 = scmp.lt.s32.totalorder %s15, 1
        %s1346 = scalar_select %p1345, %s15, 1
        %s1347 = smul.addr %s1346, 8
        %s1348 = smul.addr %s1347, 8
        %s1349 = scalar_lea.vmem %s3, %s1348
      $region44: #{convnext_stem_forward.7} parent=39 // pred_fallthru
        _
    $region40: #{convnext_stem_forward.7} parent=5 // pred_fallthru
      _
  $region6: #{convnext_stem_forward.7} parent=0 // loop_footer
    %s13 = sadd.s32 1, %s9
  $region7: #{convnext_stem_forward.7} parent=0 // loop_footer_branch
    %8 = sbr.rel target = $region3
  $region8: #{convnext_stem_forward.7} parent=0 // loop_exit
    _

// kernel: convnext_stem_forward.6
$region0: #{convnext_stem_forward.6}
  #allocation0 [shape = 'u32[]', space=smem, size = 0x4, offset = 0x4, fixed_abs, tag = 'smem constant byte address 0x4 - core index']
  #allocation1 [shape = 'u32[144,128]{1,0:T(1,128)}', space=vmem, size = 0x12000, scoped, tag = 'internal scratch']
  %s0 = inlined_call_operand.vmem [shape: f32[2,1,18,18,1], index: 0, kind: input, shape index: {}]
  %s1 = inlined_call_operand.vmem [shape: f32[3,3,1,8], index: 1, kind: input, shape index: {}]
  %s2 = inlined_call_operand.vmem [shape: f32[1,8], index: 2, kind: input, shape index: {}]
  %s3 = inlined_call_operand.vmem [shape: f32[2,256,8], index: 3, kind: output, shape index: {}]
  %s4 = sld [smem:[#allocation0]]
  $region45: #{convnext_stem_forward.6} parent=0
    _
  %s6 = ssub.s32 1, %s4
  %s7 = scalar_select 0, %s6, %s4
  loop: start=0, step=1, limit=4
  $region2: #{convnext_stem_forward.6} parent=0 // loop_pre_header
    _
  $region3: #{convnext_stem_forward.6} parent=0 // loop_header
    %s9 = sphi 0, %s13
    %p10 = scmp.ge.s32.totalorder %s9, 4
    %s19 = sphi 0, %s21
    %s22 = sphi 0, %s19
    %s23 = sphi 0, %s22
    %s39 = sphi 0, %s23
    %s43 = sphi 0, %s43
    %s45 = sphi 0, %s43
    %s46 = sphi 0, %s45
    %s60 = sphi 0, %s46
    %s64 = sphi 0, %s64
    %s66 = sphi 0, %s64
    %s67 = sphi 0, %s66
    %s81 = sphi 0, %s67
    %s87 = sphi 0, %s89
    %s90 = sphi 0, %s87
    %s91 = sphi 0, %s90
    %s107 = sphi 0, %s91
  $region4: #{convnext_stem_forward.6} parent=0 // loop_header_branch
    %12 = sbr.rel (%p10) target = $region8
  $region5: #{convnext_stem_forward.6} parent=0 // loop_body
    %s14 = ssub.s32 %s9, 1
    %s15 = ssub.s32 %s9, 2
    %s16 = sadd.s32 %s9, 1
    %s17 = ssub.s32 %s9, %s16
    %p18 = scmp.eq.s32.totalorder %s17, 0
    %s20 = sadd.s32 %s19, 1
    %s21 = scalar_select %p18, %s19, %s20
    %p24 = pneg %p18
    %p25 = scmp.eq.s32.totalorder %s9, 1
    %p26 = por %p24, %p25
    %p27 = scmp.ne.s32.totalorder %s19, %s22
    %p28 = scmp.eq.s32.totalorder %s9, 0
    %p29 = por %p27, %p28
    %p30 = scmp.ne.s32.totalorder %s19, %s22
    %p31 = scmp.eq.s32.totalorder %s14, 1
    %p32 = por %p30, %p31
    %p33 = scmp.ne.s32.totalorder %s22, %s23
    %p34 = scmp.eq.s32.totalorder %s14, 0
    %p35 = por %p33, %p34
    %p36 = scmp.ne.s32.totalorder %s22, %s23
    %p37 = scmp.eq.s32.totalorder %s15, 1
    %p38 = por %p36, %p37
    %p40 = scmp.ne.s32.totalorder %s23, %s39
    %p41 = scmp.eq.s32.totalorder %s15, 0
    %p42 = por %p40, %p41
    %s44 = sadd.s32 %s43, 1
    %p47 = scmp.eq.s32.totalorder %s9, 1
    %p48 = scmp.ne.s32.totalorder %s43, %s45
    %p49 = scmp.eq.s32.totalorder %s9, 0
    %p50 = por %p48, %p49
    %p51 = scmp.ne.s32.totalorder %s43, %s45
    %p52 = scmp.eq.s32.totalorder %s14, 1
    %p53 = por %p51, %p52
    %p54 = scmp.ne.s32.totalorder %s45, %s46
    %p55 = scmp.eq.s32.totalorder %s14, 0
    %p56 = por %p54, %p55
    %p57 = scmp.ne.s32.totalorder %s45, %s46
    %p58 = scmp.eq.s32.totalorder %s15, 1
    %p59 = por %p57, %p58
    %p61 = scmp.ne.s32.totalorder %s46, %s60
    %p62 = scmp.eq.s32.totalorder %s15, 0
    %p63 = por %p61, %p62
    %s65 = sadd.s32 %s64, 1
    %p68 = scmp.eq.s32.totalorder %s9, 1
    %p69 = scmp.ne.s32.totalorder %s64, %s66
    %p70 = scmp.eq.s32.totalorder %s9, 0
    %p71 = por %p69, %p70
    %p72 = scmp.ne.s32.totalorder %s64, %s66
    %p73 = scmp.eq.s32.totalorder %s14, 1
    %p74 = por %p72, %p73
    %p75 = scmp.ne.s32.totalorder %s66, %s67
    %p76 = scmp.eq.s32.totalorder %s14, 0
    %p77 = por %p75, %p76
    %p78 = scmp.ne.s32.totalorder %s66, %s67
    %p79 = scmp.eq.s32.totalorder %s15, 1
    %p80 = por %p78, %p79
    %p82 = scmp.ne.s32.totalorder %s67, %s81
    %p83 = scmp.eq.s32.totalorder %s15, 0
    %p84 = por %p82, %p83
    %s85 = ssub.s32 %s9, %s16
    %p86 = scmp.eq.s32.totalorder %s85, 0
    %s88 = sadd.s32 %s87, 1
    %s89 = scalar_select %p86, %s87, %s88
    %p92 = pneg %p86
    %p93 = scmp.eq.s32.totalorder %s9, 1
    %p94 = por %p92, %p93
    %p95 = scmp.ne.s32.totalorder %s87, %s90
    %p96 = scmp.eq.s32.totalorder %s9, 0
    %p97 = por %p95, %p96
    %p98 = scmp.ne.s32.totalorder %s87, %s90
    %p99 = scmp.eq.s32.totalorder %s14, 1
    %p100 = por %p98, %p99
    %p101 = scmp.ne.s32.totalorder %s90, %s91
    %p102 = scmp.eq.s32.totalorder %s14, 0
    %p103 = por %p101, %p102
    %p104 = scmp.ne.s32.totalorder %s90, %s91
    %p105 = scmp.eq.s32.totalorder %s15, 1
    %p106 = por %p104, %p105
    %p108 = scmp.ne.s32.totalorder %s91, %s107
    %p109 = scmp.eq.s32.totalorder %s15, 0
    %p110 = por %p108, %p109
    %p111 = scmp.le.s32.totalorder 1, %s9
    %p112 = scmp.lt.s32.totalorder %s9, 3
    %p113 = pnand %p111, %p112
    %p114 = pneg %p113
    // Predicated region
    $region9: #{convnext_stem_forward.6} parent=5 // pred_check
      _
    $region10: #{convnext_stem_forward.6} parent=5 // pred_check_branch
      %116 = sbr.rel (%p113) target = $region12
    $region11: #{convnext_stem_forward.6} parent=5 // pred_region
      %s117 = ssub.s32 %s9, 1
      // Predicated region
      $region13: #{convnext_stem_forward.6} parent=11 // pred_check
        %p118 = pneg %p56
      $region14: #{convnext_stem_forward.6} parent=11 // pred_check_branch
        %120 = sbr.rel (%p118) target = $region16
      $region15: #{convnext_stem_forward.6} parent=11 // pred_region
        _
      $region16: #{convnext_stem_forward.6} parent=11 // pred_fallthru
        _
      // Predicated region
      $region17: #{convnext_stem_forward.6} parent=11 // pred_check
        %p121 = pneg %p77
      $region18: #{convnext_stem_forward.6} parent=11 // pred_check_branch
        %123 = sbr.rel (%p121) target = $region20
      $region19: #{convnext_stem_forward.6} parent=11 // pred_region
        _
      $region20: #{convnext_stem_forward.6} parent=11 // pred_fallthru
        _
    $region12: #{convnext_stem_forward.6} parent=5 // pred_fallthru
      _
    %p124 = scmp.lt.s32.totalorder %s9, 2
    // Predicated region
    $region21: #{convnext_stem_forward.6} parent=5 // pred_check
      %p125 = pneg %p124
    $region22: #{convnext_stem_forward.6} parent=5 // pred_check_branch
      %127 = sbr.rel (%p125) target = $region24
    $region23: #{convnext_stem_forward.6} parent=5 // pred_region
      // Predicated region
      $region25: #{convnext_stem_forward.6} parent=23 // pred_check
        %p128 = pneg %p29
      $region26: #{convnext_stem_forward.6} parent=23 // pred_check_branch
        %130 = sbr.rel (%p128) target = $region28
      $region27: #{convnext_stem_forward.6} parent=23 // pred_region
        %p131 = scmp.lt.s32.totalorder %s9, 1
        %s132 = scalar_select %p131, %s9, 1
        %s133 = smul.addr %s132, 54
        %s134 = smul.addr %s133, 8
        %s135 = scalar_lea.vmem %s0, %s134
      $region28: #{convnext_stem_forward.6} parent=23 // pred_fallthru
        _
    $region24: #{convnext_stem_forward.6} parent=5 // pred_fallthru
      _
    %p136 = scmp.le.s32.totalorder 1, %s9
    %p137 = scmp.lt.s32.totalorder %s9, 3
    %p138 = pnand %p136, %p137
    %p139 = pneg %p138
    // Predicated region
    $region29: #{convnext_stem_forward.6} parent=5 // pred_check
      _
    $region30: #{convnext_stem_forward.6} parent=5 // pred_check_branch
      %141 = sbr.rel (%p138) target = $region32
    $region31: #{convnext_stem_forward.6} parent=5 // pred_region
      %s142 = ssub.s32 %s9, 1
      %p143 = scmp.lt.s32.totalorder %s14, 1
      %s144 = scalar_select %p143, %s14, 1
      %s145 = smul.addr %s144, 54
      %s146 = smul.addr %s145, 8
      %s147 = scalar_lea.vmem %s0, %s146
      %p148 = pneg %p35
      %p149 = pneg %p32
      %p150 = pneg %p56
      %p151 = pneg %p53
      %p152 = pneg %p77
      %p153 = pneg %p74
      %p154 = pneg %p103
      %p155 = pneg %p100
      %p156 = scmp.lt.s32.totalorder %s14, 1
      %s157 = scalar_select %p156, %s14, 1
      %s158 = smul.addr %s157, 32
      %s159 = smul.addr %s158, 8
      %s160 = scalar_lea.vmem %s3, %s159
      %p161 = scmp.lt.s32.totalorder %s14, 1
      %s162 = scalar_select %p161, %s14, 1
      %s163 = smul.addr %s162, 54
      %s164 = smul.addr %s163, 8
      %s165 = scalar_lea.vmem %s0, %s164
      %p166 = scmp.lt.s32.totalorder %s14, 1
      %s167 = scalar_select %p166, %s14, 1
      %s168 = smul.addr %s167, 32
      %s169 = smul.addr %s168, 8
      %s170 = scalar_lea.vmem %s3, %s169
      %v171 = vld [vmem:[%s165] sm:$0xff]
      %v172 = vld [vmem:[%s165 + $0x8] sm:$0xff]
      %v173 = vld [vmem:[%s165 + $0x18] sm:$0xff]
      %v174 = vld [vmem:[%s165 + $0x20] sm:$0xff]
      %v175 = vld [vmem:[%s165 + $0x30] sm:$0xff]
      %v176 = vld [vmem:[%s165 + $0x38] sm:$0xff]
      %v177 = vld [vmem:[%s165 + $0x48] sm:$0xff]
      %v178 = vld [vmem:[%s165 + $0x50] sm:$0xff]
      %v179 = vld [vmem:[%s165 + $0x60] sm:$0xff]
      %v180 = vld [vmem:[%s165 + $0x68] sm:$0xff]
      %v181 = vld [vmem:[%s165 + $0x78] sm:$0xff]
      %v182 = vld [vmem:[%s165 + $0x80] sm:$0xff]
      %v183 = vld [vmem:[%s165 + $0x90] sm:$0xff]
      %v184 = vld [vmem:[%s165 + $0x98] sm:$0xff]
      %v185 = vld [vmem:[%s165 + $0xa8] sm:$0xff]
      %v186 = vld [vmem:[%s165 + $0xb0] sm:$0xff]
      %v187 = vld [vmem:[%s165 + $0xc0] sm:$0xff]
      %v188 = vld [vmem:[%s165 + $0xc8] sm:$0xff]
      %v189 = vld [vmem:[%s165 + $0xd8] sm:$0xff]
      %v190 = vld [vmem:[%s165 + $0xe0] sm:$0xff]
      %v191 = vld [vmem:[%s165 + $0xf0] sm:$0xff]
      %v192 = vld [vmem:[%s165 + $0xf8] sm:$0xff]
      %v193 = vld [vmem:[%s165 + $0x108] sm:$0xff]
      %v194 = vld [vmem:[%s165 + $0x110] sm:$0xff]
      %v195 = vld [vmem:[%s165 + $0x120] sm:$0xff]
      %v196 = vld [vmem:[%s165 + $0x128] sm:$0xff]
      %v197 = vld [vmem:[%s165 + $0x138] sm:$0xff]
      %v198 = vld [vmem:[%s165 + $0x140] sm:$0xff]
      %v199 = vld [vmem:[%s165 + $0x150] sm:$0xff]
      %v200 = vld [vmem:[%s165 + $0x158] sm:$0xff]
      %v201 = vld [vmem:[%s165 + $0x168] sm:$0xff]
      %v202 = vld [vmem:[%s165 + $0x170] sm:$0xff]
      %v203 = vld [vmem:[%s1] sm:$0x1]
      %205 = vset.pattern.permute.xlu0 0
      %206 = vperm.xlu0 %205, %v171
      %v207 = vpop.permute.xlu0 %206
      %210 = vset.pattern.permute.xlu0 0
      %211 = vperm.xlu0 %210, %v172
      %v212 = vpop.permute.xlu0 %211
      %215 = vset.pattern.permute.xlu0 0
      %216 = vperm.xlu0 %215, %v173
      %v217 = vpop.permute.xlu0 %216
      %220 = vset.pattern.permute.xlu0 0
      %221 = vperm.xlu0 %220, %v174
      %v222 = vpop.permute.xlu0 %221
      %225 = vset.pattern.permute.xlu0 0
      %226 = vperm.xlu0 %225, %v175
      %v227 = vpop.permute.xlu0 %226
      %230 = vset.pattern.permute.xlu0 0
      %231 = vperm.xlu0 %230, %v176
      %v232 = vpop.permute.xlu0 %231
      %235 = vset.pattern.permute.xlu0 0
      %236 = vperm.xlu0 %235, %v177
      %v237 = vpop.permute.xlu0 %236
      %240 = vset.pattern.permute.xlu0 0
      %241 = vperm.xlu0 %240, %v178
      %v242 = vpop.permute.xlu0 %241
      %245 = vset.pattern.permute.xlu0 0
      %246 = vperm.xlu0 %245, %v179
      %v247 = vpop.permute.xlu0 %246
      %250 = vset.pattern.permute.xlu0 0
      %251 = vperm.xlu0 %250, %v180
      %v252 = vpop.permute.xlu0 %251
      %255 = vset.pattern.permute.xlu0 0
      %256 = vperm.xlu0 %255, %v181
      %v257 = vpop.permute.xlu0 %256
      %260 = vset.pattern.permute.xlu0 0
      %261 = vperm.xlu0 %260, %v182
      %v262 = vpop.permute.xlu0 %261
      %265 = vset.pattern.permute.xlu0 0
      %266 = vperm.xlu0 %265, %v183
      %v267 = vpop.permute.xlu0 %266
      %270 = vset.pattern.permute.xlu0 0
      %271 = vperm.xlu0 %270, %v184
      %v272 = vpop.permute.xlu0 %271
      %275 = vset.pattern.permute.xlu0 0
      %276 = vperm.xlu0 %275, %v185
      %v277 = vpop.permute.xlu0 %276
      %280 = vset.pattern.permute.xlu0 0
      %281 = vperm.xlu0 %280, %v186
      %v282 = vpop.permute.xlu0 %281
      %285 = vset.pattern.permute.xlu0 0
      %286 = vperm.xlu0 %285, %v187
      %v287 = vpop.permute.xlu0 %286
      %290 = vset.pattern.permute.xlu0 0
      %291 = vperm.xlu0 %290, %v188
      %v292 = vpop.permute.xlu0 %291
      %295 = vset.pattern.permute.xlu0 0
      %296 = vperm.xlu0 %295, %v189
      %v297 = vpop.permute.xlu0 %296
      %300 = vset.pattern.permute.xlu0 0
      %301 = vperm.xlu0 %300, %v190
      %v302 = vpop.permute.xlu0 %301
      %305 = vset.pattern.permute.xlu0 0
      %306 = vperm.xlu0 %305, %v191
      %v307 = vpop.permute.xlu0 %306
      %310 = vset.pattern.permute.xlu0 0
      %311 = vperm.xlu0 %310, %v192
      %v312 = vpop.permute.xlu0 %311
      %315 = vset.pattern.permute.xlu0 0
      %316 = vperm.xlu0 %315, %v193
      %v317 = vpop.permute.xlu0 %316
      %320 = vset.pattern.permute.xlu0 0
      %321 = vperm.xlu0 %320, %v194
      %v322 = vpop.permute.xlu0 %321
      %325 = vset.pattern.permute.xlu0 0
      %326 = vperm.xlu0 %325, %v195
      %v327 = vpop.permute.xlu0 %326
      %330 = vset.pattern.permute.xlu0 0
      %331 = vperm.xlu0 %330, %v196
      %v332 = vpop.permute.xlu0 %331
      %335 = vset.pattern.permute.xlu0 0
      %336 = vperm.xlu0 %335, %v197
      %v337 = vpop.permute.xlu0 %336
      %340 = vset.pattern.permute.xlu0 0
      %341 = vperm.xlu0 %340, %v198
      %v342 = vpop.permute.xlu0 %341
      %345 = vset.pattern.permute.xlu0 0
      %346 = vperm.xlu0 %345, %v199
      %v347 = vpop.permute.xlu0 %346
      %350 = vset.pattern.permute.xlu0 0
      %351 = vperm.xlu0 %350, %v200
      %v352 = vpop.permute.xlu0 %351
      %355 = vset.pattern.permute.xlu0 0
      %356 = vperm.xlu0 %355, %v201
      %v357 = vpop.permute.xlu0 %356
      %360 = vset.pattern.permute.xlu0 0
      %361 = vperm.xlu0 %360, %v202
      %v362 = vpop.permute.xlu0 %361
      %v365 = vlaneseq
      %v366 = vshrl.u32 %v365, 7
      %v367 = vsub.s32 0, %v366
      %v368 = vrot.slane %v203, %v367
      %v370 = vmul.f32 %v207, %v368
      %v371 = vmul.f32 %v212, %v368
      %v372 = vmul.f32 %v217, %v368
      %v373 = vmul.f32 %v222, %v368
      %v374 = vmul.f32 %v227, %v368
      %v375 = vmul.f32 %v232, %v368
      %v376 = vmul.f32 %v237, %v368
      %v377 = vmul.f32 %v242, %v368
      %v378 = vmul.f32 %v247, %v368
      %v379 = vmul.f32 %v252, %v368
      %v380 = vmul.f32 %v257, %v368
      %v381 = vmul.f32 %v262, %v368
      %v382 = vmul.f32 %v267, %v368
      %v383 = vmul.f32 %v272, %v368
      %v384 = vmul.f32 %v277, %v368
      %v385 = vmul.f32 %v282, %v368
      %v386 = vmul.f32 %v287, %v368
      %v387 = vmul.f32 %v292, %v368
      %v388 = vmul.f32 %v297, %v368
      %v389 = vmul.f32 %v302, %v368
      %v390 = vmul.f32 %v307, %v368
      %v391 = vmul.f32 %v312, %v368
      %v392 = vmul.f32 %v317, %v368
      %v393 = vmul.f32 %v322, %v368
      %v394 = vmul.f32 %v327, %v368
      %v395 = vmul.f32 %v332, %v368
      %v396 = vmul.f32 %v337, %v368
      %v397 = vmul.f32 %v342, %v368
      %v398 = vmul.f32 %v347, %v368
      %v399 = vmul.f32 %v352, %v368
      %v400 = vmul.f32 %v357, %v368
      %v401 = vmul.f32 %v362, %v368
      %v402 = vadd.f32 %v370, 0.0
      %v403 = vadd.f32 %v371, 0.0
      %v404 = vadd.f32 %v372, 0.0
      %v405 = vadd.f32 %v373, 0.0
      %v406 = vadd.f32 %v374, 0.0
      %v407 = vadd.f32 %v375, 0.0
      %v408 = vadd.f32 %v376, 0.0
      %v409 = vadd.f32 %v377, 0.0
      %v410 = vadd.f32 %v378, 0.0
      %v411 = vadd.f32 %v379, 0.0
      %v412 = vadd.f32 %v380, 0.0
      %v413 = vadd.f32 %v381, 0.0
      %v414 = vadd.f32 %v382, 0.0
      %v415 = vadd.f32 %v383, 0.0
      %v416 = vadd.f32 %v384, 0.0
      %v417 = vadd.f32 %v385, 0.0
      %v418 = vadd.f32 %v386, 0.0
      %v419 = vadd.f32 %v387, 0.0
      %v420 = vadd.f32 %v388, 0.0
      %v421 = vadd.f32 %v389, 0.0
      %v422 = vadd.f32 %v390, 0.0
      %v423 = vadd.f32 %v391, 0.0
      %v424 = vadd.f32 %v392, 0.0
      %v425 = vadd.f32 %v393, 0.0
      %v426 = vadd.f32 %v394, 0.0
      %v427 = vadd.f32 %v395, 0.0
      %v428 = vadd.f32 %v396, 0.0
      %v429 = vadd.f32 %v397, 0.0
      %v430 = vadd.f32 %v398, 0.0
      %v431 = vadd.f32 %v399, 0.0
      %v432 = vadd.f32 %v400, 0.0
      %v433 = vadd.f32 %v401, 0.0
      %v434 = vld [vmem:[%s165 + $0x1] sm:$0xff]
      %v435 = vld [vmem:[%s165 + $0x9] sm:$0xff]
      %v436 = vld [vmem:[%s165 + $0x19] sm:$0xff]
      %v437 = vld [vmem:[%s165 + $0x21] sm:$0xff]
      %v438 = vld [vmem:[%s165 + $0x31] sm:$0xff]
      %v439 = vld [vmem:[%s165 + $0x39] sm:$0xff]
      %v440 = vld [vmem:[%s165 + $0x49] sm:$0xff]
      %v441 = vld [vmem:[%s165 + $0x51] sm:$0xff]
      %v442 = vld [vmem:[%s165 + $0x61] sm:$0xff]
      %v443 = vld [vmem:[%s165 + $0x69] sm:$0xff]
      %v444 = vld [vmem:[%s165 + $0x79] sm:$0xff]
      %v445 = vld [vmem:[%s165 + $0x81] sm:$0xff]
      %v446 = vld [vmem:[%s165 + $0x91] sm:$0xff]
      %v447 = vld [vmem:[%s165 + $0x99] sm:$0xff]
      %v448 = vld [vmem:[%s165 + $0xa9] sm:$0xff]
      %v449 = vld [vmem:[%s165 + $0xb1] sm:$0xff]
      %v450 = vld [vmem:[%s165 + $0xc1] sm:$0xff]
      %v451 = vld [vmem:[%s165 + $0xc9] sm:$0xff]
      %v452 = vld [vmem:[%s165 + $0xd9] sm:$0xff]
      %v453 = vld [vmem:[%s165 + $0xe1] sm:$0xff]
      %v454 = vld [vmem:[%s165 + $0xf1] sm:$0xff]
      %v455 = vld [vmem:[%s165 + $0xf9] sm:$0xff]
      %v456 = vld [vmem:[%s165 + $0x109] sm:$0xff]
      %v457 = vld [vmem:[%s165 + $0x111] sm:$0xff]
      %v458 = vld [vmem:[%s165 + $0x121] sm:$0xff]
      %v459 = vld [vmem:[%s165 + $0x129] sm:$0xff]
      %v460 = vld [vmem:[%s165 + $0x139] sm:$0xff]
      %v461 = vld [vmem:[%s165 + $0x141] sm:$0xff]
      %v462 = vld [vmem:[%s165 + $0x151] sm:$0xff]
      %v463 = vld [vmem:[%s165 + $0x159] sm:$0xff]
      %v464 = vld [vmem:[%s165 + $0x169] sm:$0xff]
      %v465 = vld [vmem:[%s165 + $0x171] sm:$0xff]
      %s466 = scalar_lea.vmem %s1, 1
      %v467 = vld [vmem:[%s466] sm:$0x1]
      %469 = vset.pattern.permute.xlu0 0
      %470 = vperm.xlu0 %469, %v434
      %v471 = vpop.permute.xlu0 %470
      %474 = vset.pattern.permute.xlu0 0
      %475 = vperm.xlu0 %474, %v435
      %v476 = vpop.permute.xlu0 %475
      %479 = vset.pattern.permute.xlu0 0
      %480 = vperm.xlu0 %479, %v436
      %v481 = vpop.permute.xlu0 %480
      %484 = vset.pattern.permute.xlu0 0
      %485 = vperm.xlu0 %484, %v437
      %v486 = vpop.permute.xlu0 %485
      %489 = vset.pattern.permute.xlu0 0
      %490 = vperm.xlu0 %489, %v438
      %v491 = vpop.permute.xlu0 %490
      %494 = vset.pattern.permute.xlu0 0
      %495 = vperm.xlu0 %494, %v439
      %v496 = vpop.permute.xlu0 %495
      %499 = vset.pattern.permute.xlu0 0
      %500 = vperm.xlu0 %499, %v440
      %v501 = vpop.permute.xlu0 %500
      %504 = vset.pattern.permute.xlu0 0
      %505 = vperm.xlu0 %504, %v441
      %v506 = vpop.permute.xlu0 %505
      %509 = vset.pattern.permute.xlu0 0
      %510 = vperm.xlu0 %509, %v442
      %v511 = vpop.permute.xlu0 %510
      %514 = vset.pattern.permute.xlu0 0
      %515 = vperm.xlu0 %514, %v443
      %v516 = vpop.permute.xlu0 %515
      %519 = vset.pattern.permute.xlu0 0
      %520 = vperm.xlu0 %519, %v444
      %v521 = vpop.permute.xlu0 %520
      %524 = vset.pattern.permute.xlu0 0
      %525 = vperm.xlu0 %524, %v445
      %v526 = vpop.permute.xlu0 %525
      %529 = vset.pattern.permute.xlu0 0
      %530 = vperm.xlu0 %529, %v446
      %v531 = vpop.permute.xlu0 %530
      %534 = vset.pattern.permute.xlu0 0
      %535 = vperm.xlu0 %534, %v447
      %v536 = vpop.permute.xlu0 %535
      %539 = vset.pattern.permute.xlu0 0
      %540 = vperm.xlu0 %539, %v448
      %v541 = vpop.permute.xlu0 %540
      %544 = vset.pattern.permute.xlu0 0
      %545 = vperm.xlu0 %544, %v449
      %v546 = vpop.permute.xlu0 %545
      %549 = vset.pattern.permute.xlu0 0
      %550 = vperm.xlu0 %549, %v450
      %v551 = vpop.permute.xlu0 %550
      %554 = vset.pattern.permute.xlu0 0
      %555 = vperm.xlu0 %554, %v451
      %v556 = vpop.permute.xlu0 %555
      %559 = vset.pattern.permute.xlu0 0
      %560 = vperm.xlu0 %559, %v452
      %v561 = vpop.permute.xlu0 %560
      %564 = vset.pattern.permute.xlu0 0
      %565 = vperm.xlu0 %564, %v453
      %v566 = vpop.permute.xlu0 %565
      %569 = vset.pattern.permute.xlu0 0
      %570 = vperm.xlu0 %569, %v454
      %v571 = vpop.permute.xlu0 %570
      %574 = vset.pattern.permute.xlu0 0
      %575 = vperm.xlu0 %574, %v455
      %v576 = vpop.permute.xlu0 %575
      %579 = vset.pattern.permute.xlu0 0
      %580 = vperm.xlu0 %579, %v456
      %v581 = vpop.permute.xlu0 %580
      %584 = vset.pattern.permute.xlu0 0
      %585 = vperm.xlu0 %584, %v457
      %v586 = vpop.permute.xlu0 %585
      %589 = vset.pattern.permute.xlu0 0
      %590 = vperm.xlu0 %589, %v458
      %v591 = vpop.permute.xlu0 %590
      %594 = vset.pattern.permute.xlu0 0
      %595 = vperm.xlu0 %594, %v459
      %v596 = vpop.permute.xlu0 %595
      %599 = vset.pattern.permute.xlu0 0
      %600 = vperm.xlu0 %599, %v460
      %v601 = vpop.permute.xlu0 %600
      %604 = vset.pattern.permute.xlu0 0
      %605 = vperm.xlu0 %604, %v461
      %v606 = vpop.permute.xlu0 %605
      %609 = vset.pattern.permute.xlu0 0
      %610 = vperm.xlu0 %609, %v462
      %v611 = vpop.permute.xlu0 %610
      %614 = vset.pattern.permute.xlu0 0
      %615 = vperm.xlu0 %614, %v463
      %v616 = vpop.permute.xlu0 %615
      %619 = vset.pattern.permute.xlu0 0
      %620 = vperm.xlu0 %619, %v464
      %v621 = vpop.permute.xlu0 %620
      %624 = vset.pattern.permute.xlu0 0
      %625 = vperm.xlu0 %624, %v465
      %v626 = vpop.permute.xlu0 %625
      %v629 = vlaneseq
      %v630 = vshrl.u32 %v629, 7
      %v631 = vsub.s32 0, %v630
      %v632 = vrot.slane %v467, %v631
      %v634 = vmul.f32 %v471, %v632
      %v635 = vmul.f32 %v476, %v632
      %v636 = vmul.f32 %v481, %v632
      %v637 = vmul.f32 %v486, %v632
      %v638 = vmul.f32 %v491, %v632
      %v639 = vmul.f32 %v496, %v632
      %v640 = vmul.f32 %v501, %v632
      %v641 = vmul.f32 %v506, %v632
      %v642 = vmul.f32 %v511, %v632
      %v643 = vmul.f32 %v516, %v632
      %v644 = vmul.f32 %v521, %v632
      %v645 = vmul.f32 %v526, %v632
      %v646 = vmul.f32 %v531, %v632
      %v647 = vmul.f32 %v536, %v632
      %v648 = vmul.f32 %v541, %v632
      %v649 = vmul.f32 %v546, %v632
      %v650 = vmul.f32 %v551, %v632
      %v651 = vmul.f32 %v556, %v632
      %v652 = vmul.f32 %v561, %v632
      %v653 = vmul.f32 %v566, %v632
      %v654 = vmul.f32 %v571, %v632
      %v655 = vmul.f32 %v576, %v632
      %v656 = vmul.f32 %v581, %v632
      %v657 = vmul.f32 %v586, %v632
      %v658 = vmul.f32 %v591, %v632
      %v659 = vmul.f32 %v596, %v632
      %v660 = vmul.f32 %v601, %v632
      %v661 = vmul.f32 %v606, %v632
      %v662 = vmul.f32 %v611, %v632
      %v663 = vmul.f32 %v616, %v632
      %v664 = vmul.f32 %v621, %v632
      %v665 = vmul.f32 %v626, %v632
      %v666 = vadd.f32 %v402, %v634
      %v667 = vadd.f32 %v403, %v635
      %v668 = vadd.f32 %v404, %v636
      %v669 = vadd.f32 %v405, %v637
      %v670 = vadd.f32 %v406, %v638
      %v671 = vadd.f32 %v407, %v639
      %v672 = vadd.f32 %v408, %v640
      %v673 = vadd.f32 %v409, %v641
      %v674 = vadd.f32 %v410, %v642
      %v675 = vadd.f32 %v411, %v643
      %v676 = vadd.f32 %v412, %v644
      %v677 = vadd.f32 %v413, %v645
      %v678 = vadd.f32 %v414, %v646
      %v679 = vadd.f32 %v415, %v647
      %v680 = vadd.f32 %v416, %v648
      %v681 = vadd.f32 %v417, %v649
      %v682 = vadd.f32 %v418, %v650
      %v683 = vadd.f32 %v419, %v651
      %v684 = vadd.f32 %v420, %v652
      %v685 = vadd.f32 %v421, %v653
      %v686 = vadd.f32 %v422, %v654
      %v687 = vadd.f32 %v423, %v655
      %v688 = vadd.f32 %v424, %v656
      %v689 = vadd.f32 %v425, %v657
      %v690 = vadd.f32 %v426, %v658
      %v691 = vadd.f32 %v427, %v659
      %v692 = vadd.f32 %v428, %v660
      %v693 = vadd.f32 %v429, %v661
      %v694 = vadd.f32 %v430, %v662
      %v695 = vadd.f32 %v431, %v663
      %v696 = vadd.f32 %v432, %v664
      %v697 = vadd.f32 %v433, %v665
      %v698 = vld [vmem:[%s165 + $0x2] sm:$0xff]
      %v699 = vld [vmem:[%s165 + $0xa] sm:$0xff]
      %v700 = vld [vmem:[%s165 + $0x1a] sm:$0xff]
      %v701 = vld [vmem:[%s165 + $0x22] sm:$0xff]
      %v702 = vld [vmem:[%s165 + $0x32] sm:$0xff]
      %v703 = vld [vmem:[%s165 + $0x3a] sm:$0xff]
      %v704 = vld [vmem:[%s165 + $0x4a] sm:$0xff]
      %v705 = vld [vmem:[%s165 + $0x52] sm:$0xff]
      %v706 = vld [vmem:[%s165 + $0x62] sm:$0xff]
      %v707 = vld [vmem:[%s165 + $0x6a] sm:$0xff]
      %v708 = vld [vmem:[%s165 + $0x7a] sm:$0xff]
      %v709 = vld [vmem:[%s165 + $0x82] sm:$0xff]
      %v710 = vld [vmem:[%s165 + $0x92] sm:$0xff]
      %v711 = vld [vmem:[%s165 + $0x9a] sm:$0xff]
      %v712 = vld [vmem:[%s165 + $0xaa] sm:$0xff]
      %v713 = vld [vmem:[%s165 + $0xb2] sm:$0xff]
      %v714 = vld [vmem:[%s165 + $0xc2] sm:$0xff]
      %v715 = vld [vmem:[%s165 + $0xca] sm:$0xff]
      %v716 = vld [vmem:[%s165 + $0xda] sm:$0xff]
      %v717 = vld [vmem:[%s165 + $0xe2] sm:$0xff]
      %v718 = vld [vmem:[%s165 + $0xf2] sm:$0xff]
      %v719 = vld [vmem:[%s165 + $0xfa] sm:$0xff]
      %v720 = vld [vmem:[%s165 + $0x10a] sm:$0xff]
      %v721 = vld [vmem:[%s165 + $0x112] sm:$0xff]
      %v722 = vld [vmem:[%s165 + $0x122] sm:$0xff]
      %v723 = vld [vmem:[%s165 + $0x12a] sm:$0xff]
      %v724 = vld [vmem:[%s165 + $0x13a] sm:$0xff]
      %v725 = vld [vmem:[%s165 + $0x142] sm:$0xff]
      %v726 = vld [vmem:[%s165 + $0x152] sm:$0xff]
      %v727 = vld [vmem:[%s165 + $0x15a] sm:$0xff]
      %v728 = vld [vmem:[%s165 + $0x16a] sm:$0xff]
      %v729 = vld [vmem:[%s165 + $0x172] sm:$0xff]
      %s730 = scalar_lea.vmem %s1, 2
      %v731 = vld [vmem:[%s730] sm:$0x1]
      %733 = vset.pattern.permute.xlu0 0
      %734 = vperm.xlu0 %733, %v698
      %v735 = vpop.permute.xlu0 %734
      %738 = vset.pattern.permute.xlu0 0
      %739 = vperm.xlu0 %738, %v699
      %v740 = vpop.permute.xlu0 %739
      %743 = vset.pattern.permute.xlu0 0
      %744 = vperm.xlu0 %743, %v700
      %v745 = vpop.permute.xlu0 %744
      %748 = vset.pattern.permute.xlu0 0
      %749 = vperm.xlu0 %748, %v701
      %v750 = vpop.permute.xlu0 %749
      %753 = vset.pattern.permute.xlu0 0
      %754 = vperm.xlu0 %753, %v702
      %v755 = vpop.permute.xlu0 %754
      %758 = vset.pattern.permute.xlu0 0
      %759 = vperm.xlu0 %758, %v703
      %v760 = vpop.permute.xlu0 %759
      %763 = vset.pattern.permute.xlu0 0
      %764 = vperm.xlu0 %763, %v704
      %v765 = vpop.permute.xlu0 %764
      %768 = vset.pattern.permute.xlu0 0
      %769 = vperm.xlu0 %768, %v705
      %v770 = vpop.permute.xlu0 %769
      %773 = vset.pattern.permute.xlu0 0
      %774 = vperm.xlu0 %773, %v706
      %v775 = vpop.permute.xlu0 %774
      %778 = vset.pattern.permute.xlu0 0
      %779 = vperm.xlu0 %778, %v707
      %v780 = vpop.permute.xlu0 %779
      %783 = vset.pattern.permute.xlu0 0
      %784 = vperm.xlu0 %783, %v708
      %v785 = vpop.permute.xlu0 %784
      %788 = vset.pattern.permute.xlu0 0
      %789 = vperm.xlu0 %788, %v709
      %v790 = vpop.permute.xlu0 %789
      %793 = vset.pattern.permute.xlu0 0
      %794 = vperm.xlu0 %793, %v710
      %v795 = vpop.permute.xlu0 %794
      %798 = vset.pattern.permute.xlu0 0
      %799 = vperm.xlu0 %798, %v711
      %v800 = vpop.permute.xlu0 %799
      %803 = vset.pattern.permute.xlu0 0
      %804 = vperm.xlu0 %803, %v712
      %v805 = vpop.permute.xlu0 %804
      %808 = vset.pattern.permute.xlu0 0
      %809 = vperm.xlu0 %808, %v713
      %v810 = vpop.permute.xlu0 %809
      %813 = vset.pattern.permute.xlu0 0
      %814 = vperm.xlu0 %813, %v714
      %v815 = vpop.permute.xlu0 %814
      %818 = vset.pattern.permute.xlu0 0
      %819 = vperm.xlu0 %818, %v715
      %v820 = vpop.permute.xlu0 %819
      %823 = vset.pattern.permute.xlu0 0
      %824 = vperm.xlu0 %823, %v716
      %v825 = vpop.permute.xlu0 %824
      %828 = vset.pattern.permute.xlu0 0
      %829 = vperm.xlu0 %828, %v717
      %v830 = vpop.permute.xlu0 %829
      %833 = vset.pattern.permute.xlu0 0
      %834 = vperm.xlu0 %833, %v718
      %v835 = vpop.permute.xlu0 %834
      %838 = vset.pattern.permute.xlu0 0
      %839 = vperm.xlu0 %838, %v719
      %v840 = vpop.permute.xlu0 %839
      %843 = vset.pattern.permute.xlu0 0
      %844 = vperm.xlu0 %843, %v720
      %v845 = vpop.permute.xlu0 %844
      %848 = vset.pattern.permute.xlu0 0
      %849 = vperm.xlu0 %848, %v721
      %v850 = vpop.permute.xlu0 %849
      %853 = vset.pattern.permute.xlu0 0
      %854 = vperm.xlu0 %853, %v722
      %v855 = vpop.permute.xlu0 %854
      %858 = vset.pattern.permute.xlu0 0
      %859 = vperm.xlu0 %858, %v723
      %v860 = vpop.permute.xlu0 %859
      %863 = vset.pattern.permute.xlu0 0
      %864 = vperm.xlu0 %863, %v724
      %v865 = vpop.permute.xlu0 %864
      %868 = vset.pattern.permute.xlu0 0
      %869 = vperm.xlu0 %868, %v725
      %v870 = vpop.permute.xlu0 %869
      %873 = vset.pattern.permute.xlu0 0
      %874 = vperm.xlu0 %873, %v726
      %v875 = vpop.permute.xlu0 %874
      %878 = vset.pattern.permute.xlu0 0
      %879 = vperm.xlu0 %878, %v727
      %v880 = vpop.permute.xlu0 %879
      %883 = vset.pattern.permute.xlu0 0
      %884 = vperm.xlu0 %883, %v728
      %v885 = vpop.permute.xlu0 %884
      %888 = vset.pattern.permute.xlu0 0
      %889 = vperm.xlu0 %888, %v729
      %v890 = vpop.permute.xlu0 %889
      %v893 = vlaneseq
      %v894 = vshrl.u32 %v893, 7
      %v895 = vsub.s32 0, %v894
      %v896 = vrot.slane %v731, %v895
      %v898 = vmul.f32 %v735, %v896
      %v899 = vmul.f32 %v740, %v896
      %v900 = vmul.f32 %v745, %v896
      %v901 = vmul.f32 %v750, %v896
      %v902 = vmul.f32 %v755, %v896
      %v903 = vmul.f32 %v760, %v896
      %v904 = vmul.f32 %v765, %v896
      %v905 = vmul.f32 %v770, %v896
      %v906 = vmul.f32 %v775, %v896
      %v907 = vmul.f32 %v780, %v896
      %v908 = vmul.f32 %v785, %v896
      %v909 = vmul.f32 %v790, %v896
      %v910 = vmul.f32 %v795, %v896
      %v911 = vmul.f32 %v800, %v896
      %v912 = vmul.f32 %v805, %v896
      %v913 = vmul.f32 %v810, %v896
      %v914 = vmul.f32 %v815, %v896
      %v915 = vmul.f32 %v820, %v896
      %v916 = vmul.f32 %v825, %v896
      %v917 = vmul.f32 %v830, %v896
      %v918 = vmul.f32 %v835, %v896
      %v919 = vmul.f32 %v840, %v896
      %v920 = vmul.f32 %v845, %v896
      %v921 = vmul.f32 %v850, %v896
      %v922 = vmul.f32 %v855, %v896
      %v923 = vmul.f32 %v860, %v896
      %v924 = vmul.f32 %v865, %v896
      %v925 = vmul.f32 %v870, %v896
      %v926 = vmul.f32 %v875, %v896
      %v927 = vmul.f32 %v880, %v896
      %v928 = vmul.f32 %v885, %v896
      %v929 = vmul.f32 %v890, %v896
      %v930 = vadd.f32 %v666, %v898
      %v931 = vadd.f32 %v667, %v899
      %v932 = vadd.f32 %v668, %v900
      %v933 = vadd.f32 %v669, %v901
      %v934 = vadd.f32 %v670, %v902
      %v935 = vadd.f32 %v671, %v903
      %v936 = vadd.f32 %v672, %v904
      %v937 = vadd.f32 %v673, %v905
      %v938 = vadd.f32 %v674, %v906
      %v939 = vadd.f32 %v675, %v907
      %v940 = vadd.f32 %v676, %v908
      %v941 = vadd.f32 %v677, %v909
      %v942 = vadd.f32 %v678, %v910
      %v943 = vadd.f32 %v679, %v911
      %v944 = vadd.f32 %v680, %v912
      %v945 = vadd.f32 %v681, %v913
      %v946 = vadd.f32 %v682, %v914
      %v947 = vadd.f32 %v683, %v915
      %v948 = vadd.f32 %v684, %v916
      %v949 = vadd.f32 %v685, %v917
      %v950 = vadd.f32 %v686, %v918
      %v951 = vadd.f32 %v687, %v919
      %v952 = vadd.f32 %v688, %v920
      %v953 = vadd.f32 %v689, %v921
      %v954 = vadd.f32 %v690, %v922
      %v955 = vadd.f32 %v691, %v923
      %v956 = vadd.f32 %v692, %v924
      %v957 = vadd.f32 %v693, %v925
      %v958 = vadd.f32 %v694, %v926
      %v959 = vadd.f32 %v695, %v927
      %v960 = vadd.f32 %v696, %v928
      %v961 = vadd.f32 %v697, %v929
      %s962 = scalar_lea.vmem %s165, 24
      %v963 = vld [vmem:[%s962] sm:$0xff]
      %v964 = vld [vmem:[%s962 + $0x8] sm:$0xff]
      %v965 = vld [vmem:[%s962 + $0x18] sm:$0xff]
      %v966 = vld [vmem:[%s962 + $0x20] sm:$0xff]
      %v967 = vld [vmem:[%s962 + $0x30] sm:$0xff]
      %v968 = vld [vmem:[%s962 + $0x38] sm:$0xff]
      %v969 = vld [vmem:[%s962 + $0x48] sm:$0xff]
      %v970 = vld [vmem:[%s962 + $0x50] sm:$0xff]
      %v971 = vld [vmem:[%s962 + $0x60] sm:$0xff]
      %v972 = vld [vmem:[%s962 + $0x68] sm:$0xff]
      %v973 = vld [vmem:[%s962 + $0x78] sm:$0xff]
      %v974 = vld [vmem:[%s962 + $0x80] sm:$0xff]
      %v975 = vld [vmem:[%s962 + $0x90] sm:$0xff]
      %v976 = vld [vmem:[%s962 + $0x98] sm:$0xff]
      %v977 = vld [vmem:[%s962 + $0xa8] sm:$0xff]
      %v978 = vld [vmem:[%s962 + $0xb0] sm:$0xff]
      %v979 = vld [vmem:[%s962 + $0xc0] sm:$0xff]
      %v980 = vld [vmem:[%s962 + $0xc8] sm:$0xff]
      %v981 = vld [vmem:[%s962 + $0xd8] sm:$0xff]
      %v982 = vld [vmem:[%s962 + $0xe0] sm:$0xff]
      %v983 = vld [vmem:[%s962 + $0xf0] sm:$0xff]
      %v984 = vld [vmem:[%s962 + $0xf8] sm:$0xff]
      %v985 = vld [vmem:[%s962 + $0x108] sm:$0xff]
      %v986 = vld [vmem:[%s962 + $0x110] sm:$0xff]
      %v987 = vld [vmem:[%s962 + $0x120] sm:$0xff]
      %v988 = vld [vmem:[%s962 + $0x128] sm:$0xff]
      %v989 = vld [vmem:[%s962 + $0x138] sm:$0xff]
      %v990 = vld [vmem:[%s962 + $0x140] sm:$0xff]
      %v991 = vld [vmem:[%s962 + $0x150] sm:$0xff]
      %v992 = vld [vmem:[%s962 + $0x158] sm:$0xff]
      %v993 = vld [vmem:[%s962 + $0x168] sm:$0xff]
      %v994 = vld [vmem:[%s962 + $0x170] sm:$0xff]
      %s995 = scalar_lea.vmem %s1, 3
      %v996 = vld [vmem:[%s995] sm:$0x1]
      %998 = vset.pattern.permute.xlu0 0
      %999 = vperm.xlu0 %998, %v963
      %v1000 = vpop.permute.xlu0 %999
      %1003 = vset.pattern.permute.xlu0 0
      %1004 = vperm.xlu0 %1003, %v964
      %v1005 = vpop.permute.xlu0 %1004
      %1008 = vset.pattern.permute.xlu0 0
      %1009 = vperm.xlu0 %1008, %v965
      %v1010 = vpop.permute.xlu0 %1009
      %1013 = vset.pattern.permute.xlu0 0
      %1014 = vperm.xlu0 %1013, %v966
      %v1015 = vpop.permute.xlu0 %1014
      %1018 = vset.pattern.permute.xlu0 0
      %1019 = vperm.xlu0 %1018, %v967
      %v1020 = vpop.permute.xlu0 %1019
      %1023 = vset.pattern.permute.xlu0 0
      %1024 = vperm.xlu0 %1023, %v968
      %v1025 = vpop.permute.xlu0 %1024
      %1028 = vset.pattern.permute.xlu0 0
      %1029 = vperm.xlu0 %1028, %v969
      %v1030 = vpop.permute.xlu0 %1029
      %1033 = vset.pattern.permute.xlu0 0
      %1034 = vperm.xlu0 %1033, %v970
      %v1035 = vpop.permute.xlu0 %1034
      %1038 = vset.pattern.permute.xlu0 0
      %1039 = vperm.xlu0 %1038, %v971
      %v1040 = vpop.permute.xlu0 %1039
      %1043 = vset.pattern.permute.xlu0 0
      %1044 = vperm.xlu0 %1043, %v972
      %v1045 = vpop.permute.xlu0 %1044
      %1048 = vset.pattern.permute.xlu0 0
      %1049 = vperm.xlu0 %1048, %v973
      %v1050 = vpop.permute.xlu0 %1049
      %1053 = vset.pattern.permute.xlu0 0
      %1054 = vperm.xlu0 %1053, %v974
      %v1055 = vpop.permute.xlu0 %1054
      %1058 = vset.pattern.permute.xlu0 0
      %1059 = vperm.xlu0 %1058, %v975
      %v1060 = vpop.permute.xlu0 %1059
      %1063 = vset.pattern.permute.xlu0 0
      %1064 = vperm.xlu0 %1063, %v976
      %v1065 = vpop.permute.xlu0 %1064
      %1068 = vset.pattern.permute.xlu0 0
      %1069 = vperm.xlu0 %1068, %v977
      %v1070 = vpop.permute.xlu0 %1069
      %1073 = vset.pattern.permute.xlu0 0
      %1074 = vperm.xlu0 %1073, %v978
      %v1075 = vpop.permute.xlu0 %1074
      %1078 = vset.pattern.permute.xlu0 0
      %1079 = vperm.xlu0 %1078, %v979
      %v1080 = vpop.permute.xlu0 %1079
      %1083 = vset.pattern.permute.xlu0 0
      %1084 = vperm.xlu0 %1083, %v980
      %v1085 = vpop.permute.xlu0 %1084
      %1088 = vset.pattern.permute.xlu0 0
      %1089 = vperm.xlu0 %1088, %v981
      %v1090 = vpop.permute.xlu0 %1089
      %1093 = vset.pattern.permute.xlu0 0
      %1094 = vperm.xlu0 %1093, %v982
      %v1095 = vpop.permute.xlu0 %1094
      %1098 = vset.pattern.permute.xlu0 0
      %1099 = vperm.xlu0 %1098, %v983
      %v1100 = vpop.permute.xlu0 %1099
      %1103 = vset.pattern.permute.xlu0 0
      %1104 = vperm.xlu0 %1103, %v984
      %v1105 = vpop.permute.xlu0 %1104
      %1108 = vset.pattern.permute.xlu0 0
      %1109 = vperm.xlu0 %1108, %v985
      %v1110 = vpop.permute.xlu0 %1109
      %1113 = vset.pattern.permute.xlu0 0
      %1114 = vperm.xlu0 %1113, %v986
      %v1115 = vpop.permute.xlu0 %1114
      %1118 = vset.pattern.permute.xlu0 0
      %1119 = vperm.xlu0 %1118, %v987
      %v1120 = vpop.permute.xlu0 %1119
      %1123 = vset.pattern.permute.xlu0 0
      %1124 = vperm.xlu0 %1123, %v988
      %v1125 = vpop.permute.xlu0 %1124
      %1128 = vset.pattern.permute.xlu0 0
      %1129 = vperm.xlu0 %1128, %v989
      %v1130 = vpop.permute.xlu0 %1129
      %1133 = vset.pattern.permute.xlu0 0
      %1134 = vperm.xlu0 %1133, %v990
      %v1135 = vpop.permute.xlu0 %1134
      %1138 = vset.pattern.permute.xlu0 0
      %1139 = vperm.xlu0 %1138, %v991
      %v1140 = vpop.permute.xlu0 %1139
      %1143 = vset.pattern.permute.xlu0 0
      %1144 = vperm.xlu0 %1143, %v992
      %v1145 = vpop.permute.xlu0 %1144
      %1148 = vset.pattern.permute.xlu0 0
      %1149 = vperm.xlu0 %1148, %v993
      %v1150 = vpop.permute.xlu0 %1149
      %1153 = vset.pattern.permute.xlu0 0
      %1154 = vperm.xlu0 %1153, %v994
      %v1155 = vpop.permute.xlu0 %1154
      %v1158 = vlaneseq
      %v1159 = vshrl.u32 %v1158, 7
      %v1160 = vsub.s32 0, %v1159
      %v1161 = vrot.slane %v996, %v1160
      %v1163 = vmul.f32 %v1000, %v1161
      %v1164 = vmul.f32 %v1005, %v1161
      %v1165 = vmul.f32 %v1010, %v1161
      %v1166 = vmul.f32 %v1015, %v1161
      %v1167 = vmul.f32 %v1020, %v1161
      %v1168 = vmul.f32 %v1025, %v1161
      %v1169 = vmul.f32 %v1030, %v1161
      %v1170 = vmul.f32 %v1035, %v1161
      %v1171 = vmul.f32 %v1040, %v1161
      %v1172 = vmul.f32 %v1045, %v1161
      %v1173 = vmul.f32 %v1050, %v1161
      %v1174 = vmul.f32 %v1055, %v1161
      %v1175 = vmul.f32 %v1060, %v1161
      %v1176 = vmul.f32 %v1065, %v1161
      %v1177 = vmul.f32 %v1070, %v1161
      %v1178 = vmul.f32 %v1075, %v1161
      %v1179 = vmul.f32 %v1080, %v1161
      %v1180 = vmul.f32 %v1085, %v1161
      %v1181 = vmul.f32 %v1090, %v1161
      %v1182 = vmul.f32 %v1095, %v1161
      %v1183 = vmul.f32 %v1100, %v1161
      %v1184 = vmul.f32 %v1105, %v1161
      %v1185 = vmul.f32 %v1110, %v1161
      %v1186 = vmul.f32 %v1115, %v1161
      %v1187 = vmul.f32 %v1120, %v1161
      %v1188 = vmul.f32 %v1125, %v1161
      %v1189 = vmul.f32 %v1130, %v1161
      %v1190 = vmul.f32 %v1135, %v1161
      %v1191 = vmul.f32 %v1140, %v1161
      %v1192 = vmul.f32 %v1145, %v1161
      %v1193 = vmul.f32 %v1150, %v1161
      %v1194 = vmul.f32 %v1155, %v1161
      %v1195 = vadd.f32 %v930, %v1163
      %v1196 = vadd.f32 %v931, %v1164
      %v1197 = vadd.f32 %v932, %v1165
      %v1198 = vadd.f32 %v933, %v1166
      %v1199 = vadd.f32 %v934, %v1167
      %v1200 = vadd.f32 %v935, %v1168
      %v1201 = vadd.f32 %v936, %v1169
      %v1202 = vadd.f32 %v937, %v1170
      %v1203 = vadd.f32 %v938, %v1171
      %v1204 = vadd.f32 %v939, %v1172
      %v1205 = vadd.f32 %v940, %v1173
      %v1206 = vadd.f32 %v941, %v1174
      %v1207 = vadd.f32 %v942, %v1175
      %v1208 = vadd.f32 %v943, %v1176
      %v1209 = vadd.f32 %v944, %v1177
      %v1210 = vadd.f32 %v945, %v1178
      %v1211 = vadd.f32 %v946, %v1179
      %v1212 = vadd.f32 %v947, %v1180
      %v1213 = vadd.f32 %v948, %v1181
      %v1214 = vadd.f32 %v949, %v1182
      %v1215 = vadd.f32 %v950, %v1183
      %v1216 = vadd.f32 %v951, %v1184
      %v1217 = vadd.f32 %v952, %v1185
      %v1218 = vadd.f32 %v953, %v1186
      %v1219 = vadd.f32 %v954, %v1187
      %v1220 = vadd.f32 %v955, %v1188
      %v1221 = vadd.f32 %v956, %v1189
      %v1222 = vadd.f32 %v957, %v1190
      %v1223 = vadd.f32 %v958, %v1191
      %v1224 = vadd.f32 %v959, %v1192
      %v1225 = vadd.f32 %v960, %v1193
      %v1226 = vadd.f32 %v961, %v1194
      %v1227 = vld [vmem:[%s962 + $0x1] sm:$0xff]
      %v1228 = vld [vmem:[%s962 + $0x9] sm:$0xff]
      %v1229 = vld [vmem:[%s962 + $0x19] sm:$0xff]
      %v1230 = vld [vmem:[%s962 + $0x21] sm:$0xff]
      %v1231 = vld [vmem:[%s962 + $0x31] sm:$0xff]
      %v1232 = vld [vmem:[%s962 + $0x39] sm:$0xff]
      %v1233 = vld [vmem:[%s962 + $0x49] sm:$0xff]
      %v1234 = vld [vmem:[%s962 + $0x51] sm:$0xff]
      %v1235 = vld [vmem:[%s962 + $0x61] sm:$0xff]
      %v1236 = vld [vmem:[%s962 + $0x69] sm:$0xff]
      %v1237 = vld [vmem:[%s962 + $0x79] sm:$0xff]
      %v1238 = vld [vmem:[%s962 + $0x81] sm:$0xff]
      %v1239 = vld [vmem:[%s962 + $0x91] sm:$0xff]
      %v1240 = vld [vmem:[%s962 + $0x99] sm:$0xff]
      %v1241 = vld [vmem:[%s962 + $0xa9] sm:$0xff]
      %v1242 = vld [vmem:[%s962 + $0xb1] sm:$0xff]
      %v1243 = vld [vmem:[%s962 + $0xc1] sm:$0xff]
      %v1244 = vld [vmem:[%s962 + $0xc9] sm:$0xff]
      %v1245 = vld [vmem:[%s962 + $0xd9] sm:$0xff]
      %v1246 = vld [vmem:[%s962 + $0xe1] sm:$0xff]
      %v1247 = vld [vmem:[%s962 + $0xf1] sm:$0xff]
      %v1248 = vld [vmem:[%s962 + $0xf9] sm:$0xff]
      %v1249 = vld [vmem:[%s962 + $0x109] sm:$0xff]
      %v1250 = vld [vmem:[%s962 + $0x111] sm:$0xff]
      %v1251 = vld [vmem:[%s962 + $0x121] sm:$0xff]
      %v1252 = vld [vmem:[%s962 + $0x129] sm:$0xff]
      %v1253 = vld [vmem:[%s962 + $0x139] sm:$0xff]
      %v1254 = vld [vmem:[%s962 + $0x141] sm:$0xff]
      %v1255 = vld [vmem:[%s962 + $0x151] sm:$0xff]
      %v1256 = vld [vmem:[%s962 + $0x159] sm:$0xff]
      %v1257 = vld [vmem:[%s962 + $0x169] sm:$0xff]
      %v1258 = vld [vmem:[%s962 + $0x171] sm:$0xff]
      %s1259 = scalar_lea.vmem %s1, 4
      %v1260 = vld [vmem:[%s1259] sm:$0x1]
      %1262 = vset.pattern.permute.xlu0 0
      %1263 = vperm.xlu0 %1262, %v1227
      %v1264 = vpop.permute.xlu0 %1263
      %1267 = vset.pattern.permute.xlu0 0
      %1268 = vperm.xlu0 %1267, %v1228
      %v1269 = vpop.permute.xlu0 %1268
      %1272 = vset.pattern.permute.xlu0 0
      %1273 = vperm.xlu0 %1272, %v1229
      %v1274 = vpop.permute.xlu0 %1273
      %1277 = vset.pattern.permute.xlu0 0
      %1278 = vperm.xlu0 %1277, %v1230
      %v1279 = vpop.permute.xlu0 %1278
      %1282 = vset.pattern.permute.xlu0 0
      %1283 = vperm.xlu0 %1282, %v1231
      %v1284 = vpop.permute.xlu0 %1283
      %1287 = vset.pattern.permute.xlu0 0
      %1288 = vperm.xlu0 %1287, %v1232
      %v1289 = vpop.permute.xlu0 %1288
      %1292 = vset.pattern.permute.xlu0 0
      %1293 = vperm.xlu0 %1292, %v1233
      %v1294 = vpop.permute.xlu0 %1293
      %1297 = vset.pattern.permute.xlu0 0
      %1298 = vperm.xlu0 %1297, %v1234
      %v1299 = vpop.permute.xlu0 %1298
      %1302 = vset.pattern.permute.xlu0 0
      %1303 = vperm.xlu0 %1302, %v1235
      %v1304 = vpop.permute.xlu0 %1303
      %1307 = vset.pattern.permute.xlu0 0
      %1308 = vperm.xlu0 %1307, %v1236
      %v1309 = vpop.permute.xlu0 %1308
      %1312 = vset.pattern.permute.xlu0 0
      %1313 = vperm.xlu0 %1312, %v1237
      %v1314 = vpop.permute.xlu0 %1313
      %1317 = vset.pattern.permute.xlu0 0
      %1318 = vperm.xlu0 %1317, %v1238
      %v1319 = vpop.permute.xlu0 %1318
      %1322 = vset.pattern.permute.xlu0 0
      %1323 = vperm.xlu0 %1322, %v1239
      %v1324 = vpop.permute.xlu0 %1323
      %1327 = vset.pattern.permute.xlu0 0
      %1328 = vperm.xlu0 %1327, %v1240
      %v1329 = vpop.permute.xlu0 %1328
      %1332 = vset.pattern.permute.xlu0 0
      %1333 = vperm.xlu0 %1332, %v1241
      %v1334 = vpop.permute.xlu0 %1333
      %1337 = vset.pattern.permute.xlu0 0
      %1338 = vperm.xlu0 %1337, %v1242
      %v1339 = vpop.permute.xlu0 %1338
      %1342 = vset.pattern.permute.xlu0 0
      %1343 = vperm.xlu0 %1342, %v1243
      %v1344 = vpop.permute.xlu0 %1343
      %1347 = vset.pattern.permute.xlu0 0
      %1348 = vperm.xlu0 %1347, %v1244
      %v1349 = vpop.permute.xlu0 %1348
      %1352 = vset.pattern.permute.xlu0 0
      %1353 = vperm.xlu0 %1352, %v1245
      %v1354 = vpop.permute.xlu0 %1353
      %1357 = vset.pattern.permute.xlu0 0
      %1358 = vperm.xlu0 %1357, %v1246
      %v1359 = vpop.permute.xlu0 %1358
      %1362 = vset.pattern.permute.xlu0 0
      %1363 = vperm.xlu0 %1362, %v1247
      %v1364 = vpop.permute.xlu0 %1363
      %1367 = vset.pattern.permute.xlu0 0
      %1368 = vperm.xlu0 %1367, %v1248
      %v1369 = vpop.permute.xlu0 %1368
      %1372 = vset.pattern.permute.xlu0 0
      %1373 = vperm.xlu0 %1372, %v1249
      %v1374 = vpop.permute.xlu0 %1373
      %1377 = vset.pattern.permute.xlu0 0
      %1378 = vperm.xlu0 %1377, %v1250
      %v1379 = vpop.permute.xlu0 %1378
      %1382 = vset.pattern.permute.xlu0 0
      %1383 = vperm.xlu0 %1382, %v1251
      %v1384 = vpop.permute.xlu0 %1383
      %1387 = vset.pattern.permute.xlu0 0
      %1388 = vperm.xlu0 %1387, %v1252
      %v1389 = vpop.permute.xlu0 %1388
      %1392 = vset.pattern.permute.xlu0 0
      %1393 = vperm.xlu0 %1392, %v1253
      %v1394 = vpop.permute.xlu0 %1393
      %1397 = vset.pattern.permute.xlu0 0
      %1398 = vperm.xlu0 %1397, %v1254
      %v1399 = vpop.permute.xlu0 %1398
      %1402 = vset.pattern.permute.xlu0 0
      %1403 = vperm.xlu0 %1402, %v1255
      %v1404 = vpop.permute.xlu0 %1403
      %1407 = vset.pattern.permute.xlu0 0
      %1408 = vperm.xlu0 %1407, %v1256
      %v1409 = vpop.permute.xlu0 %1408
      %1412 = vset.pattern.permute.xlu0 0
      %1413 = vperm.xlu0 %1412, %v1257
      %v1414 = vpop.permute.xlu0 %1413
      %1417 = vset.pattern.permute.xlu0 0
      %1418 = vperm.xlu0 %1417, %v1258
      %v1419 = vpop.permute.xlu0 %1418
      %v1422 = vlaneseq
      %v1423 = vshrl.u32 %v1422, 7
      %v1424 = vsub.s32 0, %v1423
      %v1425 = vrot.slane %v1260, %v1424
      %v1427 = vmul.f32 %v1264, %v1425
      %v1428 = vmul.f32 %v1269, %v1425
      %v1429 = vmul.f32 %v1274, %v1425
      %v1430 = vmul.f32 %v1279, %v1425
      %v1431 = vmul.f32 %v1284, %v1425
      %v1432 = vmul.f32 %v1289, %v1425
      %v1433 = vmul.f32 %v1294, %v1425
      %v1434 = vmul.f32 %v1299, %v1425
      %v1435 = vmul.f32 %v1304, %v1425
      %v1436 = vmul.f32 %v1309, %v1425
      %v1437 = vmul.f32 %v1314, %v1425
      %v1438 = vmul.f32 %v1319, %v1425
      %v1439 = vmul.f32 %v1324, %v1425
      %v1440 = vmul.f32 %v1329, %v1425
      %v1441 = vmul.f32 %v1334, %v1425
      %v1442 = vmul.f32 %v1339, %v1425
      %v1443 = vmul.f32 %v1344, %v1425
      %v1444 = vmul.f32 %v1349, %v1425
      %v1445 = vmul.f32 %v1354, %v1425
      %v1446 = vmul.f32 %v1359, %v1425
      %v1447 = vmul.f32 %v1364, %v1425
      %v1448 = vmul.f32 %v1369, %v1425
      %v1449 = vmul.f32 %v1374, %v1425
      %v1450 = vmul.f32 %v1379, %v1425
      %v1451 = vmul.f32 %v1384, %v1425
      %v1452 = vmul.f32 %v1389, %v1425
      %v1453 = vmul.f32 %v1394, %v1425
      %v1454 = vmul.f32 %v1399, %v1425
      %v1455 = vmul.f32 %v1404, %v1425
      %v1456 = vmul.f32 %v1409, %v1425
      %v1457 = vmul.f32 %v1414, %v1425
      %v1458 = vmul.f32 %v1419, %v1425
      %v1459 = vadd.f32 %v1195, %v1427
      %v1460 = vadd.f32 %v1196, %v1428
      %v1461 = vadd.f32 %v1197, %v1429
      %v1462 = vadd.f32 %v1198, %v1430
      %v1463 = vadd.f32 %v1199, %v1431
      %v1464 = vadd.f32 %v1200, %v1432
      %v1465 = vadd.f32 %v1201, %v1433
      %v1466 = vadd.f32 %v1202, %v1434
      %v1467 = vadd.f32 %v1203, %v1435
      %v1468 = vadd.f32 %v1204, %v1436
      %v1469 = vadd.f32 %v1205, %v1437
      %v1470 = vadd.f32 %v1206, %v1438
      %v1471 = vadd.f32 %v1207, %v1439
      %v1472 = vadd.f32 %v1208, %v1440
      %v1473 = vadd.f32 %v1209, %v1441
      %v1474 = vadd.f32 %v1210, %v1442
      %v1475 = vadd.f32 %v1211, %v1443
      %v1476 = vadd.f32 %v1212, %v1444
      %v1477 = vadd.f32 %v1213, %v1445
      %v1478 = vadd.f32 %v1214, %v1446
      %v1479 = vadd.f32 %v1215, %v1447
      %v1480 = vadd.f32 %v1216, %v1448
      %v1481 = vadd.f32 %v1217, %v1449
      %v1482 = vadd.f32 %v1218, %v1450
      %v1483 = vadd.f32 %v1219, %v1451
      %v1484 = vadd.f32 %v1220, %v1452
      %v1485 = vadd.f32 %v1221, %v1453
      %v1486 = vadd.f32 %v1222, %v1454
      %v1487 = vadd.f32 %v1223, %v1455
      %v1488 = vadd.f32 %v1224, %v1456
      %v1489 = vadd.f32 %v1225, %v1457
      %v1490 = vadd.f32 %v1226, %v1458
      %v1491 = vld [vmem:[%s962 + $0x2] sm:$0xff]
      %v1492 = vld [vmem:[%s962 + $0xa] sm:$0xff]
      %v1493 = vld [vmem:[%s962 + $0x1a] sm:$0xff]
      %v1494 = vld [vmem:[%s962 + $0x22] sm:$0xff]
      %v1495 = vld [vmem:[%s962 + $0x32] sm:$0xff]
      %v1496 = vld [vmem:[%s962 + $0x3a] sm:$0xff]
      %v1497 = vld [vmem:[%s962 + $0x4a] sm:$0xff]
      %v1498 = vld [vmem:[%s962 + $0x52] sm:$0xff]
      %v1499 = vld [vmem:[%s962 + $0x62] sm:$0xff]
      %v1500 = vld [vmem:[%s962 + $0x6a] sm:$0xff]
      %v1501 = vld [vmem:[%s962 + $0x7a] sm:$0xff]
      %v1502 = vld [vmem:[%s962 + $0x82] sm:$0xff]
      %v1503 = vld [vmem:[%s962 + $0x92] sm:$0xff]
      %v1504 = vld [vmem:[%s962 + $0x9a] sm:$0xff]
      %v1505 = vld [vmem:[%s962 + $0xaa] sm:$0xff]
      %v1506 = vld [vmem:[%s962 + $0xb2] sm:$0xff]
      %v1507 = vld [vmem:[%s962 + $0xc2] sm:$0xff]
      %v1508 = vld [vmem:[%s962 + $0xca] sm:$0xff]
      %v1509 = vld [vmem:[%s962 + $0xda] sm:$0xff]
      %v1510 = vld [vmem:[%s962 + $0xe2] sm:$0xff]
      %v1511 = vld [vmem:[%s962 + $0xf2] sm:$0xff]
      %v1512 = vld [vmem:[%s962 + $0xfa] sm:$0xff]
      %v1513 = vld [vmem:[%s962 + $0x10a] sm:$0xff]
      %v1514 = vld [vmem:[%s962 + $0x112] sm:$0xff]
      %v1515 = vld [vmem:[%s962 + $0x122] sm:$0xff]
      %v1516 = vld [vmem:[%s962 + $0x12a] sm:$0xff]
      %v1517 = vld [vmem:[%s962 + $0x13a] sm:$0xff]
      %v1518 = vld [vmem:[%s962 + $0x142] sm:$0xff]
      %v1519 = vld [vmem:[%s962 + $0x152] sm:$0xff]
      %v1520 = vld [vmem:[%s962 + $0x15a] sm:$0xff]
      %v1521 = vld [vmem:[%s962 + $0x16a] sm:$0xff]
      %v1522 = vld [vmem:[%s962 + $0x172] sm:$0xff]
      %s1523 = scalar_lea.vmem %s1, 5
      %v1524 = vld [vmem:[%s1523] sm:$0x1]
      %1526 = vset.pattern.permute.xlu0 0
      %1527 = vperm.xlu0 %1526, %v1491
      %v1528 = vpop.permute.xlu0 %1527
      %1531 = vset.pattern.permute.xlu0 0
      %1532 = vperm.xlu0 %1531, %v1492
      %v1533 = vpop.permute.xlu0 %1532
      %1536 = vset.pattern.permute.xlu0 0
      %1537 = vperm.xlu0 %1536, %v1493
      %v1538 = vpop.permute.xlu0 %1537
      %1541 = vset.pattern.permute.xlu0 0
      %1542 = vperm.xlu0 %1541, %v1494
      %v1543 = vpop.permute.xlu0 %1542
      %1546 = vset.pattern.permute.xlu0 0
      %1547 = vperm.xlu0 %1546, %v1495
      %v1548 = vpop.permute.xlu0 %1547
      %1551 = vset.pattern.permute.xlu0 0
      %1552 = vperm.xlu0 %1551, %v1496
      %v1553 = vpop.permute.xlu0 %1552
      %1556 = vset.pattern.permute.xlu0 0
      %1557 = vperm.xlu0 %1556, %v1497
      %v1558 = vpop.permute.xlu0 %1557
      %1561 = vset.pattern.permute.xlu0 0
      %1562 = vperm.xlu0 %1561, %v1498
      %v1563 = vpop.permute.xlu0 %1562
      %1566 = vset.pattern.permute.xlu0 0
      %1567 = vperm.xlu0 %1566, %v1499
      %v1568 = vpop.permute.xlu0 %1567
      %1571 = vset.pattern.permute.xlu0 0
      %1572 = vperm.xlu0 %1571, %v1500
      %v1573 = vpop.permute.xlu0 %1572
      %1576 = vset.pattern.permute.xlu0 0
      %1577 = vperm.xlu0 %1576, %v1501
      %v1578 = vpop.permute.xlu0 %1577
      %1581 = vset.pattern.permute.xlu0 0
      %1582 = vperm.xlu0 %1581, %v1502
      %v1583 = vpop.permute.xlu0 %1582
      %1586 = vset.pattern.permute.xlu0 0
      %1587 = vperm.xlu0 %1586, %v1503
      %v1588 = vpop.permute.xlu0 %1587
      %1591 = vset.pattern.permute.xlu0 0
      %1592 = vperm.xlu0 %1591, %v1504
      %v1593 = vpop.permute.xlu0 %1592
      %1596 = vset.pattern.permute.xlu0 0
      %1597 = vperm.xlu0 %1596, %v1505
      %v1598 = vpop.permute.xlu0 %1597
      %1601 = vset.pattern.permute.xlu0 0
      %1602 = vperm.xlu0 %1601, %v1506
      %v1603 = vpop.permute.xlu0 %1602
      %1606 = vset.pattern.permute.xlu0 0
      %1607 = vperm.xlu0 %1606, %v1507
      %v1608 = vpop.permute.xlu0 %1607
      %1611 = vset.pattern.permute.xlu0 0
      %1612 = vperm.xlu0 %1611, %v1508
      %v1613 = vpop.permute.xlu0 %1612
      %1616 = vset.pattern.permute.xlu0 0
      %1617 = vperm.xlu0 %1616, %v1509
      %v1618 = vpop.permute.xlu0 %1617
      %1621 = vset.pattern.permute.xlu0 0
      %1622 = vperm.xlu0 %1621, %v1510
      %v1623 = vpop.permute.xlu0 %1622
      %1626 = vset.pattern.permute.xlu0 0
      %1627 = vperm.xlu0 %1626, %v1511
      %v1628 = vpop.permute.xlu0 %1627
      %1631 = vset.pattern.permute.xlu0 0
      %1632 = vperm.xlu0 %1631, %v1512
      %v1633 = vpop.permute.xlu0 %1632
      %1636 = vset.pattern.permute.xlu0 0
      %1637 = vperm.xlu0 %1636, %v1513
      %v1638 = vpop.permute.xlu0 %1637
      %1641 = vset.pattern.permute.xlu0 0
      %1642 = vperm.xlu0 %1641, %v1514
      %v1643 = vpop.permute.xlu0 %1642
      %1646 = vset.pattern.permute.xlu0 0
      %1647 = vperm.xlu0 %1646, %v1515
      %v1648 = vpop.permute.xlu0 %1647
      %1651 = vset.pattern.permute.xlu0 0
      %1652 = vperm.xlu0 %1651, %v1516
      %v1653 = vpop.permute.xlu0 %1652
      %1656 = vset.pattern.permute.xlu0 0
      %1657 = vperm.xlu0 %1656, %v1517
      %v1658 = vpop.permute.xlu0 %1657
      %1661 = vset.pattern.permute.xlu0 0
      %1662 = vperm.xlu0 %1661, %v1518
      %v1663 = vpop.permute.xlu0 %1662
      %1666 = vset.pattern.permute.xlu0 0
      %1667 = vperm.xlu0 %1666, %v1519
      %v1668 = vpop.permute.xlu0 %1667
      %1671 = vset.pattern.permute.xlu0 0
      %1672 = vperm.xlu0 %1671, %v1520
      %v1673 = vpop.permute.xlu0 %1672
      %1676 = vset.pattern.permute.xlu0 0
      %1677 = vperm.xlu0 %1676, %v1521
      %v1678 = vpop.permute.xlu0 %1677
      %1681 = vset.pattern.permute.xlu0 0
      %1682 = vperm.xlu0 %1681, %v1522
      %v1683 = vpop.permute.xlu0 %1682
      %v1686 = vlaneseq
      %v1687 = vshrl.u32 %v1686, 7
      %v1688 = vsub.s32 0, %v1687
      %v1689 = vrot.slane %v1524, %v1688
      %v1691 = vmul.f32 %v1528, %v1689
      %v1692 = vmul.f32 %v1533, %v1689
      %v1693 = vmul.f32 %v1538, %v1689
      %v1694 = vmul.f32 %v1543, %v1689
      %v1695 = vmul.f32 %v1548, %v1689
      %v1696 = vmul.f32 %v1553, %v1689
      %v1697 = vmul.f32 %v1558, %v1689
      %v1698 = vmul.f32 %v1563, %v1689
      %v1699 = vmul.f32 %v1568, %v1689
      %v1700 = vmul.f32 %v1573, %v1689
      %v1701 = vmul.f32 %v1578, %v1689
      %v1702 = vmul.f32 %v1583, %v1689
      %v1703 = vmul.f32 %v1588, %v1689
      %v1704 = vmul.f32 %v1593, %v1689
      %v1705 = vmul.f32 %v1598, %v1689
      %v1706 = vmul.f32 %v1603, %v1689
      %v1707 = vmul.f32 %v1608, %v1689
      %v1708 = vmul.f32 %v1613, %v1689
      %v1709 = vmul.f32 %v1618, %v1689
      %v1710 = vmul.f32 %v1623, %v1689
      %v1711 = vmul.f32 %v1628, %v1689
      %v1712 = vmul.f32 %v1633, %v1689
      %v1713 = vmul.f32 %v1638, %v1689
      %v1714 = vmul.f32 %v1643, %v1689
      %v1715 = vmul.f32 %v1648, %v1689
      %v1716 = vmul.f32 %v1653, %v1689
      %v1717 = vmul.f32 %v1658, %v1689
      %v1718 = vmul.f32 %v1663, %v1689
      %v1719 = vmul.f32 %v1668, %v1689
      %v1720 = vmul.f32 %v1673, %v1689
      %v1721 = vmul.f32 %v1678, %v1689
      %v1722 = vmul.f32 %v1683, %v1689
      %v1723 = vadd.f32 %v1459, %v1691
      %v1724 = vadd.f32 %v1460, %v1692
      %v1725 = vadd.f32 %v1461, %v1693
      %v1726 = vadd.f32 %v1462, %v1694
      %v1727 = vadd.f32 %v1463, %v1695
      %v1728 = vadd.f32 %v1464, %v1696
      %v1729 = vadd.f32 %v1465, %v1697
      %v1730 = vadd.f32 %v1466, %v1698
      %v1731 = vadd.f32 %v1467, %v1699
      %v1732 = vadd.f32 %v1468, %v1700
      %v1733 = vadd.f32 %v1469, %v1701
      %v1734 = vadd.f32 %v1470, %v1702
      %v1735 = vadd.f32 %v1471, %v1703
      %v1736 = vadd.f32 %v1472, %v1704
      %v1737 = vadd.f32 %v1473, %v1705
      %v1738 = vadd.f32 %v1474, %v1706
      %v1739 = vadd.f32 %v1475, %v1707
      %v1740 = vadd.f32 %v1476, %v1708
      %v1741 = vadd.f32 %v1477, %v1709
      %v1742 = vadd.f32 %v1478, %v1710
      %v1743 = vadd.f32 %v1479, %v1711
      %v1744 = vadd.f32 %v1480, %v1712
      %v1745 = vadd.f32 %v1481, %v1713
      %v1746 = vadd.f32 %v1482, %v1714
      %v1747 = vadd.f32 %v1483, %v1715
      %v1748 = vadd.f32 %v1484, %v1716
      %v1749 = vadd.f32 %v1485, %v1717
      %v1750 = vadd.f32 %v1486, %v1718
      %v1751 = vadd.f32 %v1487, %v1719
      %v1752 = vadd.f32 %v1488, %v1720
      %v1753 = vadd.f32 %v1489, %v1721
      %v1754 = vadd.f32 %v1490, %v1722
      %s1755 = scalar_lea.vmem %s165, 48
      %v1756 = vld [vmem:[%s1755] sm:$0xff]
      %v1757 = vld [vmem:[%s1755 + $0x8] sm:$0xff]
      %v1758 = vld [vmem:[%s1755 + $0x18] sm:$0xff]
      %v1759 = vld [vmem:[%s1755 + $0x20] sm:$0xff]
      %v1760 = vld [vmem:[%s1755 + $0x30] sm:$0xff]
      %v1761 = vld [vmem:[%s1755 + $0x38] sm:$0xff]
      %v1762 = vld [vmem:[%s1755 + $0x48] sm:$0xff]
      %v1763 = vld [vmem:[%s1755 + $0x50] sm:$0xff]
      %v1764 = vld [vmem:[%s1755 + $0x60] sm:$0xff]
      %v1765 = vld [vmem:[%s1755 + $0x68] sm:$0xff]
      %v1766 = vld [vmem:[%s1755 + $0x78] sm:$0xff]
      %v1767 = vld [vmem:[%s1755 + $0x80] sm:$0xff]
      %v1768 = vld [vmem:[%s1755 + $0x90] sm:$0xff]
      %v1769 = vld [vmem:[%s1755 + $0x98] sm:$0xff]
      %v1770 = vld [vmem:[%s1755 + $0xa8] sm:$0xff]
      %v1771 = vld [vmem:[%s1755 + $0xb0] sm:$0xff]
      %v1772 = vld [vmem:[%s1755 + $0xc0] sm:$0xff]
      %v1773 = vld [vmem:[%s1755 + $0xc8] sm:$0xff]
      %v1774 = vld [vmem:[%s1755 + $0xd8] sm:$0xff]
      %v1775 = vld [vmem:[%s1755 + $0xe0] sm:$0xff]
      %v1776 = vld [vmem:[%s1755 + $0xf0] sm:$0xff]
      %v1777 = vld [vmem:[%s1755 + $0xf8] sm:$0xff]
      %v1778 = vld [vmem:[%s1755 + $0x108] sm:$0xff]
      %v1779 = vld [vmem:[%s1755 + $0x110] sm:$0xff]
      %v1780 = vld [vmem:[%s1755 + $0x120] sm:$0xff]
      %v1781 = vld [vmem:[%s1755 + $0x128] sm:$0xff]
      %v1782 = vld [vmem:[%s1755 + $0x138] sm:$0xff]
      %v1783 = vld [vmem:[%s1755 + $0x140] sm:$0xff]
      %v1784 = vld [vmem:[%s1755 + $0x150] sm:$0xff]
      %v1785 = vld [vmem:[%s1755 + $0x158] sm:$0xff]
      %v1786 = vld [vmem:[%s1755 + $0x168] sm:$0xff]
      %v1787 = vld [vmem:[%s1755 + $0x170] sm:$0xff]
      %s1788 = scalar_lea.vmem %s1, 6
      %v1789 = vld [vmem:[%s1788] sm:$0x1]
      %1791 = vset.pattern.permute.xlu0 0
      %1792 = vperm.xlu0 %1791, %v1756
      %v1793 = vpop.permute.xlu0 %1792
      %1796 = vset.pattern.permute.xlu0 0
      %1797 = vperm.xlu0 %1796, %v1757
      %v1798 = vpop.permute.xlu0 %1797
      %1801 = vset.pattern.permute.xlu0 0
      %1802 = vperm.xlu0 %1801, %v1758
      %v1803 = vpop.permute.xlu0 %1802
      %1806 = vset.pattern.permute.xlu0 0
      %1807 = vperm.xlu0 %1806, %v1759
      %v1808 = vpop.permute.xlu0 %1807
      %1811 = vset.pattern.permute.xlu0 0
      %1812 = vperm.xlu0 %1811, %v1760
      %v1813 = vpop.permute.xlu0 %1812
      %1816 = vset.pattern.permute.xlu0 0
      %1817 = vperm.xlu0 %1816, %v1761
      %v1818 = vpop.permute.xlu0 %1817
      %1821 = vset.pattern.permute.xlu0 0
      %1822 = vperm.xlu0 %1821, %v1762
      %v1823 = vpop.permute.xlu0 %1822
      %1826 = vset.pattern.permute.xlu0 0
      %1827 = vperm.xlu0 %1826, %v1763
      %v1828 = vpop.permute.xlu0 %1827
      %1831 = vset.pattern.permute.xlu0 0
      %1832 = vperm.xlu0 %1831, %v1764
      %v1833 = vpop.permute.xlu0 %1832
      %1836 = vset.pattern.permute.xlu0 0
      %1837 = vperm.xlu0 %1836, %v1765
      %v1838 = vpop.permute.xlu0 %1837
      %1841 = vset.pattern.permute.xlu0 0
      %1842 = vperm.xlu0 %1841, %v1766
      %v1843 = vpop.permute.xlu0 %1842
      %1846 = vset.pattern.permute.xlu0 0
      %1847 = vperm.xlu0 %1846, %v1767
      %v1848 = vpop.permute.xlu0 %1847
      %1851 = vset.pattern.permute.xlu0 0
      %1852 = vperm.xlu0 %1851, %v1768
      %v1853 = vpop.permute.xlu0 %1852
      %1856 = vset.pattern.permute.xlu0 0
      %1857 = vperm.xlu0 %1856, %v1769
      %v1858 = vpop.permute.xlu0 %1857
      %1861 = vset.pattern.permute.xlu0 0
      %1862 = vperm.xlu0 %1861, %v1770
      %v1863 = vpop.permute.xlu0 %1862
      %1866 = vset.pattern.permute.xlu0 0
      %1867 = vperm.xlu0 %1866, %v1771
      %v1868 = vpop.permute.xlu0 %1867
      %1871 = vset.pattern.permute.xlu0 0
      %1872 = vperm.xlu0 %1871, %v1772
      %v1873 = vpop.permute.xlu0 %1872
      %1876 = vset.pattern.permute.xlu0 0
      %1877 = vperm.xlu0 %1876, %v1773
      %v1878 = vpop.permute.xlu0 %1877
      %1881 = vset.pattern.permute.xlu0 0
      %1882 = vperm.xlu0 %1881, %v1774
      %v1883 = vpop.permute.xlu0 %1882
      %1886 = vset.pattern.permute.xlu0 0
      %1887 = vperm.xlu0 %1886, %v1775
      %v1888 = vpop.permute.xlu0 %1887
      %1891 = vset.pattern.permute.xlu0 0
      %1892 = vperm.xlu0 %1891, %v1776
      %v1893 = vpop.permute.xlu0 %1892
      %1896 = vset.pattern.permute.xlu0 0
      %1897 = vperm.xlu0 %1896, %v1777
      %v1898 = vpop.permute.xlu0 %1897
      %1901 = vset.pattern.permute.xlu0 0
      %1902 = vperm.xlu0 %1901, %v1778
      %v1903 = vpop.permute.xlu0 %1902
      %1906 = vset.pattern.permute.xlu0 0
      %1907 = vperm.xlu0 %1906, %v1779
      %v1908 = vpop.permute.xlu0 %1907
      %1911 = vset.pattern.permute.xlu0 0
      %1912 = vperm.xlu0 %1911, %v1780
      %v1913 = vpop.permute.xlu0 %1912
      %1916 = vset.pattern.permute.xlu0 0
      %1917 = vperm.xlu0 %1916, %v1781
      %v1918 = vpop.permute.xlu0 %1917
      %1921 = vset.pattern.permute.xlu0 0
      %1922 = vperm.xlu0 %1921, %v1782
      %v1923 = vpop.permute.xlu0 %1922
      %1926 = vset.pattern.permute.xlu0 0
      %1927 = vperm.xlu0 %1926, %v1783
      %v1928 = vpop.permute.xlu0 %1927
      %1931 = vset.pattern.permute.xlu0 0
      %1932 = vperm.xlu0 %1931, %v1784
      %v1933 = vpop.permute.xlu0 %1932
      %1936 = vset.pattern.permute.xlu0 0
      %1937 = vperm.xlu0 %1936, %v1785
      %v1938 = vpop.permute.xlu0 %1937
      %1941 = vset.pattern.permute.xlu0 0
      %1942 = vperm.xlu0 %1941, %v1786
      %v1943 = vpop.permute.xlu0 %1942
      %1946 = vset.pattern.permute.xlu0 0
      %1947 = vperm.xlu0 %1946, %v1787
      %v1948 = vpop.permute.xlu0 %1947
      %v1951 = vlaneseq
      %v1952 = vshrl.u32 %v1951, 7
      %v1953 = vsub.s32 0, %v1952
      %v1954 = vrot.slane %v1789, %v1953
      %v1956 = vmul.f32 %v1793, %v1954
      %v1957 = vmul.f32 %v1798, %v1954
      %v1958 = vmul.f32 %v1803, %v1954
      %v1959 = vmul.f32 %v1808, %v1954
      %v1960 = vmul.f32 %v1813, %v1954
      %v1961 = vmul.f32 %v1818, %v1954
      %v1962 = vmul.f32 %v1823, %v1954
      %v1963 = vmul.f32 %v1828, %v1954
      %v1964 = vmul.f32 %v1833, %v1954
      %v1965 = vmul.f32 %v1838, %v1954
      %v1966 = vmul.f32 %v1843, %v1954
      %v1967 = vmul.f32 %v1848, %v1954
      %v1968 = vmul.f32 %v1853, %v1954
      %v1969 = vmul.f32 %v1858, %v1954
      %v1970 = vmul.f32 %v1863, %v1954
      %v1971 = vmul.f32 %v1868, %v1954
      %v1972 = vmul.f32 %v1873, %v1954
      %v1973 = vmul.f32 %v1878, %v1954
      %v1974 = vmul.f32 %v1883, %v1954
      %v1975 = vmul.f32 %v1888, %v1954
      %v1976 = vmul.f32 %v1893, %v1954
      %v1977 = vmul.f32 %v1898, %v1954
      %v1978 = vmul.f32 %v1903, %v1954
      %v1979 = vmul.f32 %v1908, %v1954
      %v1980 = vmul.f32 %v1913, %v1954
      %v1981 = vmul.f32 %v1918, %v1954
      %v1982 = vmul.f32 %v1923, %v1954
      %v1983 = vmul.f32 %v1928, %v1954
      %v1984 = vmul.f32 %v1933, %v1954
      %v1985 = vmul.f32 %v1938, %v1954
      %v1986 = vmul.f32 %v1943, %v1954
      %v1987 = vmul.f32 %v1948, %v1954
      %v1988 = vadd.f32 %v1723, %v1956
      %v1989 = vadd.f32 %v1724, %v1957
      %v1990 = vadd.f32 %v1725, %v1958
      %v1991 = vadd.f32 %v1726, %v1959
      %v1992 = vadd.f32 %v1727, %v1960
      %v1993 = vadd.f32 %v1728, %v1961
      %v1994 = vadd.f32 %v1729, %v1962
      %v1995 = vadd.f32 %v1730, %v1963
      %v1996 = vadd.f32 %v1731, %v1964
      %v1997 = vadd.f32 %v1732, %v1965
      %v1998 = vadd.f32 %v1733, %v1966
      %v1999 = vadd.f32 %v1734, %v1967
      %v2000 = vadd.f32 %v1735, %v1968
      %v2001 = vadd.f32 %v1736, %v1969
      %v2002 = vadd.f32 %v1737, %v1970
      %v2003 = vadd.f32 %v1738, %v1971
      %v2004 = vadd.f32 %v1739, %v1972
      %v2005 = vadd.f32 %v1740, %v1973
      %v2006 = vadd.f32 %v1741, %v1974
      %v2007 = vadd.f32 %v1742, %v1975
      %v2008 = vadd.f32 %v1743, %v1976
      %v2009 = vadd.f32 %v1744, %v1977
      %v2010 = vadd.f32 %v1745, %v1978
      %v2011 = vadd.f32 %v1746, %v1979
      %v2012 = vadd.f32 %v1747, %v1980
      %v2013 = vadd.f32 %v1748, %v1981
      %v2014 = vadd.f32 %v1749, %v1982
      %v2015 = vadd.f32 %v1750, %v1983
      %v2016 = vadd.f32 %v1751, %v1984
      %v2017 = vadd.f32 %v1752, %v1985
      %v2018 = vadd.f32 %v1753, %v1986
      %v2019 = vadd.f32 %v1754, %v1987
      %v2020 = vld [vmem:[%s1755 + $0x1] sm:$0xff]
      %v2021 = vld [vmem:[%s1755 + $0x9] sm:$0xff]
      %v2022 = vld [vmem:[%s1755 + $0x19] sm:$0xff]
      %v2023 = vld [vmem:[%s1755 + $0x21] sm:$0xff]
      %v2024 = vld [vmem:[%s1755 + $0x31] sm:$0xff]
      %v2025 = vld [vmem:[%s1755 + $0x39] sm:$0xff]
      %v2026 = vld [vmem:[%s1755 + $0x49] sm:$0xff]
      %v2027 = vld [vmem:[%s1755 + $0x51] sm:$0xff]
      %v2028 = vld [vmem:[%s1755 + $0x61] sm:$0xff]
      %v2029 = vld [vmem:[%s1755 + $0x69] sm:$0xff]
      %v2030 = vld [vmem:[%s1755 + $0x79] sm:$0xff]
      %v2031 = vld [vmem:[%s1755 + $0x81] sm:$0xff]
      %v2032 = vld [vmem:[%s1755 + $0x91] sm:$0xff]
      %v2033 = vld [vmem:[%s1755 + $0x99] sm:$0xff]
      %v2034 = vld [vmem:[%s1755 + $0xa9] sm:$0xff]
      %v2035 = vld [vmem:[%s1755 + $0xb1] sm:$0xff]
      %v2036 = vld [vmem:[%s1755 + $0xc1] sm:$0xff]
      %v2037 = vld [vmem:[%s1755 + $0xc9] sm:$0xff]
      %v2038 = vld [vmem:[%s1755 + $0xd9] sm:$0xff]
      %v2039 = vld [vmem:[%s1755 + $0xe1] sm:$0xff]
      %v2040 = vld [vmem:[%s1755 + $0xf1] sm:$0xff]
      %v2041 = vld [vmem:[%s1755 + $0xf9] sm:$0xff]
      %v2042 = vld [vmem:[%s1755 + $0x109] sm:$0xff]
      %v2043 = vld [vmem:[%s1755 + $0x111] sm:$0xff]
      %v2044 = vld [vmem:[%s1755 + $0x121] sm:$0xff]
      %v2045 = vld [vmem:[%s1755 + $0x129] sm:$0xff]
      %v2046 = vld [vmem:[%s1755 + $0x139] sm:$0xff]
      %v2047 = vld [vmem:[%s1755 + $0x141] sm:$0xff]
      %v2048 = vld [vmem:[%s1755 + $0x151] sm:$0xff]
      %v2049 = vld [vmem:[%s1755 + $0x159] sm:$0xff]
      %v2050 = vld [vmem:[%s1755 + $0x169] sm:$0xff]
      %v2051 = vld [vmem:[%s1755 + $0x171] sm:$0xff]
      %s2052 = scalar_lea.vmem %s1, 7
      %v2053 = vld [vmem:[%s2052] sm:$0x1]
      %2055 = vset.pattern.permute.xlu0 0
      %2056 = vperm.xlu0 %2055, %v2020
      %v2057 = vpop.permute.xlu0 %2056
      %2060 = vset.pattern.permute.xlu0 0
      %2061 = vperm.xlu0 %2060, %v2021
      %v2062 = vpop.permute.xlu0 %2061
      %2065 = vset.pattern.permute.xlu0 0
      %2066 = vperm.xlu0 %2065, %v2022
      %v2067 = vpop.permute.xlu0 %2066
      %2070 = vset.pattern.permute.xlu0 0
      %2071 = vperm.xlu0 %2070, %v2023
      %v2072 = vpop.permute.xlu0 %2071
      %2075 = vset.pattern.permute.xlu0 0
      %2076 = vperm.xlu0 %2075, %v2024
      %v2077 = vpop.permute.xlu0 %2076
      %2080 = vset.pattern.permute.xlu0 0
      %2081 = vperm.xlu0 %2080, %v2025
      %v2082 = vpop.permute.xlu0 %2081
      %2085 = vset.pattern.permute.xlu0 0
      %2086 = vperm.xlu0 %2085, %v2026
      %v2087 = vpop.permute.xlu0 %2086
      %2090 = vset.pattern.permute.xlu0 0
      %2091 = vperm.xlu0 %2090, %v2027
      %v2092 = vpop.permute.xlu0 %2091
      %2095 = vset.pattern.permute.xlu0 0
      %2096 = vperm.xlu0 %2095, %v2028
      %v2097 = vpop.permute.xlu0 %2096
      %2100 = vset.pattern.permute.xlu0 0
      %2101 = vperm.xlu0 %2100, %v2029
      %v2102 = vpop.permute.xlu0 %2101
      %2105 = vset.pattern.permute.xlu0 0
      %2106 = vperm.xlu0 %2105, %v2030
      %v2107 = vpop.permute.xlu0 %2106
      %2110 = vset.pattern.permute.xlu0 0
      %2111 = vperm.xlu0 %2110, %v2031
      %v2112 = vpop.permute.xlu0 %2111
      %2115 = vset.pattern.permute.xlu0 0
      %2116 = vperm.xlu0 %2115, %v2032
      %v2117 = vpop.permute.xlu0 %2116
      %2120 = vset.pattern.permute.xlu0 0
      %2121 = vperm.xlu0 %2120, %v2033
      %v2122 = vpop.permute.xlu0 %2121
      %2125 = vset.pattern.permute.xlu0 0
      %2126 = vperm.xlu0 %2125, %v2034
      %v2127 = vpop.permute.xlu0 %2126
      %2130 = vset.pattern.permute.xlu0 0
      %2131 = vperm.xlu0 %2130, %v2035
      %v2132 = vpop.permute.xlu0 %2131
      %2135 = vset.pattern.permute.xlu0 0
      %2136 = vperm.xlu0 %2135, %v2036
      %v2137 = vpop.permute.xlu0 %2136
      %2140 = vset.pattern.permute.xlu0 0
      %2141 = vperm.xlu0 %2140, %v2037
      %v2142 = vpop.permute.xlu0 %2141
      %2145 = vset.pattern.permute.xlu0 0
      %2146 = vperm.xlu0 %2145, %v2038
      %v2147 = vpop.permute.xlu0 %2146
      %2150 = vset.pattern.permute.xlu0 0
      %2151 = vperm.xlu0 %2150, %v2039
      %v2152 = vpop.permute.xlu0 %2151
      %2155 = vset.pattern.permute.xlu0 0
      %2156 = vperm.xlu0 %2155, %v2040
      %v2157 = vpop.permute.xlu0 %2156
      %2160 = vset.pattern.permute.xlu0 0
      %2161 = vperm.xlu0 %2160, %v2041
      %v2162 = vpop.permute.xlu0 %2161
      %2165 = vset.pattern.permute.xlu0 0
      %2166 = vperm.xlu0 %2165, %v2042
      %v2167 = vpop.permute.xlu0 %2166
      %2170 = vset.pattern.permute.xlu0 0
      %2171 = vperm.xlu0 %2170, %v2043
      %v2172 = vpop.permute.xlu0 %2171
      %2175 = vset.pattern.permute.xlu0 0
      %2176 = vperm.xlu0 %2175, %v2044
      %v2177 = vpop.permute.xlu0 %2176
      %2180 = vset.pattern.permute.xlu0 0
      %2181 = vperm.xlu0 %2180, %v2045
      %v2182 = vpop.permute.xlu0 %2181
      %2185 = vset.pattern.permute.xlu0 0
      %2186 = vperm.xlu0 %2185, %v2046
      %v2187 = vpop.permute.xlu0 %2186
      %2190 = vset.pattern.permute.xlu0 0
      %2191 = vperm.xlu0 %2190, %v2047
      %v2192 = vpop.permute.xlu0 %2191
      %2195 = vset.pattern.permute.xlu0 0
      %2196 = vperm.xlu0 %2195, %v2048
      %v2197 = vpop.permute.xlu0 %2196
      %2200 = vset.pattern.permute.xlu0 0
      %2201 = vperm.xlu0 %2200, %v2049
      %v2202 = vpop.permute.xlu0 %2201
      %2205 = vset.pattern.permute.xlu0 0
      %2206 = vperm.xlu0 %2205, %v2050
      %v2207 = vpop.permute.xlu0 %2206
      %2210 = vset.pattern.permute.xlu0 0
      %2211 = vperm.xlu0 %2210, %v2051
      %v2212 = vpop.permute.xlu0 %2211
      %v2215 = vlaneseq
      %v2216 = vshrl.u32 %v2215, 7
      %v2217 = vsub.s32 0, %v2216
      %v2218 = vrot.slane %v2053, %v2217
      %v2220 = vmul.f32 %v2057, %v2218
      %v2221 = vmul.f32 %v2062, %v2218
      %v2222 = vmul.f32 %v2067, %v2218
      %v2223 = vmul.f32 %v2072, %v2218
      %v2224 = vmul.f32 %v2077, %v2218
      %v2225 = vmul.f32 %v2082, %v2218
      %v2226 = vmul.f32 %v2087, %v2218
      %v2227 = vmul.f32 %v2092, %v2218
      %v2228 = vmul.f32 %v2097, %v2218
      %v2229 = vmul.f32 %v2102, %v2218
      %v2230 = vmul.f32 %v2107, %v2218
      %v2231 = vmul.f32 %v2112, %v2218
      %v2232 = vmul.f32 %v2117, %v2218
      %v2233 = vmul.f32 %v2122, %v2218
      %v2234 = vmul.f32 %v2127, %v2218
      %v2235 = vmul.f32 %v2132, %v2218
      %v2236 = vmul.f32 %v2137, %v2218
      %v2237 = vmul.f32 %v2142, %v2218
      %v2238 = vmul.f32 %v2147, %v2218
      %v2239 = vmul.f32 %v2152, %v2218
      %v2240 = vmul.f32 %v2157, %v2218
      %v2241 = vmul.f32 %v2162, %v2218
      %v2242 = vmul.f32 %v2167, %v2218
      %v2243 = vmul.f32 %v2172, %v2218
      %v2244 = vmul.f32 %v2177, %v2218
      %v2245 = vmul.f32 %v2182, %v2218
      %v2246 = vmul.f32 %v2187, %v2218
      %v2247 = vmul.f32 %v2192, %v2218
      %v2248 = vmul.f32 %v2197, %v2218
      %v2249 = vmul.f32 %v2202, %v2218
      %v2250 = vmul.f32 %v2207, %v2218
      %v2251 = vmul.f32 %v2212, %v2218
      %v2252 = vadd.f32 %v1988, %v2220
      %v2253 = vadd.f32 %v1989, %v2221
      %v2254 = vadd.f32 %v1990, %v2222
      %v2255 = vadd.f32 %v1991, %v2223
      %v2256 = vadd.f32 %v1992, %v2224
      %v2257 = vadd.f32 %v1993, %v2225
      %v2258 = vadd.f32 %v1994, %v2226
      %v2259 = vadd.f32 %v1995, %v2227
      %v2260 = vadd.f32 %v1996, %v2228
      %v2261 = vadd.f32 %v1997, %v2229
      %v2262 = vadd.f32 %v1998, %v2230
      %v2263 = vadd.f32 %v1999, %v2231
      %v2264 = vadd.f32 %v2000, %v2232
      %v2265 = vadd.f32 %v2001, %v2233
      %v2266 = vadd.f32 %v2002, %v2234
      %v2267 = vadd.f32 %v2003, %v2235
      %v2268 = vadd.f32 %v2004, %v2236
      %v2269 = vadd.f32 %v2005, %v2237
      %v2270 = vadd.f32 %v2006, %v2238
      %v2271 = vadd.f32 %v2007, %v2239
      %v2272 = vadd.f32 %v2008, %v2240
      %v2273 = vadd.f32 %v2009, %v2241
      %v2274 = vadd.f32 %v2010, %v2242
      %v2275 = vadd.f32 %v2011, %v2243
      %v2276 = vadd.f32 %v2012, %v2244
      %v2277 = vadd.f32 %v2013, %v2245
      %v2278 = vadd.f32 %v2014, %v2246
      %v2279 = vadd.f32 %v2015, %v2247
      %v2280 = vadd.f32 %v2016, %v2248
      %v2281 = vadd.f32 %v2017, %v2249
      %v2282 = vadd.f32 %v2018, %v2250
      %v2283 = vadd.f32 %v2019, %v2251
      %v2284 = vld [vmem:[%s1755 + $0x2] sm:$0xff]
      %v2285 = vld [vmem:[%s1755 + $0xa] sm:$0xff]
      %v2286 = vld [vmem:[%s1755 + $0x1a] sm:$0xff]
      %v2287 = vld [vmem:[%s1755 + $0x22] sm:$0xff]
      %v2288 = vld [vmem:[%s1755 + $0x32] sm:$0xff]
      %v2289 = vld [vmem:[%s1755 + $0x3a] sm:$0xff]
      %v2290 = vld [vmem:[%s1755 + $0x4a] sm:$0xff]
      %v2291 = vld [vmem:[%s1755 + $0x52] sm:$0xff]
      %v2292 = vld [vmem:[%s1755 + $0x62] sm:$0xff]
      %v2293 = vld [vmem:[%s1755 + $0x6a] sm:$0xff]
      %v2294 = vld [vmem:[%s1755 + $0x7a] sm:$0xff]
      %v2295 = vld [vmem:[%s1755 + $0x82] sm:$0xff]
      %v2296 = vld [vmem:[%s1755 + $0x92] sm:$0xff]
      %v2297 = vld [vmem:[%s1755 + $0x9a] sm:$0xff]
      %v2298 = vld [vmem:[%s1755 + $0xaa] sm:$0xff]
      %v2299 = vld [vmem:[%s1755 + $0xb2] sm:$0xff]
      %v2300 = vld [vmem:[%s1755 + $0xc2] sm:$0xff]
      %v2301 = vld [vmem:[%s1755 + $0xca] sm:$0xff]
      %v2302 = vld [vmem:[%s1755 + $0xda] sm:$0xff]
      %v2303 = vld [vmem:[%s1755 + $0xe2] sm:$0xff]
      %v2304 = vld [vmem:[%s1755 + $0xf2] sm:$0xff]
      %v2305 = vld [vmem:[%s1755 + $0xfa] sm:$0xff]
      %v2306 = vld [vmem:[%s1755 + $0x10a] sm:$0xff]
      %v2307 = vld [vmem:[%s1755 + $0x112] sm:$0xff]
      %v2308 = vld [vmem:[%s1755 + $0x122] sm:$0xff]
      %v2309 = vld [vmem:[%s1755 + $0x12a] sm:$0xff]
      %v2310 = vld [vmem:[%s1755 + $0x13a] sm:$0xff]
      %v2311 = vld [vmem:[%s1755 + $0x142] sm:$0xff]
      %v2312 = vld [vmem:[%s1755 + $0x152] sm:$0xff]
      %v2313 = vld [vmem:[%s1755 + $0x15a] sm:$0xff]
      %v2314 = vld [vmem:[%s1755 + $0x16a] sm:$0xff]
      %v2315 = vld [vmem:[%s1755 + $0x172] sm:$0xff]
      %s2316 = scalar_lea.vmem %s1, 8
      %v2317 = vld [vmem:[%s2316] sm:$0x1]
      %2319 = vset.pattern.permute.xlu0 0
      %2320 = vperm.xlu0 %2319, %v2284
      %v2321 = vpop.permute.xlu0 %2320
      %2324 = vset.pattern.permute.xlu0 0
      %2325 = vperm.xlu0 %2324, %v2285
      %v2326 = vpop.permute.xlu0 %2325
      %2329 = vset.pattern.permute.xlu0 0
      %2330 = vperm.xlu0 %2329, %v2286
      %v2331 = vpop.permute.xlu0 %2330
      %2334 = vset.pattern.permute.xlu0 0
      %2335 = vperm.xlu0 %2334, %v2287
      %v2336 = vpop.permute.xlu0 %2335
      %2339 = vset.pattern.permute.xlu0 0
      %2340 = vperm.xlu0 %2339, %v2288
      %v2341 = vpop.permute.xlu0 %2340
      %2344 = vset.pattern.permute.xlu0 0
      %2345 = vperm.xlu0 %2344, %v2289
      %v2346 = vpop.permute.xlu0 %2345
      %2349 = vset.pattern.permute.xlu0 0
      %2350 = vperm.xlu0 %2349, %v2290
      %v2351 = vpop.permute.xlu0 %2350
      %2354 = vset.pattern.permute.xlu0 0
      %2355 = vperm.xlu0 %2354, %v2291
      %v2356 = vpop.permute.xlu0 %2355
      %2359 = vset.pattern.permute.xlu0 0
      %2360 = vperm.xlu0 %2359, %v2292
      %v2361 = vpop.permute.xlu0 %2360
      %2364 = vset.pattern.permute.xlu0 0
      %2365 = vperm.xlu0 %2364, %v2293
      %v2366 = vpop.permute.xlu0 %2365
      %2369 = vset.pattern.permute.xlu0 0
      %2370 = vperm.xlu0 %2369, %v2294
      %v2371 = vpop.permute.xlu0 %2370
      %2374 = vset.pattern.permute.xlu0 0
      %2375 = vperm.xlu0 %2374, %v2295
      %v2376 = vpop.permute.xlu0 %2375
      %2379 = vset.pattern.permute.xlu0 0
      %2380 = vperm.xlu0 %2379, %v2296
      %v2381 = vpop.permute.xlu0 %2380
      %2384 = vset.pattern.permute.xlu0 0
      %2385 = vperm.xlu0 %2384, %v2297
      %v2386 = vpop.permute.xlu0 %2385
      %2389 = vset.pattern.permute.xlu0 0
      %2390 = vperm.xlu0 %2389, %v2298
      %v2391 = vpop.permute.xlu0 %2390
      %2394 = vset.pattern.permute.xlu0 0
      %2395 = vperm.xlu0 %2394, %v2299
      %v2396 = vpop.permute.xlu0 %2395
      %2399 = vset.pattern.permute.xlu0 0
      %2400 = vperm.xlu0 %2399, %v2300
      %v2401 = vpop.permute.xlu0 %2400
      %2404 = vset.pattern.permute.xlu0 0
      %2405 = vperm.xlu0 %2404, %v2301
      %v2406 = vpop.permute.xlu0 %2405
      %2409 = vset.pattern.permute.xlu0 0
      %2410 = vperm.xlu0 %2409, %v2302
      %v2411 = vpop.permute.xlu0 %2410
      %2414 = vset.pattern.permute.xlu0 0
      %2415 = vperm.xlu0 %2414, %v2303
      %v2416 = vpop.permute.xlu0 %2415
      %2419 = vset.pattern.permute.xlu0 0
      %2420 = vperm.xlu0 %2419, %v2304
      %v2421 = vpop.permute.xlu0 %2420
      %2424 = vset.pattern.permute.xlu0 0
      %2425 = vperm.xlu0 %2424, %v2305
      %v2426 = vpop.permute.xlu0 %2425
      %2429 = vset.pattern.permute.xlu0 0
      %2430 = vperm.xlu0 %2429, %v2306
      %v2431 = vpop.permute.xlu0 %2430
      %2434 = vset.pattern.permute.xlu0 0
      %2435 = vperm.xlu0 %2434, %v2307
      %v2436 = vpop.permute.xlu0 %2435
      %2439 = vset.pattern.permute.xlu0 0
      %2440 = vperm.xlu0 %2439, %v2308
      %v2441 = vpop.permute.xlu0 %2440
      %2444 = vset.pattern.permute.xlu0 0
      %2445 = vperm.xlu0 %2444, %v2309
      %v2446 = vpop.permute.xlu0 %2445
      %2449 = vset.pattern.permute.xlu0 0
      %2450 = vperm.xlu0 %2449, %v2310
      %v2451 = vpop.permute.xlu0 %2450
      %2454 = vset.pattern.permute.xlu0 0
      %2455 = vperm.xlu0 %2454, %v2311
      %v2456 = vpop.permute.xlu0 %2455
      %2459 = vset.pattern.permute.xlu0 0
      %2460 = vperm.xlu0 %2459, %v2312
      %v2461 = vpop.permute.xlu0 %2460
      %2464 = vset.pattern.permute.xlu0 0
      %2465 = vperm.xlu0 %2464, %v2313
      %v2466 = vpop.permute.xlu0 %2465
      %2469 = vset.pattern.permute.xlu0 0
      %2470 = vperm.xlu0 %2469, %v2314
      %v2471 = vpop.permute.xlu0 %2470
      %2474 = vset.pattern.permute.xlu0 0
      %2475 = vperm.xlu0 %2474, %v2315
      %v2476 = vpop.permute.xlu0 %2475
      %v2479 = vlaneseq
      %v2480 = vshrl.u32 %v2479, 7
      %v2481 = vsub.s32 0, %v2480
      %v2482 = vrot.slane %v2317, %v2481
      %v2484 = vmul.f32 %v2321, %v2482
      %v2485 = vmul.f32 %v2326, %v2482
      %v2486 = vmul.f32 %v2331, %v2482
      %v2487 = vmul.f32 %v2336, %v2482
      %v2488 = vmul.f32 %v2341, %v2482
      %v2489 = vmul.f32 %v2346, %v2482
      %v2490 = vmul.f32 %v2351, %v2482
      %v2491 = vmul.f32 %v2356, %v2482
      %v2492 = vmul.f32 %v2361, %v2482
      %v2493 = vmul.f32 %v2366, %v2482
      %v2494 = vmul.f32 %v2371, %v2482
      %v2495 = vmul.f32 %v2376, %v2482
      %v2496 = vmul.f32 %v2381, %v2482
      %v2497 = vmul.f32 %v2386, %v2482
      %v2498 = vmul.f32 %v2391, %v2482
      %v2499 = vmul.f32 %v2396, %v2482
      %v2500 = vmul.f32 %v2401, %v2482
      %v2501 = vmul.f32 %v2406, %v2482
      %v2502 = vmul.f32 %v2411, %v2482
      %v2503 = vmul.f32 %v2416, %v2482
      %v2504 = vmul.f32 %v2421, %v2482
      %v2505 = vmul.f32 %v2426, %v2482
      %v2506 = vmul.f32 %v2431, %v2482
      %v2507 = vmul.f32 %v2436, %v2482
      %v2508 = vmul.f32 %v2441, %v2482
      %v2509 = vmul.f32 %v2446, %v2482
      %v2510 = vmul.f32 %v2451, %v2482
      %v2511 = vmul.f32 %v2456, %v2482
      %v2512 = vmul.f32 %v2461, %v2482
      %v2513 = vmul.f32 %v2466, %v2482
      %v2514 = vmul.f32 %v2471, %v2482
      %v2515 = vmul.f32 %v2476, %v2482
      %v2516 = vadd.f32 %v2252, %v2484
      %v2517 = vadd.f32 %v2253, %v2485
      %v2518 = vadd.f32 %v2254, %v2486
      %v2519 = vadd.f32 %v2255, %v2487
      %v2520 = vadd.f32 %v2256, %v2488
      %v2521 = vadd.f32 %v2257, %v2489
      %v2522 = vadd.f32 %v2258, %v2490
      %v2523 = vadd.f32 %v2259, %v2491
      %v2524 = vadd.f32 %v2260, %v2492
      %v2525 = vadd.f32 %v2261, %v2493
      %v2526 = vadd.f32 %v2262, %v2494
      %v2527 = vadd.f32 %v2263, %v2495
      %v2528 = vadd.f32 %v2264, %v2496
      %v2529 = vadd.f32 %v2265, %v2497
      %v2530 = vadd.f32 %v2266, %v2498
      %v2531 = vadd.f32 %v2267, %v2499
      %v2532 = vadd.f32 %v2268, %v2500
      %v2533 = vadd.f32 %v2269, %v2501
      %v2534 = vadd.f32 %v2270, %v2502
      %v2535 = vadd.f32 %v2271, %v2503
      %v2536 = vadd.f32 %v2272, %v2504
      %v2537 = vadd.f32 %v2273, %v2505
      %v2538 = vadd.f32 %v2274, %v2506
      %v2539 = vadd.f32 %v2275, %v2507
      %v2540 = vadd.f32 %v2276, %v2508
      %v2541 = vadd.f32 %v2277, %v2509
      %v2542 = vadd.f32 %v2278, %v2510
      %v2543 = vadd.f32 %v2279, %v2511
      %v2544 = vadd.f32 %v2280, %v2512
      %v2545 = vadd.f32 %v2281, %v2513
      %v2546 = vadd.f32 %v2282, %v2514
      %v2547 = vadd.f32 %v2283, %v2515
      %v2548 = vld [vmem:[%s2] sm:$0x1]
      %v2550 = vlaneseq
      %v2551 = vshrl.u32 %v2550, 7
      %v2552 = vsub.s32 0, %v2551
      %v2553 = vrot.slane %v2548, %v2552
      %v2555 = vadd.f32 %v2516, %v2553
      %v2556 = vadd.f32 %v2517, %v2553
      %v2557 = vadd.f32 %v2518, %v2553
      %v2558 = vadd.f32 %v2519, %v2553
      %v2559 = vadd.f32 %v2520, %v2553
      %v2560 = vadd.f32 %v2521, %v2553
      %v2561 = vadd.f32 %v2522, %v2553
      %v2562 = vadd.f32 %v2523, %v2553
      %v2563 = vadd.f32 %v2524, %v2553
      %v2564 = vadd.f32 %v2525, %v2553
      %v2565 = vadd.f32 %v2526, %v2553
      %v2566 = vadd.f32 %v2527, %v2553
      %v2567 = vadd.f32 %v2528, %v2553
      %v2568 = vadd.f32 %v2529, %v2553
      %v2569 = vadd.f32 %v2530, %v2553
      %v2570 = vadd.f32 %v2531, %v2553
      %v2571 = vadd.f32 %v2532, %v2553
      %v2572 = vadd.f32 %v2533, %v2553
      %v2573 = vadd.f32 %v2534, %v2553
      %v2574 = vadd.f32 %v2535, %v2553
      %v2575 = vadd.f32 %v2536, %v2553
      %v2576 = vadd.f32 %v2537, %v2553
      %v2577 = vadd.f32 %v2538, %v2553
      %v2578 = vadd.f32 %v2539, %v2553
      %v2579 = vadd.f32 %v2540, %v2553
      %v2580 = vadd.f32 %v2541, %v2553
      %v2581 = vadd.f32 %v2542, %v2553
      %v2582 = vadd.f32 %v2543, %v2553
      %v2583 = vadd.f32 %v2544, %v2553
      %v2584 = vadd.f32 %v2545, %v2553
      %v2585 = vadd.f32 %v2546, %v2553
      %v2586 = vadd.f32 %v2547, %v2553
      %v2587 = vmul.f32 %v2555, 0.5
      %v2588 = vmul.f32 %v2556, 0.5
      %v2589 = vmul.f32 %v2557, 0.5
      %v2590 = vmul.f32 %v2558, 0.5
      %v2591 = vmul.f32 %v2559, 0.5
      %v2592 = vmul.f32 %v2560, 0.5
      %v2593 = vmul.f32 %v2561, 0.5
      %v2594 = vmul.f32 %v2562, 0.5
      %v2595 = vmul.f32 %v2563, 0.5
      %v2596 = vmul.f32 %v2564, 0.5
      %v2597 = vmul.f32 %v2565, 0.5
      %v2598 = vmul.f32 %v2566, 0.5
      %v2599 = vmul.f32 %v2567, 0.5
      %v2600 = vmul.f32 %v2568, 0.5
      %v2601 = vmul.f32 %v2569, 0.5
      %v2602 = vmul.f32 %v2570, 0.5
      %v2603 = vmul.f32 %v2571, 0.5
      %v2604 = vmul.f32 %v2572, 0.5
      %v2605 = vmul.f32 %v2573, 0.5
      %v2606 = vmul.f32 %v2574, 0.5
      %v2607 = vmul.f32 %v2575, 0.5
      %v2608 = vmul.f32 %v2576, 0.5
      %v2609 = vmul.f32 %v2577, 0.5
      %v2610 = vmul.f32 %v2578, 0.5
      %v2611 = vmul.f32 %v2579, 0.5
      %v2612 = vmul.f32 %v2580, 0.5
      %v2613 = vmul.f32 %v2581, 0.5
      %v2614 = vmul.f32 %v2582, 0.5
      %v2615 = vmul.f32 %v2583, 0.5
      %v2616 = vmul.f32 %v2584, 0.5
      %v2617 = vmul.f32 %v2585, 0.5
      %v2618 = vmul.f32 %v2586, 0.5
      %v2619 = vmul.f32 %v2555, 0.70710677
      %v2620 = vmul.f32 %v2556, 0.70710677
      %v2621 = vmul.f32 %v2557, 0.70710677
      %v2622 = vmul.f32 %v2558, 0.70710677
      %v2623 = vmul.f32 %v2559, 0.70710677
      %v2624 = vmul.f32 %v2560, 0.70710677
      %v2625 = vmul.f32 %v2561, 0.70710677
      %v2626 = vmul.f32 %v2562, 0.70710677
      %v2627 = vmul.f32 %v2563, 0.70710677
      %v2628 = vmul.f32 %v2564, 0.70710677
      %v2629 = vmul.f32 %v2565, 0.70710677
      %v2630 = vmul.f32 %v2566, 0.70710677
      %v2631 = vmul.f32 %v2567, 0.70710677
      %v2632 = vmul.f32 %v2568, 0.70710677
      %v2633 = vmul.f32 %v2569, 0.70710677
      %v2634 = vmul.f32 %v2570, 0.70710677
      %v2635 = vmul.f32 %v2571, 0.70710677
      %v2636 = vmul.f32 %v2572, 0.70710677
      %v2637 = vmul.f32 %v2573, 0.70710677
      %v2638 = vmul.f32 %v2574, 0.70710677
      %v2639 = vmul.f32 %v2575, 0.70710677
      %v2640 = vmul.f32 %v2576, 0.70710677
      %v2641 = vmul.f32 %v2577, 0.70710677
      %v2642 = vmul.f32 %v2578, 0.70710677
      %v2643 = vmul.f32 %v2579, 0.70710677
      %v2644 = vmul.f32 %v2580, 0.70710677
      %v2645 = vmul.f32 %v2581, 0.70710677
      %v2646 = vmul.f32 %v2582, 0.70710677
      %v2647 = vmul.f32 %v2583, 0.70710677
      %v2648 = vmul.f32 %v2584, 0.70710677
      %v2649 = vmul.f32 %v2585, 0.70710677
      %v2650 = vmul.f32 %v2586, 0.70710677
      %vm2651 = vcmp.ge.f32.partialorder %v2619, 0.0
      %vm2652 = vcmp.ge.f32.partialorder %v2620, 0.0
      %vm2653 = vcmp.ge.f32.partialorder %v2621, 0.0
      %vm2654 = vcmp.ge.f32.partialorder %v2622, 0.0
      %vm2655 = vcmp.ge.f32.partialorder %v2623, 0.0
      %vm2656 = vcmp.ge.f32.partialorder %v2624, 0.0
      %vm2657 = vcmp.ge.f32.partialorder %v2625, 0.0
      %vm2658 = vcmp.ge.f32.partialorder %v2626, 0.0
      %vm2659 = vcmp.ge.f32.partialorder %v2627, 0.0
      %vm2660 = vcmp.ge.f32.partialorder %v2628, 0.0
      %vm2661 = vcmp.ge.f32.partialorder %v2629, 0.0
      %vm2662 = vcmp.ge.f32.partialorder %v2630, 0.0
      %vm2663 = vcmp.ge.f32.partialorder %v2631, 0.0
      %vm2664 = vcmp.ge.f32.partialorder %v2632, 0.0
      %vm2665 = vcmp.ge.f32.partialorder %v2633, 0.0
      %vm2666 = vcmp.ge.f32.partialorder %v2634, 0.0
      %vm2667 = vcmp.ge.f32.partialorder %v2635, 0.0
      %vm2668 = vcmp.ge.f32.partialorder %v2636, 0.0
      %vm2669 = vcmp.ge.f32.partialorder %v2637, 0.0
      %vm2670 = vcmp.ge.f32.partialorder %v2638, 0.0
      %vm2671 = vcmp.ge.f32.partialorder %v2639, 0.0
      %vm2672 = vcmp.ge.f32.partialorder %v2640, 0.0
      %vm2673 = vcmp.ge.f32.partialorder %v2641, 0.0
      %vm2674 = vcmp.ge.f32.partialorder %v2642, 0.0
      %vm2675 = vcmp.ge.f32.partialorder %v2643, 0.0
      %vm2676 = vcmp.ge.f32.partialorder %v2644, 0.0
      %vm2677 = vcmp.ge.f32.partialorder %v2645, 0.0
      %vm2678 = vcmp.ge.f32.partialorder %v2646, 0.0
      %vm2679 = vcmp.ge.f32.partialorder %v2647, 0.0
      %vm2680 = vcmp.ge.f32.partialorder %v2648, 0.0
      %vm2681 = vcmp.ge.f32.partialorder %v2649, 0.0
      %vm2682 = vcmp.ge.f32.partialorder %v2650, 0.0
      %v2683 = vsel %vm2651, 1.0, -1.0
      %v2684 = vsel %vm2652, 1.0, -1.0
      %v2685 = vsel %vm2653, 1.0, -1.0
      %v2686 = vsel %vm2654, 1.0, -1.0
      %v2687 = vsel %vm2655, 1.0, -1.0
      %v2688 = vsel %vm2656, 1.0, -1.0
      %v2689 = vsel %vm2657, 1.0, -1.0
      %v2690 = vsel %vm2658, 1.0, -1.0
      %v2691 = vsel %vm2659, 1.0, -1.0
      %v2692 = vsel %vm2660, 1.0, -1.0
      %v2693 = vsel %vm2661, 1.0, -1.0
      %v2694 = vsel %vm2662, 1.0, -1.0
      %v2695 = vsel %vm2663, 1.0, -1.0
      %v2696 = vsel %vm2664, 1.0, -1.0
      %v2697 = vsel %vm2665, 1.0, -1.0
      %v2698 = vsel %vm2666, 1.0, -1.0
      %v2699 = vsel %vm2667, 1.0, -1.0
      %v2700 = vsel %vm2668, 1.0, -1.0
      %v2701 = vsel %vm2669, 1.0, -1.0
      %v2702 = vsel %vm2670, 1.0, -1.0
      %v2703 = vsel %vm2671, 1.0, -1.0
      %v2704 = vsel %vm2672, 1.0, -1.0
      %v2705 = vsel %vm2673, 1.0, -1.0
      %v2706 = vsel %vm2674, 1.0, -1.0
      %v2707 = vsel %vm2675, 1.0, -1.0
      %v2708 = vsel %vm2676, 1.0, -1.0
      %v2709 = vsel %vm2677, 1.0, -1.0
      %v2710 = vsel %vm2678, 1.0, -1.0
      %v2711 = vsel %vm2679, 1.0, -1.0
      %v2712 = vsel %vm2680, 1.0, -1.0
      %v2713 = vsel %vm2681, 1.0, -1.0
      %v2714 = vsel %vm2682, 1.0, -1.0
      %v2715 = vand.u32 2147483647, %v2619
      %v2716 = vand.u32 2147483647, %v2620
      %v2717 = vand.u32 2147483647, %v2621
      %v2718 = vand.u32 2147483647, %v2622
      %v2719 = vand.u32 2147483647, %v2623
      %v2720 = vand.u32 2147483647, %v2624
      %v2721 = vand.u32 2147483647, %v2625
      %v2722 = vand.u32 2147483647, %v2626
      %v2723 = vand.u32 2147483647, %v2627
      %v2724 = vand.u32 2147483647, %v2628
      %v2725 = vand.u32 2147483647, %v2629
      %v2726 = vand.u32 2147483647, %v2630
      %v2727 = vand.u32 2147483647, %v2631
      %v2728 = vand.u32 2147483647, %v2632
      %v2729 = vand.u32 2147483647, %v2633
      %v2730 = vand.u32 2147483647, %v2634
      %v2731 = vand.u32 2147483647, %v2635
      %v2732 = vand.u32 2147483647, %v2636
      %v2733 = vand.u32 2147483647, %v2637
      %v2734 = vand.u32 2147483647, %v2638
      %v2735 = vand.u32 2147483647, %v2639
      %v2736 = vand.u32 2147483647, %v2640
      %v2737 = vand.u32 2147483647, %v2641
      %v2738 = vand.u32 2147483647, %v2642
      %v2739 = vand.u32 2147483647, %v2643
      %v2740 = vand.u32 2147483647, %v2644
      %v2741 = vand.u32 2147483647, %v2645
      %v2742 = vand.u32 2147483647, %v2646
      %v2743 = vand.u32 2147483647, %v2647
      %v2744 = vand.u32 2147483647, %v2648
      %v2745 = vand.u32 2147483647, %v2649
      %v2746 = vand.u32 2147483647, %v2650
      %v2747 = vmul.f32 %v2715, 0.3275911
      %v2748 = vmul.f32 %v2716, 0.3275911
      %v2749 = vmul.f32 %v2717, 0.3275911
      %v2750 = vmul.f32 %v2718, 0.3275911
      %v2751 = vmul.f32 %v2719, 0.3275911
      %v2752 = vmul.f32 %v2720, 0.3275911
      %v2753 = vmul.f32 %v2721, 0.3275911
      %v2754 = vmul.f32 %v2722, 0.3275911
      %v2755 = vmul.f32 %v2723, 0.3275911
      %v2756 = vmul.f32 %v2724, 0.3275911
      %v2757 = vmul.f32 %v2725, 0.3275911
      %v2758 = vmul.f32 %v2726, 0.3275911
      %v2759 = vmul.f32 %v2727, 0.3275911
      %v2760 = vmul.f32 %v2728, 0.3275911
      %v2761 = vmul.f32 %v2729, 0.3275911
      %v2762 = vmul.f32 %v2730, 0.3275911
      %v2763 = vmul.f32 %v2731, 0.3275911
      %v2764 = vmul.f32 %v2732, 0.3275911
      %v2765 = vmul.f32 %v2733, 0.3275911
      %v2766 = vmul.f32 %v2734, 0.3275911
      %v2767 = vmul.f32 %v2735, 0.3275911
      %v2768 = vmul.f32 %v2736, 0.3275911
      %v2769 = vmul.f32 %v2737, 0.3275911
      %v2770 = vmul.f32 %v2738, 0.3275911
      %v2771 = vmul.f32 %v2739, 0.3275911
      %v2772 = vmul.f32 %v2740, 0.3275911
      %v2773 = vmul.f32 %v2741, 0.3275911
      %v2774 = vmul.f32 %v2742, 0.3275911
      %v2775 = vmul.f32 %v2743, 0.3275911
      %v2776 = vmul.f32 %v2744, 0.3275911
      %v2777 = vmul.f32 %v2745, 0.3275911
      %v2778 = vmul.f32 %v2746, 0.3275911
      %v2779 = vadd.f32 %v2747, 1.0
      %v2780 = vadd.f32 %v2748, 1.0
      %v2781 = vadd.f32 %v2749, 1.0
      %v2782 = vadd.f32 %v2750, 1.0
      %v2783 = vadd.f32 %v2751, 1.0
      %v2784 = vadd.f32 %v2752, 1.0
      %v2785 = vadd.f32 %v2753, 1.0
      %v2786 = vadd.f32 %v2754, 1.0
      %v2787 = vadd.f32 %v2755, 1.0
      %v2788 = vadd.f32 %v2756, 1.0
      %v2789 = vadd.f32 %v2757, 1.0
      %v2790 = vadd.f32 %v2758, 1.0
      %v2791 = vadd.f32 %v2759, 1.0
      %v2792 = vadd.f32 %v2760, 1.0
      %v2793 = vadd.f32 %v2761, 1.0
      %v2794 = vadd.f32 %v2762, 1.0
      %v2795 = vadd.f32 %v2763, 1.0
      %v2796 = vadd.f32 %v2764, 1.0
      %v2797 = vadd.f32 %v2765, 1.0
      %v2798 = vadd.f32 %v2766, 1.0
      %v2799 = vadd.f32 %v2767, 1.0
      %v2800 = vadd.f32 %v2768, 1.0
      %v2801 = vadd.f32 %v2769, 1.0
      %v2802 = vadd.f32 %v2770, 1.0
      %v2803 = vadd.f32 %v2771, 1.0
      %v2804 = vadd.f32 %v2772, 1.0
      %v2805 = vadd.f32 %v2773, 1.0
      %v2806 = vadd.f32 %v2774, 1.0
      %v2807 = vadd.f32 %v2775, 1.0
      %v2808 = vadd.f32 %v2776, 1.0
      %v2809 = vadd.f32 %v2777, 1.0
      %v2810 = vadd.f32 %v2778, 1.0
      %v2811 = vrcp.pop %v2779
      %v2812 = vmul.f32 1.0, %v2811
      %v2813 = vrcp.pop %v2780
      %v2814 = vmul.f32 1.0, %v2813
      %v2815 = vrcp.pop %v2781
      %v2816 = vmul.f32 1.0, %v2815
      %v2817 = vrcp.pop %v2782
      %v2818 = vmul.f32 1.0, %v2817
      %v2819 = vrcp.pop %v2783
      %v2820 = vmul.f32 1.0, %v2819
      %v2821 = vrcp.pop %v2784
      %v2822 = vmul.f32 1.0, %v2821
      %v2823 = vrcp.pop %v2785
      %v2824 = vmul.f32 1.0, %v2823
      %v2825 = vrcp.pop %v2786
      %v2826 = vmul.f32 1.0, %v2825
      %v2827 = vrcp.pop %v2787
      %v2828 = vmul.f32 1.0, %v2827
      %v2829 = vrcp.pop %v2788
      %v2830 = vmul.f32 1.0, %v2829
      %v2831 = vrcp.pop %v2789
      %v2832 = vmul.f32 1.0, %v2831
      %v2833 = vrcp.pop %v2790
      %v2834 = vmul.f32 1.0, %v2833
      %v2835 = vrcp.pop %v2791
      %v2836 = vmul.f32 1.0, %v2835
      %v2837 = vrcp.pop %v2792
      %v2838 = vmul.f32 1.0, %v2837
      %v2839 = vrcp.pop %v2793
      %v2840 = vmul.f32 1.0, %v2839
      %v2841 = vrcp.pop %v2794
      %v2842 = vmul.f32 1.0, %v2841
      %v2843 = vrcp.pop %v2795
      %v2844 = vmul.f32 1.0, %v2843
      %v2845 = vrcp.pop %v2796
      %v2846 = vmul.f32 1.0, %v2845
      %v2847 = vrcp.pop %v2797
      %v2848 = vmul.f32 1.0, %v2847
      %v2849 = vrcp.pop %v2798
      %v2850 = vmul.f32 1.0, %v2849
      %v2851 = vrcp.pop %v2799
      %v2852 = vmul.f32 1.0, %v2851
      %v2853 = vrcp.pop %v2800
      %v2854 = vmul.f32 1.0, %v2853
      %v2855 = vrcp.pop %v2801
      %v2856 = vmul.f32 1.0, %v2855
      %v2857 = vrcp.pop %v2802
      %v2858 = vmul.f32 1.0, %v2857
      %v2859 = vrcp.pop %v2803
      %v2860 = vmul.f32 1.0, %v2859
      %v2861 = vrcp.pop %v2804
      %v2862 = vmul.f32 1.0, %v2861
      %v2863 = vrcp.pop %v2805
      %v2864 = vmul.f32 1.0, %v2863
      %v2865 = vrcp.pop %v2806
      %v2866 = vmul.f32 1.0, %v2865
      %v2867 = vrcp.pop %v2807
      %v2868 = vmul.f32 1.0, %v2867
      %v2869 = vrcp.pop %v2808
      %v2870 = vmul.f32 1.0, %v2869
      %v2871 = vrcp.pop %v2809
      %v2872 = vmul.f32 1.0, %v2871
      %v2873 = vrcp.pop %v2810
      %v2874 = vmul.f32 1.0, %v2873
      %v2875 = vmul.f32 %v2812, 1.0614054
      %v2876 = vmul.f32 %v2814, 1.0614054
      %v2877 = vmul.f32 %v2816, 1.0614054
      %v2878 = vmul.f32 %v2818, 1.0614054
      %v2879 = vmul.f32 %v2820, 1.0614054
      %v2880 = vmul.f32 %v2822, 1.0614054
      %v2881 = vmul.f32 %v2824, 1.0614054
      %v2882 = vmul.f32 %v2826, 1.0614054
      %v2883 = vmul.f32 %v2828, 1.0614054
      %v2884 = vmul.f32 %v2830, 1.0614054
      %v2885 = vmul.f32 %v2832, 1.0614054
      %v2886 = vmul.f32 %v2834, 1.0614054
      %v2887 = vmul.f32 %v2836, 1.0614054
      %v2888 = vmul.f32 %v2838, 1.0614054
      %v2889 = vmul.f32 %v2840, 1.0614054
      %v2890 = vmul.f32 %v2842, 1.0614054
      %v2891 = vmul.f32 %v2844, 1.0614054
      %v2892 = vmul.f32 %v2846, 1.0614054
      %v2893 = vmul.f32 %v2848, 1.0614054
      %v2894 = vmul.f32 %v2850, 1.0614054
      %v2895 = vmul.f32 %v2852, 1.0614054
      %v2896 = vmul.f32 %v2854, 1.0614054
      %v2897 = vmul.f32 %v2856, 1.0614054
      %v2898 = vmul.f32 %v2858, 1.0614054
      %v2899 = vmul.f32 %v2860, 1.0614054
      %v2900 = vmul.f32 %v2862, 1.0614054
      %v2901 = vmul.f32 %v2864, 1.0614054
      %v2902 = vmul.f32 %v2866, 1.0614054
      %v2903 = vmul.f32 %v2868, 1.0614054
      %v2904 = vmul.f32 %v2870, 1.0614054
      %v2905 = vmul.f32 %v2872, 1.0614054
      %v2906 = vmul.f32 %v2874, 1.0614054
      %v2907 = vadd.f32 %v2875, -1.4531521
      %v2908 = vadd.f32 %v2876, -1.4531521
      %v2909 = vadd.f32 %v2877, -1.4531521
      %v2910 = vadd.f32 %v2878, -1.4531521
      %v2911 = vadd.f32 %v2879, -1.4531521
      %v2912 = vadd.f32 %v2880, -1.4531521
      %v2913 = vadd.f32 %v2881, -1.4531521
      %v2914 = vadd.f32 %v2882, -1.4531521
      %v2915 = vadd.f32 %v2883, -1.4531521
      %v2916 = vadd.f32 %v2884, -1.4531521
      %v2917 = vadd.f32 %v2885, -1.4531521
      %v2918 = vadd.f32 %v2886, -1.4531521
      %v2919 = vadd.f32 %v2887, -1.4531521
      %v2920 = vadd.f32 %v2888, -1.4531521
      %v2921 = vadd.f32 %v2889, -1.4531521
      %v2922 = vadd.f32 %v2890, -1.4531521
      %v2923 = vadd.f32 %v2891, -1.4531521
      %v2924 = vadd.f32 %v2892, -1.4531521
      %v2925 = vadd.f32 %v2893, -1.4531521
      %v2926 = vadd.f32 %v2894, -1.4531521
      %v2927 = vadd.f32 %v2895, -1.4531521
      %v2928 = vadd.f32 %v2896, -1.4531521
      %v2929 = vadd.f32 %v2897, -1.4531521
      %v2930 = vadd.f32 %v2898, -1.4531521
      %v2931 = vadd.f32 %v2899, -1.4531521
      %v2932 = vadd.f32 %v2900, -1.4531521
      %v2933 = vadd.f32 %v2901, -1.4531521
      %v2934 = vadd.f32 %v2902, -1.4531521
      %v2935 = vadd.f32 %v2903, -1.4531521
      %v2936 = vadd.f32 %v2904, -1.4531521
      %v2937 = vadd.f32 %v2905, -1.4531521
      %v2938 = vadd.f32 %v2906, -1.4531521
      %v2939 = vmul.f32 %v2907, %v2812
      %v2940 = vmul.f32 %v2908, %v2814
      %v2941 = vmul.f32 %v2909, %v2816
      %v2942 = vmul.f32 %v2910, %v2818
      %v2943 = vmul.f32 %v2911, %v2820
      %v2944 = vmul.f32 %v2912, %v2822
      %v2945 = vmul.f32 %v2913, %v2824
      %v2946 = vmul.f32 %v2914, %v2826
      %v2947 = vmul.f32 %v2915, %v2828
      %v2948 = vmul.f32 %v2916, %v2830
      %v2949 = vmul.f32 %v2917, %v2832
      %v2950 = vmul.f32 %v2918, %v2834
      %v2951 = vmul.f32 %v2919, %v2836
      %v2952 = vmul.f32 %v2920, %v2838
      %v2953 = vmul.f32 %v2921, %v2840
      %v2954 = vmul.f32 %v2922, %v2842
      %v2955 = vmul.f32 %v2923, %v2844
      %v2956 = vmul.f32 %v2924, %v2846
      %v2957 = vmul.f32 %v2925, %v2848
      %v2958 = vmul.f32 %v2926, %v2850
      %v2959 = vmul.f32 %v2927, %v2852
      %v2960 = vmul.f32 %v2928, %v2854
      %v2961 = vmul.f32 %v2929, %v2856
      %v2962 = vmul.f32 %v2930, %v2858
      %v2963 = vmul.f32 %v2931, %v2860
      %v2964 = vmul.f32 %v2932, %v2862
      %v2965 = vmul.f32 %v2933, %v2864
      %v2966 = vmul.f32 %v2934, %v2866
      %v2967 = vmul.f32 %v2935, %v2868
      %v2968 = vmul.f32 %v2936, %v2870
      %v2969 = vmul.f32 %v2937, %v2872
      %v2970 = vmul.f32 %v2938, %v2874
      %v2971 = vadd.f32 %v2939, 1.4214138
      %v2972 = vadd.f32 %v2940, 1.4214138
      %v2973 = vadd.f32 %v2941, 1.4214138
      %v2974 = vadd.f32 %v2942, 1.4214138
      %v2975 = vadd.f32 %v2943, 1.4214138
      %v2976 = vadd.f32 %v2944, 1.4214138
      %v2977 = vadd.f32 %v2945, 1.4214138
      %v2978 = vadd.f32 %v2946, 1.4214138
      %v2979 = vadd.f32 %v2947, 1.4214138
      %v2980 = vadd.f32 %v2948, 1.4214138
      %v2981 = vadd.f32 %v2949, 1.4214138
      %v2982 = vadd.f32 %v2950, 1.4214138
      %v2983 = vadd.f32 %v2951, 1.4214138
      %v2984 = vadd.f32 %v2952, 1.4214138
      %v2985 = vadd.f32 %v2953, 1.4214138
      %v2986 = vadd.f32 %v2954, 1.4214138
      %v2987 = vadd.f32 %v2955, 1.4214138
      %v2988 = vadd.f32 %v2956, 1.4214138
      %v2989 = vadd.f32 %v2957, 1.4214138
      %v2990 = vadd.f32 %v2958, 1.4214138
      %v2991 = vadd.f32 %v2959, 1.4214138
      %v2992 = vadd.f32 %v2960, 1.4214138
      %v2993 = vadd.f32 %v2961, 1.4214138
      %v2994 = vadd.f32 %v2962, 1.4214138
      %v2995 = vadd.f32 %v2963, 1.4214138
      %v2996 = vadd.f32 %v2964, 1.4214138
      %v2997 = vadd.f32 %v2965, 1.4214138
      %v2998 = vadd.f32 %v2966, 1.4214138
      %v2999 = vadd.f32 %v2967, 1.4214138
      %v3000 = vadd.f32 %v2968, 1.4214138
      %v3001 = vadd.f32 %v2969, 1.4214138
      %v3002 = vadd.f32 %v2970, 1.4214138
      %v3003 = vmul.f32 %v2971, %v2812
      %v3004 = vmul.f32 %v2972, %v2814
      %v3005 = vmul.f32 %v2973, %v2816
      %v3006 = vmul.f32 %v2974, %v2818
      %v3007 = vmul.f32 %v2975, %v2820
      %v3008 = vmul.f32 %v2976, %v2822
      %v3009 = vmul.f32 %v2977, %v2824
      %v3010 = vmul.f32 %v2978, %v2826
      %v3011 = vmul.f32 %v2979, %v2828
      %v3012 = vmul.f32 %v2980, %v2830
      %v3013 = vmul.f32 %v2981, %v2832
      %v3014 = vmul.f32 %v2982, %v2834
      %v3015 = vmul.f32 %v2983, %v2836
      %v3016 = vmul.f32 %v2984, %v2838
      %v3017 = vmul.f32 %v2985, %v2840
      %v3018 = vmul.f32 %v2986, %v2842
      %v3019 = vmul.f32 %v2987, %v2844
      %v3020 = vmul.f32 %v2988, %v2846
      %v3021 = vmul.f32 %v2989, %v2848
      %v3022 = vmul.f32 %v2990, %v2850
      %v3023 = vmul.f32 %v2991, %v2852
      %v3024 = vmul.f32 %v2992, %v2854
      %v3025 = vmul.f32 %v2993, %v2856
      %v3026 = vmul.f32 %v2994, %v2858
      %v3027 = vmul.f32 %v2995, %v2860
      %v3028 = vmul.f32 %v2996, %v2862
      %v3029 = vmul.f32 %v2997, %v2864
      %v3030 = vmul.f32 %v2998, %v2866
      %v3031 = vmul.f32 %v2999, %v2868
      %v3032 = vmul.f32 %v3000, %v2870
      %v3033 = vmul.f32 %v3001, %v2872
      %v3034 = vmul.f32 %v3002, %v2874
      %v3035 = vadd.f32 %v3003, -0.28449672
      %v3036 = vadd.f32 %v3004, -0.28449672
      %v3037 = vadd.f32 %v3005, -0.28449672
      %v3038 = vadd.f32 %v3006, -0.28449672
      %v3039 = vadd.f32 %v3007, -0.28449672
      %v3040 = vadd.f32 %v3008, -0.28449672
      %v3041 = vadd.f32 %v3009, -0.28449672
      %v3042 = vadd.f32 %v3010, -0.28449672
      %v3043 = vadd.f32 %v3011, -0.28449672
      %v3044 = vadd.f32 %v3012, -0.28449672
      %v3045 = vadd.f32 %v3013, -0.28449672
      %v3046 = vadd.f32 %v3014, -0.28449672
      %v3047 = vadd.f32 %v3015, -0.28449672
      %v3048 = vadd.f32 %v3016, -0.28449672
      %v3049 = vadd.f32 %v3017, -0.28449672
      %v3050 = vadd.f32 %v3018, -0.28449672
      %v3051 = vadd.f32 %v3019, -0.28449672
      %v3052 = vadd.f32 %v3020, -0.28449672
      %v3053 = vadd.f32 %v3021, -0.28449672
      %v3054 = vadd.f32 %v3022, -0.28449672
      %v3055 = vadd.f32 %v3023, -0.28449672
      %v3056 = vadd.f32 %v3024, -0.28449672
      %v3057 = vadd.f32 %v3025, -0.28449672
      %v3058 = vadd.f32 %v3026, -0.28449672
      %v3059 = vadd.f32 %v3027, -0.28449672
      %v3060 = vadd.f32 %v3028, -0.28449672
      %v3061 = vadd.f32 %v3029, -0.28449672
      %v3062 = vadd.f32 %v3030, -0.28449672
      %v3063 = vadd.f32 %v3031, -0.28449672
      %v3064 = vadd.f32 %v3032, -0.28449672
      %v3065 = vadd.f32 %v3033, -0.28449672
      %v3066 = vadd.f32 %v3034, -0.28449672
      %v3067 = vmul.f32 %v3035, %v2812
      %v3068 = vmul.f32 %v3036, %v2814
      %v3069 = vmul.f32 %v3037, %v2816
      %v3070 = vmul.f32 %v3038, %v2818
      %v3071 = vmul.f32 %v3039, %v2820
      %v3072 = vmul.f32 %v3040, %v2822
      %v3073 = vmul.f32 %v3041, %v2824
      %v3074 = vmul.f32 %v3042, %v2826
      %v3075 = vmul.f32 %v3043, %v2828
      %v3076 = vmul.f32 %v3044, %v2830
      %v3077 = vmul.f32 %v3045, %v2832
      %v3078 = vmul.f32 %v3046, %v2834
      %v3079 = vmul.f32 %v3047, %v2836
      %v3080 = vmul.f32 %v3048, %v2838
      %v3081 = vmul.f32 %v3049, %v2840
      %v3082 = vmul.f32 %v3050, %v2842
      %v3083 = vmul.f32 %v3051, %v2844
      %v3084 = vmul.f32 %v3052, %v2846
      %v3085 = vmul.f32 %v3053, %v2848
      %v3086 = vmul.f32 %v3054, %v2850
      %v3087 = vmul.f32 %v3055, %v2852
      %v3088 = vmul.f32 %v3056, %v2854
      %v3089 = vmul.f32 %v3057, %v2856
      %v3090 = vmul.f32 %v3058, %v2858
      %v3091 = vmul.f32 %v3059, %v2860
      %v3092 = vmul.f32 %v3060, %v2862
      %v3093 = vmul.f32 %v3061, %v2864
      %v3094 = vmul.f32 %v3062, %v2866
      %v3095 = vmul.f32 %v3063, %v2868
      %v3096 = vmul.f32 %v3064, %v2870
      %v3097 = vmul.f32 %v3065, %v2872
      %v3098 = vmul.f32 %v3066, %v2874
      %v3099 = vadd.f32 %v3067, 0.2548296
      %v3100 = vadd.f32 %v3068, 0.2548296
      %v3101 = vadd.f32 %v3069, 0.2548296
      %v3102 = vadd.f32 %v3070, 0.2548296
      %v3103 = vadd.f32 %v3071, 0.2548296
      %v3104 = vadd.f32 %v3072, 0.2548296
      %v3105 = vadd.f32 %v3073, 0.2548296
      %v3106 = vadd.f32 %v3074, 0.2548296
      %v3107 = vadd.f32 %v3075, 0.2548296
      %v3108 = vadd.f32 %v3076, 0.2548296
      %v3109 = vadd.f32 %v3077, 0.2548296
      %v3110 = vadd.f32 %v3078, 0.2548296
      %v3111 = vadd.f32 %v3079, 0.2548296
      %v3112 = vadd.f32 %v3080, 0.2548296
      %v3113 = vadd.f32 %v3081, 0.2548296
      %v3114 = vadd.f32 %v3082, 0.2548296
      %v3115 = vadd.f32 %v3083, 0.2548296
      %v3116 = vadd.f32 %v3084, 0.2548296
      %v3117 = vadd.f32 %v3085, 0.2548296
      %v3118 = vadd.f32 %v3086, 0.2548296
      %v3119 = vadd.f32 %v3087, 0.2548296
      %v3120 = vadd.f32 %v3088, 0.2548296
      %v3121 = vadd.f32 %v3089, 0.2548296
      %v3122 = vadd.f32 %v3090, 0.2548296
      %v3123 = vadd.f32 %v3091, 0.2548296
      %v3124 = vadd.f32 %v3092, 0.2548296
      %v3125 = vadd.f32 %v3093, 0.2548296
      %v3126 = vadd.f32 %v3094, 0.2548296
      %v3127 = vadd.f32 %v3095, 0.2548296
      %v3128 = vadd.f32 %v3096, 0.2548296
      %v3129 = vadd.f32 %v3097, 0.2548296
      %v3130 = vadd.f32 %v3098, 0.2548296
      %v3131 = vmul.f32 %v3099, %v2812
      %v3132 = vmul.f32 %v3100, %v2814
      %v3133 = vmul.f32 %v3101, %v2816
      %v3134 = vmul.f32 %v3102, %v2818
      %v3135 = vmul.f32 %v3103, %v2820
      %v3136 = vmul.f32 %v3104, %v2822
      %v3137 = vmul.f32 %v3105, %v2824
      %v3138 = vmul.f32 %v3106, %v2826
      %v3139 = vmul.f32 %v3107, %v2828
      %v3140 = vmul.f32 %v3108, %v2830
      %v3141 = vmul.f32 %v3109, %v2832
      %v3142 = vmul.f32 %v3110, %v2834
      %v3143 = vmul.f32 %v3111, %v2836
      %v3144 = vmul.f32 %v3112, %v2838
      %v3145 = vmul.f32 %v3113, %v2840
      %v3146 = vmul.f32 %v3114, %v2842
      %v3147 = vmul.f32 %v3115, %v2844
      %v3148 = vmul.f32 %v3116, %v2846
      %v3149 = vmul.f32 %v3117, %v2848
      %v3150 = vmul.f32 %v3118, %v2850
      %v3151 = vmul.f32 %v3119, %v2852
      %v3152 = vmul.f32 %v3120, %v2854
      %v3153 = vmul.f32 %v3121, %v2856
      %v3154 = vmul.f32 %v3122, %v2858
      %v3155 = vmul.f32 %v3123, %v2860
      %v3156 = vmul.f32 %v3124, %v2862
      %v3157 = vmul.f32 %v3125, %v2864
      %v3158 = vmul.f32 %v3126, %v2866
      %v3159 = vmul.f32 %v3127, %v2868
      %v3160 = vmul.f32 %v3128, %v2870
      %v3161 = vmul.f32 %v3129, %v2872
      %v3162 = vmul.f32 %v3130, %v2874
      %v3163 = vsub.f32 0.0, %v2715
      %v3164 = vsub.f32 0.0, %v2716
      %v3165 = vsub.f32 0.0, %v2717
      %v3166 = vsub.f32 0.0, %v2718
      %v3167 = vsub.f32 0.0, %v2719
      %v3168 = vsub.f32 0.0, %v2720
      %v3169 = vsub.f32 0.0, %v2721
      %v3170 = vsub.f32 0.0, %v2722
      %v3171 = vsub.f32 0.0, %v2723
      %v3172 = vsub.f32 0.0, %v2724
      %v3173 = vsub.f32 0.0, %v2725
      %v3174 = vsub.f32 0.0, %v2726
      %v3175 = vsub.f32 0.0, %v2727
      %v3176 = vsub.f32 0.0, %v2728
      %v3177 = vsub.f32 0.0, %v2729
      %v3178 = vsub.f32 0.0, %v2730
      %v3179 = vsub.f32 0.0, %v2731
      %v3180 = vsub.f32 0.0, %v2732
      %v3181 = vsub.f32 0.0, %v2733
      %v3182 = vsub.f32 0.0, %v2734
      %v3183 = vsub.f32 0.0, %v2735
      %v3184 = vsub.f32 0.0, %v2736
      %v3185 = vsub.f32 0.0, %v2737
      %v3186 = vsub.f32 0.0, %v2738
      %v3187 = vsub.f32 0.0, %v2739
      %v3188 = vsub.f32 0.0, %v2740
      %v3189 = vsub.f32 0.0, %v2741
      %v3190 = vsub.f32 0.0, %v2742
      %v3191 = vsub.f32 0.0, %v2743
      %v3192 = vsub.f32 0.0, %v2744
      %v3193 = vsub.f32 0.0, %v2745
      %v3194 = vsub.f32 0.0, %v2746
      %v3195 = vmul.f32 %v3163, %v2715
      %v3196 = vmul.f32 %v3164, %v2716
      %v3197 = vmul.f32 %v3165, %v2717
      %v3198 = vmul.f32 %v3166, %v2718
      %v3199 = vmul.f32 %v3167, %v2719
      %v3200 = vmul.f32 %v3168, %v2720
      %v3201 = vmul.f32 %v3169, %v2721
      %v3202 = vmul.f32 %v3170, %v2722
      %v3203 = vmul.f32 %v3171, %v2723
      %v3204 = vmul.f32 %v3172, %v2724
      %v3205 = vmul.f32 %v3173, %v2725
      %v3206 = vmul.f32 %v3174, %v2726
      %v3207 = vmul.f32 %v3175, %v2727
      %v3208 = vmul.f32 %v3176, %v2728
      %v3209 = vmul.f32 %v3177, %v2729
      %v3210 = vmul.f32 %v3178, %v2730
      %v3211 = vmul.f32 %v3179, %v2731
      %v3212 = vmul.f32 %v3180, %v2732
      %v3213 = vmul.f32 %v3181, %v2733
      %v3214 = vmul.f32 %v3182, %v2734
      %v3215 = vmul.f32 %v3183, %v2735
      %v3216 = vmul.f32 %v3184, %v2736
      %v3217 = vmul.f32 %v3185, %v2737
      %v3218 = vmul.f32 %v3186, %v2738
      %v3219 = vmul.f32 %v3187, %v2739
      %v3220 = vmul.f32 %v3188, %v2740
      %v3221 = vmul.f32 %v3189, %v2741
      %v3222 = vmul.f32 %v3190, %v2742
      %v3223 = vmul.f32 %v3191, %v2743
      %v3224 = vmul.f32 %v3192, %v2744
      %v3225 = vmul.f32 %v3193, %v2745
      %v3226 = vmul.f32 %v3194, %v2746
      %v3227 = vmul.f32 %v3195, 1.442695
      %v3228 = vpow.pop %v3227
      %v3229 = vmul.f32 %v3196, 1.442695
      %v3230 = vpow.pop %v3229
      %v3231 = vmul.f32 %v3197, 1.442695
      %v3232 = vpow.pop %v3231
      %v3233 = vmul.f32 %v3198, 1.442695
      %v3234 = vpow.pop %v3233
      %v3235 = vmul.f32 %v3199, 1.442695
      %v3236 = vpow.pop %v3235
      %v3237 = vmul.f32 %v3200, 1.442695
      %v3238 = vpow.pop %v3237
      %v3239 = vmul.f32 %v3201, 1.442695
      %v3240 = vpow.pop %v3239
      %v3241 = vmul.f32 %v3202, 1.442695
      %v3242 = vpow.pop %v3241
      %v3243 = vmul.f32 %v3203, 1.442695
      %v3244 = vpow.pop %v3243
      %v3245 = vmul.f32 %v3204, 1.442695
      %v3246 = vpow.pop %v3245
      %v3247 = vmul.f32 %v3205, 1.442695
      %v3248 = vpow.pop %v3247
      %v3249 = vmul.f32 %v3206, 1.442695
      %v3250 = vpow.pop %v3249
      %v3251 = vmul.f32 %v3207, 1.442695
      %v3252 = vpow.pop %v3251
      %v3253 = vmul.f32 %v3208, 1.442695
      %v3254 = vpow.pop %v3253
      %v3255 = vmul.f32 %v3209, 1.442695
      %v3256 = vpow.pop %v3255
      %v3257 = vmul.f32 %v3210, 1.442695
      %v3258 = vpow.pop %v3257
      %v3259 = vmul.f32 %v3211, 1.442695
      %v3260 = vpow.pop %v3259
      %v3261 = vmul.f32 %v3212, 1.442695
      %v3262 = vpow.pop %v3261
      %v3263 = vmul.f32 %v3213, 1.442695
      %v3264 = vpow.pop %v3263
      %v3265 = vmul.f32 %v3214, 1.442695
      %v3266 = vpow.pop %v3265
      %v3267 = vmul.f32 %v3215, 1.442695
      %v3268 = vpow.pop %v3267
      %v3269 = vmul.f32 %v3216, 1.442695
      %v3270 = vpow.pop %v3269
      %v3271 = vmul.f32 %v3217, 1.442695
      %v3272 = vpow.pop %v3271
      %v3273 = vmul.f32 %v3218, 1.442695
      %v3274 = vpow.pop %v3273
      %v3275 = vmul.f32 %v3219, 1.442695
      %v3276 = vpow.pop %v3275
      %v3277 = vmul.f32 %v3220, 1.442695
      %v3278 = vpow.pop %v3277
      %v3279 = vmul.f32 %v3221, 1.442695
      %v3280 = vpow.pop %v3279
      %v3281 = vmul.f32 %v3222, 1.442695
      %v3282 = vpow.pop %v3281
      %v3283 = vmul.f32 %v3223, 1.442695
      %v3284 = vpow.pop %v3283
      %v3285 = vmul.f32 %v3224, 1.442695
      %v3286 = vpow.pop %v3285
      %v3287 = vmul.f32 %v3225, 1.442695
      %v3288 = vpow.pop %v3287
      %v3289 = vmul.f32 %v3226, 1.442695
      %v3290 = vpow.pop %v3289
      %v3291 = vmul.f32 %v3131, %v3228
      %v3292 = vmul.f32 %v3132, %v3230
      %v3293 = vmul.f32 %v3133, %v3232
      %v3294 = vmul.f32 %v3134, %v3234
      %v3295 = vmul.f32 %v3135, %v3236
      %v3296 = vmul.f32 %v3136, %v3238
      %v3297 = vmul.f32 %v3137, %v3240
      %v3298 = vmul.f32 %v3138, %v3242
      %v3299 = vmul.f32 %v3139, %v3244
      %v3300 = vmul.f32 %v3140, %v3246
      %v3301 = vmul.f32 %v3141, %v3248
      %v3302 = vmul.f32 %v3142, %v3250
      %v3303 = vmul.f32 %v3143, %v3252
      %v3304 = vmul.f32 %v3144, %v3254
      %v3305 = vmul.f32 %v3145, %v3256
      %v3306 = vmul.f32 %v3146, %v3258
      %v3307 = vmul.f32 %v3147, %v3260
      %v3308 = vmul.f32 %v3148, %v3262
      %v3309 = vmul.f32 %v3149, %v3264
      %v3310 = vmul.f32 %v3150, %v3266
      %v3311 = vmul.f32 %v3151, %v3268
      %v3312 = vmul.f32 %v3152, %v3270
      %v3313 = vmul.f32 %v3153, %v3272
      %v3314 = vmul.f32 %v3154, %v3274
      %v3315 = vmul.f32 %v3155, %v3276
      %v3316 = vmul.f32 %v3156, %v3278
      %v3317 = vmul.f32 %v3157, %v3280
      %v3318 = vmul.f32 %v3158, %v3282
      %v3319 = vmul.f32 %v3159, %v3284
      %v3320 = vmul.f32 %v3160, %v3286
      %v3321 = vmul.f32 %v3161, %v3288
      %v3322 = vmul.f32 %v3162, %v3290
      %v3323 = vsub.f32 1.0, %v3291
      %v3324 = vsub.f32 1.0, %v3292
      %v3325 = vsub.f32 1.0, %v3293
      %v3326 = vsub.f32 1.0, %v3294
      %v3327 = vsub.f32 1.0, %v3295
      %v3328 = vsub.f32 1.0, %v3296
      %v3329 = vsub.f32 1.0, %v3297
      %v3330 = vsub.f32 1.0, %v3298
      %v3331 = vsub.f32 1.0, %v3299
      %v3332 = vsub.f32 1.0, %v3300
      %v3333 = vsub.f32 1.0, %v3301
      %v3334 = vsub.f32 1.0, %v3302
      %v3335 = vsub.f32 1.0, %v3303
      %v3336 = vsub.f32 1.0, %v3304
      %v3337 = vsub.f32 1.0, %v3305
      %v3338 = vsub.f32 1.0, %v3306
      %v3339 = vsub.f32 1.0, %v3307
      %v3340 = vsub.f32 1.0, %v3308
      %v3341 = vsub.f32 1.0, %v3309
      %v3342 = vsub.f32 1.0, %v3310
      %v3343 = vsub.f32 1.0, %v3311
      %v3344 = vsub.f32 1.0, %v3312
      %v3345 = vsub.f32 1.0, %v3313
      %v3346 = vsub.f32 1.0, %v3314
      %v3347 = vsub.f32 1.0, %v3315
      %v3348 = vsub.f32 1.0, %v3316
      %v3349 = vsub.f32 1.0, %v3317
      %v3350 = vsub.f32 1.0, %v3318
      %v3351 = vsub.f32 1.0, %v3319
      %v3352 = vsub.f32 1.0, %v3320
      %v3353 = vsub.f32 1.0, %v3321
      %v3354 = vsub.f32 1.0, %v3322
      %v3355 = vmul.f32 %v2683, %v3323
      %v3356 = vmul.f32 %v2684, %v3324
      %v3357 = vmul.f32 %v2685, %v3325
      %v3358 = vmul.f32 %v2686, %v3326
      %v3359 = vmul.f32 %v2687, %v3327
      %v3360 = vmul.f32 %v2688, %v3328
      %v3361 = vmul.f32 %v2689, %v3329
      %v3362 = vmul.f32 %v2690, %v3330
      %v3363 = vmul.f32 %v2691, %v3331
      %v3364 = vmul.f32 %v2692, %v3332
      %v3365 = vmul.f32 %v2693, %v3333
      %v3366 = vmul.f32 %v2694, %v3334
      %v3367 = vmul.f32 %v2695, %v3335
      %v3368 = vmul.f32 %v2696, %v3336
      %v3369 = vmul.f32 %v2697, %v3337
      %v3370 = vmul.f32 %v2698, %v3338
      %v3371 = vmul.f32 %v2699, %v3339
      %v3372 = vmul.f32 %v2700, %v3340
      %v3373 = vmul.f32 %v2701, %v3341
      %v3374 = vmul.f32 %v2702, %v3342
      %v3375 = vmul.f32 %v2703, %v3343
      %v3376 = vmul.f32 %v2704, %v3344
      %v3377 = vmul.f32 %v2705, %v3345
      %v3378 = vmul.f32 %v2706, %v3346
      %v3379 = vmul.f32 %v2707, %v3347
      %v3380 = vmul.f32 %v2708, %v3348
      %v3381 = vmul.f32 %v2709, %v3349
      %v3382 = vmul.f32 %v2710, %v3350
      %v3383 = vmul.f32 %v2711, %v3351
      %v3384 = vmul.f32 %v2712, %v3352
      %v3385 = vmul.f32 %v2713, %v3353
      %v3386 = vmul.f32 %v2714, %v3354
      %v3387 = vadd.f32 %v3355, 1.0
      %v3388 = vadd.f32 %v3356, 1.0
      %v3389 = vadd.f32 %v3357, 1.0
      %v3390 = vadd.f32 %v3358, 1.0
      %v3391 = vadd.f32 %v3359, 1.0
      %v3392 = vadd.f32 %v3360, 1.0
      %v3393 = vadd.f32 %v3361, 1.0
      %v3394 = vadd.f32 %v3362, 1.0
      %v3395 = vadd.f32 %v3363, 1.0
      %v3396 = vadd.f32 %v3364, 1.0
      %v3397 = vadd.f32 %v3365, 1.0
      %v3398 = vadd.f32 %v3366, 1.0
      %v3399 = vadd.f32 %v3367, 1.0
      %v3400 = vadd.f32 %v3368, 1.0
      %v3401 = vadd.f32 %v3369, 1.0
      %v3402 = vadd.f32 %v3370, 1.0
      %v3403 = vadd.f32 %v3371, 1.0
      %v3404 = vadd.f32 %v3372, 1.0
      %v3405 = vadd.f32 %v3373, 1.0
      %v3406 = vadd.f32 %v3374, 1.0
      %v3407 = vadd.f32 %v3375, 1.0
      %v3408 = vadd.f32 %v3376, 1.0
      %v3409 = vadd.f32 %v3377, 1.0
      %v3410 = vadd.f32 %v3378, 1.0
      %v3411 = vadd.f32 %v3379, 1.0
      %v3412 = vadd.f32 %v3380, 1.0
      %v3413 = vadd.f32 %v3381, 1.0
      %v3414 = vadd.f32 %v3382, 1.0
      %v3415 = vadd.f32 %v3383, 1.0
      %v3416 = vadd.f32 %v3384, 1.0
      %v3417 = vadd.f32 %v3385, 1.0
      %v3418 = vadd.f32 %v3386, 1.0
      %v3419 = vmul.f32 %v2587, %v3387
      %v3420 = vmul.f32 %v2588, %v3388
      %v3421 = vmul.f32 %v2589, %v3389
      %v3422 = vmul.f32 %v2590, %v3390
      %v3423 = vmul.f32 %v2591, %v3391
      %v3424 = vmul.f32 %v2592, %v3392
      %v3425 = vmul.f32 %v2593, %v3393
      %v3426 = vmul.f32 %v2594, %v3394
      %v3427 = vmul.f32 %v2595, %v3395
      %v3428 = vmul.f32 %v2596, %v3396
      %v3429 = vmul.f32 %v2597, %v3397
      %v3430 = vmul.f32 %v2598, %v3398
      %v3431 = vmul.f32 %v2599, %v3399
      %v3432 = vmul.f32 %v2600, %v3400
      %v3433 = vmul.f32 %v2601, %v3401
      %v3434 = vmul.f32 %v2602, %v3402
      %v3435 = vmul.f32 %v2603, %v3403
      %v3436 = vmul.f32 %v2604, %v3404
      %v3437 = vmul.f32 %v2605, %v3405
      %v3438 = vmul.f32 %v2606, %v3406
      %v3439 = vmul.f32 %v2607, %v3407
      %v3440 = vmul.f32 %v2608, %v3408
      %v3441 = vmul.f32 %v2609, %v3409
      %v3442 = vmul.f32 %v2610, %v3410
      %v3443 = vmul.f32 %v2611, %v3411
      %v3444 = vmul.f32 %v2612, %v3412
      %v3445 = vmul.f32 %v2613, %v3413
      %v3446 = vmul.f32 %v2614, %v3414
      %v3447 = vmul.f32 %v2615, %v3415
      %v3448 = vmul.f32 %v2616, %v3416
      %v3449 = vmul.f32 %v2617, %v3417
      %v3450 = vmul.f32 %v2618, %v3418
      %vm3451 = vcmask 64512
      %3452 = vst.msk [vmem:[%s170] sm:$0xff] %vm3451, %v3419
      %3453 = vst.msk [vmem:[%s170 + $0x8] sm:$0xff] %vm3451, %v3420
      %3454 = vst.msk [vmem:[%s170 + $0x10] sm:$0xff] %vm3451, %v3421
      %3455 = vst.msk [vmem:[%s170 + $0x18] sm:$0xff] %vm3451, %v3422
      %3456 = vst.msk [vmem:[%s170 + $0x20] sm:$0xff] %vm3451, %v3423
      %3457 = vst.msk [vmem:[%s170 + $0x28] sm:$0xff] %vm3451, %v3424
      %3458 = vst.msk [vmem:[%s170 + $0x30] sm:$0xff] %vm3451, %v3425
      %3459 = vst.msk [vmem:[%s170 + $0x38] sm:$0xff] %vm3451, %v3426
      %3460 = vst.msk [vmem:[%s170 + $0x40] sm:$0xff] %vm3451, %v3427
      %3461 = vst.msk [vmem:[%s170 + $0x48] sm:$0xff] %vm3451, %v3428
      %3462 = vst.msk [vmem:[%s170 + $0x50] sm:$0xff] %vm3451, %v3429
      %3463 = vst.msk [vmem:[%s170 + $0x58] sm:$0xff] %vm3451, %v3430
      %3464 = vst.msk [vmem:[%s170 + $0x60] sm:$0xff] %vm3451, %v3431
      %3465 = vst.msk [vmem:[%s170 + $0x68] sm:$0xff] %vm3451, %v3432
      %3466 = vst.msk [vmem:[%s170 + $0x70] sm:$0xff] %vm3451, %v3433
      %3467 = vst.msk [vmem:[%s170 + $0x78] sm:$0xff] %vm3451, %v3434
      %3468 = vst.msk [vmem:[%s170 + $0x80] sm:$0xff] %vm3451, %v3435
      %3469 = vst.msk [vmem:[%s170 + $0x88] sm:$0xff] %vm3451, %v3436
      %3470 = vst.msk [vmem:[%s170 + $0x90] sm:$0xff] %vm3451, %v3437
      %3471 = vst.msk [vmem:[%s170 + $0x98] sm:$0xff] %vm3451, %v3438
      %3472 = vst.msk [vmem:[%s170 + $0xa0] sm:$0xff] %vm3451, %v3439
      %3473 = vst.msk [vmem:[%s170 + $0xa8] sm:$0xff] %vm3451, %v3440
      %3474 = vst.msk [vmem:[%s170 + $0xb0] sm:$0xff] %vm3451, %v3441
      %3475 = vst.msk [vmem:[%s170 + $0xb8] sm:$0xff] %vm3451, %v3442
      %3476 = vst.msk [vmem:[%s170 + $0xc0] sm:$0xff] %vm3451, %v3443
      %3477 = vst.msk [vmem:[%s170 + $0xc8] sm:$0xff] %vm3451, %v3444
      %3478 = vst.msk [vmem:[%s170 + $0xd0] sm:$0xff] %vm3451, %v3445
      %3479 = vst.msk [vmem:[%s170 + $0xd8] sm:$0xff] %vm3451, %v3446
      %3480 = vst.msk [vmem:[%s170 + $0xe0] sm:$0xff] %vm3451, %v3447
      %3481 = vst.msk [vmem:[%s170 + $0xe8] sm:$0xff] %vm3451, %v3448
      %3482 = vst.msk [vmem:[%s170 + $0xf0] sm:$0xff] %vm3451, %v3449
      %3483 = vst.msk [vmem:[%s170 + $0xf8] sm:$0xff] %vm3451, %v3450
      %p3484 = scmp.lt.s32.totalorder %s14, 1
      %s3485 = scalar_select %p3484, %s14, 1
      %s3486 = smul.addr %s3485, 32
      %s3487 = smul.addr %s3486, 8
      %s3488 = scalar_lea.vmem %s3, %s3487
      // Predicated region
      $region33: #{convnext_stem_forward.6} parent=31 // pred_check
        %p3489 = pneg %p100
      $region34: #{convnext_stem_forward.6} parent=31 // pred_check_branch
        %3491 = sbr.rel (%p3489) target = $region36
      $region35: #{convnext_stem_forward.6} parent=31 // pred_region
        _
      $region36: #{convnext_stem_forward.6} parent=31 // pred_fallthru
        _
    $region32: #{convnext_stem_forward.6} parent=5 // pred_fallthru
      _
    %p3492 = scmp.le.s32.totalorder 2, %s9
    // Predicated region
    $region37: #{convnext_stem_forward.6} parent=5 // pred_check
      %p3493 = pneg %p3492
    $region38: #{convnext_stem_forward.6} parent=5 // pred_check_branch
      %3495 = sbr.rel (%p3493) target = $region40
    $region39: #{convnext_stem_forward.6} parent=5 // pred_region
      %s3496 = ssub.s32 %s9, 2
      // Predicated region
      $region41: #{convnext_stem_forward.6} parent=39 // pred_check
        %p3497 = pneg %p106
      $region42: #{convnext_stem_forward.6} parent=39 // pred_check_branch
        %3499 = sbr.rel (%p3497) target = $region44
      $region43: #{convnext_stem_forward.6} parent=39 // pred_region
        %p3500 = scmp.lt.s32.totalorder %s15, 1
        %s3501 = scalar_select %p3500, %s15, 1
        %s3502 = smul.addr %s3501, 32
        %s3503 = smul.addr %s3502, 8
        %s3504 = scalar_lea.vmem %s3, %s3503
      $region44: #{convnext_stem_forward.6} parent=39 // pred_fallthru
        _
    $region40: #{convnext_stem_forward.6} parent=5 // pred_fallthru
      _
  $region6: #{convnext_stem_forward.6} parent=0 // loop_footer
    %s13 = sadd.s32 1, %s9
  $region7: #{convnext_stem_forward.6} parent=0 // loop_footer_branch
    %8 = sbr.rel target = $region3
  $region8: #{convnext_stem_forward.6} parent=0 // loop_exit
    _

// kernel: convnext_stem_forward.8
$region0: #{convnext_stem_forward.8}
  #allocation0 [shape = 'u32[]', space=smem, size = 0x4, offset = 0x4, fixed_abs, tag = 'smem constant byte address 0x4 - core index']
  #allocation1 [shape = 'u32[144,128]{1,0:T(1,128)}', space=vmem, size = 0x12000, scoped, tag = 'internal scratch']
  %s0 = inlined_call_operand.vmem [shape: f32[2,2,10,5,32], index: 0, kind: input, shape index: {}]
  %s1 = inlined_call_operand.vmem [shape: f32[3,3,32,128], index: 1, kind: input, shape index: {}]
  %s2 = inlined_call_operand.vmem [shape: f32[1,128], index: 2, kind: input, shape index: {}]
  %s3 = inlined_call_operand.vmem [shape: f32[2,32,128], index: 3, kind: output, shape index: {}]
  %s4 = sld [smem:[#allocation0]]
  $region45: #{convnext_stem_forward.8} parent=0
    _
  %s6 = ssub.s32 1, %s4
  %s7 = scalar_select 0, %s6, %s4
  loop: start=0, step=1, limit=4
  $region2: #{convnext_stem_forward.8} parent=0 // loop_pre_header
    _
  $region3: #{convnext_stem_forward.8} parent=0 // loop_header
    %s9 = sphi 0, %s13
    %p10 = scmp.ge.s32.totalorder %s9, 4
    %s19 = sphi 0, %s21
    %s22 = sphi 0, %s19
    %s23 = sphi 0, %s22
    %s39 = sphi 0, %s23
    %s43 = sphi 0, %s43
    %s45 = sphi 0, %s43
    %s46 = sphi 0, %s45
    %s60 = sphi 0, %s46
    %s64 = sphi 0, %s64
    %s66 = sphi 0, %s64
    %s67 = sphi 0, %s66
    %s81 = sphi 0, %s67
    %s87 = sphi 0, %s89
    %s90 = sphi 0, %s87
    %s91 = sphi 0, %s90
    %s107 = sphi 0, %s91
  $region4: #{convnext_stem_forward.8} parent=0 // loop_header_branch
    %12 = sbr.rel (%p10) target = $region8
  $region5: #{convnext_stem_forward.8} parent=0 // loop_body
    %s14 = ssub.s32 %s9, 1
    %s15 = ssub.s32 %s9, 2
    %s16 = sadd.s32 %s9, 1
    %s17 = ssub.s32 %s9, %s16
    %p18 = scmp.eq.s32.totalorder %s17, 0
    %s20 = sadd.s32 %s19, 1
    %s21 = scalar_select %p18, %s19, %s20
    %p24 = pneg %p18
    %p25 = scmp.eq.s32.totalorder %s9, 1
    %p26 = por %p24, %p25
    %p27 = scmp.ne.s32.totalorder %s19, %s22
    %p28 = scmp.eq.s32.totalorder %s9, 0
    %p29 = por %p27, %p28
    %p30 = scmp.ne.s32.totalorder %s19, %s22
    %p31 = scmp.eq.s32.totalorder %s14, 1
    %p32 = por %p30, %p31
    %p33 = scmp.ne.s32.totalorder %s22, %s23
    %p34 = scmp.eq.s32.totalorder %s14, 0
    %p35 = por %p33, %p34
    %p36 = scmp.ne.s32.totalorder %s22, %s23
    %p37 = scmp.eq.s32.totalorder %s15, 1
    %p38 = por %p36, %p37
    %p40 = scmp.ne.s32.totalorder %s23, %s39
    %p41 = scmp.eq.s32.totalorder %s15, 0
    %p42 = por %p40, %p41
    %s44 = sadd.s32 %s43, 1
    %p47 = scmp.eq.s32.totalorder %s9, 1
    %p48 = scmp.ne.s32.totalorder %s43, %s45
    %p49 = scmp.eq.s32.totalorder %s9, 0
    %p50 = por %p48, %p49
    %p51 = scmp.ne.s32.totalorder %s43, %s45
    %p52 = scmp.eq.s32.totalorder %s14, 1
    %p53 = por %p51, %p52
    %p54 = scmp.ne.s32.totalorder %s45, %s46
    %p55 = scmp.eq.s32.totalorder %s14, 0
    %p56 = por %p54, %p55
    %p57 = scmp.ne.s32.totalorder %s45, %s46
    %p58 = scmp.eq.s32.totalorder %s15, 1
    %p59 = por %p57, %p58
    %p61 = scmp.ne.s32.totalorder %s46, %s60
    %p62 = scmp.eq.s32.totalorder %s15, 0
    %p63 = por %p61, %p62
    %s65 = sadd.s32 %s64, 1
    %p68 = scmp.eq.s32.totalorder %s9, 1
    %p69 = scmp.ne.s32.totalorder %s64, %s66
    %p70 = scmp.eq.s32.totalorder %s9, 0
    %p71 = por %p69, %p70
    %p72 = scmp.ne.s32.totalorder %s64, %s66
    %p73 = scmp.eq.s32.totalorder %s14, 1
    %p74 = por %p72, %p73
    %p75 = scmp.ne.s32.totalorder %s66, %s67
    %p76 = scmp.eq.s32.totalorder %s14, 0
    %p77 = por %p75, %p76
    %p78 = scmp.ne.s32.totalorder %s66, %s67
    %p79 = scmp.eq.s32.totalorder %s15, 1
    %p80 = por %p78, %p79
    %p82 = scmp.ne.s32.totalorder %s67, %s81
    %p83 = scmp.eq.s32.totalorder %s15, 0
    %p84 = por %p82, %p83
    %s85 = ssub.s32 %s9, %s16
    %p86 = scmp.eq.s32.totalorder %s85, 0
    %s88 = sadd.s32 %s87, 1
    %s89 = scalar_select %p86, %s87, %s88
    %p92 = pneg %p86
    %p93 = scmp.eq.s32.totalorder %s9, 1
    %p94 = por %p92, %p93
    %p95 = scmp.ne.s32.totalorder %s87, %s90
    %p96 = scmp.eq.s32.totalorder %s9, 0
    %p97 = por %p95, %p96
    %p98 = scmp.ne.s32.totalorder %s87, %s90
    %p99 = scmp.eq.s32.totalorder %s14, 1
    %p100 = por %p98, %p99
    %p101 = scmp.ne.s32.totalorder %s90, %s91
    %p102 = scmp.eq.s32.totalorder %s14, 0
    %p103 = por %p101, %p102
    %p104 = scmp.ne.s32.totalorder %s90, %s91
    %p105 = scmp.eq.s32.totalorder %s15, 1
    %p106 = por %p104, %p105
    %p108 = scmp.ne.s32.totalorder %s91, %s107
    %p109 = scmp.eq.s32.totalorder %s15, 0
    %p110 = por %p108, %p109
    %p111 = scmp.le.s32.totalorder 1, %s9
    %p112 = scmp.lt.s32.totalorder %s9, 3
    %p113 = pnand %p111, %p112
    %p114 = pneg %p113
    // Predicated region
    $region9: #{convnext_stem_forward.8} parent=5 // pred_check
      _
    $region10: #{convnext_stem_forward.8} parent=5 // pred_check_branch
      %116 = sbr.rel (%p113) target = $region12
    $region11: #{convnext_stem_forward.8} parent=5 // pred_region
      %s117 = ssub.s32 %s9, 1
      // Predicated region
      $region13: #{convnext_stem_forward.8} parent=11 // pred_check
        %p118 = pneg %p56
      $region14: #{convnext_stem_forward.8} parent=11 // pred_check_branch
        %120 = sbr.rel (%p118) target = $region16
      $region15: #{convnext_stem_forward.8} parent=11 // pred_region
        _
      $region16: #{convnext_stem_forward.8} parent=11 // pred_fallthru
        _
      // Predicated region
      $region17: #{convnext_stem_forward.8} parent=11 // pred_check
        %p121 = pneg %p77
      $region18: #{convnext_stem_forward.8} parent=11 // pred_check_branch
        %123 = sbr.rel (%p121) target = $region20
      $region19: #{convnext_stem_forward.8} parent=11 // pred_region
        _
      $region20: #{convnext_stem_forward.8} parent=11 // pred_fallthru
        _
    $region12: #{convnext_stem_forward.8} parent=5 // pred_fallthru
      _
    %p124 = scmp.lt.s32.totalorder %s9, 2
    // Predicated region
    $region21: #{convnext_stem_forward.8} parent=5 // pred_check
      %p125 = pneg %p124
    $region22: #{convnext_stem_forward.8} parent=5 // pred_check_branch
      %127 = sbr.rel (%p125) target = $region24
    $region23: #{convnext_stem_forward.8} parent=5 // pred_region
      // Predicated region
      $region25: #{convnext_stem_forward.8} parent=23 // pred_check
        %p128 = pneg %p29
      $region26: #{convnext_stem_forward.8} parent=23 // pred_check_branch
        %130 = sbr.rel (%p128) target = $region28
      $region27: #{convnext_stem_forward.8} parent=23 // pred_region
        %p131 = scmp.lt.s32.totalorder %s9, 1
        %s132 = scalar_select %p131, %s9, 1
        %s133 = smul.addr %s132, 20
        %s134 = smul.addr %s133, 8
        %s135 = scalar_lea.vmem %s0, %s134
      $region28: #{convnext_stem_forward.8} parent=23 // pred_fallthru
        _
    $region24: #{convnext_stem_forward.8} parent=5 // pred_fallthru
      _
    %p136 = scmp.le.s32.totalorder 1, %s9
    %p137 = scmp.lt.s32.totalorder %s9, 3
    %p138 = pnand %p136, %p137
    %p139 = pneg %p138
    // Predicated region
    $region29: #{convnext_stem_forward.8} parent=5 // pred_check
      _
    $region30: #{convnext_stem_forward.8} parent=5 // pred_check_branch
      %141 = sbr.rel (%p138) target = $region32
    $region31: #{convnext_stem_forward.8} parent=5 // pred_region
      %s142 = ssub.s32 %s9, 1
      %p143 = scmp.lt.s32.totalorder %s14, 1
      %s144 = scalar_select %p143, %s14, 1
      %s145 = smul.addr %s144, 20
      %s146 = smul.addr %s145, 8
      %s147 = scalar_lea.vmem %s0, %s146
      %p148 = pneg %p35
      %p149 = pneg %p32
      %p150 = pneg %p56
      %p151 = pneg %p53
      %p152 = pneg %p77
      %p153 = pneg %p74
      %p154 = pneg %p103
      %p155 = pneg %p100
      %p156 = scmp.lt.s32.totalorder %s14, 1
      %s157 = scalar_select %p156, %s14, 1
      %s158 = smul.addr %s157, 4
      %s159 = smul.addr %s158, 8
      %s160 = scalar_lea.vmem %s3, %s159
      %p161 = scmp.lt.s32.totalorder %s14, 1
      %s162 = scalar_select %p161, %s14, 1
      %s163 = smul.addr %s162, 20
      %s164 = smul.addr %s163, 8
      %s165 = scalar_lea.vmem %s0, %s164
      %p166 = scmp.lt.s32.totalorder %s14, 1
      %s167 = scalar_select %p166, %s14, 1
      %s168 = smul.addr %s167, 4
      %s169 = smul.addr %s168, 8
      %s170 = scalar_lea.vmem %s3, %s169
      %v172 = vld [vmem:[%s165] sm:$0xf]
      %v173 = vld [vmem:[%s165 + $0x8] sm:$0xf]
      %v174 = vld [vmem:[%s165 + $0x10] sm:$0xf]
      %v175 = vld [vmem:[%s165 + $0x18] sm:$0xf]
      %v176 = vld [vmem:[%s165 + $0x20] sm:$0xf]
      %v177 = vld [vmem:[%s165 + $0x28] sm:$0xf]
      %v178 = vld [vmem:[%s165 + $0x30] sm:$0xf]
      %v179 = vld [vmem:[%s165 + $0x38] sm:$0xf]
      %v180 = vld [vmem:[%s1] sm:$0xff]
      %v181 = vld [vmem:[%s1 + $0x8] sm:$0xff]
      %v182 = vld [vmem:[%s1 + $0x10] sm:$0xff]
      %v183 = vld [vmem:[%s1 + $0x18] sm:$0xff]
      %v192 = vcombine.low %v172, %v173
      %v193 = vcombine.low %v174, %v175
      %v194 = vcombine.low %v176, %v177
      %v195 = vcombine.low %v178, %v179
      %v200 = vpack.c.bf16 %v193, %v192
      %v201 = vpack.c.bf16 %v195, %v194
      %v202 = vpack.c.bf16 %v181, %v180
      %v203 = vpack.c.bf16 %v183, %v182
      %s204 = scalar_lea.vmem %s165, 80
      %v205 = vld [vmem:[%s204] sm:$0xf]
      %v206 = vld [vmem:[%s204 + $0x8] sm:$0xf]
      %v207 = vld [vmem:[%s204 + $0x10] sm:$0xf]
      %v208 = vld [vmem:[%s204 + $0x18] sm:$0xf]
      %v209 = vld [vmem:[%s204 + $0x20] sm:$0xf]
      %v210 = vld [vmem:[%s204 + $0x28] sm:$0xf]
      %v211 = vld [vmem:[%s204 + $0x30] sm:$0xf]
      %v212 = vld [vmem:[%s204 + $0x38] sm:$0xf]
      %s213 = scalar_lea.vmem %s1, 32
      %v214 = vld [vmem:[%s213] sm:$0xff]
      %v215 = vld [vmem:[%s213 + $0x8] sm:$0xff]
      %v216 = vld [vmem:[%s213 + $0x10] sm:$0xff]
      %v217 = vld [vmem:[%s213 + $0x18] sm:$0xff]
      %v226 = vcombine.low %v205, %v206
      %v227 = vcombine.low %v207, %v208
      %v228 = vcombine.low %v209, %v210
      %v229 = vcombine.low %v211, %v212
      %v234 = vpack.c.bf16 %v227, %v226
      %v235 = vpack.c.bf16 %v229, %v228
      %v236 = vpack.c.bf16 %v215, %v214
      %v237 = vpack.c.bf16 %v217, %v216
      %vm238 = vcmask 261120
      %v240 = vsel %vm238, %v234, 0
      %v243 = vsel %vm238, %v235, 0
      %245 = vmatprep.subr.bf16.mxu0 0
      %246 = vmatpush1.bf16.msra.mxu0 %v236
      %247 = vmatprep.subr.bf16.mxu0 0
      %248 = vmatpush1.bf16.msra.mxu0 %v237
      %249 = vmatprep.subr.bf16.mxu0 0
      %250 = vmatpush1.bf16.msra.mxu0 0
      %251 = vmatprep.subr.bf16.mxu0 0
      %252 = vmatpush1.bf16.msra.mxu0 0
      %253 = vmatprep.subr.bf16.mxu0 0
      %254 = vmatpush1.bf16.msra.mxu0 0
      %255 = vmatprep.subr.bf16.mxu0 0
      %256 = vmatpush1.bf16.msra.mxu0 0
      %257 = vmatprep.subr.bf16.mxu0 0
      %258 = vmatpush1.bf16.msra.mxu0 0
      %259 = vmatprep.subr.bf16.mxu0 0
      %260 = vmatpush1.bf16.msra.mxu0 0
      %261 = vmatprep.subr.bf16.mxu0 0
      %262 = vmatpush1.bf16.msra.mxu0 0
      %263 = vmatprep.subr.bf16.mxu0 0
      %264 = vmatpush1.bf16.msra.mxu0 0
      %265 = vmatprep.subr.bf16.mxu0 0
      %266 = vmatpush1.bf16.msra.mxu0 0
      %267 = vmatprep.subr.bf16.mxu0 0
      %268 = vmatpush1.bf16.msra.mxu0 0
      %269 = vmatprep.subr.bf16.mxu0 0
      %270 = vmatpush1.bf16.msra.mxu0 0
      %271 = vmatprep.subr.bf16.mxu0 0
      %272 = vmatpush1.bf16.msra.mxu0 0
      %273 = vmatprep.subr.bf16.mxu0 0
      %274 = vmatpush1.bf16.msra.mxu0 0
      %275 = vmatprep.subr.bf16.mxu0 0
      %276 = vmatpush1.bf16.msra.mxu0 0
      %277 = vmatprep.mubr.bf16.mxu0 0
      %278 = vmatmul.mubr.bf16.gmra.mrb[0].mxu0 %v240
      %v279 = vpop.f32.mrb[0].mxu0
      %v280 = vadd.f32 0.0, %v279
      %v281 = vpop.f32.mrb[0].mxu0
      %v282 = vpop.f32.mrb[0].mxu0
      %v283 = vadd.f32 0.0, %v282
      %v284 = vpop.f32.mrb[0].mxu0
      %285 = vmatprep.mubr.bf16.mxu0 0
      %286 = vmatmul.mubr.bf16.gmra.mrb[0].mxu0 %v243
      %v287 = vpop.f32.mrb[0].mxu0
      %v288 = vadd.f32 0.0, %v287
      %v289 = vpop.f32.mrb[0].mxu0
      %v290 = vpop.f32.mrb[0].mxu0
      %v291 = vadd.f32 0.0, %v290
      %v292 = vpop.f32.mrb[0].mxu0
      %293 = vdwg.mxu0
      %v295 = vsel %vm238, %v200, 0
      %v298 = vsel %vm238, %v201, 0
      %300 = vmatprep.subr.bf16.mxu0 0
      %301 = vmatpush1.bf16.msra.mxu0 %v202
      %302 = vmatprep.subr.bf16.mxu0 0
      %303 = vmatpush1.bf16.msra.mxu0 %v203
      %304 = vmatprep.subr.bf16.mxu0 0
      %305 = vmatpush1.bf16.msra.mxu0 0
      %306 = vmatprep.subr.bf16.mxu0 0
      %307 = vmatpush1.bf16.msra.mxu0 0
      %308 = vmatprep.subr.bf16.mxu0 0
      %309 = vmatpush1.bf16.msra.mxu0 0
      %310 = vmatprep.subr.bf16.mxu0 0
      %311 = vmatpush1.bf16.msra.mxu0 0
      %312 = vmatprep.subr.bf16.mxu0 0
      %313 = vmatpush1.bf16.msra.mxu0 0
      %314 = vmatprep.subr.bf16.mxu0 0
      %315 = vmatpush1.bf16.msra.mxu0 0
      %316 = vmatprep.subr.bf16.mxu0 0
      %317 = vmatpush1.bf16.msra.mxu0 0
      %318 = vmatprep.subr.bf16.mxu0 0
      %319 = vmatpush1.bf16.msra.mxu0 0
      %320 = vmatprep.subr.bf16.mxu0 0
      %321 = vmatpush1.bf16.msra.mxu0 0
      %322 = vmatprep.subr.bf16.mxu0 0
      %323 = vmatpush1.bf16.msra.mxu0 0
      %324 = vmatprep.subr.bf16.mxu0 0
      %325 = vmatpush1.bf16.msra.mxu0 0
      %326 = vmatprep.subr.bf16.mxu0 0
      %327 = vmatpush1.bf16.msra.mxu0 0
      %328 = vmatprep.subr.bf16.mxu0 0
      %329 = vmatpush1.bf16.msra.mxu0 0
      %330 = vmatprep.subr.bf16.mxu0 0
      %331 = vmatpush1.bf16.msra.mxu0 0
      %332 = vmatprep.mubr.bf16.mxu0 0
      %333 = vmatmul.mubr.bf16.gmra.mrb[0].mxu0 %v295
      %v334 = vpop.f32.mrb[0].mxu0
      %v335 = vadd.f32 %v280, %v334
      %v336 = vpop.f32.mrb[0].mxu0
      %v337 = vpop.f32.mrb[0].mxu0
      %v338 = vadd.f32 %v283, %v337
      %v339 = vpop.f32.mrb[0].mxu0
      %340 = vmatprep.mubr.bf16.mxu0 0
      %341 = vmatmul.mubr.bf16.gmra.mrb[0].mxu0 %v298
      %v342 = vpop.f32.mrb[0].mxu0
      %v343 = vadd.f32 %v288, %v342
      %v344 = vpop.f32.mrb[0].mxu0
      %v345 = vpop.f32.mrb[0].mxu0
      %v346 = vadd.f32 %v291, %v345
      %v347 = vpop.f32.mrb[0].mxu0
      %348 = vdwg.mxu0
      %v349 = vld [vmem:[%s165 + $0x1] sm:$0xf]
      %v350 = vld [vmem:[%s165 + $0x9] sm:$0xf]
      %v351 = vld [vmem:[%s165 + $0x11] sm:$0xf]
      %v352 = vld [vmem:[%s165 + $0x19] sm:$0xf]
      %v353 = vld [vmem:[%s165 + $0x21] sm:$0xf]
      %v354 = vld [vmem:[%s165 + $0x29] sm:$0xf]
      %v355 = vld [vmem:[%s165 + $0x31] sm:$0xf]
      %v356 = vld [vmem:[%s165 + $0x39] sm:$0xf]
      %s357 = scalar_lea.vmem %s1, 64
      %v358 = vld [vmem:[%s357] sm:$0xff]
      %v359 = vld [vmem:[%s357 + $0x8] sm:$0xff]
      %v360 = vld [vmem:[%s357 + $0x10] sm:$0xff]
      %v361 = vld [vmem:[%s357 + $0x18] sm:$0xff]
      %v370 = vcombine.low %v349, %v350
      %v371 = vcombine.low %v351, %v352
      %v372 = vcombine.low %v353, %v354
      %v373 = vcombine.low %v355, %v356
      %v378 = vpack.c.bf16 %v371, %v370
      %v379 = vpack.c.bf16 %v373, %v372
      %v380 = vpack.c.bf16 %v359, %v358
      %v381 = vpack.c.bf16 %v361, %v360
      %v383 = vsel %vm238, %v378, 0
      %v386 = vsel %vm238, %v379, 0
      %388 = vmatprep.subr.bf16.mxu0 0
      %389 = vmatpush1.bf16.msra.mxu0 %v380
      %390 = vmatprep.subr.bf16.mxu0 0
      %391 = vmatpush1.bf16.msra.mxu0 %v381
      %392 = vmatprep.subr.bf16.mxu0 0
      %393 = vmatpush1.bf16.msra.mxu0 0
      %394 = vmatprep.subr.bf16.mxu0 0
      %395 = vmatpush1.bf16.msra.mxu0 0
      %396 = vmatprep.subr.bf16.mxu0 0
      %397 = vmatpush1.bf16.msra.mxu0 0
      %398 = vmatprep.subr.bf16.mxu0 0
      %399 = vmatpush1.bf16.msra.mxu0 0
      %400 = vmatprep.subr.bf16.mxu0 0
      %401 = vmatpush1.bf16.msra.mxu0 0
      %402 = vmatprep.subr.bf16.mxu0 0
      %403 = vmatpush1.bf16.msra.mxu0 0
      %404 = vmatprep.subr.bf16.mxu0 0
      %405 = vmatpush1.bf16.msra.mxu0 0
      %406 = vmatprep.subr.bf16.mxu0 0
      %407 = vmatpush1.bf16.msra.mxu0 0
      %408 = vmatprep.subr.bf16.mxu0 0
      %409 = vmatpush1.bf16.msra.mxu0 0
      %410 = vmatprep.subr.bf16.mxu0 0
      %411 = vmatpush1.bf16.msra.mxu0 0
      %412 = vmatprep.subr.bf16.mxu0 0
      %413 = vmatpush1.bf16.msra.mxu0 0
      %414 = vmatprep.subr.bf16.mxu0 0
      %415 = vmatpush1.bf16.msra.mxu0 0
      %416 = vmatprep.subr.bf16.mxu0 0
      %417 = vmatpush1.bf16.msra.mxu0 0
      %418 = vmatprep.subr.bf16.mxu0 0
      %419 = vmatpush1.bf16.msra.mxu0 0
      %420 = vmatprep.mubr.bf16.mxu0 0
      %421 = vmatmul.mubr.bf16.gmra.mrb[0].mxu0 %v383
      %v422 = vpop.f32.mrb[0].mxu0
      %v423 = vadd.f32 0.0, %v422
      %v424 = vpop.f32.mrb[0].mxu0
      %v425 = vpop.f32.mrb[0].mxu0
      %v426 = vadd.f32 0.0, %v425
      %v427 = vpop.f32.mrb[0].mxu0
      %428 = vmatprep.mubr.bf16.mxu0 0
      %429 = vmatmul.mubr.bf16.gmra.mrb[0].mxu0 %v386
      %v430 = vpop.f32.mrb[0].mxu0
      %v431 = vadd.f32 0.0, %v430
      %v432 = vpop.f32.mrb[0].mxu0
      %v433 = vpop.f32.mrb[0].mxu0
      %v434 = vadd.f32 0.0, %v433
      %v435 = vpop.f32.mrb[0].mxu0
      %436 = vdwg.mxu0
      %v437 = vadd.f32 %v335, %v423
      %v438 = vadd.f32 %v338, %v426
      %v439 = vadd.f32 %v343, %v431
      %v440 = vadd.f32 %v346, %v434
      %s441 = scalar_lea.vmem %s165, 8
      %v442 = vld [vmem:[%s441] sm:$0xf]
      %v443 = vld [vmem:[%s441 + $0x8] sm:$0xf]
      %v444 = vld [vmem:[%s441 + $0x10] sm:$0xf]
      %v445 = vld [vmem:[%s441 + $0x18] sm:$0xf]
      %v446 = vld [vmem:[%s441 + $0x20] sm:$0xf]
      %v447 = vld [vmem:[%s441 + $0x28] sm:$0xf]
      %v448 = vld [vmem:[%s441 + $0x30] sm:$0xf]
      %v449 = vld [vmem:[%s441 + $0x38] sm:$0xf]
      %s450 = scalar_lea.vmem %s1, 96
      %v451 = vld [vmem:[%s450] sm:$0xff]
      %v452 = vld [vmem:[%s450 + $0x8] sm:$0xff]
      %v453 = vld [vmem:[%s450 + $0x10] sm:$0xff]
      %v454 = vld [vmem:[%s450 + $0x18] sm:$0xff]
      %v463 = vcombine.low %v442, %v443
      %v464 = vcombine.low %v444, %v445
      %v465 = vcombine.low %v446, %v447
      %v466 = vcombine.low %v448, %v449
      %v471 = vpack.c.bf16 %v464, %v463
      %v472 = vpack.c.bf16 %v466, %v465
      %v473 = vpack.c.bf16 %v452, %v451
      %v474 = vpack.c.bf16 %v454, %v453
      %v476 = vsel %vm238, %v471, 0
      %v479 = vsel %vm238, %v472, 0
      %481 = vmatprep.subr.bf16.mxu0 0
      %482 = vmatpush1.bf16.msra.mxu0 %v473
      %483 = vmatprep.subr.bf16.mxu0 0
      %484 = vmatpush1.bf16.msra.mxu0 %v474
      %485 = vmatprep.subr.bf16.mxu0 0
      %486 = vmatpush1.bf16.msra.mxu0 0
      %487 = vmatprep.subr.bf16.mxu0 0
      %488 = vmatpush1.bf16.msra.mxu0 0
      %489 = vmatprep.subr.bf16.mxu0 0
      %490 = vmatpush1.bf16.msra.mxu0 0
      %491 = vmatprep.subr.bf16.mxu0 0
      %492 = vmatpush1.bf16.msra.mxu0 0
      %493 = vmatprep.subr.bf16.mxu0 0
      %494 = vmatpush1.bf16.msra.mxu0 0
      %495 = vmatprep.subr.bf16.mxu0 0
      %496 = vmatpush1.bf16.msra.mxu0 0
      %497 = vmatprep.subr.bf16.mxu0 0
      %498 = vmatpush1.bf16.msra.mxu0 0
      %499 = vmatprep.subr.bf16.mxu0 0
      %500 = vmatpush1.bf16.msra.mxu0 0
      %501 = vmatprep.subr.bf16.mxu0 0
      %502 = vmatpush1.bf16.msra.mxu0 0
      %503 = vmatprep.subr.bf16.mxu0 0
      %504 = vmatpush1.bf16.msra.mxu0 0
      %505 = vmatprep.subr.bf16.mxu0 0
      %506 = vmatpush1.bf16.msra.mxu0 0
      %507 = vmatprep.subr.bf16.mxu0 0
      %508 = vmatpush1.bf16.msra.mxu0 0
      %509 = vmatprep.subr.bf16.mxu0 0
      %510 = vmatpush1.bf16.msra.mxu0 0
      %511 = vmatprep.subr.bf16.mxu0 0
      %512 = vmatpush1.bf16.msra.mxu0 0
      %513 = vmatprep.mubr.bf16.mxu0 0
      %514 = vmatmul.mubr.bf16.gmra.mrb[0].mxu0 %v476
      %v515 = vpop.f32.mrb[0].mxu0
      %v516 = vadd.f32 0.0, %v515
      %v517 = vpop.f32.mrb[0].mxu0
      %v518 = vpop.f32.mrb[0].mxu0
      %v519 = vadd.f32 0.0, %v518
      %v520 = vpop.f32.mrb[0].mxu0
      %521 = vmatprep.mubr.bf16.mxu0 0
      %522 = vmatmul.mubr.bf16.gmra.mrb[0].mxu0 %v479
      %v523 = vpop.f32.mrb[0].mxu0
      %v524 = vadd.f32 0.0, %v523
      %v525 = vpop.f32.mrb[0].mxu0
      %v526 = vpop.f32.mrb[0].mxu0
      %v527 = vadd.f32 0.0, %v526
      %v528 = vpop.f32.mrb[0].mxu0
      %529 = vdwg.mxu0
      %v530 = vadd.f32 %v437, %v516
      %v531 = vadd.f32 %v438, %v519
      %v532 = vadd.f32 %v439, %v524
      %v533 = vadd.f32 %v440, %v527
      %s534 = scalar_lea.vmem %s165, 88
      %v535 = vld [vmem:[%s534] sm:$0xf]
      %v536 = vld [vmem:[%s534 + $0x8] sm:$0xf]
      %v537 = vld [vmem:[%s534 + $0x10] sm:$0xf]
      %v538 = vld [vmem:[%s534 + $0x18] sm:$0xf]
      %v539 = vld [vmem:[%s534 + $0x20] sm:$0xf]
      %v540 = vld [vmem:[%s534 + $0x28] sm:$0xf]
      %v541 = vld [vmem:[%s534 + $0x30] sm:$0xf]
      %v542 = vld [vmem:[%s534 + $0x38] sm:$0xf]
      %s543 = scalar_lea.vmem %s1, 128
      %v544 = vld [vmem:[%s543] sm:$0xff]
      %v545 = vld [vmem:[%s543 + $0x8] sm:$0xff]
      %v546 = vld [vmem:[%s543 + $0x10] sm:$0xff]
      %v547 = vld [vmem:[%s543 + $0x18] sm:$0xff]
      %v556 = vcombine.low %v535, %v536
      %v557 = vcombine.low %v537, %v538
      %v558 = vcombine.low %v539, %v540
      %v559 = vcombine.low %v541, %v542
      %v564 = vpack.c.bf16 %v557, %v556
      %v565 = vpack.c.bf16 %v559, %v558
      %v566 = vpack.c.bf16 %v545, %v544
      %v567 = vpack.c.bf16 %v547, %v546
      %v569 = vsel %vm238, %v564, 0
      %v572 = vsel %vm238, %v565, 0
      %574 = vmatprep.subr.bf16.mxu0 0
      %575 = vmatpush1.bf16.msra.mxu0 %v566
      %576 = vmatprep.subr.bf16.mxu0 0
      %577 = vmatpush1.bf16.msra.mxu0 %v567
      %578 = vmatprep.subr.bf16.mxu0 0
      %579 = vmatpush1.bf16.msra.mxu0 0
      %580 = vmatprep.subr.bf16.mxu0 0
      %581 = vmatpush1.bf16.msra.mxu0 0
      %582 = vmatprep.subr.bf16.mxu0 0
      %583 = vmatpush1.bf16.msra.mxu0 0
      %584 = vmatprep.subr.bf16.mxu0 0
      %585 = vmatpush1.bf16.msra.mxu0 0
      %586 = vmatprep.subr.bf16.mxu0 0
      %587 = vmatpush1.bf16.msra.mxu0 0
      %588 = vmatprep.subr.bf16.mxu0 0
      %589 = vmatpush1.bf16.msra.mxu0 0
      %590 = vmatprep.subr.bf16.mxu0 0
      %591 = vmatpush1.bf16.msra.mxu0 0
      %592 = vmatprep.subr.bf16.mxu0 0
      %593 = vmatpush1.bf16.msra.mxu0 0
      %594 = vmatprep.subr.bf16.mxu0 0
      %595 = vmatpush1.bf16.msra.mxu0 0
      %596 = vmatprep.subr.bf16.mxu0 0
      %597 = vmatpush1.bf16.msra.mxu0 0
      %598 = vmatprep.subr.bf16.mxu0 0
      %599 = vmatpush1.bf16.msra.mxu0 0
      %600 = vmatprep.subr.bf16.mxu0 0
      %601 = vmatpush1.bf16.msra.mxu0 0
      %602 = vmatprep.subr.bf16.mxu0 0
      %603 = vmatpush1.bf16.msra.mxu0 0
      %604 = vmatprep.subr.bf16.mxu0 0
      %605 = vmatpush1.bf16.msra.mxu0 0
      %606 = vmatprep.mubr.bf16.mxu0 0
      %607 = vmatmul.mubr.bf16.gmra.mrb[0].mxu0 %v569
      %v608 = vpop.f32.mrb[0].mxu0
      %v609 = vadd.f32 0.0, %v608
      %v610 = vpop.f32.mrb[0].mxu0
      %v611 = vpop.f32.mrb[0].mxu0
      %v612 = vadd.f32 0.0, %v611
      %v613 = vpop.f32.mrb[0].mxu0
      %614 = vmatprep.mubr.bf16.mxu0 0
      %615 = vmatmul.mubr.bf16.gmra.mrb[0].mxu0 %v572
      %v616 = vpop.f32.mrb[0].mxu0
      %v617 = vadd.f32 0.0, %v616
      %v618 = vpop.f32.mrb[0].mxu0
      %v619 = vpop.f32.mrb[0].mxu0
      %v620 = vadd.f32 0.0, %v619
      %v621 = vpop.f32.mrb[0].mxu0
      %622 = vdwg.mxu0
      %v623 = vadd.f32 %v530, %v609
      %v624 = vadd.f32 %v531, %v612
      %v625 = vadd.f32 %v532, %v617
      %v626 = vadd.f32 %v533, %v620
      %v627 = vld [vmem:[%s441 + $0x1] sm:$0xf]
      %v628 = vld [vmem:[%s441 + $0x9] sm:$0xf]
      %v629 = vld [vmem:[%s441 + $0x11] sm:$0xf]
      %v630 = vld [vmem:[%s441 + $0x19] sm:$0xf]
      %v631 = vld [vmem:[%s441 + $0x21] sm:$0xf]
      %v632 = vld [vmem:[%s441 + $0x29] sm:$0xf]
      %v633 = vld [vmem:[%s441 + $0x31] sm:$0xf]
      %v634 = vld [vmem:[%s441 + $0x39] sm:$0xf]
      %s635 = scalar_lea.vmem %s1, 160
      %v636 = vld [vmem:[%s635] sm:$0xff]
      %v637 = vld [vmem:[%s635 + $0x8] sm:$0xff]
      %v638 = vld [vmem:[%s635 + $0x10] sm:$0xff]
      %v639 = vld [vmem:[%s635 + $0x18] sm:$0xff]
      %v648 = vcombine.low %v627, %v628
      %v649 = vcombine.low %v629, %v630
      %v650 = vcombine.low %v631, %v632
      %v651 = vcombine.low %v633, %v634
      %v656 = vpack.c.bf16 %v649, %v648
      %v657 = vpack.c.bf16 %v651, %v650
      %v658 = vpack.c.bf16 %v637, %v636
      %v659 = vpack.c.bf16 %v639, %v638
      %v661 = vsel %vm238, %v656, 0
      %v664 = vsel %vm238, %v657, 0
      %666 = vmatprep.subr.bf16.mxu0 0
      %667 = vmatpush1.bf16.msra.mxu0 %v658
      %668 = vmatprep.subr.bf16.mxu0 0
      %669 = vmatpush1.bf16.msra.mxu0 %v659
      %670 = vmatprep.subr.bf16.mxu0 0
      %671 = vmatpush1.bf16.msra.mxu0 0
      %672 = vmatprep.subr.bf16.mxu0 0
      %673 = vmatpush1.bf16.msra.mxu0 0
      %674 = vmatprep.subr.bf16.mxu0 0
      %675 = vmatpush1.bf16.msra.mxu0 0
      %676 = vmatprep.subr.bf16.mxu0 0
      %677 = vmatpush1.bf16.msra.mxu0 0
      %678 = vmatprep.subr.bf16.mxu0 0
      %679 = vmatpush1.bf16.msra.mxu0 0
      %680 = vmatprep.subr.bf16.mxu0 0
      %681 = vmatpush1.bf16.msra.mxu0 0
      %682 = vmatprep.subr.bf16.mxu0 0
      %683 = vmatpush1.bf16.msra.mxu0 0
      %684 = vmatprep.subr.bf16.mxu0 0
      %685 = vmatpush1.bf16.msra.mxu0 0
      %686 = vmatprep.subr.bf16.mxu0 0
      %687 = vmatpush1.bf16.msra.mxu0 0
      %688 = vmatprep.subr.bf16.mxu0 0
      %689 = vmatpush1.bf16.msra.mxu0 0
      %690 = vmatprep.subr.bf16.mxu0 0
      %691 = vmatpush1.bf16.msra.mxu0 0
      %692 = vmatprep.subr.bf16.mxu0 0
      %693 = vmatpush1.bf16.msra.mxu0 0
      %694 = vmatprep.subr.bf16.mxu0 0
      %695 = vmatpush1.bf16.msra.mxu0 0
      %696 = vmatprep.subr.bf16.mxu0 0
      %697 = vmatpush1.bf16.msra.mxu0 0
      %698 = vmatprep.mubr.bf16.mxu0 0
      %699 = vmatmul.mubr.bf16.gmra.mrb[0].mxu0 %v661
      %v700 = vpop.f32.mrb[0].mxu0
      %v701 = vadd.f32 0.0, %v700
      %v702 = vpop.f32.mrb[0].mxu0
      %v703 = vpop.f32.mrb[0].mxu0
      %v704 = vadd.f32 0.0, %v703
      %v705 = vpop.f32.mrb[0].mxu0
      %706 = vmatprep.mubr.bf16.mxu0 0
      %707 = vmatmul.mubr.bf16.gmra.mrb[0].mxu0 %v664
      %v708 = vpop.f32.mrb[0].mxu0
      %v709 = vadd.f32 0.0, %v708
      %v710 = vpop.f32.mrb[0].mxu0
      %v711 = vpop.f32.mrb[0].mxu0
      %v712 = vadd.f32 0.0, %v711
      %v713 = vpop.f32.mrb[0].mxu0
      %714 = vdwg.mxu0
      %v715 = vadd.f32 %v623, %v701
      %v716 = vadd.f32 %v624, %v704
      %v717 = vadd.f32 %v625, %v709
      %v718 = vadd.f32 %v626, %v712
      %s719 = scalar_lea.vmem %s165, 16
      %v720 = vld [vmem:[%s719] sm:$0xf]
      %v721 = vld [vmem:[%s719 + $0x8] sm:$0xf]
      %v722 = vld [vmem:[%s719 + $0x10] sm:$0xf]
      %v723 = vld [vmem:[%s719 + $0x18] sm:$0xf]
      %v724 = vld [vmem:[%s719 + $0x20] sm:$0xf]
      %v725 = vld [vmem:[%s719 + $0x28] sm:$0xf]
      %v726 = vld [vmem:[%s719 + $0x30] sm:$0xf]
      %v727 = vld [vmem:[%s719 + $0x38] sm:$0xf]
      %s728 = scalar_lea.vmem %s1, 192
      %v729 = vld [vmem:[%s728] sm:$0xff]
      %v730 = vld [vmem:[%s728 + $0x8] sm:$0xff]
      %v731 = vld [vmem:[%s728 + $0x10] sm:$0xff]
      %v732 = vld [vmem:[%s728 + $0x18] sm:$0xff]
      %v741 = vcombine.low %v720, %v721
      %v742 = vcombine.low %v722, %v723
      %v743 = vcombine.low %v724, %v725
      %v744 = vcombine.low %v726, %v727
      %v749 = vpack.c.bf16 %v742, %v741
      %v750 = vpack.c.bf16 %v744, %v743
      %v751 = vpack.c.bf16 %v730, %v729
      %v752 = vpack.c.bf16 %v732, %v731
      %v754 = vsel %vm238, %v749, 0
      %v757 = vsel %vm238, %v750, 0
      %759 = vmatprep.subr.bf16.mxu0 0
      %760 = vmatpush1.bf16.msra.mxu0 %v751
      %761 = vmatprep.subr.bf16.mxu0 0
      %762 = vmatpush1.bf16.msra.mxu0 %v752
      %763 = vmatprep.subr.bf16.mxu0 0
      %764 = vmatpush1.bf16.msra.mxu0 0
      %765 = vmatprep.subr.bf16.mxu0 0
      %766 = vmatpush1.bf16.msra.mxu0 0
      %767 = vmatprep.subr.bf16.mxu0 0
      %768 = vmatpush1.bf16.msra.mxu0 0
      %769 = vmatprep.subr.bf16.mxu0 0
      %770 = vmatpush1.bf16.msra.mxu0 0
      %771 = vmatprep.subr.bf16.mxu0 0
      %772 = vmatpush1.bf16.msra.mxu0 0
      %773 = vmatprep.subr.bf16.mxu0 0
      %774 = vmatpush1.bf16.msra.mxu0 0
      %775 = vmatprep.subr.bf16.mxu0 0
      %776 = vmatpush1.bf16.msra.mxu0 0
      %777 = vmatprep.subr.bf16.mxu0 0
      %778 = vmatpush1.bf16.msra.mxu0 0
      %779 = vmatprep.subr.bf16.mxu0 0
      %780 = vmatpush1.bf16.msra.mxu0 0
      %781 = vmatprep.subr.bf16.mxu0 0
      %782 = vmatpush1.bf16.msra.mxu0 0
      %783 = vmatprep.subr.bf16.mxu0 0
      %784 = vmatpush1.bf16.msra.mxu0 0
      %785 = vmatprep.subr.bf16.mxu0 0
      %786 = vmatpush1.bf16.msra.mxu0 0
      %787 = vmatprep.subr.bf16.mxu0 0
      %788 = vmatpush1.bf16.msra.mxu0 0
      %789 = vmatprep.subr.bf16.mxu0 0
      %790 = vmatpush1.bf16.msra.mxu0 0
      %791 = vmatprep.mubr.bf16.mxu0 0
      %792 = vmatmul.mubr.bf16.gmra.mrb[0].mxu0 %v754
      %v793 = vpop.f32.mrb[0].mxu0
      %v794 = vadd.f32 0.0, %v793
      %v795 = vpop.f32.mrb[0].mxu0
      %v796 = vpop.f32.mrb[0].mxu0
      %v797 = vadd.f32 0.0, %v796
      %v798 = vpop.f32.mrb[0].mxu0
      %799 = vmatprep.mubr.bf16.mxu0 0
      %800 = vmatmul.mubr.bf16.gmra.mrb[0].mxu0 %v757
      %v801 = vpop.f32.mrb[0].mxu0
      %v802 = vadd.f32 0.0, %v801
      %v803 = vpop.f32.mrb[0].mxu0
      %v804 = vpop.f32.mrb[0].mxu0
      %v805 = vadd.f32 0.0, %v804
      %v806 = vpop.f32.mrb[0].mxu0
      %807 = vdwg.mxu0
      %v808 = vadd.f32 %v715, %v794
      %v809 = vadd.f32 %v716, %v797
      %v810 = vadd.f32 %v717, %v802
      %v811 = vadd.f32 %v718, %v805
      %s812 = scalar_lea.vmem %s165, 96
      %v813 = vld [vmem:[%s812] sm:$0xf]
      %v814 = vld [vmem:[%s812 + $0x8] sm:$0xf]
      %v815 = vld [vmem:[%s812 + $0x10] sm:$0xf]
      %v816 = vld [vmem:[%s812 + $0x18] sm:$0xf]
      %v817 = vld [vmem:[%s812 + $0x20] sm:$0xf]
      %v818 = vld [vmem:[%s812 + $0x28] sm:$0xf]
      %v819 = vld [vmem:[%s812 + $0x30] sm:$0xf]
      %v820 = vld [vmem:[%s812 + $0x38] sm:$0xf]
      %s821 = scalar_lea.vmem %s1, 224
      %v822 = vld [vmem:[%s821] sm:$0xff]
      %v823 = vld [vmem:[%s821 + $0x8] sm:$0xff]
      %v824 = vld [vmem:[%s821 + $0x10] sm:$0xff]
      %v825 = vld [vmem:[%s821 + $0x18] sm:$0xff]
      %v834 = vcombine.low %v813, %v814
      %v835 = vcombine.low %v815, %v816
      %v836 = vcombine.low %v817, %v818
      %v837 = vcombine.low %v819, %v820
      %v842 = vpack.c.bf16 %v835, %v834
      %v843 = vpack.c.bf16 %v837, %v836
      %v844 = vpack.c.bf16 %v823, %v822
      %v845 = vpack.c.bf16 %v825, %v824
      %v847 = vsel %vm238, %v842, 0
      %v850 = vsel %vm238, %v843, 0
      %852 = vmatprep.subr.bf16.mxu0 0
      %853 = vmatpush1.bf16.msra.mxu0 %v844
      %854 = vmatprep.subr.bf16.mxu0 0
      %855 = vmatpush1.bf16.msra.mxu0 %v845
      %856 = vmatprep.subr.bf16.mxu0 0
      %857 = vmatpush1.bf16.msra.mxu0 0
      %858 = vmatprep.subr.bf16.mxu0 0
      %859 = vmatpush1.bf16.msra.mxu0 0
      %860 = vmatprep.subr.bf16.mxu0 0
      %861 = vmatpush1.bf16.msra.mxu0 0
      %862 = vmatprep.subr.bf16.mxu0 0
      %863 = vmatpush1.bf16.msra.mxu0 0
      %864 = vmatprep.subr.bf16.mxu0 0
      %865 = vmatpush1.bf16.msra.mxu0 0
      %866 = vmatprep.subr.bf16.mxu0 0
      %867 = vmatpush1.bf16.msra.mxu0 0
      %868 = vmatprep.subr.bf16.mxu0 0
      %869 = vmatpush1.bf16.msra.mxu0 0
      %870 = vmatprep.subr.bf16.mxu0 0
      %871 = vmatpush1.bf16.msra.mxu0 0
      %872 = vmatprep.subr.bf16.mxu0 0
      %873 = vmatpush1.bf16.msra.mxu0 0
      %874 = vmatprep.subr.bf16.mxu0 0
      %875 = vmatpush1.bf16.msra.mxu0 0
      %876 = vmatprep.subr.bf16.mxu0 0
      %877 = vmatpush1.bf16.msra.mxu0 0
      %878 = vmatprep.subr.bf16.mxu0 0
      %879 = vmatpush1.bf16.msra.mxu0 0
      %880 = vmatprep.subr.bf16.mxu0 0
      %881 = vmatpush1.bf16.msra.mxu0 0
      %882 = vmatprep.subr.bf16.mxu0 0
      %883 = vmatpush1.bf16.msra.mxu0 0
      %884 = vmatprep.mubr.bf16.mxu0 0
      %885 = vmatmul.mubr.bf16.gmra.mrb[0].mxu0 %v847
      %v886 = vpop.f32.mrb[0].mxu0
      %v887 = vadd.f32 0.0, %v886
      %v888 = vpop.f32.mrb[0].mxu0
      %v889 = vpop.f32.mrb[0].mxu0
      %v890 = vadd.f32 0.0, %v889
      %v891 = vpop.f32.mrb[0].mxu0
      %892 = vmatprep.mubr.bf16.mxu0 0
      %893 = vmatmul.mubr.bf16.gmra.mrb[0].mxu0 %v850
      %v894 = vpop.f32.mrb[0].mxu0
      %v895 = vadd.f32 0.0, %v894
      %v896 = vpop.f32.mrb[0].mxu0
      %v897 = vpop.f32.mrb[0].mxu0
      %v898 = vadd.f32 0.0, %v897
      %v899 = vpop.f32.mrb[0].mxu0
      %900 = vdwg.mxu0
      %v901 = vadd.f32 %v808, %v887
      %v902 = vadd.f32 %v809, %v890
      %v903 = vadd.f32 %v810, %v895
      %v904 = vadd.f32 %v811, %v898
      %v905 = vld [vmem:[%s719 + $0x1] sm:$0xf]
      %v906 = vld [vmem:[%s719 + $0x9] sm:$0xf]
      %v907 = vld [vmem:[%s719 + $0x11] sm:$0xf]
      %v908 = vld [vmem:[%s719 + $0x19] sm:$0xf]
      %v909 = vld [vmem:[%s719 + $0x21] sm:$0xf]
      %v910 = vld [vmem:[%s719 + $0x29] sm:$0xf]
      %v911 = vld [vmem:[%s719 + $0x31] sm:$0xf]
      %v912 = vld [vmem:[%s719 + $0x39] sm:$0xf]
      %s913 = scalar_lea.vmem %s1, 256
      %v914 = vld [vmem:[%s913] sm:$0xff]
      %v915 = vld [vmem:[%s913 + $0x8] sm:$0xff]
      %v916 = vld [vmem:[%s913 + $0x10] sm:$0xff]
      %v917 = vld [vmem:[%s913 + $0x18] sm:$0xff]
      %v926 = vcombine.low %v905, %v906
      %v927 = vcombine.low %v907, %v908
      %v928 = vcombine.low %v909, %v910
      %v929 = vcombine.low %v911, %v912
      %v934 = vpack.c.bf16 %v927, %v926
      %v935 = vpack.c.bf16 %v929, %v928
      %v936 = vpack.c.bf16 %v915, %v914
      %v937 = vpack.c.bf16 %v917, %v916
      %v939 = vsel %vm238, %v934, 0
      %v942 = vsel %vm238, %v935, 0
      %944 = vmatprep.subr.bf16.mxu0 0
      %945 = vmatpush1.bf16.msra.mxu0 %v936
      %946 = vmatprep.subr.bf16.mxu0 0
      %947 = vmatpush1.bf16.msra.mxu0 %v937
      %948 = vmatprep.subr.bf16.mxu0 0
      %949 = vmatpush1.bf16.msra.mxu0 0
      %950 = vmatprep.subr.bf16.mxu0 0
      %951 = vmatpush1.bf16.msra.mxu0 0
      %952 = vmatprep.subr.bf16.mxu0 0
      %953 = vmatpush1.bf16.msra.mxu0 0
      %954 = vmatprep.subr.bf16.mxu0 0
      %955 = vmatpush1.bf16.msra.mxu0 0
      %956 = vmatprep.subr.bf16.mxu0 0
      %957 = vmatpush1.bf16.msra.mxu0 0
      %958 = vmatprep.subr.bf16.mxu0 0
      %959 = vmatpush1.bf16.msra.mxu0 0
      %960 = vmatprep.subr.bf16.mxu0 0
      %961 = vmatpush1.bf16.msra.mxu0 0
      %962 = vmatprep.subr.bf16.mxu0 0
      %963 = vmatpush1.bf16.msra.mxu0 0
      %964 = vmatprep.subr.bf16.mxu0 0
      %965 = vmatpush1.bf16.msra.mxu0 0
      %966 = vmatprep.subr.bf16.mxu0 0
      %967 = vmatpush1.bf16.msra.mxu0 0
      %968 = vmatprep.subr.bf16.mxu0 0
      %969 = vmatpush1.bf16.msra.mxu0 0
      %970 = vmatprep.subr.bf16.mxu0 0
      %971 = vmatpush1.bf16.msra.mxu0 0
      %972 = vmatprep.subr.bf16.mxu0 0
      %973 = vmatpush1.bf16.msra.mxu0 0
      %974 = vmatprep.subr.bf16.mxu0 0
      %975 = vmatpush1.bf16.msra.mxu0 0
      %976 = vmatprep.mubr.bf16.mxu0 0
      %977 = vmatmul.mubr.bf16.gmra.mrb[0].mxu0 %v939
      %v978 = vpop.f32.mrb[0].mxu0
      %v979 = vadd.f32 0.0, %v978
      %v980 = vpop.f32.mrb[0].mxu0
      %v981 = vpop.f32.mrb[0].mxu0
      %v982 = vadd.f32 0.0, %v981
      %v983 = vpop.f32.mrb[0].mxu0
      %984 = vmatprep.mubr.bf16.mxu0 0
      %985 = vmatmul.mubr.bf16.gmra.mrb[0].mxu0 %v942
      %v986 = vpop.f32.mrb[0].mxu0
      %v987 = vadd.f32 0.0, %v986
      %v988 = vpop.f32.mrb[0].mxu0
      %v989 = vpop.f32.mrb[0].mxu0
      %v990 = vadd.f32 0.0, %v989
      %v991 = vpop.f32.mrb[0].mxu0
      %992 = vdwg.mxu0
      %v993 = vadd.f32 %v901, %v979
      %v994 = vadd.f32 %v902, %v982
      %v995 = vadd.f32 %v903, %v987
      %v996 = vadd.f32 %v904, %v990
      %v997 = vld [vmem:[%s2] sm:$0x1]
      %v999 = vlaneseq
      %v1000 = vshrl.u32 %v999, 7
      %v1001 = vsub.s32 0, %v1000
      %v1002 = vrot.slane %v997, %v1001
      %v1004 = vadd.f32 %v993, %v1002
      %v1005 = vadd.f32 %v994, %v1002
      %v1006 = vadd.f32 %v995, %v1002
      %v1007 = vadd.f32 %v996, %v1002
      %v1008 = vmul.f32 %v1004, 0.5
      %v1009 = vmul.f32 %v1005, 0.5
      %v1010 = vmul.f32 %v1006, 0.5
      %v1011 = vmul.f32 %v1007, 0.5
      %v1012 = vmul.f32 %v1004, 0.70710677
      %v1013 = vmul.f32 %v1005, 0.70710677
      %v1014 = vmul.f32 %v1006, 0.70710677
      %v1015 = vmul.f32 %v1007, 0.70710677
      %vm1016 = vcmp.ge.f32.partialorder %v1012, 0.0
      %vm1017 = vcmp.ge.f32.partialorder %v1013, 0.0
      %vm1018 = vcmp.ge.f32.partialorder %v1014, 0.0
      %vm1019 = vcmp.ge.f32.partialorder %v1015, 0.0
      %v1020 = vsel %vm1016, 1.0, -1.0
      %v1021 = vsel %vm1017, 1.0, -1.0
      %v1022 = vsel %vm1018, 1.0, -1.0
      %v1023 = vsel %vm1019, 1.0, -1.0
      %v1024 = vand.u32 2147483647, %v1012
      %v1025 = vand.u32 2147483647, %v1013
      %v1026 = vand.u32 2147483647, %v1014
      %v1027 = vand.u32 2147483647, %v1015
      %v1028 = vmul.f32 %v1024, 0.3275911
      %v1029 = vmul.f32 %v1025, 0.3275911
      %v1030 = vmul.f32 %v1026, 0.3275911
      %v1031 = vmul.f32 %v1027, 0.3275911
      %v1032 = vadd.f32 %v1028, 1.0
      %v1033 = vadd.f32 %v1029, 1.0
      %v1034 = vadd.f32 %v1030, 1.0
      %v1035 = vadd.f32 %v1031, 1.0
      %v1036 = vrcp.pop %v1032
      %v1037 = vmul.f32 1.0, %v1036
      %v1038 = vrcp.pop %v1033
      %v1039 = vmul.f32 1.0, %v1038
      %v1040 = vrcp.pop %v1034
      %v1041 = vmul.f32 1.0, %v1040
      %v1042 = vrcp.pop %v1035
      %v1043 = vmul.f32 1.0, %v1042
      %v1044 = vmul.f32 %v1037, 1.0614054
      %v1045 = vmul.f32 %v1039, 1.0614054
      %v1046 = vmul.f32 %v1041, 1.0614054
      %v1047 = vmul.f32 %v1043, 1.0614054
      %v1048 = vadd.f32 %v1044, -1.4531521
      %v1049 = vadd.f32 %v1045, -1.4531521
      %v1050 = vadd.f32 %v1046, -1.4531521
      %v1051 = vadd.f32 %v1047, -1.4531521
      %v1052 = vmul.f32 %v1048, %v1037
      %v1053 = vmul.f32 %v1049, %v1039
      %v1054 = vmul.f32 %v1050, %v1041
      %v1055 = vmul.f32 %v1051, %v1043
      %v1056 = vadd.f32 %v1052, 1.4214138
      %v1057 = vadd.f32 %v1053, 1.4214138
      %v1058 = vadd.f32 %v1054, 1.4214138
      %v1059 = vadd.f32 %v1055, 1.4214138
      %v1060 = vmul.f32 %v1056, %v1037
      %v1061 = vmul.f32 %v1057, %v1039
      %v1062 = vmul.f32 %v1058, %v1041
      %v1063 = vmul.f32 %v1059, %v1043
      %v1064 = vadd.f32 %v1060, -0.28449672
      %v1065 = vadd.f32 %v1061, -0.28449672
      %v1066 = vadd.f32 %v1062, -0.28449672
      %v1067 = vadd.f32 %v1063, -0.28449672
      %v1068 = vmul.f32 %v1064, %v1037
      %v1069 = vmul.f32 %v1065, %v1039
      %v1070 = vmul.f32 %v1066, %v1041
      %v1071 = vmul.f32 %v1067, %v1043
      %v1072 = vadd.f32 %v1068, 0.2548296
      %v1073 = vadd.f32 %v1069, 0.2548296
      %v1074 = vadd.f32 %v1070, 0.2548296
      %v1075 = vadd.f32 %v1071, 0.2548296
      %v1076 = vmul.f32 %v1072, %v1037
      %v1077 = vmul.f32 %v1073, %v1039
      %v1078 = vmul.f32 %v1074, %v1041
      %v1079 = vmul.f32 %v1075, %v1043
      %v1080 = vsub.f32 0.0, %v1024
      %v1081 = vsub.f32 0.0, %v1025
      %v1082 = vsub.f32 0.0, %v1026
      %v1083 = vsub.f32 0.0, %v1027
      %v1084 = vmul.f32 %v1080, %v1024
      %v1085 = vmul.f32 %v1081, %v1025
      %v1086 = vmul.f32 %v1082, %v1026
      %v1087 = vmul.f32 %v1083, %v1027
      %v1088 = vmul.f32 %v1084, 1.442695
      %v1089 = vpow.pop %v1088
      %v1090 = vmul.f32 %v1085, 1.442695
      %v1091 = vpow.pop %v1090
      %v1092 = vmul.f32 %v1086, 1.442695
      %v1093 = vpow.pop %v1092
      %v1094 = vmul.f32 %v1087, 1.442695
      %v1095 = vpow.pop %v1094
      %v1096 = vmul.f32 %v1076, %v1089
      %v1097 = vmul.f32 %v1077, %v1091
      %v1098 = vmul.f32 %v1078, %v1093
      %v1099 = vmul.f32 %v1079, %v1095
      %v1100 = vsub.f32 1.0, %v1096
      %v1101 = vsub.f32 1.0, %v1097
      %v1102 = vsub.f32 1.0, %v1098
      %v1103 = vsub.f32 1.0, %v1099
      %v1104 = vmul.f32 %v1020, %v1100
      %v1105 = vmul.f32 %v1021, %v1101
      %v1106 = vmul.f32 %v1022, %v1102
      %v1107 = vmul.f32 %v1023, %v1103
      %v1108 = vadd.f32 %v1104, 1.0
      %v1109 = vadd.f32 %v1105, 1.0
      %v1110 = vadd.f32 %v1106, 1.0
      %v1111 = vadd.f32 %v1107, 1.0
      %v1112 = vmul.f32 %v1008, %v1108
      %v1113 = vmul.f32 %v1009, %v1109
      %v1114 = vmul.f32 %v1010, %v1110
      %v1115 = vmul.f32 %v1011, %v1111
      %1116 = vst [vmem:[%s170] sm:$0xff] %v1112
      %1117 = vst [vmem:[%s170 + $0x8] sm:$0xff] %v1113
      %1118 = vst [vmem:[%s170 + $0x10] sm:$0xff] %v1114
      %1119 = vst [vmem:[%s170 + $0x18] sm:$0xff] %v1115
      %p1120 = scmp.lt.s32.totalorder %s14, 1
      %s1121 = scalar_select %p1120, %s14, 1
      %s1122 = smul.addr %s1121, 4
      %s1123 = smul.addr %s1122, 8
      %s1124 = scalar_lea.vmem %s3, %s1123
      // Predicated region
      $region33: #{convnext_stem_forward.8} parent=31 // pred_check
        %p1125 = pneg %p100
      $region34: #{convnext_stem_forward.8} parent=31 // pred_check_branch
        %1127 = sbr.rel (%p1125) target = $region36
      $region35: #{convnext_stem_forward.8} parent=31 // pred_region
        _
      $region36: #{convnext_stem_forward.8} parent=31 // pred_fallthru
        _
    $region32: #{convnext_stem_forward.8} parent=5 // pred_fallthru
      _
    %p1128 = scmp.le.s32.totalorder 2, %s9
    // Predicated region
    $region37: #{convnext_stem_forward.8} parent=5 // pred_check
      %p1129 = pneg %p1128
    $region38: #{convnext_stem_forward.8} parent=5 // pred_check_branch
      %1131 = sbr.rel (%p1129) target = $region40
    $region39: #{convnext_stem_forward.8} parent=5 // pred_region
      %s1132 = ssub.s32 %s9, 2
      // Predicated region
      $region41: #{convnext_stem_forward.8} parent=39 // pred_check
        %p1133 = pneg %p106
      $region42: #{convnext_stem_forward.8} parent=39 // pred_check_branch
        %1135 = sbr.rel (%p1133) target = $region44
      $region43: #{convnext_stem_forward.8} parent=39 // pred_region
        %p1136 = scmp.lt.s32.totalorder %s15, 1
        %s1137 = scalar_select %p1136, %s15, 1
        %s1138 = smul.addr %s1137, 4
        %s1139 = smul.addr %s1138, 8
        %s1140 = scalar_lea.vmem %s3, %s1139
      $region44: #{convnext_stem_forward.8} parent=39 // pred_fallthru
        _
    $region40: #{convnext_stem_forward.8} parent=5 // pred_fallthru
      _
  $region6: #{convnext_stem_forward.8} parent=0 // loop_footer
    %s13 = sadd.s32 1, %s9
  $region7: #{convnext_stem_forward.8} parent=0 // loop_footer_branch
    %8 = sbr.rel target = $region3
  $region8: #{convnext_stem_forward.8} parent=0 // loop_exit
    _

// kernel: convnext_stem_forward.9
$region0: #{convnext_stem_forward.9}
  #allocation0 [shape = 'u32[]', space=smem, size = 0x4, offset = 0x4, fixed_abs, tag = 'smem constant byte address 0x4 - core index']
  #allocation1 [shape = 'u32[144,128]{1,0:T(1,128)}', space=vmem, size = 0x12000, scoped, tag = 'internal scratch']
  %s0 = inlined_call_operand.vmem [shape: f32[2,14,10,128], index: 0, kind: input, shape index: {}]
  %s1 = inlined_call_operand.vmem [shape: f32[7,7,1,128], index: 1, kind: input, shape index: {}]
  %s2 = inlined_call_operand.vmem [shape: f32[1,128], index: 2, kind: input, shape index: {}]
  %s3 = inlined_call_operand.vmem [shape: f32[2,8,4,128], index: 3, kind: output, shape index: {}]
  %s4 = sld [smem:[#allocation0]]
  $region52: #{convnext_stem_forward.9} parent=0
    _
  %s6 = ssub.s32 1, %s4
  %s7 = scalar_select 0, %s6, %s4
  loop: start=0, step=1, limit=4
  $region2: #{convnext_stem_forward.9} parent=0 // loop_pre_header
    _
  $region3: #{convnext_stem_forward.9} parent=0 // loop_header
    %s9 = sphi 0, %s13
    %p10 = scmp.ge.s32.totalorder %s9, 4
    %s19 = sphi 0, %s21
    %s22 = sphi 0, %s19
    %s23 = sphi 0, %s22
    %s39 = sphi 0, %s23
    %s43 = sphi 0, %s43
    %s45 = sphi 0, %s43
    %s46 = sphi 0, %s45
    %s60 = sphi 0, %s46
    %s64 = sphi 0, %s64
    %s66 = sphi 0, %s64
    %s67 = sphi 0, %s66
    %s81 = sphi 0, %s67
    %s87 = sphi 0, %s89
    %s90 = sphi 0, %s87
    %s91 = sphi 0, %s90
    %s107 = sphi 0, %s91
  $region4: #{convnext_stem_forward.9} parent=0 // loop_header_branch
    %12 = sbr.rel (%p10) target = $region8
  $region5: #{convnext_stem_forward.9} parent=0 // loop_body
    %s14 = ssub.s32 %s9, 1
    %s15 = ssub.s32 %s9, 2
    %s16 = sadd.s32 %s9, 1
    %s17 = ssub.s32 %s9, %s16
    %p18 = scmp.eq.s32.totalorder %s17, 0
    %s20 = sadd.s32 %s19, 1
    %s21 = scalar_select %p18, %s19, %s20
    %p24 = pneg %p18
    %p25 = scmp.eq.s32.totalorder %s9, 1
    %p26 = por %p24, %p25
    %p27 = scmp.ne.s32.totalorder %s19, %s22
    %p28 = scmp.eq.s32.totalorder %s9, 0
    %p29 = por %p27, %p28
    %p30 = scmp.ne.s32.totalorder %s19, %s22
    %p31 = scmp.eq.s32.totalorder %s14, 1
    %p32 = por %p30, %p31
    %p33 = scmp.ne.s32.totalorder %s22, %s23
    %p34 = scmp.eq.s32.totalorder %s14, 0
    %p35 = por %p33, %p34
    %p36 = scmp.ne.s32.totalorder %s22, %s23
    %p37 = scmp.eq.s32.totalorder %s15, 1
    %p38 = por %p36, %p37
    %p40 = scmp.ne.s32.totalorder %s23, %s39
    %p41 = scmp.eq.s32.totalorder %s15, 0
    %p42 = por %p40, %p41
    %s44 = sadd.s32 %s43, 1
    %p47 = scmp.eq.s32.totalorder %s9, 1
    %p48 = scmp.ne.s32.totalorder %s43, %s45
    %p49 = scmp.eq.s32.totalorder %s9, 0
    %p50 = por %p48, %p49
    %p51 = scmp.ne.s32.totalorder %s43, %s45
    %p52 = scmp.eq.s32.totalorder %s14, 1
    %p53 = por %p51, %p52
    %p54 = scmp.ne.s32.totalorder %s45, %s46
    %p55 = scmp.eq.s32.totalorder %s14, 0
    %p56 = por %p54, %p55
    %p57 = scmp.ne.s32.totalorder %s45, %s46
    %p58 = scmp.eq.s32.totalorder %s15, 1
    %p59 = por %p57, %p58
    %p61 = scmp.ne.s32.totalorder %s46, %s60
    %p62 = scmp.eq.s32.totalorder %s15, 0
    %p63 = por %p61, %p62
    %s65 = sadd.s32 %s64, 1
    %p68 = scmp.eq.s32.totalorder %s9, 1
    %p69 = scmp.ne.s32.totalorder %s64, %s66
    %p70 = scmp.eq.s32.totalorder %s9, 0
    %p71 = por %p69, %p70
    %p72 = scmp.ne.s32.totalorder %s64, %s66
    %p73 = scmp.eq.s32.totalorder %s14, 1
    %p74 = por %p72, %p73
    %p75 = scmp.ne.s32.totalorder %s66, %s67
    %p76 = scmp.eq.s32.totalorder %s14, 0
    %p77 = por %p75, %p76
    %p78 = scmp.ne.s32.totalorder %s66, %s67
    %p79 = scmp.eq.s32.totalorder %s15, 1
    %p80 = por %p78, %p79
    %p82 = scmp.ne.s32.totalorder %s67, %s81
    %p83 = scmp.eq.s32.totalorder %s15, 0
    %p84 = por %p82, %p83
    %s85 = ssub.s32 %s9, %s16
    %p86 = scmp.eq.s32.totalorder %s85, 0
    %s88 = sadd.s32 %s87, 1
    %s89 = scalar_select %p86, %s87, %s88
    %p92 = pneg %p86
    %p93 = scmp.eq.s32.totalorder %s9, 1
    %p94 = por %p92, %p93
    %p95 = scmp.ne.s32.totalorder %s87, %s90
    %p96 = scmp.eq.s32.totalorder %s9, 0
    %p97 = por %p95, %p96
    %p98 = scmp.ne.s32.totalorder %s87, %s90
    %p99 = scmp.eq.s32.totalorder %s14, 1
    %p100 = por %p98, %p99
    %p101 = scmp.ne.s32.totalorder %s90, %s91
    %p102 = scmp.eq.s32.totalorder %s14, 0
    %p103 = por %p101, %p102
    %p104 = scmp.ne.s32.totalorder %s90, %s91
    %p105 = scmp.eq.s32.totalorder %s15, 1
    %p106 = por %p104, %p105
    %p108 = scmp.ne.s32.totalorder %s91, %s107
    %p109 = scmp.eq.s32.totalorder %s15, 0
    %p110 = por %p108, %p109
    %p111 = scmp.le.s32.totalorder 1, %s9
    %p112 = scmp.lt.s32.totalorder %s9, 3
    %p113 = pnand %p111, %p112
    %p114 = pneg %p113
    // Predicated region
    $region9: #{convnext_stem_forward.9} parent=5 // pred_check
      _
    $region10: #{convnext_stem_forward.9} parent=5 // pred_check_branch
      %116 = sbr.rel (%p113) target = $region12
    $region11: #{convnext_stem_forward.9} parent=5 // pred_region
      %s117 = ssub.s32 %s9, 1
      // Predicated region
      $region13: #{convnext_stem_forward.9} parent=11 // pred_check
        %p118 = pneg %p56
      $region14: #{convnext_stem_forward.9} parent=11 // pred_check_branch
        %120 = sbr.rel (%p118) target = $region16
      $region15: #{convnext_stem_forward.9} parent=11 // pred_region
        _
      $region16: #{convnext_stem_forward.9} parent=11 // pred_fallthru
        _
      // Predicated region
      $region17: #{convnext_stem_forward.9} parent=11 // pred_check
        %p121 = pneg %p77
      $region18: #{convnext_stem_forward.9} parent=11 // pred_check_branch
        %123 = sbr.rel (%p121) target = $region20
      $region19: #{convnext_stem_forward.9} parent=11 // pred_region
        _
      $region20: #{convnext_stem_forward.9} parent=11 // pred_fallthru
        _
    $region12: #{convnext_stem_forward.9} parent=5 // pred_fallthru
      _
    %p124 = scmp.lt.s32.totalorder %s9, 2
    // Predicated region
    $region21: #{convnext_stem_forward.9} parent=5 // pred_check
      %p125 = pneg %p124
    $region22: #{convnext_stem_forward.9} parent=5 // pred_check_branch
      %127 = sbr.rel (%p125) target = $region24
    $region23: #{convnext_stem_forward.9} parent=5 // pred_region
      // Predicated region
      $region25: #{convnext_stem_forward.9} parent=23 // pred_check
        %p128 = pneg %p29
      $region26: #{convnext_stem_forward.9} parent=23 // pred_check_branch
        %130 = sbr.rel (%p128) target = $region28
      $region27: #{convnext_stem_forward.9} parent=23 // pred_region
        %p131 = scmp.lt.s32.totalorder %s9, 1
        %s132 = scalar_select %p131, %s9, 1
        %s133 = smul.addr %s132, 28
        %s134 = smul.addr %s133, 8
        %s135 = scalar_lea.vmem %s0, %s134
      $region28: #{convnext_stem_forward.9} parent=23 // pred_fallthru
        _
    $region24: #{convnext_stem_forward.9} parent=5 // pred_fallthru
      _
    %p136 = scmp.le.s32.totalorder 1, %s9
    %p137 = scmp.lt.s32.totalorder %s9, 3
    %p138 = pnand %p136, %p137
    %p139 = pneg %p138
    // Predicated region
    $region29: #{convnext_stem_forward.9} parent=5 // pred_check
      _
    $region30: #{convnext_stem_forward.9} parent=5 // pred_check_branch
      %141 = sbr.rel (%p138) target = $region32
    $region31: #{convnext_stem_forward.9} parent=5 // pred_region
      %s142 = ssub.s32 %s9, 1
      %p143 = scmp.lt.s32.totalorder %s14, 1
      %s144 = scalar_select %p143, %s14, 1
      %s145 = smul.addr %s144, 28
      %s146 = smul.addr %s145, 8
      %s147 = scalar_lea.vmem %s0, %s146
      %p148 = pneg %p35
      %p149 = pneg %p32
      %p150 = pneg %p56
      %p151 = pneg %p53
      %p152 = pneg %p77
      %p153 = pneg %p74
      %p154 = pneg %p103
      %p155 = pneg %p100
      %p156 = scmp.lt.s32.totalorder %s14, 1
      %s157 = scalar_select %p156, %s14, 1
      %s158 = smul.addr %s157, 8
      %s159 = smul.addr %s158, 4
      %s160 = scalar_lea.vmem %s3, %s159
      %p161 = scmp.lt.s32.totalorder %s14, 1
      %s162 = scalar_select %p161, %s14, 1
      %s163 = smul.addr %s162, 28
      %s164 = smul.addr %s163, 8
      %s165 = scalar_lea.vmem %s0, %s164
      %p166 = scmp.lt.s32.totalorder %s14, 1
      %s167 = scalar_select %p166, %s14, 1
      %s168 = smul.addr %s167, 8
      %s169 = smul.addr %s168, 4
      %s170 = scalar_lea.vmem %s3, %s169
      %v171 = vld [vmem:[%s1] sm:$0x1]
      %v172 = vld [vmem:[%s1 + $0x1] sm:$0x1]
      %v173 = vld [vmem:[%s1 + $0x2] sm:$0x1]
      %v174 = vld [vmem:[%s1 + $0x3] sm:$0x1]
      %v175 = vld [vmem:[%s1 + $0x4] sm:$0x1]
      %v176 = vld [vmem:[%s1 + $0x5] sm:$0x1]
      %v177 = vld [vmem:[%s1 + $0x6] sm:$0x1]
      %v178 = vld [vmem:[%s1 + $0x7] sm:$0x1]
      %v179 = vld [vmem:[%s1 + $0x8] sm:$0x1]
      %v180 = vld [vmem:[%s1 + $0x9] sm:$0x1]
      %v181 = vld [vmem:[%s1 + $0xa] sm:$0x1]
      %v182 = vld [vmem:[%s1 + $0xb] sm:$0x1]
      %v183 = vld [vmem:[%s1 + $0xc] sm:$0x1]
      %v184 = vld [vmem:[%s1 + $0xd] sm:$0x1]
      %v185 = vld [vmem:[%s1 + $0xe] sm:$0x1]
      %v186 = vld [vmem:[%s1 + $0xf] sm:$0x1]
      %v187 = vld [vmem:[%s1 + $0x10] sm:$0x1]
      %v188 = vld [vmem:[%s1 + $0x11] sm:$0x1]
      %v189 = vld [vmem:[%s1 + $0x12] sm:$0x1]
      %v190 = vld [vmem:[%s1 + $0x13] sm:$0x1]
      %v191 = vld [vmem:[%s1 + $0x14] sm:$0x1]
      %v192 = vld [vmem:[%s1 + $0x15] sm:$0x1]
      %v193 = vld [vmem:[%s1 + $0x16] sm:$0x1]
      %v194 = vld [vmem:[%s1 + $0x17] sm:$0x1]
      %v195 = vld [vmem:[%s1 + $0x18] sm:$0x1]
      %v196 = vld [vmem:[%s1 + $0x19] sm:$0x1]
      %v197 = vld [vmem:[%s1 + $0x1a] sm:$0x1]
      %v198 = vld [vmem:[%s1 + $0x1b] sm:$0x1]
      %v199 = vld [vmem:[%s1 + $0x1c] sm:$0x1]
      %v200 = vld [vmem:[%s1 + $0x1d] sm:$0x1]
      %v201 = vld [vmem:[%s1 + $0x1e] sm:$0x1]
      %v202 = vld [vmem:[%s1 + $0x1f] sm:$0x1]
      %v203 = vld [vmem:[%s1 + $0x20] sm:$0x1]
      %v204 = vld [vmem:[%s1 + $0x21] sm:$0x1]
      %v205 = vld [vmem:[%s1 + $0x22] sm:$0x1]
      %v206 = vld [vmem:[%s1 + $0x23] sm:$0x1]
      %v207 = vld [vmem:[%s1 + $0x24] sm:$0x1]
      %v208 = vld [vmem:[%s1 + $0x25] sm:$0x1]
      %v209 = vld [vmem:[%s1 + $0x26] sm:$0x1]
      %v210 = vld [vmem:[%s1 + $0x27] sm:$0x1]
      %v211 = vld [vmem:[%s1 + $0x28] sm:$0x1]
      %v212 = vld [vmem:[%s1 + $0x29] sm:$0x1]
      %v213 = vld [vmem:[%s1 + $0x2a] sm:$0x1]
      %v214 = vld [vmem:[%s1 + $0x2b] sm:$0x1]
      %v215 = vld [vmem:[%s1 + $0x2c] sm:$0x1]
      %v216 = vld [vmem:[%s1 + $0x2d] sm:$0x1]
      %v217 = vld [vmem:[%s1 + $0x2e] sm:$0x1]
      %v218 = vld [vmem:[%s1 + $0x2f] sm:$0x1]
      %v219 = vld [vmem:[%s1 + $0x30] sm:$0x1]
      %v220 = vld [vmem:[%s2] sm:$0x1]
      loop: start=0, step=1, limit=8
      $region33: #{convnext_stem_forward.9} parent=31 // loop_pre_header
        _
      $region34: #{convnext_stem_forward.9} parent=31 // loop_header
        %s222 = sphi 0, %s226
        %p223 = scmp.ge.s32.totalorder %s222, 8
      $region35: #{convnext_stem_forward.9} parent=31 // loop_header_branch
        %225 = sbr.rel (%p223) target = $region39
      $region36: #{convnext_stem_forward.9} parent=31 // loop_body
        %s227 = smul.u32 %s222, 16
        %s228 = scalar_lea.vmem %s165, %s227
        %v229 = vld [vmem:[%s228] sm:$0xf]
        %v231 = vlaneseq
        %v232 = vshrl.u32 %v231, 7
        %v233 = vsub.s32 0, %v232
        %v234 = vrot.slane %v171, %v233
        %v236 = vmul.f32 %v229, %v234
        %v237 = vadd.f32 %v236, 0.0
        %v238 = vld [vmem:[%s228 + $0x1] sm:$0xf]
        %v240 = vlaneseq
        %v241 = vshrl.u32 %v240, 7
        %v242 = vsub.s32 0, %v241
        %v243 = vrot.slane %v172, %v242
        %v245 = vmul.f32 %v238, %v243
        %v246 = vadd.f32 %v237, %v245
        %v247 = vld [vmem:[%s228 + $0x2] sm:$0xf]
        %v249 = vlaneseq
        %v250 = vshrl.u32 %v249, 7
        %v251 = vsub.s32 0, %v250
        %v252 = vrot.slane %v173, %v251
        %v254 = vmul.f32 %v247, %v252
        %v255 = vadd.f32 %v246, %v254
        %v256 = vld [vmem:[%s228 + $0x3] sm:$0xf]
        %v258 = vlaneseq
        %v259 = vshrl.u32 %v258, 7
        %v260 = vsub.s32 0, %v259
        %v261 = vrot.slane %v174, %v260
        %v263 = vmul.f32 %v256, %v261
        %v264 = vadd.f32 %v255, %v263
        %v265 = vld [vmem:[%s228 + $0x4] sm:$0xf]
        %v267 = vlaneseq
        %v268 = vshrl.u32 %v267, 7
        %v269 = vsub.s32 0, %v268
        %v270 = vrot.slane %v175, %v269
        %v272 = vmul.f32 %v265, %v270
        %v273 = vadd.f32 %v264, %v272
        %v274 = vld [vmem:[%s228 + $0x5] sm:$0xf]
        %v276 = vlaneseq
        %v277 = vshrl.u32 %v276, 7
        %v278 = vsub.s32 0, %v277
        %v279 = vrot.slane %v176, %v278
        %v281 = vmul.f32 %v274, %v279
        %v282 = vadd.f32 %v273, %v281
        %v283 = vld [vmem:[%s228 + $0x6] sm:$0xf]
        %v285 = vlaneseq
        %v286 = vshrl.u32 %v285, 7
        %v287 = vsub.s32 0, %v286
        %v288 = vrot.slane %v177, %v287
        %v290 = vmul.f32 %v283, %v288
        %v291 = vadd.f32 %v282, %v290
        %s292 = sadd.s32 %s222, 1
        %s293 = smul.u32 %s292, 16
        %s294 = scalar_lea.vmem %s165, %s293
        %v295 = vld [vmem:[%s294] sm:$0xf]
        %v297 = vlaneseq
        %v298 = vshrl.u32 %v297, 7
        %v299 = vsub.s32 0, %v298
        %v300 = vrot.slane %v178, %v299
        %v302 = vmul.f32 %v295, %v300
        %v303 = vadd.f32 %v291, %v302
        %v304 = vld [vmem:[%s294 + $0x1] sm:$0xf]
        %v306 = vlaneseq
        %v307 = vshrl.u32 %v306, 7
        %v308 = vsub.s32 0, %v307
        %v309 = vrot.slane %v179, %v308
        %v311 = vmul.f32 %v304, %v309
        %v312 = vadd.f32 %v303, %v311
        %v313 = vld [vmem:[%s294 + $0x2] sm:$0xf]
        %v315 = vlaneseq
        %v316 = vshrl.u32 %v315, 7
        %v317 = vsub.s32 0, %v316
        %v318 = vrot.slane %v180, %v317
        %v320 = vmul.f32 %v313, %v318
        %v321 = vadd.f32 %v312, %v320
        %v322 = vld [vmem:[%s294 + $0x3] sm:$0xf]
        %v324 = vlaneseq
        %v325 = vshrl.u32 %v324, 7
        %v326 = vsub.s32 0, %v325
        %v327 = vrot.slane %v181, %v326
        %v329 = vmul.f32 %v322, %v327
        %v330 = vadd.f32 %v321, %v329
        %v331 = vld [vmem:[%s294 + $0x4] sm:$0xf]
        %v333 = vlaneseq
        %v334 = vshrl.u32 %v333, 7
        %v335 = vsub.s32 0, %v334
        %v336 = vrot.slane %v182, %v335
        %v338 = vmul.f32 %v331, %v336
        %v339 = vadd.f32 %v330, %v338
        %v340 = vld [vmem:[%s294 + $0x5] sm:$0xf]
        %v342 = vlaneseq
        %v343 = vshrl.u32 %v342, 7
        %v344 = vsub.s32 0, %v343
        %v345 = vrot.slane %v183, %v344
        %v347 = vmul.f32 %v340, %v345
        %v348 = vadd.f32 %v339, %v347
        %v349 = vld [vmem:[%s294 + $0x6] sm:$0xf]
        %v351 = vlaneseq
        %v352 = vshrl.u32 %v351, 7
        %v353 = vsub.s32 0, %v352
        %v354 = vrot.slane %v184, %v353
        %v356 = vmul.f32 %v349, %v354
        %v357 = vadd.f32 %v348, %v356
        %s358 = sadd.s32 %s222, 2
        %s359 = smul.u32 %s358, 16
        %s360 = scalar_lea.vmem %s165, %s359
        %v361 = vld [vmem:[%s360] sm:$0xf]
        %v363 = vlaneseq
        %v364 = vshrl.u32 %v363, 7
        %v365 = vsub.s32 0, %v364
        %v366 = vrot.slane %v185, %v365
        %v368 = vmul.f32 %v361, %v366
        %v369 = vadd.f32 %v357, %v368
        %v370 = vld [vmem:[%s360 + $0x1] sm:$0xf]
        %v372 = vlaneseq
        %v373 = vshrl.u32 %v372, 7
        %v374 = vsub.s32 0, %v373
        %v375 = vrot.slane %v186, %v374
        %v377 = vmul.f32 %v370, %v375
        %v378 = vadd.f32 %v369, %v377
        %v379 = vld [vmem:[%s360 + $0x2] sm:$0xf]
        %v381 = vlaneseq
        %v382 = vshrl.u32 %v381, 7
        %v383 = vsub.s32 0, %v382
        %v384 = vrot.slane %v187, %v383
        %v386 = vmul.f32 %v379, %v384
        %v387 = vadd.f32 %v378, %v386
        %v388 = vld [vmem:[%s360 + $0x3] sm:$0xf]
        %v390 = vlaneseq
        %v391 = vshrl.u32 %v390, 7
        %v392 = vsub.s32 0, %v391
        %v393 = vrot.slane %v188, %v392
        %v395 = vmul.f32 %v388, %v393
        %v396 = vadd.f32 %v387, %v395
        %v397 = vld [vmem:[%s360 + $0x4] sm:$0xf]
        %v399 = vlaneseq
        %v400 = vshrl.u32 %v399, 7
        %v401 = vsub.s32 0, %v400
        %v402 = vrot.slane %v189, %v401
        %v404 = vmul.f32 %v397, %v402
        %v405 = vadd.f32 %v396, %v404
        %v406 = vld [vmem:[%s360 + $0x5] sm:$0xf]
        %v408 = vlaneseq
        %v409 = vshrl.u32 %v408, 7
        %v410 = vsub.s32 0, %v409
        %v411 = vrot.slane %v190, %v410
        %v413 = vmul.f32 %v406, %v411
        %v414 = vadd.f32 %v405, %v413
        %v415 = vld [vmem:[%s360 + $0x6] sm:$0xf]
        %v417 = vlaneseq
        %v418 = vshrl.u32 %v417, 7
        %v419 = vsub.s32 0, %v418
        %v420 = vrot.slane %v191, %v419
        %v422 = vmul.f32 %v415, %v420
        %v423 = vadd.f32 %v414, %v422
        %s424 = sadd.s32 %s222, 3
        %s425 = smul.u32 %s424, 16
        %s426 = scalar_lea.vmem %s165, %s425
        %v427 = vld [vmem:[%s426] sm:$0xf]
        %v429 = vlaneseq
        %v430 = vshrl.u32 %v429, 7
        %v431 = vsub.s32 0, %v430
        %v432 = vrot.slane %v192, %v431
        %v434 = vmul.f32 %v427, %v432
        %v435 = vadd.f32 %v423, %v434
        %v436 = vld [vmem:[%s426 + $0x1] sm:$0xf]
        %v438 = vlaneseq
        %v439 = vshrl.u32 %v438, 7
        %v440 = vsub.s32 0, %v439
        %v441 = vrot.slane %v193, %v440
        %v443 = vmul.f32 %v436, %v441
        %v444 = vadd.f32 %v435, %v443
        %v445 = vld [vmem:[%s426 + $0x2] sm:$0xf]
        %v447 = vlaneseq
        %v448 = vshrl.u32 %v447, 7
        %v449 = vsub.s32 0, %v448
        %v450 = vrot.slane %v194, %v449
        %v452 = vmul.f32 %v445, %v450
        %v453 = vadd.f32 %v444, %v452
        %v454 = vld [vmem:[%s426 + $0x3] sm:$0xf]
        %v456 = vlaneseq
        %v457 = vshrl.u32 %v456, 7
        %v458 = vsub.s32 0, %v457
        %v459 = vrot.slane %v195, %v458
        %v461 = vmul.f32 %v454, %v459
        %v462 = vadd.f32 %v453, %v461
        %v463 = vld [vmem:[%s426 + $0x4] sm:$0xf]
        %v465 = vlaneseq
        %v466 = vshrl.u32 %v465, 7
        %v467 = vsub.s32 0, %v466
        %v468 = vrot.slane %v196, %v467
        %v470 = vmul.f32 %v463, %v468
        %v471 = vadd.f32 %v462, %v470
        %v472 = vld [vmem:[%s426 + $0x5] sm:$0xf]
        %v474 = vlaneseq
        %v475 = vshrl.u32 %v474, 7
        %v476 = vsub.s32 0, %v475
        %v477 = vrot.slane %v197, %v476
        %v479 = vmul.f32 %v472, %v477
        %v480 = vadd.f32 %v471, %v479
        %v481 = vld [vmem:[%s426 + $0x6] sm:$0xf]
        %v483 = vlaneseq
        %v484 = vshrl.u32 %v483, 7
        %v485 = vsub.s32 0, %v484
        %v486 = vrot.slane %v198, %v485
        %v488 = vmul.f32 %v481, %v486
        %v489 = vadd.f32 %v480, %v488
        %s490 = sadd.s32 %s222, 4
        %s491 = smul.u32 %s490, 16
        %s492 = scalar_lea.vmem %s165, %s491
        %v493 = vld [vmem:[%s492] sm:$0xf]
        %v495 = vlaneseq
        %v496 = vshrl.u32 %v495, 7
        %v497 = vsub.s32 0, %v496
        %v498 = vrot.slane %v199, %v497
        %v500 = vmul.f32 %v493, %v498
        %v501 = vadd.f32 %v489, %v500
        %v502 = vld [vmem:[%s492 + $0x1] sm:$0xf]
        %v504 = vlaneseq
        %v505 = vshrl.u32 %v504, 7
        %v506 = vsub.s32 0, %v505
        %v507 = vrot.slane %v200, %v506
        %v509 = vmul.f32 %v502, %v507
        %v510 = vadd.f32 %v501, %v509
        %v511 = vld [vmem:[%s492 + $0x2] sm:$0xf]
        %v513 = vlaneseq
        %v514 = vshrl.u32 %v513, 7
        %v515 = vsub.s32 0, %v514
        %v516 = vrot.slane %v201, %v515
        %v518 = vmul.f32 %v511, %v516
        %v519 = vadd.f32 %v510, %v518
        %v520 = vld [vmem:[%s492 + $0x3] sm:$0xf]
        %v522 = vlaneseq
        %v523 = vshrl.u32 %v522, 7
        %v524 = vsub.s32 0, %v523
        %v525 = vrot.slane %v202, %v524
        %v527 = vmul.f32 %v520, %v525
        %v528 = vadd.f32 %v519, %v527
        %v529 = vld [vmem:[%s492 + $0x4] sm:$0xf]
        %v531 = vlaneseq
        %v532 = vshrl.u32 %v531, 7
        %v533 = vsub.s32 0, %v532
        %v534 = vrot.slane %v203, %v533
        %v536 = vmul.f32 %v529, %v534
        %v537 = vadd.f32 %v528, %v536
        %v538 = vld [vmem:[%s492 + $0x5] sm:$0xf]
        %v540 = vlaneseq
        %v541 = vshrl.u32 %v540, 7
        %v542 = vsub.s32 0, %v541
        %v543 = vrot.slane %v204, %v542
        %v545 = vmul.f32 %v538, %v543
        %v546 = vadd.f32 %v537, %v545
        %v547 = vld [vmem:[%s492 + $0x6] sm:$0xf]
        %v549 = vlaneseq
        %v550 = vshrl.u32 %v549, 7
        %v551 = vsub.s32 0, %v550
        %v552 = vrot.slane %v205, %v551
        %v554 = vmul.f32 %v547, %v552
        %v555 = vadd.f32 %v546, %v554
        %s556 = sadd.s32 %s222, 5
        %s557 = smul.u32 %s556, 16
        %s558 = scalar_lea.vmem %s165, %s557
        %v559 = vld [vmem:[%s558] sm:$0xf]
        %v561 = vlaneseq
        %v562 = vshrl.u32 %v561, 7
        %v563 = vsub.s32 0, %v562
        %v564 = vrot.slane %v206, %v563
        %v566 = vmul.f32 %v559, %v564
        %v567 = vadd.f32 %v555, %v566
        %v568 = vld [vmem:[%s558 + $0x1] sm:$0xf]
        %v570 = vlaneseq
        %v571 = vshrl.u32 %v570, 7
        %v572 = vsub.s32 0, %v571
        %v573 = vrot.slane %v207, %v572
        %v575 = vmul.f32 %v568, %v573
        %v576 = vadd.f32 %v567, %v575
        %v577 = vld [vmem:[%s558 + $0x2] sm:$0xf]
        %v579 = vlaneseq
        %v580 = vshrl.u32 %v579, 7
        %v581 = vsub.s32 0, %v580
        %v582 = vrot.slane %v208, %v581
        %v584 = vmul.f32 %v577, %v582
        %v585 = vadd.f32 %v576, %v584
        %v586 = vld [vmem:[%s558 + $0x3] sm:$0xf]
        %v588 = vlaneseq
        %v589 = vshrl.u32 %v588, 7
        %v590 = vsub.s32 0, %v589
        %v591 = vrot.slane %v209, %v590
        %v593 = vmul.f32 %v586, %v591
        %v594 = vadd.f32 %v585, %v593
        %v595 = vld [vmem:[%s558 + $0x4] sm:$0xf]
        %v597 = vlaneseq
        %v598 = vshrl.u32 %v597, 7
        %v599 = vsub.s32 0, %v598
        %v600 = vrot.slane %v210, %v599
        %v602 = vmul.f32 %v595, %v600
        %v603 = vadd.f32 %v594, %v602
        %v604 = vld [vmem:[%s558 + $0x5] sm:$0xf]
        %v606 = vlaneseq
        %v607 = vshrl.u32 %v606, 7
        %v608 = vsub.s32 0, %v607
        %v609 = vrot.slane %v211, %v608
        %v611 = vmul.f32 %v604, %v609
        %v612 = vadd.f32 %v603, %v611
        %v613 = vld [vmem:[%s558 + $0x6] sm:$0xf]
        %v615 = vlaneseq
        %v616 = vshrl.u32 %v615, 7
        %v617 = vsub.s32 0, %v616
        %v618 = vrot.slane %v212, %v617
        %v620 = vmul.f32 %v613, %v618
        %v621 = vadd.f32 %v612, %v620
        %s622 = sadd.s32 %s222, 6
        %s623 = smul.u32 %s622, 16
        %s624 = scalar_lea.vmem %s165, %s623
        %v625 = vld [vmem:[%s624] sm:$0xf]
        %v627 = vlaneseq
        %v628 = vshrl.u32 %v627, 7
        %v629 = vsub.s32 0, %v628
        %v630 = vrot.slane %v213, %v629
        %v632 = vmul.f32 %v625, %v630
        %v633 = vadd.f32 %v621, %v632
        %v634 = vld [vmem:[%s624 + $0x1] sm:$0xf]
        %v636 = vlaneseq
        %v637 = vshrl.u32 %v636, 7
        %v638 = vsub.s32 0, %v637
        %v639 = vrot.slane %v214, %v638
        %v641 = vmul.f32 %v634, %v639
        %v642 = vadd.f32 %v633, %v641
        %v643 = vld [vmem:[%s624 + $0x2] sm:$0xf]
        %v645 = vlaneseq
        %v646 = vshrl.u32 %v645, 7
        %v647 = vsub.s32 0, %v646
        %v648 = vrot.slane %v215, %v647
        %v650 = vmul.f32 %v643, %v648
        %v651 = vadd.f32 %v642, %v650
        %v652 = vld [vmem:[%s624 + $0x3] sm:$0xf]
        %v654 = vlaneseq
        %v655 = vshrl.u32 %v654, 7
        %v656 = vsub.s32 0, %v655
        %v657 = vrot.slane %v216, %v656
        %v659 = vmul.f32 %v652, %v657
        %v660 = vadd.f32 %v651, %v659
        %v661 = vld [vmem:[%s624 + $0x4] sm:$0xf]
        %v663 = vlaneseq
        %v664 = vshrl.u32 %v663, 7
        %v665 = vsub.s32 0, %v664
        %v666 = vrot.slane %v217, %v665
        %v668 = vmul.f32 %v661, %v666
        %v669 = vadd.f32 %v660, %v668
        %v670 = vld [vmem:[%s624 + $0x5] sm:$0xf]
        %v672 = vlaneseq
        %v673 = vshrl.u32 %v672, 7
        %v674 = vsub.s32 0, %v673
        %v675 = vrot.slane %v218, %v674
        %v677 = vmul.f32 %v670, %v675
        %v678 = vadd.f32 %v669, %v677
        %v679 = vld [vmem:[%s624 + $0x6] sm:$0xf]
        %v681 = vlaneseq
        %v682 = vshrl.u32 %v681, 7
        %v683 = vsub.s32 0, %v682
        %v684 = vrot.slane %v219, %v683
        %v686 = vmul.f32 %v679, %v684
        %v687 = vadd.f32 %v678, %v686
        %v689 = vlaneseq
        %v690 = vshrl.u32 %v689, 7
        %v691 = vsub.s32 0, %v690
        %v692 = vrot.slane %v220, %v691
        %v694 = vadd.f32 %v687, %v692
        %s695 = smul.u32 %s222, 4
        %s696 = scalar_lea.vmem %s170, %s695
        %697 = vst [vmem:[%s696] sm:$0xf] %v694
      $region37: #{convnext_stem_forward.9} parent=31 // loop_footer
        %s226 = sadd.s32 1, %s222
      $region38: #{convnext_stem_forward.9} parent=31 // loop_footer_branch
        %221 = sbr.rel target = $region34
      $region39: #{convnext_stem_forward.9} parent=31 // loop_exit
        _
      %p698 = scmp.lt.s32.totalorder %s14, 1
      %s699 = scalar_select %p698, %s14, 1
      %s700 = smul.addr %s699, 8
      %s701 = smul.addr %s700, 4
      %s702 = scalar_lea.vmem %s3, %s701
      // Predicated region
      $region40: #{convnext_stem_forward.9} parent=31 // pred_check
        %p703 = pneg %p100
      $region41: #{convnext_stem_forward.9} parent=31 // pred_check_branch
        %705 = sbr.rel (%p703) target = $region43
      $region42: #{convnext_stem_forward.9} parent=31 // pred_region
        _
      $region43: #{convnext_stem_forward.9} parent=31 // pred_fallthru
        _
    $region32: #{convnext_stem_forward.9} parent=5 // pred_fallthru
      _
    %p706 = scmp.le.s32.totalorder 2, %s9
    // Predicated region
    $region44: #{convnext_stem_forward.9} parent=5 // pred_check
      %p707 = pneg %p706
    $region45: #{convnext_stem_forward.9} parent=5 // pred_check_branch
      %709 = sbr.rel (%p707) target = $region47
    $region46: #{convnext_stem_forward.9} parent=5 // pred_region
      %s710 = ssub.s32 %s9, 2
      // Predicated region
      $region48: #{convnext_stem_forward.9} parent=46 // pred_check
        %p711 = pneg %p106
      $region49: #{convnext_stem_forward.9} parent=46 // pred_check_branch
        %713 = sbr.rel (%p711) target = $region51
      $region50: #{convnext_stem_forward.9} parent=46 // pred_region
        %p714 = scmp.lt.s32.totalorder %s15, 1
        %s715 = scalar_select %p714, %s15, 1
        %s716 = smul.addr %s715, 8
        %s717 = smul.addr %s716, 4
        %s718 = scalar_lea.vmem %s3, %s717
      $region51: #{convnext_stem_forward.9} parent=46 // pred_fallthru
        _
    $region47: #{convnext_stem_forward.9} parent=5 // pred_fallthru
      _
  $region6: #{convnext_stem_forward.9} parent=0 // loop_footer
    %s13 = sadd.s32 1, %s9
  $region7: #{convnext_stem_forward.9} parent=0 // loop_footer_branch
    %8 = sbr.rel target = $region3
  $region8: #{convnext_stem_forward.9} parent=0 // loop_exit
    _

// kernel: convnext_stem_forward.11
$region0: #{convnext_stem_forward.11}
  #allocation0 [shape = 'u32[]', space=smem, size = 0x4, offset = 0x4, fixed_abs, tag = 'smem constant byte address 0x4 - core index']
  #allocation1 [shape = 'u32[144,128]{1,0:T(1,128)}', space=vmem, size = 0x12000, scoped, tag = 'internal scratch']
  %s0 = inlined_call_operand.vmem [shape: f32[16,512], index: 0, kind: input, shape index: {}]
  %s1 = inlined_call_operand.vmem [shape: bf16[512,64], index: 1, kind: input, shape index: {}]
  %s2 = inlined_call_operand.vmem [shape: f32[1,64], index: 2, kind: input, shape index: {}]
  %s3 = inlined_call_operand.vmem [shape: f32[1,64], index: 3, kind: input, shape index: {}]
  %s4 = inlined_call_operand.vmem [shape: f32[1,64], index: 4, kind: input, shape index: {}]
  %s5 = inlined_call_operand.hbm [shape: f32[16,64], index: 5, kind: output, shape index: {}]
  %s6 = sld [smem:[#allocation0]]
  $region30: #{convnext_stem_forward.11} parent=0
    _
  %s8 = ssub.s32 1, %s6
  %s9 = scalar_select 0, %s8, %s6
  $region1: #{convnext_stem_forward.11} parent=0
    #allocation2 [shape = 'u8[8192]{0}', space=vmem, size = 0x2000, scoped, tag = 'output window, operand 0, single buffered']
    #allocation3 [shape = 's32[1]{0}', space=sflag, size = 0x4, scoped, tag = 'scoped memory for convnext_stem_forward.11']
    %10 = vsyncpa [#allocation3], 0
    // Predicated region
    $region2: #{convnext_stem_forward.11} parent=1 // pred_check
      _
    $region3: #{convnext_stem_forward.11} parent=1 // pred_check_branch
      %12 = sbr.rel (0) target = $region5
    $region4: #{convnext_stem_forward.11} parent=1 // pred_region
      _
    $region5: #{convnext_stem_forward.11} parent=1 // pred_fallthru
      _
    // Predicated region
    $region6: #{convnext_stem_forward.11} parent=1 // pred_check
      _
    $region7: #{convnext_stem_forward.11} parent=1 // pred_check_branch
      %14 = sbr.rel (0) target = $region9
    $region8: #{convnext_stem_forward.11} parent=1 // pred_region
      _
    $region9: #{convnext_stem_forward.11} parent=1 // pred_fallthru
      _
    // Predicated region
    $region10: #{convnext_stem_forward.11} parent=1 // pred_check
      _
    $region11: #{convnext_stem_forward.11} parent=1 // pred_check_branch
      %16 = sbr.rel (0) target = $region13
    $region12: #{convnext_stem_forward.11} parent=1 // pred_region
      _
    $region13: #{convnext_stem_forward.11} parent=1 // pred_fallthru
      _
    // Predicated region
    $region14: #{convnext_stem_forward.11} parent=1 // pred_check
      _
    $region15: #{convnext_stem_forward.11} parent=1 // pred_check_branch
      %18 = sbr.rel (0) target = $region17
    $region16: #{convnext_stem_forward.11} parent=1 // pred_region
      _
    $region17: #{convnext_stem_forward.11} parent=1 // pred_fallthru
      _
    // Predicated region
    $region18: #{convnext_stem_forward.11} parent=1 // pred_check
      _
    $region19: #{convnext_stem_forward.11} parent=1 // pred_check_branch
      %20 = sbr.rel (0) target = $region21
    $region20: #{convnext_stem_forward.11} parent=1 // pred_region
      _
    $region21: #{convnext_stem_forward.11} parent=1 // pred_fallthru
      _
    %v22 = vld [vmem:[%s0] sm:$0xff]
    %v23 = vld [vmem:[%s0 + $0x8] sm:$0xff]
    %v24 = vld [vmem:[%s0 + $0x10] sm:$0xff]
    %v25 = vld [vmem:[%s0 + $0x18] sm:$0xff]
    %v26 = vld [vmem:[%s0 + $0x20] sm:$0xff]
    %v27 = vld [vmem:[%s0 + $0x28] sm:$0xff]
    %v28 = vld [vmem:[%s0 + $0x30] sm:$0xff]
    %v29 = vld [vmem:[%s0 + $0x38] sm:$0xff]
    %v30 = vpack.c.bf16 %v26, %v22
    %v31 = vpack.c.bf16 %v27, %v23
    %v32 = vpack.c.bf16 %v28, %v24
    %v33 = vpack.c.bf16 %v29, %v25
    %v34 = vld [vmem:[%s1] sm:$0xf]
    %v35 = vld [vmem:[%s1 + $0x4] sm:$0xf]
    %v36 = vld [vmem:[%s1 + $0x8] sm:$0xf]
    %v37 = vld [vmem:[%s1 + $0xc] sm:$0xf]
    %v38 = vld [vmem:[%s1 + $0x10] sm:$0xf]
    %v39 = vld [vmem:[%s1 + $0x14] sm:$0xf]
    %v40 = vld [vmem:[%s1 + $0x18] sm:$0xf]
    %v41 = vld [vmem:[%s1 + $0x1c] sm:$0xf]
    %v42 = vld [vmem:[%s1 + $0x20] sm:$0xf]
    %v43 = vld [vmem:[%s1 + $0x24] sm:$0xf]
    %v44 = vld [vmem:[%s1 + $0x28] sm:$0xf]
    %v45 = vld [vmem:[%s1 + $0x2c] sm:$0xf]
    %v46 = vld [vmem:[%s1 + $0x30] sm:$0xf]
    %v47 = vld [vmem:[%s1 + $0x34] sm:$0xf]
    %v48 = vld [vmem:[%s1 + $0x38] sm:$0xf]
    %v49 = vld [vmem:[%s1 + $0x3c] sm:$0xf]
    %v50 = vld [vmem:[%s1 + $0x40] sm:$0xf]
    %v51 = vld [vmem:[%s1 + $0x44] sm:$0xf]
    %v52 = vld [vmem:[%s1 + $0x48] sm:$0xf]
    %v53 = vld [vmem:[%s1 + $0x4c] sm:$0xf]
    %v54 = vld [vmem:[%s1 + $0x50] sm:$0xf]
    %v55 = vld [vmem:[%s1 + $0x54] sm:$0xf]
    %v56 = vld [vmem:[%s1 + $0x58] sm:$0xf]
    %v57 = vld [vmem:[%s1 + $0x5c] sm:$0xf]
    %v58 = vld [vmem:[%s1 + $0x60] sm:$0xf]
    %v59 = vld [vmem:[%s1 + $0x64] sm:$0xf]
    %v60 = vld [vmem:[%s1 + $0x68] sm:$0xf]
    %v61 = vld [vmem:[%s1 + $0x6c] sm:$0xf]
    %v62 = vld [vmem:[%s1 + $0x70] sm:$0xf]
    %v63 = vld [vmem:[%s1 + $0x74] sm:$0xf]
    %v64 = vld [vmem:[%s1 + $0x78] sm:$0xf]
    %v65 = vld [vmem:[%s1 + $0x7c] sm:$0xf]
    %v66 = vld [vmem:[%s1 + $0x80] sm:$0xf]
    %v67 = vld [vmem:[%s1 + $0x84] sm:$0xf]
    %v68 = vld [vmem:[%s1 + $0x88] sm:$0xf]
    %v69 = vld [vmem:[%s1 + $0x8c] sm:$0xf]
    %v70 = vld [vmem:[%s1 + $0x90] sm:$0xf]
    %v71 = vld [vmem:[%s1 + $0x94] sm:$0xf]
    %v72 = vld [vmem:[%s1 + $0x98] sm:$0xf]
    %v73 = vld [vmem:[%s1 + $0x9c] sm:$0xf]
    %v74 = vld [vmem:[%s1 + $0xa0] sm:$0xf]
    %v75 = vld [vmem:[%s1 + $0xa4] sm:$0xf]
    %v76 = vld [vmem:[%s1 + $0xa8] sm:$0xf]
    %v77 = vld [vmem:[%s1 + $0xac] sm:$0xf]
    %v78 = vld [vmem:[%s1 + $0xb0] sm:$0xf]
    %v79 = vld [vmem:[%s1 + $0xb4] sm:$0xf]
    %v80 = vld [vmem:[%s1 + $0xb8] sm:$0xf]
    %v81 = vld [vmem:[%s1 + $0xbc] sm:$0xf]
    %v82 = vld [vmem:[%s1 + $0xc0] sm:$0xf]
    %v83 = vld [vmem:[%s1 + $0xc4] sm:$0xf]
    %v84 = vld [vmem:[%s1 + $0xc8] sm:$0xf]
    %v85 = vld [vmem:[%s1 + $0xcc] sm:$0xf]
    %v86 = vld [vmem:[%s1 + $0xd0] sm:$0xf]
    %v87 = vld [vmem:[%s1 + $0xd4] sm:$0xf]
    %v88 = vld [vmem:[%s1 + $0xd8] sm:$0xf]
    %v89 = vld [vmem:[%s1 + $0xdc] sm:$0xf]
    %v90 = vld [vmem:[%s1 + $0xe0] sm:$0xf]
    %v91 = vld [vmem:[%s1 + $0xe4] sm:$0xf]
    %v92 = vld [vmem:[%s1 + $0xe8] sm:$0xf]
    %v93 = vld [vmem:[%s1 + $0xec] sm:$0xf]
    %v94 = vld [vmem:[%s1 + $0xf0] sm:$0xf]
    %v95 = vld [vmem:[%s1 + $0xf4] sm:$0xf]
    %v96 = vld [vmem:[%s1 + $0xf8] sm:$0xf]
    %v97 = vld [vmem:[%s1 + $0xfc] sm:$0xf]
    %v98 = vld [vmem:[%s2] sm:$0x1]
    %v100 = vlaneseq
    %v101 = vshrl.u32 %v100, 7
    %v102 = vsub.s32 0, %v101
    %v103 = vrot.slane %v98, %v102
    %v169 = vunpack.c.l.b16 %v34
    %v170 = vunpack.c.l.b16 %v35
    %v171 = vunpack.c.l.b16 %v36
    %v172 = vunpack.c.l.b16 %v37
    %v173 = vunpack.c.l.b16 %v38
    %v174 = vunpack.c.l.b16 %v39
    %v175 = vunpack.c.l.b16 %v40
    %v176 = vunpack.c.l.b16 %v41
    %v177 = vunpack.c.l.b16 %v42
    %v178 = vunpack.c.l.b16 %v43
    %v179 = vunpack.c.l.b16 %v44
    %v180 = vunpack.c.l.b16 %v45
    %v181 = vunpack.c.l.b16 %v46
    %v182 = vunpack.c.l.b16 %v47
    %v183 = vunpack.c.l.b16 %v48
    %v184 = vunpack.c.l.b16 %v49
    %v185 = vunpack.c.l.b16 %v50
    %v186 = vunpack.c.l.b16 %v51
    %v187 = vunpack.c.l.b16 %v52
    %v188 = vunpack.c.l.b16 %v53
    %v189 = vunpack.c.l.b16 %v54
    %v190 = vunpack.c.l.b16 %v55
    %v191 = vunpack.c.l.b16 %v56
    %v192 = vunpack.c.l.b16 %v57
    %v193 = vunpack.c.l.b16 %v58
    %v194 = vunpack.c.l.b16 %v59
    %v195 = vunpack.c.l.b16 %v60
    %v196 = vunpack.c.l.b16 %v61
    %v197 = vunpack.c.l.b16 %v62
    %v198 = vunpack.c.l.b16 %v63
    %v199 = vunpack.c.l.b16 %v64
    %v200 = vunpack.c.l.b16 %v65
    %v201 = vunpack.c.l.b16 %v66
    %v202 = vunpack.c.l.b16 %v67
    %v203 = vunpack.c.l.b16 %v68
    %v204 = vunpack.c.l.b16 %v69
    %v205 = vunpack.c.l.b16 %v70
    %v206 = vunpack.c.l.b16 %v71
    %v207 = vunpack.c.l.b16 %v72
    %v208 = vunpack.c.l.b16 %v73
    %v209 = vunpack.c.l.b16 %v74
    %v210 = vunpack.c.l.b16 %v75
    %v211 = vunpack.c.l.b16 %v76
    %v212 = vunpack.c.l.b16 %v77
    %v213 = vunpack.c.l.b16 %v78
    %v214 = vunpack.c.l.b16 %v79
    %v215 = vunpack.c.l.b16 %v80
    %v216 = vunpack.c.l.b16 %v81
    %v217 = vunpack.c.l.b16 %v82
    %v218 = vunpack.c.l.b16 %v83
    %v219 = vunpack.c.l.b16 %v84
    %v220 = vunpack.c.l.b16 %v85
    %v221 = vunpack.c.l.b16 %v86
    %v222 = vunpack.c.l.b16 %v87
    %v223 = vunpack.c.l.b16 %v88
    %v224 = vunpack.c.l.b16 %v89
    %v225 = vunpack.c.l.b16 %v90
    %v226 = vunpack.c.l.b16 %v91
    %v227 = vunpack.c.l.b16 %v92
    %v228 = vunpack.c.l.b16 %v93
    %v229 = vunpack.c.l.b16 %v94
    %v230 = vunpack.c.l.b16 %v95
    %v231 = vunpack.c.l.b16 %v96
    %v232 = vunpack.c.l.b16 %v97
    %v233 = vpack.c.b16 %v170, %v169
    %v234 = vpack.c.b16 %v172, %v171
    %v235 = vpack.c.b16 %v174, %v173
    %v236 = vpack.c.b16 %v176, %v175
    %v237 = vpack.c.b16 %v178, %v177
    %v238 = vpack.c.b16 %v180, %v179
    %v239 = vpack.c.b16 %v182, %v181
    %v240 = vpack.c.b16 %v184, %v183
    %v241 = vpack.c.b16 %v186, %v185
    %v242 = vpack.c.b16 %v188, %v187
    %v243 = vpack.c.b16 %v190, %v189
    %v244 = vpack.c.b16 %v192, %v191
    %v245 = vpack.c.b16 %v194, %v193
    %v246 = vpack.c.b16 %v196, %v195
    %v247 = vpack.c.b16 %v198, %v197
    %v248 = vpack.c.b16 %v200, %v199
    %v249 = vpack.c.b16 %v202, %v201
    %v250 = vpack.c.b16 %v204, %v203
    %v251 = vpack.c.b16 %v206, %v205
    %v252 = vpack.c.b16 %v208, %v207
    %v253 = vpack.c.b16 %v210, %v209
    %v254 = vpack.c.b16 %v212, %v211
    %v255 = vpack.c.b16 %v214, %v213
    %v256 = vpack.c.b16 %v216, %v215
    %v257 = vpack.c.b16 %v218, %v217
    %v258 = vpack.c.b16 %v220, %v219
    %v259 = vpack.c.b16 %v222, %v221
    %v260 = vpack.c.b16 %v224, %v223
    %v261 = vpack.c.b16 %v226, %v225
    %v262 = vpack.c.b16 %v228, %v227
    %v263 = vpack.c.b16 %v230, %v229
    %v264 = vpack.c.b16 %v232, %v231
    %297 = vmatprep.subr.bf16.mxu0 0
    %298 = vmatpush1.bf16.msra.mxu0 %v233
    %299 = vmatprep.subr.bf16.mxu0 0
    %300 = vmatpush1.bf16.msra.mxu0 %v234
    %301 = vmatprep.subr.bf16.mxu0 0
    %302 = vmatpush1.bf16.msra.mxu0 %v235
    %303 = vmatprep.subr.bf16.mxu0 0
    %304 = vmatpush1.bf16.msra.mxu0 %v236
    %305 = vmatprep.subr.bf16.mxu0 0
    %306 = vmatpush1.bf16.msra.mxu0 %v237
    %307 = vmatprep.subr.bf16.mxu0 0
    %308 = vmatpush1.bf16.msra.mxu0 %v238
    %309 = vmatprep.subr.bf16.mxu0 0
    %310 = vmatpush1.bf16.msra.mxu0 %v239
    %311 = vmatprep.subr.bf16.mxu0 0
    %312 = vmatpush1.bf16.msra.mxu0 %v240
    %313 = vmatprep.subr.bf16.mxu0 0
    %314 = vmatpush1.bf16.msra.mxu0 %v241
    %315 = vmatprep.subr.bf16.mxu0 0
    %316 = vmatpush1.bf16.msra.mxu0 %v242
    %317 = vmatprep.subr.bf16.mxu0 0
    %318 = vmatpush1.bf16.msra.mxu0 %v243
    %319 = vmatprep.subr.bf16.mxu0 0
    %320 = vmatpush1.bf16.msra.mxu0 %v244
    %321 = vmatprep.subr.bf16.mxu0 0
    %322 = vmatpush1.bf16.msra.mxu0 %v245
    %323 = vmatprep.subr.bf16.mxu0 0
    %324 = vmatpush1.bf16.msra.mxu0 %v246
    %325 = vmatprep.subr.bf16.mxu0 0
    %326 = vmatpush1.bf16.msra.mxu0 %v247
    %327 = vmatprep.subr.bf16.mxu0 0
    %328 = vmatpush1.bf16.msra.mxu0 %v248
    %329 = vmatprep.mubr.bf16.mxu0 %v31
    %330 = vmatmul.mubr.bf16.gmra.mrb[0].mxu0 %v30
    %v331 = vpop.f32.mrb[0].mxu0
    %v332 = vadd.f32 %v103, %v331
    %v333 = vpop.f32.mrb[0].mxu0
    %v334 = vpop.f32.mrb[0].mxu0
    %v335 = vadd.f32 %v103, %v334
    %v336 = vpop.f32.mrb[0].mxu0
    %337 = vdwg.mxu0
    %338 = vmatprep.subr.bf16.mxu0 0
    %339 = vmatpush1.bf16.msra.mxu0 %v249
    %340 = vmatprep.subr.bf16.mxu0 0
    %341 = vmatpush1.bf16.msra.mxu0 %v250
    %342 = vmatprep.subr.bf16.mxu0 0
    %343 = vmatpush1.bf16.msra.mxu0 %v251
    %344 = vmatprep.subr.bf16.mxu0 0
    %345 = vmatpush1.bf16.msra.mxu0 %v252
    %346 = vmatprep.subr.bf16.mxu0 0
    %347 = vmatpush1.bf16.msra.mxu0 %v253
    %348 = vmatprep.subr.bf16.mxu0 0
    %349 = vmatpush1.bf16.msra.mxu0 %v254
    %350 = vmatprep.subr.bf16.mxu0 0
    %351 = vmatpush1.bf16.msra.mxu0 %v255
    %352 = vmatprep.subr.bf16.mxu0 0
    %353 = vmatpush1.bf16.msra.mxu0 %v256
    %354 = vmatprep.subr.bf16.mxu0 0
    %355 = vmatpush1.bf16.msra.mxu0 %v257
    %356 = vmatprep.subr.bf16.mxu0 0
    %357 = vmatpush1.bf16.msra.mxu0 %v258
    %358 = vmatprep.subr.bf16.mxu0 0
    %359 = vmatpush1.bf16.msra.mxu0 %v259
    %360 = vmatprep.subr.bf16.mxu0 0
    %361 = vmatpush1.bf16.msra.mxu0 %v260
    %362 = vmatprep.subr.bf16.mxu0 0
    %363 = vmatpush1.bf16.msra.mxu0 %v261
    %364 = vmatprep.subr.bf16.mxu0 0
    %365 = vmatpush1.bf16.msra.mxu0 %v262
    %366 = vmatprep.subr.bf16.mxu0 0
    %367 = vmatpush1.bf16.msra.mxu0 %v263
    %368 = vmatprep.subr.bf16.mxu0 0
    %369 = vmatpush1.bf16.msra.mxu0 %v264
    %370 = vmatprep.mubr.bf16.mxu0 %v33
    %371 = vmatmul.mubr.bf16.gmra.mrb[0].mxu0 %v32
    %v372 = vpop.f32.mrb[0].mxu0
    %v373 = vadd.f32 %v332, %v372
    %v374 = vpop.f32.mrb[0].mxu0
    %v375 = vpop.f32.mrb[0].mxu0
    %v376 = vadd.f32 %v335, %v375
    %v377 = vpop.f32.mrb[0].mxu0
    %378 = vdwg.mxu0
    %vm379 = vcmask 523264
    %v380 = vsel %vm379, %v373, 0.0
    %381 = vadd.xlane.f32.xlu0 %v380
    %v382 = vpop.xlane.xlu0 %381
    %v383 = vsel %vm379, %v376, 0.0
    %384 = vadd.xlane.f32.xlu0 %v383
    %v385 = vpop.xlane.xlu0 %384
    %v386 = vrcp.pop 64.0
    %v387 = vmul.f32 %v382, %v386
    %v388 = vmul.f32 %v385, %v386
    %v389 = vsub.f32 %v373, %v387
    %v390 = vsub.f32 %v376, %v388
    %v391 = vmul.f32 %v389, %v389
    %v392 = vmul.f32 %v390, %v390
    %v393 = vsel %vm379, %v391, 0.0
    %394 = vadd.xlane.f32.xlu0 %v393
    %v395 = vpop.xlane.xlu0 %394
    %v396 = vsel %vm379, %v392, 0.0
    %397 = vadd.xlane.f32.xlu0 %v396
    %v398 = vpop.xlane.xlu0 %397
    %v399 = vmul.f32 %v395, %v386
    %v400 = vmul.f32 %v398, %v386
    %v401 = vadd.f32 %v399, 1e-12
    %v402 = vadd.f32 %v400, 1e-12
    %v403 = vrsqrt.pop %v401
    %v404 = vrsqrt.pop %v402
    %v405 = vmul.f32 %v389, %v403
    %v406 = vmul.f32 %v390, %v404
    %v407 = vld [vmem:[%s3] sm:$0x1]
    %v409 = vlaneseq
    %v410 = vshrl.u32 %v409, 7
    %v411 = vsub.s32 0, %v410
    %v412 = vrot.slane %v407, %v411
    %v414 = vmul.f32 %v405, %v412
    %v415 = vmul.f32 %v406, %v412
    %v416 = vld [vmem:[%s4] sm:$0x1]
    %v418 = vlaneseq
    %v419 = vshrl.u32 %v418, 7
    %v420 = vsub.s32 0, %v419
    %v421 = vrot.slane %v416, %v420
    %v423 = vadd.f32 %v414, %v421
    %v424 = vadd.f32 %v415, %v421
    %425 = vst.msk [vmem:[#allocation2] sm:$0xff] %vm379, %v423
    %426 = vst.msk [vmem:[#allocation2 + $0x8] sm:$0xff] %vm379, %v424
    // Predicated region
    $region22: #{convnext_stem_forward.11} parent=1 // pred_check
      _
    $region23: #{convnext_stem_forward.11} parent=1 // pred_check_branch
      %428 = sbr.rel (0) target = $region25
    $region24: #{convnext_stem_forward.11} parent=1 // pred_region
      %s430 = ssub.s32 256, 256
      %431 = vsyncadd [#allocation3], %s430
      %s432 = sshll.u32 [#allocation2], 4
      %s433 = int_to_ptr.vmem [resolvable:$true] %s432
      %438 = dma.vmem_to_hbm [thread:$0]  %s433, 256, %s5, [#allocation3], 128, 128, 8
    $region25: #{convnext_stem_forward.11} parent=1 // pred_fallthru
      _
    // Predicated region
    $region26: #{convnext_stem_forward.11} parent=1 // pred_check
      _
    $region27: #{convnext_stem_forward.11} parent=1 // pred_check_branch
      %440 = sbr.rel (0) target = $region29
    $region28: #{convnext_stem_forward.11} parent=1 // pred_region
      %441 = dma.done [#allocation3], 256
    $region29: #{convnext_stem_forward.11} parent=1 // pred_fallthru
      _
    %442 = vsyncpa [#allocation3], 1

// kernel: convnext_stem_forward.10
$region0: #{convnext_stem_forward.10}
  #allocation0 [shape = 'u32[]', space=smem, size = 0x4, offset = 0x4, fixed_abs, tag = 'smem constant byte address 0x4 - core index']
  #allocation1 [shape = 'u32[144,128]{1,0:T(1,128)}', space=vmem, size = 0x12000, scoped, tag = 'internal scratch']
  %s0 = inlined_call_operand.vmem [shape: f32[64,128], index: 0, kind: input, shape index: {}]
  %s1 = inlined_call_operand.vmem [shape: f32[64,128], index: 1, kind: input, shape index: {}, may-alias: {1,8}]
  %s2 = inlined_call_operand.vmem [shape: f32[1,128], index: 2, kind: input, shape index: {}]
  %s3 = inlined_call_operand.vmem [shape: f32[1,128], index: 3, kind: input, shape index: {}]
  %s4 = inlined_call_operand.vmem [shape: bf16[128,512], index: 4, kind: input, shape index: {}]
  %s5 = inlined_call_operand.vmem [shape: f32[1,512], index: 5, kind: input, shape index: {}]
  %s6 = inlined_call_operand.vmem [shape: bf16[512,128], index: 6, kind: input, shape index: {}]
  %s7 = inlined_call_operand.vmem [shape: f32[1,128], index: 7, kind: input, shape index: {}]
  %s8 = inlined_call_operand.vmem [shape: f32[64,128], index: 8, kind: output, shape index: {}, may-alias: {1,8}]
  %s9 = sld [smem:[#allocation0]]
  $region42: #{convnext_stem_forward.10} parent=0
    _
  %s11 = ssub.s32 1, %s9
  %s12 = scalar_select 0, %s11, %s9
  // Predicated region
  $region2: #{convnext_stem_forward.10} parent=0 // pred_check
    _
  $region3: #{convnext_stem_forward.10} parent=0 // pred_check_branch
    %14 = sbr.rel (0) target = $region5
  $region4: #{convnext_stem_forward.10} parent=0 // pred_region
    _
  $region5: #{convnext_stem_forward.10} parent=0 // pred_fallthru
    _
  // Predicated region
  $region6: #{convnext_stem_forward.10} parent=0 // pred_check
    _
  $region7: #{convnext_stem_forward.10} parent=0 // pred_check_branch
    %16 = sbr.rel (0) target = $region9
  $region8: #{convnext_stem_forward.10} parent=0 // pred_region
    _
  $region9: #{convnext_stem_forward.10} parent=0 // pred_fallthru
    _
  // Predicated region
  $region10: #{convnext_stem_forward.10} parent=0 // pred_check
    _
  $region11: #{convnext_stem_forward.10} parent=0 // pred_check_branch
    %18 = sbr.rel (0) target = $region13
  $region12: #{convnext_stem_forward.10} parent=0 // pred_region
    _
  $region13: #{convnext_stem_forward.10} parent=0 // pred_fallthru
    _
  // Predicated region
  $region14: #{convnext_stem_forward.10} parent=0 // pred_check
    _
  $region15: #{convnext_stem_forward.10} parent=0 // pred_check_branch
    %20 = sbr.rel (0) target = $region17
  $region16: #{convnext_stem_forward.10} parent=0 // pred_region
    _
  $region17: #{convnext_stem_forward.10} parent=0 // pred_fallthru
    _
  // Predicated region
  $region18: #{convnext_stem_forward.10} parent=0 // pred_check
    _
  $region19: #{convnext_stem_forward.10} parent=0 // pred_check_branch
    %22 = sbr.rel (0) target = $region21
  $region20: #{convnext_stem_forward.10} parent=0 // pred_region
    _
  $region21: #{convnext_stem_forward.10} parent=0 // pred_fallthru
    _
  // Predicated region
  $region22: #{convnext_stem_forward.10} parent=0 // pred_check
    _
  $region23: #{convnext_stem_forward.10} parent=0 // pred_check_branch
    %24 = sbr.rel (0) target = $region25
  $region24: #{convnext_stem_forward.10} parent=0 // pred_region
    _
  $region25: #{convnext_stem_forward.10} parent=0 // pred_fallthru
    _
  // Predicated region
  $region26: #{convnext_stem_forward.10} parent=0 // pred_check
    _
  $region27: #{convnext_stem_forward.10} parent=0 // pred_check_branch
    %26 = sbr.rel (0) target = $region29
  $region28: #{convnext_stem_forward.10} parent=0 // pred_region
    _
  $region29: #{convnext_stem_forward.10} parent=0 // pred_fallthru
    _
  // Predicated region
  $region30: #{convnext_stem_forward.10} parent=0 // pred_check
    _
  $region31: #{convnext_stem_forward.10} parent=0 // pred_check_branch
    %28 = sbr.rel (0) target = $region33
  $region32: #{convnext_stem_forward.10} parent=0 // pred_region
    _
  $region33: #{convnext_stem_forward.10} parent=0 // pred_fallthru
    _
  %v30 = vld [vmem:[%s0] sm:$0xff]
  %v31 = vld [vmem:[%s0 + $0x8] sm:$0xff]
  %v32 = vld [vmem:[%s0 + $0x10] sm:$0xff]
  %v33 = vld [vmem:[%s0 + $0x18] sm:$0xff]
  %v34 = vld [vmem:[%s0 + $0x20] sm:$0xff]
  %v35 = vld [vmem:[%s0 + $0x28] sm:$0xff]
  %v36 = vld [vmem:[%s0 + $0x30] sm:$0xff]
  %v37 = vld [vmem:[%s0 + $0x38] sm:$0xff]
  %38 = vadd.xlane.f32.xlu0 %v30
  %v39 = vpop.xlane.xlu0 %38
  %40 = vadd.xlane.f32.xlu0 %v31
  %v41 = vpop.xlane.xlu0 %40
  %42 = vadd.xlane.f32.xlu0 %v32
  %v43 = vpop.xlane.xlu0 %42
  %44 = vadd.xlane.f32.xlu0 %v33
  %v45 = vpop.xlane.xlu0 %44
  %46 = vadd.xlane.f32.xlu0 %v34
  %v47 = vpop.xlane.xlu0 %46
  %48 = vadd.xlane.f32.xlu0 %v35
  %v49 = vpop.xlane.xlu0 %48
  %50 = vadd.xlane.f32.xlu0 %v36
  %v51 = vpop.xlane.xlu0 %50
  %52 = vadd.xlane.f32.xlu0 %v37
  %v53 = vpop.xlane.xlu0 %52
  %v54 = vrcp.pop 128.0
  %v55 = vmul.f32 %v39, %v54
  %v56 = vmul.f32 %v41, %v54
  %v57 = vmul.f32 %v43, %v54
  %v58 = vmul.f32 %v45, %v54
  %v59 = vmul.f32 %v47, %v54
  %v60 = vmul.f32 %v49, %v54
  %v61 = vmul.f32 %v51, %v54
  %v62 = vmul.f32 %v53, %v54
  %v63 = vsub.f32 %v30, %v55
  %v64 = vsub.f32 %v31, %v56
  %v65 = vsub.f32 %v32, %v57
  %v66 = vsub.f32 %v33, %v58
  %v67 = vsub.f32 %v34, %v59
  %v68 = vsub.f32 %v35, %v60
  %v69 = vsub.f32 %v36, %v61
  %v70 = vsub.f32 %v37, %v62
  %v71 = vmul.f32 %v63, %v63
  %v72 = vmul.f32 %v64, %v64
  %v73 = vmul.f32 %v65, %v65
  %v74 = vmul.f32 %v66, %v66
  %v75 = vmul.f32 %v67, %v67
  %v76 = vmul.f32 %v68, %v68
  %v77 = vmul.f32 %v69, %v69
  %v78 = vmul.f32 %v70, %v70
  %79 = vadd.xlane.f32.xlu0 %v71
  %v80 = vpop.xlane.xlu0 %79
  %81 = vadd.xlane.f32.xlu0 %v72
  %v82 = vpop.xlane.xlu0 %81
  %83 = vadd.xlane.f32.xlu0 %v73
  %v84 = vpop.xlane.xlu0 %83
  %85 = vadd.xlane.f32.xlu0 %v74
  %v86 = vpop.xlane.xlu0 %85
  %87 = vadd.xlane.f32.xlu0 %v75
  %v88 = vpop.xlane.xlu0 %87
  %89 = vadd.xlane.f32.xlu0 %v76
  %v90 = vpop.xlane.xlu0 %89
  %91 = vadd.xlane.f32.xlu0 %v77
  %v92 = vpop.xlane.xlu0 %91
  %93 = vadd.xlane.f32.xlu0 %v78
  %v94 = vpop.xlane.xlu0 %93
  %v95 = vmul.f32 %v80, %v54
  %v96 = vmul.f32 %v82, %v54
  %v97 = vmul.f32 %v84, %v54
  %v98 = vmul.f32 %v86, %v54
  %v99 = vmul.f32 %v88, %v54
  %v100 = vmul.f32 %v90, %v54
  %v101 = vmul.f32 %v92, %v54
  %v102 = vmul.f32 %v94, %v54
  %v103 = vadd.f32 %v95, 1e-12
  %v104 = vadd.f32 %v96, 1e-12
  %v105 = vadd.f32 %v97, 1e-12
  %v106 = vadd.f32 %v98, 1e-12
  %v107 = vadd.f32 %v99, 1e-12
  %v108 = vadd.f32 %v100, 1e-12
  %v109 = vadd.f32 %v101, 1e-12
  %v110 = vadd.f32 %v102, 1e-12
  %v111 = vrsqrt.pop %v103
  %v112 = vrsqrt.pop %v104
  %v113 = vrsqrt.pop %v105
  %v114 = vrsqrt.pop %v106
  %v115 = vrsqrt.pop %v107
  %v116 = vrsqrt.pop %v108
  %v117 = vrsqrt.pop %v109
  %v118 = vrsqrt.pop %v110
  %v119 = vmul.f32 %v63, %v111
  %v120 = vmul.f32 %v64, %v112
  %v121 = vmul.f32 %v65, %v113
  %v122 = vmul.f32 %v66, %v114
  %v123 = vmul.f32 %v67, %v115
  %v124 = vmul.f32 %v68, %v116
  %v125 = vmul.f32 %v69, %v117
  %v126 = vmul.f32 %v70, %v118
  %v127 = vld [vmem:[%s2] sm:$0x1]
  %v129 = vlaneseq
  %v130 = vshrl.u32 %v129, 7
  %v131 = vsub.s32 0, %v130
  %v132 = vrot.slane %v127, %v131
  %v134 = vmul.f32 %v119, %v132
  %v135 = vmul.f32 %v120, %v132
  %v136 = vmul.f32 %v121, %v132
  %v137 = vmul.f32 %v122, %v132
  %v138 = vmul.f32 %v123, %v132
  %v139 = vmul.f32 %v124, %v132
  %v140 = vmul.f32 %v125, %v132
  %v141 = vmul.f32 %v126, %v132
  %v142 = vld [vmem:[%s3] sm:$0x1]
  %v144 = vlaneseq
  %v145 = vshrl.u32 %v144, 7
  %v146 = vsub.s32 0, %v145
  %v147 = vrot.slane %v142, %v146
  %v149 = vadd.f32 %v134, %v147
  %v150 = vadd.f32 %v135, %v147
  %v151 = vadd.f32 %v136, %v147
  %v152 = vadd.f32 %v137, %v147
  %v153 = vadd.f32 %v138, %v147
  %v154 = vadd.f32 %v139, %v147
  %v155 = vadd.f32 %v140, %v147
  %v156 = vadd.f32 %v141, %v147
  %v157 = vpack.c.bf16 %v150, %v149
  %v158 = vpack.c.bf16 %v152, %v151
  %v159 = vpack.c.bf16 %v154, %v153
  %v160 = vpack.c.bf16 %v156, %v155
  %v161 = vld [vmem:[%s4] sm:$0xff]
  %v162 = vld [vmem:[%s4 + $0x8] sm:$0xff]
  %v163 = vld [vmem:[%s4 + $0x10] sm:$0xff]
  %v164 = vld [vmem:[%s4 + $0x18] sm:$0xff]
  %v165 = vld [vmem:[%s4 + $0x20] sm:$0xff]
  %v166 = vld [vmem:[%s4 + $0x28] sm:$0xff]
  %v167 = vld [vmem:[%s4 + $0x30] sm:$0xff]
  %v168 = vld [vmem:[%s4 + $0x38] sm:$0xff]
  %v169 = vld [vmem:[%s4 + $0x40] sm:$0xff]
  %v170 = vld [vmem:[%s4 + $0x48] sm:$0xff]
  %v171 = vld [vmem:[%s4 + $0x50] sm:$0xff]
  %v172 = vld [vmem:[%s4 + $0x58] sm:$0xff]
  %v173 = vld [vmem:[%s4 + $0x60] sm:$0xff]
  %v174 = vld [vmem:[%s4 + $0x68] sm:$0xff]
  %v175 = vld [vmem:[%s4 + $0x70] sm:$0xff]
  %v176 = vld [vmem:[%s4 + $0x78] sm:$0xff]
  %v177 = vld [vmem:[%s4 + $0x80] sm:$0xff]
  %v178 = vld [vmem:[%s4 + $0x88] sm:$0xff]
  %v179 = vld [vmem:[%s4 + $0x90] sm:$0xff]
  %v180 = vld [vmem:[%s4 + $0x98] sm:$0xff]
  %v181 = vld [vmem:[%s4 + $0xa0] sm:$0xff]
  %v182 = vld [vmem:[%s4 + $0xa8] sm:$0xff]
  %v183 = vld [vmem:[%s4 + $0xb0] sm:$0xff]
  %v184 = vld [vmem:[%s4 + $0xb8] sm:$0xff]
  %v185 = vld [vmem:[%s4 + $0xc0] sm:$0xff]
  %v186 = vld [vmem:[%s4 + $0xc8] sm:$0xff]
  %v187 = vld [vmem:[%s4 + $0xd0] sm:$0xff]
  %v188 = vld [vmem:[%s4 + $0xd8] sm:$0xff]
  %v189 = vld [vmem:[%s4 + $0xe0] sm:$0xff]
  %v190 = vld [vmem:[%s4 + $0xe8] sm:$0xff]
  %v191 = vld [vmem:[%s4 + $0xf0] sm:$0xff]
  %v192 = vld [vmem:[%s4 + $0xf8] sm:$0xff]
  %v193 = vld [vmem:[%s5] sm:$0xf]
  %v195 = vlaneseq
  %v196 = vshrl.u32 %v195, 7
  %v197 = vsub.s32 0, %v196
  %v198 = vrot.slane %v193, %v197
  %v199 = vlaneseq
  %v200 = vshrl.u32 %v199, 7
  %v201 = vsub.s32 1, %v200
  %v202 = vrot.slane %v193, %v201
  %v203 = vlaneseq
  %v204 = vshrl.u32 %v203, 7
  %v205 = vsub.s32 2, %v204
  %v206 = vrot.slane %v193, %v205
  %v207 = vlaneseq
  %v208 = vshrl.u32 %v207, 7
  %v209 = vsub.s32 3, %v208
  %v210 = vrot.slane %v193, %v209
  %v247 = vunpack.c.l.b16 %v161
  %v248 = vunpack.c.h.b16 %v161
  %v249 = vunpack.c.l.b16 %v162
  %v250 = vunpack.c.h.b16 %v162
  %v251 = vunpack.c.l.b16 %v163
  %v252 = vunpack.c.h.b16 %v163
  %v253 = vunpack.c.l.b16 %v164
  %v254 = vunpack.c.h.b16 %v164
  %v255 = vunpack.c.l.b16 %v165
  %v256 = vunpack.c.h.b16 %v165
  %v257 = vunpack.c.l.b16 %v166
  %v258 = vunpack.c.h.b16 %v166
  %v259 = vunpack.c.l.b16 %v167
  %v260 = vunpack.c.h.b16 %v167
  %v261 = vunpack.c.l.b16 %v168
  %v262 = vunpack.c.h.b16 %v168
  %v263 = vunpack.c.l.b16 %v169
  %v264 = vunpack.c.h.b16 %v169
  %v265 = vunpack.c.l.b16 %v170
  %v266 = vunpack.c.h.b16 %v170
  %v267 = vunpack.c.l.b16 %v171
  %v268 = vunpack.c.h.b16 %v171
  %v269 = vunpack.c.l.b16 %v172
  %v270 = vunpack.c.h.b16 %v172
  %v271 = vunpack.c.l.b16 %v173
  %v272 = vunpack.c.h.b16 %v173
  %v273 = vunpack.c.l.b16 %v174
  %v274 = vunpack.c.h.b16 %v174
  %v275 = vunpack.c.l.b16 %v175
  %v276 = vunpack.c.h.b16 %v175
  %v277 = vunpack.c.l.b16 %v176
  %v278 = vunpack.c.h.b16 %v176
  %v279 = vunpack.c.l.b16 %v177
  %v280 = vunpack.c.h.b16 %v177
  %v281 = vunpack.c.l.b16 %v178
  %v282 = vunpack.c.h.b16 %v178
  %v283 = vunpack.c.l.b16 %v179
  %v284 = vunpack.c.h.b16 %v179
  %v285 = vunpack.c.l.b16 %v180
  %v286 = vunpack.c.h.b16 %v180
  %v287 = vunpack.c.l.b16 %v181
  %v288 = vunpack.c.h.b16 %v181
  %v289 = vunpack.c.l.b16 %v182
  %v290 = vunpack.c.h.b16 %v182
  %v291 = vunpack.c.l.b16 %v183
  %v292 = vunpack.c.h.b16 %v183
  %v293 = vunpack.c.l.b16 %v184
  %v294 = vunpack.c.h.b16 %v184
  %v295 = vunpack.c.l.b16 %v185
  %v296 = vunpack.c.h.b16 %v185
  %v297 = vunpack.c.l.b16 %v186
  %v298 = vunpack.c.h.b16 %v186
  %v299 = vunpack.c.l.b16 %v187
  %v300 = vunpack.c.h.b16 %v187
  %v301 = vunpack.c.l.b16 %v188
  %v302 = vunpack.c.h.b16 %v188
  %v303 = vunpack.c.l.b16 %v189
  %v304 = vunpack.c.h.b16 %v189
  %v305 = vunpack.c.l.b16 %v190
  %v306 = vunpack.c.h.b16 %v190
  %v307 = vunpack.c.l.b16 %v191
  %v308 = vunpack.c.h.b16 %v191
  %v309 = vunpack.c.l.b16 %v192
  %v310 = vunpack.c.h.b16 %v192
  %v311 = vpack.c.b16 %v251, %v247
  %v312 = vpack.c.b16 %v252, %v248
  %v313 = vpack.c.b16 %v253, %v249
  %v314 = vpack.c.b16 %v254, %v250
  %v315 = vpack.c.b16 %v259, %v255
  %v316 = vpack.c.b16 %v260, %v256
  %v317 = vpack.c.b16 %v261, %v257
  %v318 = vpack.c.b16 %v262, %v258
  %v319 = vpack.c.b16 %v267, %v263
  %v320 = vpack.c.b16 %v268, %v264
  %v321 = vpack.c.b16 %v269, %v265
  %v322 = vpack.c.b16 %v270, %v266
  %v323 = vpack.c.b16 %v275, %v271
  %v324 = vpack.c.b16 %v276, %v272
  %v325 = vpack.c.b16 %v277, %v273
  %v326 = vpack.c.b16 %v278, %v274
  %v327 = vpack.c.b16 %v283, %v279
  %v328 = vpack.c.b16 %v284, %v280
  %v329 = vpack.c.b16 %v285, %v281
  %v330 = vpack.c.b16 %v286, %v282
  %v331 = vpack.c.b16 %v291, %v287
  %v332 = vpack.c.b16 %v292, %v288
  %v333 = vpack.c.b16 %v293, %v289
  %v334 = vpack.c.b16 %v294, %v290
  %v335 = vpack.c.b16 %v299, %v295
  %v336 = vpack.c.b16 %v300, %v296
  %v337 = vpack.c.b16 %v301, %v297
  %v338 = vpack.c.b16 %v302, %v298
  %v339 = vpack.c.b16 %v307, %v303
  %v340 = vpack.c.b16 %v308, %v304
  %v341 = vpack.c.b16 %v309, %v305
  %v342 = vpack.c.b16 %v310, %v306
  %375 = vmatprep.subr.bf16.mxu0 %v312
  %376 = vmatpush1.bf16.msra.mxu0 %v311
  %377 = vmatprep.subr.bf16.mxu0 %v316
  %378 = vmatpush1.bf16.msra.mxu0 %v315
  %379 = vmatprep.subr.bf16.mxu0 %v320
  %380 = vmatpush1.bf16.msra.mxu0 %v319
  %381 = vmatprep.subr.bf16.mxu0 %v324
  %382 = vmatpush1.bf16.msra.mxu0 %v323
  %383 = vmatprep.subr.bf16.mxu0 %v328
  %384 = vmatpush1.bf16.msra.mxu0 %v327
  %385 = vmatprep.subr.bf16.mxu0 %v332
  %386 = vmatpush1.bf16.msra.mxu0 %v331
  %387 = vmatprep.subr.bf16.mxu0 %v336
  %388 = vmatpush1.bf16.msra.mxu0 %v335
  %389 = vmatprep.subr.bf16.mxu0 %v340
  %390 = vmatpush1.bf16.msra.mxu0 %v339
  %391 = vmatprep.subr.bf16.mxu0 0
  %392 = vmatpush1.bf16.msra.mxu0 0
  %393 = vmatprep.subr.bf16.mxu0 0
  %394 = vmatpush1.bf16.msra.mxu0 0
  %395 = vmatprep.subr.bf16.mxu0 0
  %396 = vmatpush1.bf16.msra.mxu0 0
  %397 = vmatprep.subr.bf16.mxu0 0
  %398 = vmatpush1.bf16.msra.mxu0 0
  %399 = vmatprep.subr.bf16.mxu0 0
  %400 = vmatpush1.bf16.msra.mxu0 0
  %401 = vmatprep.subr.bf16.mxu0 0
  %402 = vmatpush1.bf16.msra.mxu0 0
  %403 = vmatprep.subr.bf16.mxu0 0
  %404 = vmatpush1.bf16.msra.mxu0 0
  %405 = vmatprep.subr.bf16.mxu0 0
  %406 = vmatpush1.bf16.msra.mxu0 0
  %407 = vmatprep.mubr.bf16.mxu0 0
  %408 = vmatmul.mubr.bf16.gmra.mrb[0].mxu0 %v157
  %v409 = vpop.f32.mrb[0].mxu0
  %v410 = vadd.f32 %v198, %v409
  %v411 = vpop.f32.mrb[0].mxu0
  %v412 = vadd.f32 %v202, %v411
  %v413 = vpop.f32.mrb[0].mxu0
  %v414 = vadd.f32 %v198, %v413
  %v415 = vpop.f32.mrb[0].mxu0
  %v416 = vadd.f32 %v202, %v415
  %417 = vmatprep.mubr.bf16.mxu0 0
  %418 = vmatmul.mubr.bf16.gmra.mrb[0].mxu0 %v158
  %v419 = vpop.f32.mrb[0].mxu0
  %v420 = vadd.f32 %v198, %v419
  %v421 = vpop.f32.mrb[0].mxu0
  %v422 = vadd.f32 %v202, %v421
  %v423 = vpop.f32.mrb[0].mxu0
  %v424 = vadd.f32 %v198, %v423
  %v425 = vpop.f32.mrb[0].mxu0
  %v426 = vadd.f32 %v202, %v425
  %427 = vmatprep.mubr.bf16.mxu0 0
  %428 = vmatmul.mubr.bf16.gmra.mrb[0].mxu0 %v159
  %v429 = vpop.f32.mrb[0].mxu0
  %v430 = vadd.f32 %v198, %v429
  %v431 = vpop.f32.mrb[0].mxu0
  %v432 = vadd.f32 %v202, %v431
  %v433 = vpop.f32.mrb[0].mxu0
  %v434 = vadd.f32 %v198, %v433
  %v435 = vpop.f32.mrb[0].mxu0
  %v436 = vadd.f32 %v202, %v435
  %437 = vmatprep.mubr.bf16.mxu0 0
  %438 = vmatmul.mubr.bf16.gmra.mrb[0].mxu0 %v160
  %v439 = vpop.f32.mrb[0].mxu0
  %v440 = vadd.f32 %v198, %v439
  %v441 = vpop.f32.mrb[0].mxu0
  %v442 = vadd.f32 %v202, %v441
  %v443 = vpop.f32.mrb[0].mxu0
  %v444 = vadd.f32 %v198, %v443
  %v445 = vpop.f32.mrb[0].mxu0
  %v446 = vadd.f32 %v202, %v445
  %447 = vdwg.mxu0
  %448 = vmatprep.subr.bf16.mxu0 %v314
  %449 = vmatpush1.bf16.msra.mxu0 %v313
  %450 = vmatprep.subr.bf16.mxu0 %v318
  %451 = vmatpush1.bf16.msra.mxu0 %v317
  %452 = vmatprep.subr.bf16.mxu0 %v322
  %453 = vmatpush1.bf16.msra.mxu0 %v321
  %454 = vmatprep.subr.bf16.mxu0 %v326
  %455 = vmatpush1.bf16.msra.mxu0 %v325
  %456 = vmatprep.subr.bf16.mxu0 %v330
  %457 = vmatpush1.bf16.msra.mxu0 %v329
  %458 = vmatprep.subr.bf16.mxu0 %v334
  %459 = vmatpush1.bf16.msra.mxu0 %v333
  %460 = vmatprep.subr.bf16.mxu0 %v338
  %461 = vmatpush1.bf16.msra.mxu0 %v337
  %462 = vmatprep.subr.bf16.mxu0 %v342
  %463 = vmatpush1.bf16.msra.mxu0 %v341
  %464 = vmatprep.subr.bf16.mxu0 0
  %465 = vmatpush1.bf16.msra.mxu0 0
  %466 = vmatprep.subr.bf16.mxu0 0
  %467 = vmatpush1.bf16.msra.mxu0 0
  %468 = vmatprep.subr.bf16.mxu0 0
  %469 = vmatpush1.bf16.msra.mxu0 0
  %470 = vmatprep.subr.bf16.mxu0 0
  %471 = vmatpush1.bf16.msra.mxu0 0
  %472 = vmatprep.subr.bf16.mxu0 0
  %473 = vmatpush1.bf16.msra.mxu0 0
  %474 = vmatprep.subr.bf16.mxu0 0
  %475 = vmatpush1.bf16.msra.mxu0 0
  %476 = vmatprep.subr.bf16.mxu0 0
  %477 = vmatpush1.bf16.msra.mxu0 0
  %478 = vmatprep.subr.bf16.mxu0 0
  %479 = vmatpush1.bf16.msra.mxu0 0
  %480 = vmatprep.mubr.bf16.mxu0 0
  %481 = vmatmul.mubr.bf16.gmra.mrb[0].mxu0 %v157
  %v482 = vpop.f32.mrb[0].mxu0
  %v483 = vadd.f32 %v206, %v482
  %v484 = vpop.f32.mrb[0].mxu0
  %v485 = vadd.f32 %v210, %v484
  %v486 = vpop.f32.mrb[0].mxu0
  %v487 = vadd.f32 %v206, %v486
  %v488 = vpop.f32.mrb[0].mxu0
  %v489 = vadd.f32 %v210, %v488
  %490 = vmatprep.mubr.bf16.mxu0 0
  %491 = vmatmul.mubr.bf16.gmra.mrb[0].mxu0 %v158
  %v492 = vpop.f32.mrb[0].mxu0
  %v493 = vadd.f32 %v206, %v492
  %v494 = vpop.f32.mrb[0].mxu0
  %v495 = vadd.f32 %v210, %v494
  %v496 = vpop.f32.mrb[0].mxu0
  %v497 = vadd.f32 %v206, %v496
  %v498 = vpop.f32.mrb[0].mxu0
  %v499 = vadd.f32 %v210, %v498
  %500 = vmatprep.mubr.bf16.mxu0 0
  %501 = vmatmul.mubr.bf16.gmra.mrb[0].mxu0 %v159
  %v502 = vpop.f32.mrb[0].mxu0
  %v503 = vadd.f32 %v206, %v502
  %v504 = vpop.f32.mrb[0].mxu0
  %v505 = vadd.f32 %v210, %v504
  %v506 = vpop.f32.mrb[0].mxu0
  %v507 = vadd.f32 %v206, %v506
  %v508 = vpop.f32.mrb[0].mxu0
  %v509 = vadd.f32 %v210, %v508
  %510 = vmatprep.mubr.bf16.mxu0 0
  %511 = vmatmul.mubr.bf16.gmra.mrb[0].mxu0 %v160
  %v512 = vpop.f32.mrb[0].mxu0
  %v513 = vadd.f32 %v206, %v512
  %v514 = vpop.f32.mrb[0].mxu0
  %v515 = vadd.f32 %v210, %v514
  %v516 = vpop.f32.mrb[0].mxu0
  %v517 = vadd.f32 %v206, %v516
  %v518 = vpop.f32.mrb[0].mxu0
  %v519 = vadd.f32 %v210, %v518
  %520 = vdwg.mxu0
  %v521 = vmul.f32 %v410, 0.5
  %v522 = vmul.f32 %v412, 0.5
  %v523 = vmul.f32 %v483, 0.5
  %v524 = vmul.f32 %v485, 0.5
  %v525 = vmul.f32 %v414, 0.5
  %v526 = vmul.f32 %v416, 0.5
  %v527 = vmul.f32 %v487, 0.5
  %v528 = vmul.f32 %v489, 0.5
  %v529 = vmul.f32 %v420, 0.5
  %v530 = vmul.f32 %v422, 0.5
  %v531 = vmul.f32 %v493, 0.5
  %v532 = vmul.f32 %v495, 0.5
  %v533 = vmul.f32 %v424, 0.5
  %v534 = vmul.f32 %v426, 0.5
  %v535 = vmul.f32 %v497, 0.5
  %v536 = vmul.f32 %v499, 0.5
  %v537 = vmul.f32 %v430, 0.5
  %v538 = vmul.f32 %v432, 0.5
  %v539 = vmul.f32 %v503, 0.5
  %v540 = vmul.f32 %v505, 0.5
  %v541 = vmul.f32 %v434, 0.5
  %v542 = vmul.f32 %v436, 0.5
  %v543 = vmul.f32 %v507, 0.5
  %v544 = vmul.f32 %v509, 0.5
  %v545 = vmul.f32 %v440, 0.5
  %v546 = vmul.f32 %v442, 0.5
  %v547 = vmul.f32 %v513, 0.5
  %v548 = vmul.f32 %v515, 0.5
  %v549 = vmul.f32 %v444, 0.5
  %v550 = vmul.f32 %v446, 0.5
  %v551 = vmul.f32 %v517, 0.5
  %v552 = vmul.f32 %v519, 0.5
  %v553 = vmul.f32 %v410, 0.70710677
  %v554 = vmul.f32 %v412, 0.70710677
  %v555 = vmul.f32 %v483, 0.70710677
  %v556 = vmul.f32 %v485, 0.70710677
  %v557 = vmul.f32 %v414, 0.70710677
  %v558 = vmul.f32 %v416, 0.70710677
  %v559 = vmul.f32 %v487, 0.70710677
  %v560 = vmul.f32 %v489, 0.70710677
  %v561 = vmul.f32 %v420, 0.70710677
  %v562 = vmul.f32 %v422, 0.70710677
  %v563 = vmul.f32 %v493, 0.70710677
  %v564 = vmul.f32 %v495, 0.70710677
  %v565 = vmul.f32 %v424, 0.70710677
  %v566 = vmul.f32 %v426, 0.70710677
  %v567 = vmul.f32 %v497, 0.70710677
  %v568 = vmul.f32 %v499, 0.70710677
  %v569 = vmul.f32 %v430, 0.70710677
  %v570 = vmul.f32 %v432, 0.70710677
  %v571 = vmul.f32 %v503, 0.70710677
  %v572 = vmul.f32 %v505, 0.70710677
  %v573 = vmul.f32 %v434, 0.70710677
  %v574 = vmul.f32 %v436, 0.70710677
  %v575 = vmul.f32 %v507, 0.70710677
  %v576 = vmul.f32 %v509, 0.70710677
  %v577 = vmul.f32 %v440, 0.70710677
  %v578 = vmul.f32 %v442, 0.70710677
  %v579 = vmul.f32 %v513, 0.70710677
  %v580 = vmul.f32 %v515, 0.70710677
  %v581 = vmul.f32 %v444, 0.70710677
  %v582 = vmul.f32 %v446, 0.70710677
  %v583 = vmul.f32 %v517, 0.70710677
  %v584 = vmul.f32 %v519, 0.70710677
  %vm585 = vcmp.ge.f32.partialorder %v553, 0.0
  %vm586 = vcmp.ge.f32.partialorder %v554, 0.0
  %vm587 = vcmp.ge.f32.partialorder %v555, 0.0
  %vm588 = vcmp.ge.f32.partialorder %v556, 0.0
  %vm589 = vcmp.ge.f32.partialorder %v557, 0.0
  %vm590 = vcmp.ge.f32.partialorder %v558, 0.0
  %vm591 = vcmp.ge.f32.partialorder %v559, 0.0
  %vm592 = vcmp.ge.f32.partialorder %v560, 0.0
  %vm593 = vcmp.ge.f32.partialorder %v561, 0.0
  %vm594 = vcmp.ge.f32.partialorder %v562, 0.0
  %vm595 = vcmp.ge.f32.partialorder %v563, 0.0
  %vm596 = vcmp.ge.f32.partialorder %v564, 0.0
  %vm597 = vcmp.ge.f32.partialorder %v565, 0.0
  %vm598 = vcmp.ge.f32.partialorder %v566, 0.0
  %vm599 = vcmp.ge.f32.partialorder %v567, 0.0
  %vm600 = vcmp.ge.f32.partialorder %v568, 0.0
  %vm601 = vcmp.ge.f32.partialorder %v569, 0.0
  %vm602 = vcmp.ge.f32.partialorder %v570, 0.0
  %vm603 = vcmp.ge.f32.partialorder %v571, 0.0
  %vm604 = vcmp.ge.f32.partialorder %v572, 0.0
  %vm605 = vcmp.ge.f32.partialorder %v573, 0.0
  %vm606 = vcmp.ge.f32.partialorder %v574, 0.0
  %vm607 = vcmp.ge.f32.partialorder %v575, 0.0
  %vm608 = vcmp.ge.f32.partialorder %v576, 0.0
  %vm609 = vcmp.ge.f32.partialorder %v577, 0.0
  %vm610 = vcmp.ge.f32.partialorder %v578, 0.0
  %vm611 = vcmp.ge.f32.partialorder %v579, 0.0
  %vm612 = vcmp.ge.f32.partialorder %v580, 0.0
  %vm613 = vcmp.ge.f32.partialorder %v581, 0.0
  %vm614 = vcmp.ge.f32.partialorder %v582, 0.0
  %vm615 = vcmp.ge.f32.partialorder %v583, 0.0
  %vm616 = vcmp.ge.f32.partialorder %v584, 0.0
  %v617 = vsel %vm585, 1.0, -1.0
  %v618 = vsel %vm586, 1.0, -1.0
  %v619 = vsel %vm587, 1.0, -1.0
  %v620 = vsel %vm588, 1.0, -1.0
  %v621 = vsel %vm589, 1.0, -1.0
  %v622 = vsel %vm590, 1.0, -1.0
  %v623 = vsel %vm591, 1.0, -1.0
  %v624 = vsel %vm592, 1.0, -1.0
  %v625 = vsel %vm593, 1.0, -1.0
  %v626 = vsel %vm594, 1.0, -1.0
  %v627 = vsel %vm595, 1.0, -1.0
  %v628 = vsel %vm596, 1.0, -1.0
  %v629 = vsel %vm597, 1.0, -1.0
  %v630 = vsel %vm598, 1.0, -1.0
  %v631 = vsel %vm599, 1.0, -1.0
  %v632 = vsel %vm600, 1.0, -1.0
  %v633 = vsel %vm601, 1.0, -1.0
  %v634 = vsel %vm602, 1.0, -1.0
  %v635 = vsel %vm603, 1.0, -1.0
  %v636 = vsel %vm604, 1.0, -1.0
  %v637 = vsel %vm605, 1.0, -1.0
  %v638 = vsel %vm606, 1.0, -1.0
  %v639 = vsel %vm607, 1.0, -1.0
  %v640 = vsel %vm608, 1.0, -1.0
  %v641 = vsel %vm609, 1.0, -1.0
  %v642 = vsel %vm610, 1.0, -1.0
  %v643 = vsel %vm611, 1.0, -1.0
  %v644 = vsel %vm612, 1.0, -1.0
  %v645 = vsel %vm613, 1.0, -1.0
  %v646 = vsel %vm614, 1.0, -1.0
  %v647 = vsel %vm615, 1.0, -1.0
  %v648 = vsel %vm616, 1.0, -1.0
  %v649 = vand.u32 2147483647, %v553
  %v650 = vand.u32 2147483647, %v554
  %v651 = vand.u32 2147483647, %v555
  %v652 = vand.u32 2147483647, %v556
  %v653 = vand.u32 2147483647, %v557
  %v654 = vand.u32 2147483647, %v558
  %v655 = vand.u32 2147483647, %v559
  %v656 = vand.u32 2147483647, %v560
  %v657 = vand.u32 2147483647, %v561
  %v658 = vand.u32 2147483647, %v562
  %v659 = vand.u32 2147483647, %v563
  %v660 = vand.u32 2147483647, %v564
  %v661 = vand.u32 2147483647, %v565
  %v662 = vand.u32 2147483647, %v566
  %v663 = vand.u32 2147483647, %v567
  %v664 = vand.u32 2147483647, %v568
  %v665 = vand.u32 2147483647, %v569
  %v666 = vand.u32 2147483647, %v570
  %v667 = vand.u32 2147483647, %v571
  %v668 = vand.u32 2147483647, %v572
  %v669 = vand.u32 2147483647, %v573
  %v670 = vand.u32 2147483647, %v574
  %v671 = vand.u32 2147483647, %v575
  %v672 = vand.u32 2147483647, %v576
  %v673 = vand.u32 2147483647, %v577
  %v674 = vand.u32 2147483647, %v578
  %v675 = vand.u32 2147483647, %v579
  %v676 = vand.u32 2147483647, %v580
  %v677 = vand.u32 2147483647, %v581
  %v678 = vand.u32 2147483647, %v582
  %v679 = vand.u32 2147483647, %v583
  %v680 = vand.u32 2147483647, %v584
  %v681 = vmul.f32 %v649, 0.3275911
  %v682 = vmul.f32 %v650, 0.3275911
  %v683 = vmul.f32 %v651, 0.3275911
  %v684 = vmul.f32 %v652, 0.3275911
  %v685 = vmul.f32 %v653, 0.3275911
  %v686 = vmul.f32 %v654, 0.3275911
  %v687 = vmul.f32 %v655, 0.3275911
  %v688 = vmul.f32 %v656, 0.3275911
  %v689 = vmul.f32 %v657, 0.3275911
  %v690 = vmul.f32 %v658, 0.3275911
  %v691 = vmul.f32 %v659, 0.3275911
  %v692 = vmul.f32 %v660, 0.3275911
  %v693 = vmul.f32 %v661, 0.3275911
  %v694 = vmul.f32 %v662, 0.3275911
  %v695 = vmul.f32 %v663, 0.3275911
  %v696 = vmul.f32 %v664, 0.3275911
  %v697 = vmul.f32 %v665, 0.3275911
  %v698 = vmul.f32 %v666, 0.3275911
  %v699 = vmul.f32 %v667, 0.3275911
  %v700 = vmul.f32 %v668, 0.3275911
  %v701 = vmul.f32 %v669, 0.3275911
  %v702 = vmul.f32 %v670, 0.3275911
  %v703 = vmul.f32 %v671, 0.3275911
  %v704 = vmul.f32 %v672, 0.3275911
  %v705 = vmul.f32 %v673, 0.3275911
  %v706 = vmul.f32 %v674, 0.3275911
  %v707 = vmul.f32 %v675, 0.3275911
  %v708 = vmul.f32 %v676, 0.3275911
  %v709 = vmul.f32 %v677, 0.3275911
  %v710 = vmul.f32 %v678, 0.3275911
  %v711 = vmul.f32 %v679, 0.3275911
  %v712 = vmul.f32 %v680, 0.3275911
  %v713 = vadd.f32 %v681, 1.0
  %v714 = vadd.f32 %v682, 1.0
  %v715 = vadd.f32 %v683, 1.0
  %v716 = vadd.f32 %v684, 1.0
  %v717 = vadd.f32 %v685, 1.0
  %v718 = vadd.f32 %v686, 1.0
  %v719 = vadd.f32 %v687, 1.0
  %v720 = vadd.f32 %v688, 1.0
  %v721 = vadd.f32 %v689, 1.0
  %v722 = vadd.f32 %v690, 1.0
  %v723 = vadd.f32 %v691, 1.0
  %v724 = vadd.f32 %v692, 1.0
  %v725 = vadd.f32 %v693, 1.0
  %v726 = vadd.f32 %v694, 1.0
  %v727 = vadd.f32 %v695, 1.0
  %v728 = vadd.f32 %v696, 1.0
  %v729 = vadd.f32 %v697, 1.0
  %v730 = vadd.f32 %v698, 1.0
  %v731 = vadd.f32 %v699, 1.0
  %v732 = vadd.f32 %v700, 1.0
  %v733 = vadd.f32 %v701, 1.0
  %v734 = vadd.f32 %v702, 1.0
  %v735 = vadd.f32 %v703, 1.0
  %v736 = vadd.f32 %v704, 1.0
  %v737 = vadd.f32 %v705, 1.0
  %v738 = vadd.f32 %v706, 1.0
  %v739 = vadd.f32 %v707, 1.0
  %v740 = vadd.f32 %v708, 1.0
  %v741 = vadd.f32 %v709, 1.0
  %v742 = vadd.f32 %v710, 1.0
  %v743 = vadd.f32 %v711, 1.0
  %v744 = vadd.f32 %v712, 1.0
  %v745 = vrcp.pop %v713
  %v746 = vmul.f32 1.0, %v745
  %v747 = vrcp.pop %v714
  %v748 = vmul.f32 1.0, %v747
  %v749 = vrcp.pop %v715
  %v750 = vmul.f32 1.0, %v749
  %v751 = vrcp.pop %v716
  %v752 = vmul.f32 1.0, %v751
  %v753 = vrcp.pop %v717
  %v754 = vmul.f32 1.0, %v753
  %v755 = vrcp.pop %v718
  %v756 = vmul.f32 1.0, %v755
  %v757 = vrcp.pop %v719
  %v758 = vmul.f32 1.0, %v757
  %v759 = vrcp.pop %v720
  %v760 = vmul.f32 1.0, %v759
  %v761 = vrcp.pop %v721
  %v762 = vmul.f32 1.0, %v761
  %v763 = vrcp.pop %v722
  %v764 = vmul.f32 1.0, %v763
  %v765 = vrcp.pop %v723
  %v766 = vmul.f32 1.0, %v765
  %v767 = vrcp.pop %v724
  %v768 = vmul.f32 1.0, %v767
  %v769 = vrcp.pop %v725
  %v770 = vmul.f32 1.0, %v769
  %v771 = vrcp.pop %v726
  %v772 = vmul.f32 1.0, %v771
  %v773 = vrcp.pop %v727
  %v774 = vmul.f32 1.0, %v773
  %v775 = vrcp.pop %v728
  %v776 = vmul.f32 1.0, %v775
  %v777 = vrcp.pop %v729
  %v778 = vmul.f32 1.0, %v777
  %v779 = vrcp.pop %v730
  %v780 = vmul.f32 1.0, %v779
  %v781 = vrcp.pop %v731
  %v782 = vmul.f32 1.0, %v781
  %v783 = vrcp.pop %v732
  %v784 = vmul.f32 1.0, %v783
  %v785 = vrcp.pop %v733
  %v786 = vmul.f32 1.0, %v785
  %v787 = vrcp.pop %v734
  %v788 = vmul.f32 1.0, %v787
  %v789 = vrcp.pop %v735
  %v790 = vmul.f32 1.0, %v789
  %v791 = vrcp.pop %v736
  %v792 = vmul.f32 1.0, %v791
  %v793 = vrcp.pop %v737
  %v794 = vmul.f32 1.0, %v793
  %v795 = vrcp.pop %v738
  %v796 = vmul.f32 1.0, %v795
  %v797 = vrcp.pop %v739
  %v798 = vmul.f32 1.0, %v797
  %v799 = vrcp.pop %v740
  %v800 = vmul.f32 1.0, %v799
  %v801 = vrcp.pop %v741
  %v802 = vmul.f32 1.0, %v801
  %v803 = vrcp.pop %v742
  %v804 = vmul.f32 1.0, %v803
  %v805 = vrcp.pop %v743
  %v806 = vmul.f32 1.0, %v805
  %v807 = vrcp.pop %v744
  %v808 = vmul.f32 1.0, %v807
  %v809 = vmul.f32 %v746, 1.0614054
  %v810 = vmul.f32 %v748, 1.0614054
  %v811 = vmul.f32 %v750, 1.0614054
  %v812 = vmul.f32 %v752, 1.0614054
  %v813 = vmul.f32 %v754, 1.0614054
  %v814 = vmul.f32 %v756, 1.0614054
  %v815 = vmul.f32 %v758, 1.0614054
  %v816 = vmul.f32 %v760, 1.0614054
  %v817 = vmul.f32 %v762, 1.0614054
  %v818 = vmul.f32 %v764, 1.0614054
  %v819 = vmul.f32 %v766, 1.0614054
  %v820 = vmul.f32 %v768, 1.0614054
  %v821 = vmul.f32 %v770, 1.0614054
  %v822 = vmul.f32 %v772, 1.0614054
  %v823 = vmul.f32 %v774, 1.0614054
  %v824 = vmul.f32 %v776, 1.0614054
  %v825 = vmul.f32 %v778, 1.0614054
  %v826 = vmul.f32 %v780, 1.0614054
  %v827 = vmul.f32 %v782, 1.0614054
  %v828 = vmul.f32 %v784, 1.0614054
  %v829 = vmul.f32 %v786, 1.0614054
  %v830 = vmul.f32 %v788, 1.0614054
  %v831 = vmul.f32 %v790, 1.0614054
  %v832 = vmul.f32 %v792, 1.0614054
  %v833 = vmul.f32 %v794, 1.0614054
  %v834 = vmul.f32 %v796, 1.0614054
  %v835 = vmul.f32 %v798, 1.0614054
  %v836 = vmul.f32 %v800, 1.0614054
  %v837 = vmul.f32 %v802, 1.0614054
  %v838 = vmul.f32 %v804, 1.0614054
  %v839 = vmul.f32 %v806, 1.0614054
  %v840 = vmul.f32 %v808, 1.0614054
  %v841 = vadd.f32 %v809, -1.4531521
  %v842 = vadd.f32 %v810, -1.4531521
  %v843 = vadd.f32 %v811, -1.4531521
  %v844 = vadd.f32 %v812, -1.4531521
  %v845 = vadd.f32 %v813, -1.4531521
  %v846 = vadd.f32 %v814, -1.4531521
  %v847 = vadd.f32 %v815, -1.4531521
  %v848 = vadd.f32 %v816, -1.4531521
  %v849 = vadd.f32 %v817, -1.4531521
  %v850 = vadd.f32 %v818, -1.4531521
  %v851 = vadd.f32 %v819, -1.4531521
  %v852 = vadd.f32 %v820, -1.4531521
  %v853 = vadd.f32 %v821, -1.4531521
  %v854 = vadd.f32 %v822, -1.4531521
  %v855 = vadd.f32 %v823, -1.4531521
  %v856 = vadd.f32 %v824, -1.4531521
  %v857 = vadd.f32 %v825, -1.4531521
  %v858 = vadd.f32 %v826, -1.4531521
  %v859 = vadd.f32 %v827, -1.4531521
  %v860 = vadd.f32 %v828, -1.4531521
  %v861 = vadd.f32 %v829, -1.4531521
  %v862 = vadd.f32 %v830, -1.4531521
  %v863 = vadd.f32 %v831, -1.4531521
  %v864 = vadd.f32 %v832, -1.4531521
  %v865 = vadd.f32 %v833, -1.4531521
  %v866 = vadd.f32 %v834, -1.4531521
  %v867 = vadd.f32 %v835, -1.4531521
  %v868 = vadd.f32 %v836, -1.4531521
  %v869 = vadd.f32 %v837, -1.4531521
  %v870 = vadd.f32 %v838, -1.4531521
  %v871 = vadd.f32 %v839, -1.4531521
  %v872 = vadd.f32 %v840, -1.4531521
  %v873 = vmul.f32 %v841, %v746
  %v874 = vmul.f32 %v842, %v748
  %v875 = vmul.f32 %v843, %v750
  %v876 = vmul.f32 %v844, %v752
  %v877 = vmul.f32 %v845, %v754
  %v878 = vmul.f32 %v846, %v756
  %v879 = vmul.f32 %v847, %v758
  %v880 = vmul.f32 %v848, %v760
  %v881 = vmul.f32 %v849, %v762
  %v882 = vmul.f32 %v850, %v764
  %v883 = vmul.f32 %v851, %v766
  %v884 = vmul.f32 %v852, %v768
  %v885 = vmul.f32 %v853, %v770
  %v886 = vmul.f32 %v854, %v772
  %v887 = vmul.f32 %v855, %v774
  %v888 = vmul.f32 %v856, %v776
  %v889 = vmul.f32 %v857, %v778
  %v890 = vmul.f32 %v858, %v780
  %v891 = vmul.f32 %v859, %v782
  %v892 = vmul.f32 %v860, %v784
  %v893 = vmul.f32 %v861, %v786
  %v894 = vmul.f32 %v862, %v788
  %v895 = vmul.f32 %v863, %v790
  %v896 = vmul.f32 %v864, %v792
  %v897 = vmul.f32 %v865, %v794
  %v898 = vmul.f32 %v866, %v796
  %v899 = vmul.f32 %v867, %v798
  %v900 = vmul.f32 %v868, %v800
  %v901 = vmul.f32 %v869, %v802
  %v902 = vmul.f32 %v870, %v804
  %v903 = vmul.f32 %v871, %v806
  %v904 = vmul.f32 %v872, %v808
  %v905 = vadd.f32 %v873, 1.4214138
  %v906 = vadd.f32 %v874, 1.4214138
  %v907 = vadd.f32 %v875, 1.4214138
  %v908 = vadd.f32 %v876, 1.4214138
  %v909 = vadd.f32 %v877, 1.4214138
  %v910 = vadd.f32 %v878, 1.4214138
  %v911 = vadd.f32 %v879, 1.4214138
  %v912 = vadd.f32 %v880, 1.4214138
  %v913 = vadd.f32 %v881, 1.4214138
  %v914 = vadd.f32 %v882, 1.4214138
  %v915 = vadd.f32 %v883, 1.4214138
  %v916 = vadd.f32 %v884, 1.4214138
  %v917 = vadd.f32 %v885, 1.4214138
  %v918 = vadd.f32 %v886, 1.4214138
  %v919 = vadd.f32 %v887, 1.4214138
  %v920 = vadd.f32 %v888, 1.4214138
  %v921 = vadd.f32 %v889, 1.4214138
  %v922 = vadd.f32 %v890, 1.4214138
  %v923 = vadd.f32 %v891, 1.4214138
  %v924 = vadd.f32 %v892, 1.4214138
  %v925 = vadd.f32 %v893, 1.4214138
  %v926 = vadd.f32 %v894, 1.4214138
  %v927 = vadd.f32 %v895, 1.4214138
  %v928 = vadd.f32 %v896, 1.4214138
  %v929 = vadd.f32 %v897, 1.4214138
  %v930 = vadd.f32 %v898, 1.4214138
  %v931 = vadd.f32 %v899, 1.4214138
  %v932 = vadd.f32 %v900, 1.4214138
  %v933 = vadd.f32 %v901, 1.4214138
  %v934 = vadd.f32 %v902, 1.4214138
  %v935 = vadd.f32 %v903, 1.4214138
  %v936 = vadd.f32 %v904, 1.4214138
  %v937 = vmul.f32 %v905, %v746
  %v938 = vmul.f32 %v906, %v748
  %v939 = vmul.f32 %v907, %v750
  %v940 = vmul.f32 %v908, %v752
  %v941 = vmul.f32 %v909, %v754
  %v942 = vmul.f32 %v910, %v756
  %v943 = vmul.f32 %v911, %v758
  %v944 = vmul.f32 %v912, %v760
  %v945 = vmul.f32 %v913, %v762
  %v946 = vmul.f32 %v914, %v764
  %v947 = vmul.f32 %v915, %v766
  %v948 = vmul.f32 %v916, %v768
  %v949 = vmul.f32 %v917, %v770
  %v950 = vmul.f32 %v918, %v772
  %v951 = vmul.f32 %v919, %v774
  %v952 = vmul.f32 %v920, %v776
  %v953 = vmul.f32 %v921, %v778
  %v954 = vmul.f32 %v922, %v780
  %v955 = vmul.f32 %v923, %v782
  %v956 = vmul.f32 %v924, %v784
  %v957 = vmul.f32 %v925, %v786
  %v958 = vmul.f32 %v926, %v788
  %v959 = vmul.f32 %v927, %v790
  %v960 = vmul.f32 %v928, %v792
  %v961 = vmul.f32 %v929, %v794
  %v962 = vmul.f32 %v930, %v796
  %v963 = vmul.f32 %v931, %v798
  %v964 = vmul.f32 %v932, %v800
  %v965 = vmul.f32 %v933, %v802
  %v966 = vmul.f32 %v934, %v804
  %v967 = vmul.f32 %v935, %v806
  %v968 = vmul.f32 %v936, %v808
  %v969 = vadd.f32 %v937, -0.28449672
  %v970 = vadd.f32 %v938, -0.28449672
  %v971 = vadd.f32 %v939, -0.28449672
  %v972 = vadd.f32 %v940, -0.28449672
  %v973 = vadd.f32 %v941, -0.28449672
  %v974 = vadd.f32 %v942, -0.28449672
  %v975 = vadd.f32 %v943, -0.28449672
  %v976 = vadd.f32 %v944, -0.28449672
  %v977 = vadd.f32 %v945, -0.28449672
  %v978 = vadd.f32 %v946, -0.28449672
  %v979 = vadd.f32 %v947, -0.28449672
  %v980 = vadd.f32 %v948, -0.28449672
  %v981 = vadd.f32 %v949, -0.28449672
  %v982 = vadd.f32 %v950, -0.28449672
  %v983 = vadd.f32 %v951, -0.28449672
  %v984 = vadd.f32 %v952, -0.28449672
  %v985 = vadd.f32 %v953, -0.28449672
  %v986 = vadd.f32 %v954, -0.28449672
  %v987 = vadd.f32 %v955, -0.28449672
  %v988 = vadd.f32 %v956, -0.28449672
  %v989 = vadd.f32 %v957, -0.28449672
  %v990 = vadd.f32 %v958, -0.28449672
  %v991 = vadd.f32 %v959, -0.28449672
  %v992 = vadd.f32 %v960, -0.28449672
  %v993 = vadd.f32 %v961, -0.28449672
  %v994 = vadd.f32 %v962, -0.28449672
  %v995 = vadd.f32 %v963, -0.28449672
  %v996 = vadd.f32 %v964, -0.28449672
  %v997 = vadd.f32 %v965, -0.28449672
  %v998 = vadd.f32 %v966, -0.28449672
  %v999 = vadd.f32 %v967, -0.28449672
  %v1000 = vadd.f32 %v968, -0.28449672
  %v1001 = vmul.f32 %v969, %v746
  %v1002 = vmul.f32 %v970, %v748
  %v1003 = vmul.f32 %v971, %v750
  %v1004 = vmul.f32 %v972, %v752
  %v1005 = vmul.f32 %v973, %v754
  %v1006 = vmul.f32 %v974, %v756
  %v1007 = vmul.f32 %v975, %v758
  %v1008 = vmul.f32 %v976, %v760
  %v1009 = vmul.f32 %v977, %v762
  %v1010 = vmul.f32 %v978, %v764
  %v1011 = vmul.f32 %v979, %v766
  %v1012 = vmul.f32 %v980, %v768
  %v1013 = vmul.f32 %v981, %v770
  %v1014 = vmul.f32 %v982, %v772
  %v1015 = vmul.f32 %v983, %v774
  %v1016 = vmul.f32 %v984, %v776
  %v1017 = vmul.f32 %v985, %v778
  %v1018 = vmul.f32 %v986, %v780
  %v1019 = vmul.f32 %v987, %v782
  %v1020 = vmul.f32 %v988, %v784
  %v1021 = vmul.f32 %v989, %v786
  %v1022 = vmul.f32 %v990, %v788
  %v1023 = vmul.f32 %v991, %v790
  %v1024 = vmul.f32 %v992, %v792
  %v1025 = vmul.f32 %v993, %v794
  %v1026 = vmul.f32 %v994, %v796
  %v1027 = vmul.f32 %v995, %v798
  %v1028 = vmul.f32 %v996, %v800
  %v1029 = vmul.f32 %v997, %v802
  %v1030 = vmul.f32 %v998, %v804
  %v1031 = vmul.f32 %v999, %v806
  %v1032 = vmul.f32 %v1000, %v808
  %v1033 = vadd.f32 %v1001, 0.2548296
  %v1034 = vadd.f32 %v1002, 0.2548296
  %v1035 = vadd.f32 %v1003, 0.2548296
  %v1036 = vadd.f32 %v1004, 0.2548296
  %v1037 = vadd.f32 %v1005, 0.2548296
  %v1038 = vadd.f32 %v1006, 0.2548296
  %v1039 = vadd.f32 %v1007, 0.2548296
  %v1040 = vadd.f32 %v1008, 0.2548296
  %v1041 = vadd.f32 %v1009, 0.2548296
  %v1042 = vadd.f32 %v1010, 0.2548296
  %v1043 = vadd.f32 %v1011, 0.2548296
  %v1044 = vadd.f32 %v1012, 0.2548296
  %v1045 = vadd.f32 %v1013, 0.2548296
  %v1046 = vadd.f32 %v1014, 0.2548296
  %v1047 = vadd.f32 %v1015, 0.2548296
  %v1048 = vadd.f32 %v1016, 0.2548296
  %v1049 = vadd.f32 %v1017, 0.2548296
  %v1050 = vadd.f32 %v1018, 0.2548296
  %v1051 = vadd.f32 %v1019, 0.2548296
  %v1052 = vadd.f32 %v1020, 0.2548296
  %v1053 = vadd.f32 %v1021, 0.2548296
  %v1054 = vadd.f32 %v1022, 0.2548296
  %v1055 = vadd.f32 %v1023, 0.2548296
  %v1056 = vadd.f32 %v1024, 0.2548296
  %v1057 = vadd.f32 %v1025, 0.2548296
  %v1058 = vadd.f32 %v1026, 0.2548296
  %v1059 = vadd.f32 %v1027, 0.2548296
  %v1060 = vadd.f32 %v1028, 0.2548296
  %v1061 = vadd.f32 %v1029, 0.2548296
  %v1062 = vadd.f32 %v1030, 0.2548296
  %v1063 = vadd.f32 %v1031, 0.2548296
  %v1064 = vadd.f32 %v1032, 0.2548296
  %v1065 = vmul.f32 %v1033, %v746
  %v1066 = vmul.f32 %v1034, %v748
  %v1067 = vmul.f32 %v1035, %v750
  %v1068 = vmul.f32 %v1036, %v752
  %v1069 = vmul.f32 %v1037, %v754
  %v1070 = vmul.f32 %v1038, %v756
  %v1071 = vmul.f32 %v1039, %v758
  %v1072 = vmul.f32 %v1040, %v760
  %v1073 = vmul.f32 %v1041, %v762
  %v1074 = vmul.f32 %v1042, %v764
  %v1075 = vmul.f32 %v1043, %v766
  %v1076 = vmul.f32 %v1044, %v768
  %v1077 = vmul.f32 %v1045, %v770
  %v1078 = vmul.f32 %v1046, %v772
  %v1079 = vmul.f32 %v1047, %v774
  %v1080 = vmul.f32 %v1048, %v776
  %v1081 = vmul.f32 %v1049, %v778
  %v1082 = vmul.f32 %v1050, %v780
  %v1083 = vmul.f32 %v1051, %v782
  %v1084 = vmul.f32 %v1052, %v784
  %v1085 = vmul.f32 %v1053, %v786
  %v1086 = vmul.f32 %v1054, %v788
  %v1087 = vmul.f32 %v1055, %v790
  %v1088 = vmul.f32 %v1056, %v792
  %v1089 = vmul.f32 %v1057, %v794
  %v1090 = vmul.f32 %v1058, %v796
  %v1091 = vmul.f32 %v1059, %v798
  %v1092 = vmul.f32 %v1060, %v800
  %v1093 = vmul.f32 %v1061, %v802
  %v1094 = vmul.f32 %v1062, %v804
  %v1095 = vmul.f32 %v1063, %v806
  %v1096 = vmul.f32 %v1064, %v808
  %v1097 = vsub.f32 0.0, %v649
  %v1098 = vsub.f32 0.0, %v650
  %v1099 = vsub.f32 0.0, %v651
  %v1100 = vsub.f32 0.0, %v652
  %v1101 = vsub.f32 0.0, %v653
  %v1102 = vsub.f32 0.0, %v654
  %v1103 = vsub.f32 0.0, %v655
  %v1104 = vsub.f32 0.0, %v656
  %v1105 = vsub.f32 0.0, %v657
  %v1106 = vsub.f32 0.0, %v658
  %v1107 = vsub.f32 0.0, %v659
  %v1108 = vsub.f32 0.0, %v660
  %v1109 = vsub.f32 0.0, %v661
  %v1110 = vsub.f32 0.0, %v662
  %v1111 = vsub.f32 0.0, %v663
  %v1112 = vsub.f32 0.0, %v664
  %v1113 = vsub.f32 0.0, %v665
  %v1114 = vsub.f32 0.0, %v666
  %v1115 = vsub.f32 0.0, %v667
  %v1116 = vsub.f32 0.0, %v668
  %v1117 = vsub.f32 0.0, %v669
  %v1118 = vsub.f32 0.0, %v670
  %v1119 = vsub.f32 0.0, %v671
  %v1120 = vsub.f32 0.0, %v672
  %v1121 = vsub.f32 0.0, %v673
  %v1122 = vsub.f32 0.0, %v674
  %v1123 = vsub.f32 0.0, %v675
  %v1124 = vsub.f32 0.0, %v676
  %v1125 = vsub.f32 0.0, %v677
  %v1126 = vsub.f32 0.0, %v678
  %v1127 = vsub.f32 0.0, %v679
  %v1128 = vsub.f32 0.0, %v680
  %v1129 = vmul.f32 %v1097, %v649
  %v1130 = vmul.f32 %v1098, %v650
  %v1131 = vmul.f32 %v1099, %v651
  %v1132 = vmul.f32 %v1100, %v652
  %v1133 = vmul.f32 %v1101, %v653
  %v1134 = vmul.f32 %v1102, %v654
  %v1135 = vmul.f32 %v1103, %v655
  %v1136 = vmul.f32 %v1104, %v656
  %v1137 = vmul.f32 %v1105, %v657
  %v1138 = vmul.f32 %v1106, %v658
  %v1139 = vmul.f32 %v1107, %v659
  %v1140 = vmul.f32 %v1108, %v660
  %v1141 = vmul.f32 %v1109, %v661
  %v1142 = vmul.f32 %v1110, %v662
  %v1143 = vmul.f32 %v1111, %v663
  %v1144 = vmul.f32 %v1112, %v664
  %v1145 = vmul.f32 %v1113, %v665
  %v1146 = vmul.f32 %v1114, %v666
  %v1147 = vmul.f32 %v1115, %v667
  %v1148 = vmul.f32 %v1116, %v668
  %v1149 = vmul.f32 %v1117, %v669
  %v1150 = vmul.f32 %v1118, %v670
  %v1151 = vmul.f32 %v1119, %v671
  %v1152 = vmul.f32 %v1120, %v672
  %v1153 = vmul.f32 %v1121, %v673
  %v1154 = vmul.f32 %v1122, %v674
  %v1155 = vmul.f32 %v1123, %v675
  %v1156 = vmul.f32 %v1124, %v676
  %v1157 = vmul.f32 %v1125, %v677
  %v1158 = vmul.f32 %v1126, %v678
  %v1159 = vmul.f32 %v1127, %v679
  %v1160 = vmul.f32 %v1128, %v680
  %v1161 = vmul.f32 %v1129, 1.442695
  %v1162 = vpow.pop %v1161
  %v1163 = vmul.f32 %v1130, 1.442695
  %v1164 = vpow.pop %v1163
  %v1165 = vmul.f32 %v1131, 1.442695
  %v1166 = vpow.pop %v1165
  %v1167 = vmul.f32 %v1132, 1.442695
  %v1168 = vpow.pop %v1167
  %v1169 = vmul.f32 %v1133, 1.442695
  %v1170 = vpow.pop %v1169
  %v1171 = vmul.f32 %v1134, 1.442695
  %v1172 = vpow.pop %v1171
  %v1173 = vmul.f32 %v1135, 1.442695
  %v1174 = vpow.pop %v1173
  %v1175 = vmul.f32 %v1136, 1.442695
  %v1176 = vpow.pop %v1175
  %v1177 = vmul.f32 %v1137, 1.442695
  %v1178 = vpow.pop %v1177
  %v1179 = vmul.f32 %v1138, 1.442695
  %v1180 = vpow.pop %v1179
  %v1181 = vmul.f32 %v1139, 1.442695
  %v1182 = vpow.pop %v1181
  %v1183 = vmul.f32 %v1140, 1.442695
  %v1184 = vpow.pop %v1183
  %v1185 = vmul.f32 %v1141, 1.442695
  %v1186 = vpow.pop %v1185
  %v1187 = vmul.f32 %v1142, 1.442695
  %v1188 = vpow.pop %v1187
  %v1189 = vmul.f32 %v1143, 1.442695
  %v1190 = vpow.pop %v1189
  %v1191 = vmul.f32 %v1144, 1.442695
  %v1192 = vpow.pop %v1191
  %v1193 = vmul.f32 %v1145, 1.442695
  %v1194 = vpow.pop %v1193
  %v1195 = vmul.f32 %v1146, 1.442695
  %v1196 = vpow.pop %v1195
  %v1197 = vmul.f32 %v1147, 1.442695
  %v1198 = vpow.pop %v1197
  %v1199 = vmul.f32 %v1148, 1.442695
  %v1200 = vpow.pop %v1199
  %v1201 = vmul.f32 %v1149, 1.442695
  %v1202 = vpow.pop %v1201
  %v1203 = vmul.f32 %v1150, 1.442695
  %v1204 = vpow.pop %v1203
  %v1205 = vmul.f32 %v1151, 1.442695
  %v1206 = vpow.pop %v1205
  %v1207 = vmul.f32 %v1152, 1.442695
  %v1208 = vpow.pop %v1207
  %v1209 = vmul.f32 %v1153, 1.442695
  %v1210 = vpow.pop %v1209
  %v1211 = vmul.f32 %v1154, 1.442695
  %v1212 = vpow.pop %v1211
  %v1213 = vmul.f32 %v1155, 1.442695
  %v1214 = vpow.pop %v1213
  %v1215 = vmul.f32 %v1156, 1.442695
  %v1216 = vpow.pop %v1215
  %v1217 = vmul.f32 %v1157, 1.442695
  %v1218 = vpow.pop %v1217
  %v1219 = vmul.f32 %v1158, 1.442695
  %v1220 = vpow.pop %v1219
  %v1221 = vmul.f32 %v1159, 1.442695
  %v1222 = vpow.pop %v1221
  %v1223 = vmul.f32 %v1160, 1.442695
  %v1224 = vpow.pop %v1223
  %v1225 = vmul.f32 %v1065, %v1162
  %v1226 = vmul.f32 %v1066, %v1164
  %v1227 = vmul.f32 %v1067, %v1166
  %v1228 = vmul.f32 %v1068, %v1168
  %v1229 = vmul.f32 %v1069, %v1170
  %v1230 = vmul.f32 %v1070, %v1172
  %v1231 = vmul.f32 %v1071, %v1174
  %v1232 = vmul.f32 %v1072, %v1176
  %v1233 = vmul.f32 %v1073, %v1178
  %v1234 = vmul.f32 %v1074, %v1180
  %v1235 = vmul.f32 %v1075, %v1182
  %v1236 = vmul.f32 %v1076, %v1184
  %v1237 = vmul.f32 %v1077, %v1186
  %v1238 = vmul.f32 %v1078, %v1188
  %v1239 = vmul.f32 %v1079, %v1190
  %v1240 = vmul.f32 %v1080, %v1192
  %v1241 = vmul.f32 %v1081, %v1194
  %v1242 = vmul.f32 %v1082, %v1196
  %v1243 = vmul.f32 %v1083, %v1198
  %v1244 = vmul.f32 %v1084, %v1200
  %v1245 = vmul.f32 %v1085, %v1202
  %v1246 = vmul.f32 %v1086, %v1204
  %v1247 = vmul.f32 %v1087, %v1206
  %v1248 = vmul.f32 %v1088, %v1208
  %v1249 = vmul.f32 %v1089, %v1210
  %v1250 = vmul.f32 %v1090, %v1212
  %v1251 = vmul.f32 %v1091, %v1214
  %v1252 = vmul.f32 %v1092, %v1216
  %v1253 = vmul.f32 %v1093, %v1218
  %v1254 = vmul.f32 %v1094, %v1220
  %v1255 = vmul.f32 %v1095, %v1222
  %v1256 = vmul.f32 %v1096, %v1224
  %v1257 = vsub.f32 1.0, %v1225
  %v1258 = vsub.f32 1.0, %v1226
  %v1259 = vsub.f32 1.0, %v1227
  %v1260 = vsub.f32 1.0, %v1228
  %v1261 = vsub.f32 1.0, %v1229
  %v1262 = vsub.f32 1.0, %v1230
  %v1263 = vsub.f32 1.0, %v1231
  %v1264 = vsub.f32 1.0, %v1232
  %v1265 = vsub.f32 1.0, %v1233
  %v1266 = vsub.f32 1.0, %v1234
  %v1267 = vsub.f32 1.0, %v1235
  %v1268 = vsub.f32 1.0, %v1236
  %v1269 = vsub.f32 1.0, %v1237
  %v1270 = vsub.f32 1.0, %v1238
  %v1271 = vsub.f32 1.0, %v1239
  %v1272 = vsub.f32 1.0, %v1240
  %v1273 = vsub.f32 1.0, %v1241
  %v1274 = vsub.f32 1.0, %v1242
  %v1275 = vsub.f32 1.0, %v1243
  %v1276 = vsub.f32 1.0, %v1244
  %v1277 = vsub.f32 1.0, %v1245
  %v1278 = vsub.f32 1.0, %v1246
  %v1279 = vsub.f32 1.0, %v1247
  %v1280 = vsub.f32 1.0, %v1248
  %v1281 = vsub.f32 1.0, %v1249
  %v1282 = vsub.f32 1.0, %v1250
  %v1283 = vsub.f32 1.0, %v1251
  %v1284 = vsub.f32 1.0, %v1252
  %v1285 = vsub.f32 1.0, %v1253
  %v1286 = vsub.f32 1.0, %v1254
  %v1287 = vsub.f32 1.0, %v1255
  %v1288 = vsub.f32 1.0, %v1256
  %v1289 = vmul.f32 %v617, %v1257
  %v1290 = vmul.f32 %v618, %v1258
  %v1291 = vmul.f32 %v619, %v1259
  %v1292 = vmul.f32 %v620, %v1260
  %v1293 = vmul.f32 %v621, %v1261
  %v1294 = vmul.f32 %v622, %v1262
  %v1295 = vmul.f32 %v623, %v1263
  %v1296 = vmul.f32 %v624, %v1264
  %v1297 = vmul.f32 %v625, %v1265
  %v1298 = vmul.f32 %v626, %v1266
  %v1299 = vmul.f32 %v627, %v1267
  %v1300 = vmul.f32 %v628, %v1268
  %v1301 = vmul.f32 %v629, %v1269
  %v1302 = vmul.f32 %v630, %v1270
  %v1303 = vmul.f32 %v631, %v1271
  %v1304 = vmul.f32 %v632, %v1272
  %v1305 = vmul.f32 %v633, %v1273
  %v1306 = vmul.f32 %v634, %v1274
  %v1307 = vmul.f32 %v635, %v1275
  %v1308 = vmul.f32 %v636, %v1276
  %v1309 = vmul.f32 %v637, %v1277
  %v1310 = vmul.f32 %v638, %v1278
  %v1311 = vmul.f32 %v639, %v1279
  %v1312 = vmul.f32 %v640, %v1280
  %v1313 = vmul.f32 %v641, %v1281
  %v1314 = vmul.f32 %v642, %v1282
  %v1315 = vmul.f32 %v643, %v1283
  %v1316 = vmul.f32 %v644, %v1284
  %v1317 = vmul.f32 %v645, %v1285
  %v1318 = vmul.f32 %v646, %v1286
  %v1319 = vmul.f32 %v647, %v1287
  %v1320 = vmul.f32 %v648, %v1288
  %v1321 = vadd.f32 %v1289, 1.0
  %v1322 = vadd.f32 %v1290, 1.0
  %v1323 = vadd.f32 %v1291, 1.0
  %v1324 = vadd.f32 %v1292, 1.0
  %v1325 = vadd.f32 %v1293, 1.0
  %v1326 = vadd.f32 %v1294, 1.0
  %v1327 = vadd.f32 %v1295, 1.0
  %v1328 = vadd.f32 %v1296, 1.0
  %v1329 = vadd.f32 %v1297, 1.0
  %v1330 = vadd.f32 %v1298, 1.0
  %v1331 = vadd.f32 %v1299, 1.0
  %v1332 = vadd.f32 %v1300, 1.0
  %v1333 = vadd.f32 %v1301, 1.0
  %v1334 = vadd.f32 %v1302, 1.0
  %v1335 = vadd.f32 %v1303, 1.0
  %v1336 = vadd.f32 %v1304, 1.0
  %v1337 = vadd.f32 %v1305, 1.0
  %v1338 = vadd.f32 %v1306, 1.0
  %v1339 = vadd.f32 %v1307, 1.0
  %v1340 = vadd.f32 %v1308, 1.0
  %v1341 = vadd.f32 %v1309, 1.0
  %v1342 = vadd.f32 %v1310, 1.0
  %v1343 = vadd.f32 %v1311, 1.0
  %v1344 = vadd.f32 %v1312, 1.0
  %v1345 = vadd.f32 %v1313, 1.0
  %v1346 = vadd.f32 %v1314, 1.0
  %v1347 = vadd.f32 %v1315, 1.0
  %v1348 = vadd.f32 %v1316, 1.0
  %v1349 = vadd.f32 %v1317, 1.0
  %v1350 = vadd.f32 %v1318, 1.0
  %v1351 = vadd.f32 %v1319, 1.0
  %v1352 = vadd.f32 %v1320, 1.0
  %v1353 = vmul.f32 %v521, %v1321
  %v1354 = vmul.f32 %v522, %v1322
  %v1355 = vmul.f32 %v523, %v1323
  %v1356 = vmul.f32 %v524, %v1324
  %v1357 = vmul.f32 %v525, %v1325
  %v1358 = vmul.f32 %v526, %v1326
  %v1359 = vmul.f32 %v527, %v1327
  %v1360 = vmul.f32 %v528, %v1328
  %v1361 = vmul.f32 %v529, %v1329
  %v1362 = vmul.f32 %v530, %v1330
  %v1363 = vmul.f32 %v531, %v1331
  %v1364 = vmul.f32 %v532, %v1332
  %v1365 = vmul.f32 %v533, %v1333
  %v1366 = vmul.f32 %v534, %v1334
  %v1367 = vmul.f32 %v535, %v1335
  %v1368 = vmul.f32 %v536, %v1336
  %v1369 = vmul.f32 %v537, %v1337
  %v1370 = vmul.f32 %v538, %v1338
  %v1371 = vmul.f32 %v539, %v1339
  %v1372 = vmul.f32 %v540, %v1340
  %v1373 = vmul.f32 %v541, %v1341
  %v1374 = vmul.f32 %v542, %v1342
  %v1375 = vmul.f32 %v543, %v1343
  %v1376 = vmul.f32 %v544, %v1344
  %v1377 = vmul.f32 %v545, %v1345
  %v1378 = vmul.f32 %v546, %v1346
  %v1379 = vmul.f32 %v547, %v1347
  %v1380 = vmul.f32 %v548, %v1348
  %v1381 = vmul.f32 %v549, %v1349
  %v1382 = vmul.f32 %v550, %v1350
  %v1383 = vmul.f32 %v551, %v1351
  %v1384 = vmul.f32 %v552, %v1352
  %v1385 = vpack.c.bf16 %v1357, %v1353
  %v1386 = vpack.c.bf16 %v1358, %v1354
  %v1387 = vpack.c.bf16 %v1359, %v1355
  %v1388 = vpack.c.bf16 %v1360, %v1356
  %v1389 = vpack.c.bf16 %v1365, %v1361
  %v1390 = vpack.c.bf16 %v1366, %v1362
  %v1391 = vpack.c.bf16 %v1367, %v1363
  %v1392 = vpack.c.bf16 %v1368, %v1364
  %v1393 = vpack.c.bf16 %v1373, %v1369
  %v1394 = vpack.c.bf16 %v1374, %v1370
  %v1395 = vpack.c.bf16 %v1375, %v1371
  %v1396 = vpack.c.bf16 %v1376, %v1372
  %v1397 = vpack.c.bf16 %v1381, %v1377
  %v1398 = vpack.c.bf16 %v1382, %v1378
  %v1399 = vpack.c.bf16 %v1383, %v1379
  %v1400 = vpack.c.bf16 %v1384, %v1380
  %v1401 = vld [vmem:[%s6] sm:$0xf]
  %v1402 = vld [vmem:[%s6 + $0x4] sm:$0xf]
  %v1403 = vld [vmem:[%s6 + $0x8] sm:$0xf]
  %v1404 = vld [vmem:[%s6 + $0xc] sm:$0xf]
  %v1405 = vld [vmem:[%s6 + $0x10] sm:$0xf]
  %v1406 = vld [vmem:[%s6 + $0x14] sm:$0xf]
  %v1407 = vld [vmem:[%s6 + $0x18] sm:$0xf]
  %v1408 = vld [vmem:[%s6 + $0x1c] sm:$0xf]
  %v1409 = vld [vmem:[%s6 + $0x20] sm:$0xf]
  %v1410 = vld [vmem:[%s6 + $0x24] sm:$0xf]
  %v1411 = vld [vmem:[%s6 + $0x28] sm:$0xf]
  %v1412 = vld [vmem:[%s6 + $0x2c] sm:$0xf]
  %v1413 = vld [vmem:[%s6 + $0x30] sm:$0xf]
  %v1414 = vld [vmem:[%s6 + $0x34] sm:$0xf]
  %v1415 = vld [vmem:[%s6 + $0x38] sm:$0xf]
  %v1416 = vld [vmem:[%s6 + $0x3c] sm:$0xf]
  %v1417 = vld [vmem:[%s6 + $0x40] sm:$0xf]
  %v1418 = vld [vmem:[%s6 + $0x44] sm:$0xf]
  %v1419 = vld [vmem:[%s6 + $0x48] sm:$0xf]
  %v1420 = vld [vmem:[%s6 + $0x4c] sm:$0xf]
  %v1421 = vld [vmem:[%s6 + $0x50] sm:$0xf]
  %v1422 = vld [vmem:[%s6 + $0x54] sm:$0xf]
  %v1423 = vld [vmem:[%s6 + $0x58] sm:$0xf]
  %v1424 = vld [vmem:[%s6 + $0x5c] sm:$0xf]
  %v1425 = vld [vmem:[%s6 + $0x60] sm:$0xf]
  %v1426 = vld [vmem:[%s6 + $0x64] sm:$0xf]
  %v1427 = vld [vmem:[%s6 + $0x68] sm:$0xf]
  %v1428 = vld [vmem:[%s6 + $0x6c] sm:$0xf]
  %v1429 = vld [vmem:[%s6 + $0x70] sm:$0xf]
  %v1430 = vld [vmem:[%s6 + $0x74] sm:$0xf]
  %v1431 = vld [vmem:[%s6 + $0x78] sm:$0xf]
  %v1432 = vld [vmem:[%s6 + $0x7c] sm:$0xf]
  %v1433 = vld [vmem:[%s6 + $0x80] sm:$0xf]
  %v1434 = vld [vmem:[%s6 + $0x84] sm:$0xf]
  %v1435 = vld [vmem:[%s6 + $0x88] sm:$0xf]
  %v1436 = vld [vmem:[%s6 + $0x8c] sm:$0xf]
  %v1437 = vld [vmem:[%s6 + $0x90] sm:$0xf]
  %v1438 = vld [vmem:[%s6 + $0x94] sm:$0xf]
  %v1439 = vld [vmem:[%s6 + $0x98] sm:$0xf]
  %v1440 = vld [vmem:[%s6 + $0x9c] sm:$0xf]
  %v1441 = vld [vmem:[%s6 + $0xa0] sm:$0xf]
  %v1442 = vld [vmem:[%s6 + $0xa4] sm:$0xf]
  %v1443 = vld [vmem:[%s6 + $0xa8] sm:$0xf]
  %v1444 = vld [vmem:[%s6 + $0xac] sm:$0xf]
  %v1445 = vld [vmem:[%s6 + $0xb0] sm:$0xf]
  %v1446 = vld [vmem:[%s6 + $0xb4] sm:$0xf]
  %v1447 = vld [vmem:[%s6 + $0xb8] sm:$0xf]
  %v1448 = vld [vmem:[%s6 + $0xbc] sm:$0xf]
  %v1449 = vld [vmem:[%s6 + $0xc0] sm:$0xf]
  %v1450 = vld [vmem:[%s6 + $0xc4] sm:$0xf]
  %v1451 = vld [vmem:[%s6 + $0xc8] sm:$0xf]
  %v1452 = vld [vmem:[%s6 + $0xcc] sm:$0xf]
  %v1453 = vld [vmem:[%s6 + $0xd0] sm:$0xf]
  %v1454 = vld [vmem:[%s6 + $0xd4] sm:$0xf]
  %v1455 = vld [vmem:[%s6 + $0xd8] sm:$0xf]
  %v1456 = vld [vmem:[%s6 + $0xdc] sm:$0xf]
  %v1457 = vld [vmem:[%s6 + $0xe0] sm:$0xf]
  %v1458 = vld [vmem:[%s6 + $0xe4] sm:$0xf]
  %v1459 = vld [vmem:[%s6 + $0xe8] sm:$0xf]
  %v1460 = vld [vmem:[%s6 + $0xec] sm:$0xf]
  %v1461 = vld [vmem:[%s6 + $0xf0] sm:$0xf]
  %v1462 = vld [vmem:[%s6 + $0xf4] sm:$0xf]
  %v1463 = vld [vmem:[%s6 + $0xf8] sm:$0xf]
  %v1464 = vld [vmem:[%s6 + $0xfc] sm:$0xf]
  %v1465 = vld [vmem:[%s7] sm:$0x1]
  %v1467 = vlaneseq
  %v1468 = vshrl.u32 %v1467, 7
  %v1469 = vsub.s32 0, %v1468
  %v1470 = vrot.slane %v1465, %v1469
  %v1536 = vunpack.c.l.b16 %v1401
  %v1537 = vunpack.c.l.b16 %v1402
  %v1538 = vunpack.c.l.b16 %v1403
  %v1539 = vunpack.c.l.b16 %v1404
  %v1540 = vunpack.c.l.b16 %v1405
  %v1541 = vunpack.c.l.b16 %v1406
  %v1542 = vunpack.c.l.b16 %v1407
  %v1543 = vunpack.c.l.b16 %v1408
  %v1544 = vunpack.c.l.b16 %v1409
  %v1545 = vunpack.c.l.b16 %v1410
  %v1546 = vunpack.c.l.b16 %v1411
  %v1547 = vunpack.c.l.b16 %v1412
  %v1548 = vunpack.c.l.b16 %v1413
  %v1549 = vunpack.c.l.b16 %v1414
  %v1550 = vunpack.c.l.b16 %v1415
  %v1551 = vunpack.c.l.b16 %v1416
  %v1552 = vunpack.c.l.b16 %v1417
  %v1553 = vunpack.c.l.b16 %v1418
  %v1554 = vunpack.c.l.b16 %v1419
  %v1555 = vunpack.c.l.b16 %v1420
  %v1556 = vunpack.c.l.b16 %v1421
  %v1557 = vunpack.c.l.b16 %v1422
  %v1558 = vunpack.c.l.b16 %v1423
  %v1559 = vunpack.c.l.b16 %v1424
  %v1560 = vunpack.c.l.b16 %v1425
  %v1561 = vunpack.c.l.b16 %v1426
  %v1562 = vunpack.c.l.b16 %v1427
  %v1563 = vunpack.c.l.b16 %v1428
  %v1564 = vunpack.c.l.b16 %v1429
  %v1565 = vunpack.c.l.b16 %v1430
  %v1566 = vunpack.c.l.b16 %v1431
  %v1567 = vunpack.c.l.b16 %v1432
  %v1568 = vunpack.c.l.b16 %v1433
  %v1569 = vunpack.c.l.b16 %v1434
  %v1570 = vunpack.c.l.b16 %v1435
  %v1571 = vunpack.c.l.b16 %v1436
  %v1572 = vunpack.c.l.b16 %v1437
  %v1573 = vunpack.c.l.b16 %v1438
  %v1574 = vunpack.c.l.b16 %v1439
  %v1575 = vunpack.c.l.b16 %v1440
  %v1576 = vunpack.c.l.b16 %v1441
  %v1577 = vunpack.c.l.b16 %v1442
  %v1578 = vunpack.c.l.b16 %v1443
  %v1579 = vunpack.c.l.b16 %v1444
  %v1580 = vunpack.c.l.b16 %v1445
  %v1581 = vunpack.c.l.b16 %v1446
  %v1582 = vunpack.c.l.b16 %v1447
  %v1583 = vunpack.c.l.b16 %v1448
  %v1584 = vunpack.c.l.b16 %v1449
  %v1585 = vunpack.c.l.b16 %v1450
  %v1586 = vunpack.c.l.b16 %v1451
  %v1587 = vunpack.c.l.b16 %v1452
  %v1588 = vunpack.c.l.b16 %v1453
  %v1589 = vunpack.c.l.b16 %v1454
  %v1590 = vunpack.c.l.b16 %v1455
  %v1591 = vunpack.c.l.b16 %v1456
  %v1592 = vunpack.c.l.b16 %v1457
  %v1593 = vunpack.c.l.b16 %v1458
  %v1594 = vunpack.c.l.b16 %v1459
  %v1595 = vunpack.c.l.b16 %v1460
  %v1596 = vunpack.c.l.b16 %v1461
  %v1597 = vunpack.c.l.b16 %v1462
  %v1598 = vunpack.c.l.b16 %v1463
  %v1599 = vunpack.c.l.b16 %v1464
  %v1600 = vpack.c.b16 %v1537, %v1536
  %v1601 = vpack.c.b16 %v1539, %v1538
  %v1602 = vpack.c.b16 %v1541, %v1540
  %v1603 = vpack.c.b16 %v1543, %v1542
  %v1604 = vpack.c.b16 %v1545, %v1544
  %v1605 = vpack.c.b16 %v1547, %v1546
  %v1606 = vpack.c.b16 %v1549, %v1548
  %v1607 = vpack.c.b16 %v1551, %v1550
  %v1608 = vpack.c.b16 %v1553, %v1552
  %v1609 = vpack.c.b16 %v1555, %v1554
  %v1610 = vpack.c.b16 %v1557, %v1556
  %v1611 = vpack.c.b16 %v1559, %v1558
  %v1612 = vpack.c.b16 %v1561, %v1560
  %v1613 = vpack.c.b16 %v1563, %v1562
  %v1614 = vpack.c.b16 %v1565, %v1564
  %v1615 = vpack.c.b16 %v1567, %v1566
  %v1616 = vpack.c.b16 %v1569, %v1568
  %v1617 = vpack.c.b16 %v1571, %v1570
  %v1618 = vpack.c.b16 %v1573, %v1572
  %v1619 = vpack.c.b16 %v1575, %v1574
  %v1620 = vpack.c.b16 %v1577, %v1576
  %v1621 = vpack.c.b16 %v1579, %v1578
  %v1622 = vpack.c.b16 %v1581, %v1580
  %v1623 = vpack.c.b16 %v1583, %v1582
  %v1624 = vpack.c.b16 %v1585, %v1584
  %v1625 = vpack.c.b16 %v1587, %v1586
  %v1626 = vpack.c.b16 %v1589, %v1588
  %v1627 = vpack.c.b16 %v1591, %v1590
  %v1628 = vpack.c.b16 %v1593, %v1592
  %v1629 = vpack.c.b16 %v1595, %v1594
  %v1630 = vpack.c.b16 %v1597, %v1596
  %v1631 = vpack.c.b16 %v1599, %v1598
  %1664 = vmatprep.subr.bf16.mxu0 0
  %1665 = vmatpush1.bf16.msra.mxu0 %v1600
  %1666 = vmatprep.subr.bf16.mxu0 0
  %1667 = vmatpush1.bf16.msra.mxu0 %v1601
  %1668 = vmatprep.subr.bf16.mxu0 0
  %1669 = vmatpush1.bf16.msra.mxu0 %v1602
  %1670 = vmatprep.subr.bf16.mxu0 0
  %1671 = vmatpush1.bf16.msra.mxu0 %v1603
  %1672 = vmatprep.subr.bf16.mxu0 0
  %1673 = vmatpush1.bf16.msra.mxu0 %v1604
  %1674 = vmatprep.subr.bf16.mxu0 0
  %1675 = vmatpush1.bf16.msra.mxu0 %v1605
  %1676 = vmatprep.subr.bf16.mxu0 0
  %1677 = vmatpush1.bf16.msra.mxu0 %v1606
  %1678 = vmatprep.subr.bf16.mxu0 0
  %1679 = vmatpush1.bf16.msra.mxu0 %v1607
  %1680 = vmatprep.subr.bf16.mxu0 0
  %1681 = vmatpush1.bf16.msra.mxu0 %v1608
  %1682 = vmatprep.subr.bf16.mxu0 0
  %1683 = vmatpush1.bf16.msra.mxu0 %v1609
  %1684 = vmatprep.subr.bf16.mxu0 0
  %1685 = vmatpush1.bf16.msra.mxu0 %v1610
  %1686 = vmatprep.subr.bf16.mxu0 0
  %1687 = vmatpush1.bf16.msra.mxu0 %v1611
  %1688 = vmatprep.subr.bf16.mxu0 0
  %1689 = vmatpush1.bf16.msra.mxu0 %v1612
  %1690 = vmatprep.subr.bf16.mxu0 0
  %1691 = vmatpush1.bf16.msra.mxu0 %v1613
  %1692 = vmatprep.subr.bf16.mxu0 0
  %1693 = vmatpush1.bf16.msra.mxu0 %v1614
  %1694 = vmatprep.subr.bf16.mxu0 0
  %1695 = vmatpush1.bf16.msra.mxu0 %v1615
  %1696 = vmatprep.mubr.bf16.mxu0 %v1386
  %1697 = vmatmul.mubr.bf16.gmra.mrb[0].mxu0 %v1385
  %v1698 = vpop.f32.mrb[0].mxu0
  %v1699 = vadd.f32 %v1470, %v1698
  %v1700 = vpop.f32.mrb[0].mxu0
  %v1701 = vpop.f32.mrb[0].mxu0
  %v1702 = vadd.f32 %v1470, %v1701
  %v1703 = vpop.f32.mrb[0].mxu0
  %1704 = vmatprep.mubr.bf16.mxu0 %v1390
  %1705 = vmatmul.mubr.bf16.gmra.mrb[0].mxu0 %v1389
  %v1706 = vpop.f32.mrb[0].mxu0
  %v1707 = vadd.f32 %v1470, %v1706
  %v1708 = vpop.f32.mrb[0].mxu0
  %v1709 = vpop.f32.mrb[0].mxu0
  %v1710 = vadd.f32 %v1470, %v1709
  %v1711 = vpop.f32.mrb[0].mxu0
  %1712 = vmatprep.mubr.bf16.mxu0 %v1394
  %1713 = vmatmul.mubr.bf16.gmra.mrb[0].mxu0 %v1393
  %v1714 = vpop.f32.mrb[0].mxu0
  %v1715 = vadd.f32 %v1470, %v1714
  %v1716 = vpop.f32.mrb[0].mxu0
  %v1717 = vpop.f32.mrb[0].mxu0
  %v1718 = vadd.f32 %v1470, %v1717
  %v1719 = vpop.f32.mrb[0].mxu0
  %1720 = vmatprep.mubr.bf16.mxu0 %v1398
  %1721 = vmatmul.mubr.bf16.gmra.mrb[0].mxu0 %v1397
  %v1722 = vpop.f32.mrb[0].mxu0
  %v1723 = vadd.f32 %v1470, %v1722
  %v1724 = vpop.f32.mrb[0].mxu0
  %v1725 = vpop.f32.mrb[0].mxu0
  %v1726 = vadd.f32 %v1470, %v1725
  %v1727 = vpop.f32.mrb[0].mxu0
  %1728 = vdwg.mxu0
  %1729 = vmatprep.subr.bf16.mxu0 0
  %1730 = vmatpush1.bf16.msra.mxu0 %v1616
  %1731 = vmatprep.subr.bf16.mxu0 0
  %1732 = vmatpush1.bf16.msra.mxu0 %v1617
  %1733 = vmatprep.subr.bf16.mxu0 0
  %1734 = vmatpush1.bf16.msra.mxu0 %v1618
  %1735 = vmatprep.subr.bf16.mxu0 0
  %1736 = vmatpush1.bf16.msra.mxu0 %v1619
  %1737 = vmatprep.subr.bf16.mxu0 0
  %1738 = vmatpush1.bf16.msra.mxu0 %v1620
  %1739 = vmatprep.subr.bf16.mxu0 0
  %1740 = vmatpush1.bf16.msra.mxu0 %v1621
  %1741 = vmatprep.subr.bf16.mxu0 0
  %1742 = vmatpush1.bf16.msra.mxu0 %v1622
  %1743 = vmatprep.subr.bf16.mxu0 0
  %1744 = vmatpush1.bf16.msra.mxu0 %v1623
  %1745 = vmatprep.subr.bf16.mxu0 0
  %1746 = vmatpush1.bf16.msra.mxu0 %v1624
  %1747 = vmatprep.subr.bf16.mxu0 0
  %1748 = vmatpush1.bf16.msra.mxu0 %v1625
  %1749 = vmatprep.subr.bf16.mxu0 0
  %1750 = vmatpush1.bf16.msra.mxu0 %v1626
  %1751 = vmatprep.subr.bf16.mxu0 0
  %1752 = vmatpush1.bf16.msra.mxu0 %v1627
  %1753 = vmatprep.subr.bf16.mxu0 0
  %1754 = vmatpush1.bf16.msra.mxu0 %v1628
  %1755 = vmatprep.subr.bf16.mxu0 0
  %1756 = vmatpush1.bf16.msra.mxu0 %v1629
  %1757 = vmatprep.subr.bf16.mxu0 0
  %1758 = vmatpush1.bf16.msra.mxu0 %v1630
  %1759 = vmatprep.subr.bf16.mxu0 0
  %1760 = vmatpush1.bf16.msra.mxu0 %v1631
  %1761 = vmatprep.mubr.bf16.mxu0 %v1388
  %1762 = vmatmul.mubr.bf16.gmra.mrb[0].mxu0 %v1387
  %v1763 = vpop.f32.mrb[0].mxu0
  %v1764 = vadd.f32 %v1699, %v1763
  %v1765 = vpop.f32.mrb[0].mxu0
  %v1766 = vpop.f32.mrb[0].mxu0
  %v1767 = vadd.f32 %v1702, %v1766
  %v1768 = vpop.f32.mrb[0].mxu0
  %1769 = vmatprep.mubr.bf16.mxu0 %v1392
  %1770 = vmatmul.mubr.bf16.gmra.mrb[0].mxu0 %v1391
  %v1771 = vpop.f32.mrb[0].mxu0
  %v1772 = vadd.f32 %v1707, %v1771
  %v1773 = vpop.f32.mrb[0].mxu0
  %v1774 = vpop.f32.mrb[0].mxu0
  %v1775 = vadd.f32 %v1710, %v1774
  %v1776 = vpop.f32.mrb[0].mxu0
  %1777 = vmatprep.mubr.bf16.mxu0 %v1396
  %1778 = vmatmul.mubr.bf16.gmra.mrb[0].mxu0 %v1395
  %v1779 = vpop.f32.mrb[0].mxu0
  %v1780 = vadd.f32 %v1715, %v1779
  %v1781 = vpop.f32.mrb[0].mxu0
  %v1782 = vpop.f32.mrb[0].mxu0
  %v1783 = vadd.f32 %v1718, %v1782
  %v1784 = vpop.f32.mrb[0].mxu0
  %1785 = vmatprep.mubr.bf16.mxu0 %v1400
  %1786 = vmatmul.mubr.bf16.gmra.mrb[0].mxu0 %v1399
  %v1787 = vpop.f32.mrb[0].mxu0
  %v1788 = vadd.f32 %v1723, %v1787
  %v1789 = vpop.f32.mrb[0].mxu0
  %v1790 = vpop.f32.mrb[0].mxu0
  %v1791 = vadd.f32 %v1726, %v1790
  %v1792 = vpop.f32.mrb[0].mxu0
  %1793 = vdwg.mxu0
  %v1794 = vld [vmem:[%s1] sm:$0xff]
  %v1795 = vld [vmem:[%s1 + $0x8] sm:$0xff]
  %v1796 = vld [vmem:[%s1 + $0x10] sm:$0xff]
  %v1797 = vld [vmem:[%s1 + $0x18] sm:$0xff]
  %v1798 = vld [vmem:[%s1 + $0x20] sm:$0xff]
  %v1799 = vld [vmem:[%s1 + $0x28] sm:$0xff]
  %v1800 = vld [vmem:[%s1 + $0x30] sm:$0xff]
  %v1801 = vld [vmem:[%s1 + $0x38] sm:$0xff]
  %v1802 = vadd.f32 %v1764, %v1794
  %v1803 = vadd.f32 %v1767, %v1795
  %v1804 = vadd.f32 %v1772, %v1796
  %v1805 = vadd.f32 %v1775, %v1797
  %v1806 = vadd.f32 %v1780, %v1798
  %v1807 = vadd.f32 %v1783, %v1799
  %v1808 = vadd.f32 %v1788, %v1800
  %v1809 = vadd.f32 %v1791, %v1801
  %1810 = vst [vmem:[%s8] sm:$0xff] %v1802
  %1811 = vst [vmem:[%s8 + $0x8] sm:$0xff] %v1803
  %1812 = vst [vmem:[%s8 + $0x10] sm:$0xff] %v1804
  %1813 = vst [vmem:[%s8 + $0x18] sm:$0xff] %v1805
  %1814 = vst [vmem:[%s8 + $0x20] sm:$0xff] %v1806
  %1815 = vst [vmem:[%s8 + $0x28] sm:$0xff] %v1807
  %1816 = vst [vmem:[%s8 + $0x30] sm:$0xff] %v1808
  %1817 = vst [vmem:[%s8 + $0x38] sm:$0xff] %v1809
  // Predicated region
  $region34: #{convnext_stem_forward.10} parent=0 // pred_check
    _
  $region35: #{convnext_stem_forward.10} parent=0 // pred_check_branch
    %1819 = sbr.rel (0) target = $region37
  $region36: #{convnext_stem_forward.10} parent=0 // pred_region
    _
  $region37: #{convnext_stem_forward.10} parent=0 // pred_fallthru
    _
  // Predicated region
  $region38: #{convnext_stem_forward.10} parent=0 // pred_check
    _
  $region39: #{convnext_stem_forward.10} parent=0 // pred_check_branch
    %1821 = sbr.rel (0) target = $region41
  $region40: #{convnext_stem_forward.10} parent=0 // pred_region
    _
  $region41: #{convnext_stem_forward.10} parent=0 // pred_fallthru
    _

</llo_original>
